<compile_context>
chip_gen: v5e
topology: v5e:2x2
jax: 0.10.0
libtpu: 0.0.40
codegen_flags: <defaults>
</compile_context>

<pallas_src>
import functools

import jax
import jax.numpy as jnp
from jax import lax
from jax.experimental import pallas as pl
from jax.experimental.pallas import tpu as pltpu

BN_EPS = 1e-5


def _round_up(x, m):
    return (x + m - 1) // m * m


# --------------------------------------------------------------------------
# Pallas kernels
# --------------------------------------------------------------------------

def _mm_bn_kernel(a_ref, b_ref, s_ref, c_ref, o_ref, acc_ref, *, relu):
    """out = [relu]((A @ B) * scale + bias); K-reduction over grid axis 1."""
    k = pl.program_id(1)

    @pl.when(k == 0)
    def _():
        acc_ref[...] = jnp.zeros_like(acc_ref)

    acc_ref[...] += jnp.dot(a_ref[...], b_ref[...],
                            preferred_element_type=jnp.float32)

    @pl.when(k == pl.num_programs(1) - 1)
    def _():
        y = acc_ref[...] * s_ref[...] + c_ref[...]
        if relu:
            y = jnp.maximum(y, 0.0)
        o_ref[...] = y.astype(o_ref.dtype)


def _mm_bn_res_kernel(a_ref, b_ref, s_ref, c_ref, r_ref, o_ref, acc_ref, *, relu):
    """Same as above, plus a fused residual add before the (optional) ReLU."""
    k = pl.program_id(1)

    @pl.when(k == 0)
    def _():
        acc_ref[...] = jnp.zeros_like(acc_ref)

    acc_ref[...] += jnp.dot(a_ref[...], b_ref[...],
                            preferred_element_type=jnp.float32)

    @pl.when(k == pl.num_programs(1) - 1)
    def _():
        y = acc_ref[...] * s_ref[...] + c_ref[...] + r_ref[...]
        if relu:
            y = jnp.maximum(y, 0.0)
        o_ref[...] = y.astype(o_ref.dtype)


def _conv3x3_kernel(x_ref, w_ref, s_ref, c_ref, o_ref, *, H, W):
    """Direct 3x3 stride-1 conv on one image: 9 shifted row-window matmuls.

    x_ref: (1, (H+2)*(W+2)+2, Cin)  flattened zero-padded image (bf16)
    w_ref: (3, 3, Cin, Cout)        HWIO weights (bf16)
    o_ref: (1, H*(W+2), Cout)       flattened output (2 junk cols/row, sliced off
                                    by the caller)
    """
    WP = W + 2
    L = H * WP
    cout = w_ref.shape[-1]
    acc = jnp.zeros((L, cout), jnp.float32)
    for di in range(3):
        for dj in range(3):
            off = di * WP + dj                     # static offset
            a = x_ref[0, off:off + L, :]           # (L, Cin) bf16 window
            acc = acc + jnp.dot(a, w_ref[di, dj],
                                preferred_element_type=jnp.float32)
    y = acc * s_ref[...] + c_ref[...]
    y = jnp.maximum(y, 0.0)
    o_ref[0] = y.astype(o_ref.dtype)


# --------------------------------------------------------------------------
# Pallas wrappers
# --------------------------------------------------------------------------

def matmul_bn_act(a, b, scale, bias, *, residual=None, relu=True,
                  out_dtype=jnp.float32):
    """[relu]((a @ b) * scale + bias [+ residual]) with bf16 MXU / f32 accum."""
    M, K = a.shape
    K2, N = b.shape
    assert K == K2

    # K tiling: single full-K block when small, else 512-wide reduction tiles.
    if K <= 512:
        tk, K_pad = K, K
    else:
        tk = 512
        K_pad = _round_up(K, tk)
    # M tiling: full-M block when small, else 256-row "parallel" tiles.
    if M <= 256:
        tm, M_pad = M, M
    else:
        tm = 256
        M_pad = _round_up(M, tm)

    a_p = a.astype(jnp.bfloat16)
    if (M_pad, K_pad) != (M, K):
        a_p = jnp.pad(a_p, ((0, M_pad - M), (0, K_pad - K)))
    b_p = b.astype(jnp.bfloat16)
    if K_pad != K:
        b_p = jnp.pad(b_p, ((0, K_pad - K), (0, 0)))
    s2 = scale.reshape(1, N).astype(jnp.float32)
    c2 = bias.reshape(1, N).astype(jnp.float32)

    in_specs = [
        pl.BlockSpec((tm, tk), lambda i, k: (i, k)),
        pl.BlockSpec((tk, N), lambda i, k: (k, 0)),
        pl.BlockSpec((1, N), lambda i, k: (0, 0)),
        pl.BlockSpec((1, N), lambda i, k: (0, 0)),
    ]
    args = [a_p, b_p, s2, c2]
    if residual is not None:
        r_p = residual.astype(jnp.bfloat16)
        if M_pad != M:
            r_p = jnp.pad(r_p, ((0, M_pad - M), (0, 0)))
        in_specs.append(pl.BlockSpec((tm, N), lambda i, k: (i, 0)))
        args.append(r_p)
        kernel = functools.partial(_mm_bn_res_kernel, relu=relu)
    else:
        kernel = functools.partial(_mm_bn_kernel, relu=relu)

    out = pl.pallas_call(
        kernel,
        out_shape=jax.ShapeDtypeStruct((M_pad, N), out_dtype),
        grid_spec=pltpu.PrefetchScalarGridSpec(
            num_scalar_prefetch=0,
            grid=(M_pad // tm, K_pad // tk),
            in_specs=in_specs,
            out_specs=pl.BlockSpec((tm, N), lambda i, k: (i, 0)),
            scratch_shapes=[pltpu.VMEM((tm, N), jnp.float32)],
        ),
        compiler_params=pltpu.CompilerParams(
            dimension_semantics=("parallel", "arbitrary")),
    )(*args)
    if M_pad != M:
        out = out[:M]
    return out


def conv1x1_bn(x, w2d, scale, bias, *, stride=1, relu=True, residual=None,
               out_dtype=jnp.float32):
    """1x1 conv (NHWC) + folded BN (+residual)(+ReLU) via the fused matmul."""
    nb, _, _, cin = x.shape
    cout = w2d.shape[-1]
    if stride != 1:
        x = x[:, ::stride, ::stride, :]
    oh, ow = x.shape[1], x.shape[2]
    a = x.reshape(nb * oh * ow, cin)
    r = residual.reshape(nb * oh * ow, cout) if residual is not None else None
    y = matmul_bn_act(a, w2d, scale, bias, residual=r, relu=relu,
                      out_dtype=out_dtype)
    return y.reshape(nb, oh, ow, cout)


def conv3x3_bn_relu(x, w, scale, bias, *, out_dtype=jnp.float32):
    """3x3 stride-1 pad-1 conv (NHWC) + folded BN + ReLU, no HBM im2col."""
    nb, H, W, cin = x.shape
    cout = w.shape[-1]
    WP = W + 2
    L = H * WP                      # rows produced per image (2 junk cols / row)
    NR = (H + 2) * WP + 2           # flattened padded rows (+2 tail for last tap)

    xp = jnp.pad(x.astype(jnp.bfloat16), ((0, 0), (1, 1), (1, 1), (0, 0)))
    xf = xp.reshape(nb, (H + 2) * WP, cin)
    xf = jnp.pad(xf, ((0, 0), (0, 2), (0, 0)))

    out = pl.pallas_call(
        functools.partial(_conv3x3_kernel, H=H, W=W),
        out_shape=jax.ShapeDtypeStruct((nb, L, cout), out_dtype),
        grid_spec=pltpu.PrefetchScalarGridSpec(
            num_scalar_prefetch=0,
            grid=(nb,),
            in_specs=[
                pl.BlockSpec((1, NR, cin), lambda n: (n, 0, 0)),
                pl.BlockSpec((3, 3, cin, cout), lambda n: (0, 0, 0, 0)),
                pl.BlockSpec((1, cout), lambda n: (0, 0)),
                pl.BlockSpec((1, cout), lambda n: (0, 0)),
            ],
            out_specs=pl.BlockSpec((1, L, cout), lambda n: (n, 0, 0)),
        ),
        compiler_params=pltpu.CompilerParams(dimension_semantics=("parallel",)),
    )(xf, w.astype(jnp.bfloat16),
      scale.reshape(1, cout).astype(jnp.float32),
      bias.reshape(1, cout).astype(jnp.float32))

    out = out.reshape(nb, H, WP, cout)[:, :, :W, :]   # drop the 2 junk columns
    return out


# --------------------------------------------------------------------------
# Parameters (deterministic synthetic init), forward pass, pure-JAX reference
# --------------------------------------------------------------------------

def _fold_bn(bn):
    scale = bn["gamma"] / jnp.sqrt(bn["var"] + BN_EPS)
    bias = bn["beta"] - bn["mean"] * scale
    return scale, bias


def init_bottleneck_params(key, in_planes, out_planes, stride, mul=4):
    keys = jax.random.split(key, 8)

    def conv_w(k, kh, kw, cin, cout):
        std = (2.0 / (kh * kw * cin)) ** 0.5
        return std * jax.random.normal(k, (kh, kw, cin, cout), jnp.float32)

    def bn_p(k, c):
        k1, k2, k3, k4 = jax.random.split(k, 4)
        return dict(
            gamma=1.0 + 0.1 * jax.random.normal(k1, (c,), jnp.float32),
            beta=0.1 * jax.random.normal(k2, (c,), jnp.float32),
            mean=0.1 * jax.random.normal(k3, (c,), jnp.float32),
            var=jax.random.uniform(k4, (c,), jnp.float32, 0.5, 1.5),
        )

    p = dict(stride=stride)
    p["w1"] = conv_w(keys[0], 1, 1, in_planes, out_planes)
    p["bn1"] = bn_p(keys[1], out_planes)
    p["w2"] = conv_w(keys[2], 3, 3, out_planes, out_planes)
    p["bn2"] = bn_p(keys[3], out_planes)
    p["w3"] = conv_w(keys[4], 1, 1, out_planes, out_planes * mul)
    p["bn3"] = bn_p(keys[5], out_planes * mul)
    if stride != 1 or in_planes != out_planes * mul:
        p["ws"] = conv_w(keys[6], 1, 1, in_planes, out_planes * mul)
        p["bns"] = bn_p(keys[7], out_planes * mul)
    return p


def bottleneck_forward(params, x_nchw):
    # NCHW (torch) -> NHWC (channels on the lane dim)
    x = jnp.transpose(x_nchw, (0, 2, 3, 1)).astype(jnp.float32)
    stride = params["stride"]

    s1, b1 = _fold_bn(params["bn1"])
    h = conv1x1_bn(x, params["w1"][0, 0], s1, b1, stride=stride,
                   relu=True, out_dtype=jnp.bfloat16)

    s2, b2 = _fold_bn(params["bn2"])
    h = conv3x3_bn_relu(h, params["w2"], s2, b2, out_dtype=jnp.bfloat16)

    if "ws" in params:
        ss, bs = _fold_bn(params["bns"])
        sc = conv1x1_bn(x, params["ws"][0, 0], ss, bs, stride=stride,
                        relu=False, out_dtype=jnp.bfloat16)
    else:
        sc = x.astype(jnp.bfloat16)

    s3, b3 = _fold_bn(params["bn3"])
    y = conv1x1_bn(h, params["w3"][0, 0], s3, b3, stride=1, relu=True,
                   residual=sc, out_dtype=jnp.float32)
    return jnp.transpose(y, (0, 3, 1, 2))           # back to NCHW


def bottleneck_ref(params, x_nchw):
    """Pure-JAX f32 reference (eval-mode BatchNorm), for correctness checking."""
    x = jnp.transpose(x_nchw, (0, 2, 3, 1)).astype(jnp.float32)
    stride = params["stride"]

    def conv(inp, w, s, pad):
        return lax.conv_general_dilated(
            inp, w, window_strides=(s, s), padding=[(pad, pad), (pad, pad)],
            dimension_numbers=("NHWC", "HWIO", "NHWC"))

    def bn(inp, p):
        return ((inp - p["mean"]) / jnp.sqrt(p["var"] + BN_EPS)
                * p["gamma"] + p["beta"])

    h = jax.nn.relu(bn(conv(x, params["w1"], stride, 0), params["bn1"]))
    h = jax.nn.relu(bn(conv(h, params["w2"], 1, 1), params["bn2"]))
    h = bn(conv(h, params["w3"], 1, 0), params["bn3"])
    sc = (bn(conv(x, params["ws"], stride, 0), params["bns"])
          if "ws" in params else x)
    y = jax.nn.relu(h + sc)
    return jnp.transpose(y, (0, 3, 1, 2))


# --------------------------------------------------------------------------
# Main
# --------------------------------------------------------------------------

if __name__ == "__main__":
    key = jax.random.PRNGKey(0)
    pkey, xkey = jax.random.split(key)

    # BottleNeck(in_planes=64, out_planes=64, stride=1): 64 -> 64 -> 64 -> 256,
    # projection shortcut present (64 != 256). Small spatial size.
    IN_PLANES, OUT_PLANES, STRIDE = 64, 64, 1
    params = init_bottleneck_params(pkey, IN_PLANES, OUT_PLANES, STRIDE)

    x = jax.random.normal(xkey, (2, IN_PLANES, 16, 16), jnp.float32)

    fwd = jax.jit(lambda inp: bottleneck_forward(params, inp))
    out = jax.block_until_ready(fwd(x))

    assert out.shape == (2, 4 * OUT_PLANES, 16, 16), out.shape
    assert bool(jnp.all(jnp.isfinite(out)))
    assert bool(jnp.all(out >= 0.0))                 # final ReLU

    ref = bottleneck_ref(params, x)
    rel_err = float(jnp.max(jnp.abs(out - ref)) / (jnp.max(jnp.abs(ref)) + 1e-6))
    assert rel_err < 0.08, f"mismatch vs reference: rel_err={rel_err}"

    print("KERNEL_OK")
</pallas_src>

<mosaic_0001>
module attributes {stable_mosaic.version = 11 : i64} {
  func.func @_mm_bn_kernel(%arg0: i32, %arg1: i32, %arg2: memref<256x64xbf16, #tpu.memory_space<vmem>>, %arg3: memref<64x64xbf16, #tpu.memory_space<vmem>>, %arg4: memref<1x64xf32, #tpu.memory_space<vmem>>, %arg5: memref<1x64xf32, #tpu.memory_space<vmem>>, %arg6: memref<256x64xbf16, #tpu.memory_space<vmem>>, %arg7: memref<256x64xf32, #tpu.memory_space<vmem>>) attributes {dimension_semantics = [#tpu.dimension_semantics<parallel>, #tpu.dimension_semantics<arbitrary>], iteration_bounds = array<i64: 2, 1>, scalar_prefetch = 0 : i64, scratch_operands = 1 : i64, tpu.core_type = #tpu.core_type<tc>, window_params = [{transform_indices = @transform_0, window_bounds = array<i64: 256, 64>}, {transform_indices = @transform_1, window_bounds = array<i64: 64, 64>}, {pipeline_mode = #tpu.pipeline_mode<synchronous>, transform_indices = @transform_2, window_bounds = array<i64: 1, 64>}, {pipeline_mode = #tpu.pipeline_mode<synchronous>, transform_indices = @transform_3, window_bounds = array<i64: 1, 64>}, {transform_indices = @transform_4, window_bounds = array<i64: 256, 64>}]} {
    %c0_i32 = arith.constant 0 : i32
    %0 = arith.cmpi eq, %arg1, %c0_i32 : i32
    %1 = arith.extui %0 : i1 to i32
    %c0_i32_0 = arith.constant 0 : i32
    %2 = arith.cmpi ne, %1, %c0_i32_0 : i32
    scf.if %2 {
      %cst_10 = arith.constant 0.000000e+00 : f32
      %12 = vector.broadcast %cst_10 : f32 to vector<256x64xf32>
      %c0_11 = arith.constant 0 : index
      %c0_12 = arith.constant 0 : index
      %13 = vector.load %arg7[%c0_11, %c0_12] : memref<256x64xf32, #tpu.memory_space<vmem>>, vector<256x64xf32>
      tpu.vector_store %arg7[%c0_11, %c0_12], %12 {strides = array<i32>} : memref<256x64xf32, #tpu.memory_space<vmem>>, vector<256x64xf32>,
    } else {
    }
    %c0 = arith.constant 0 : index
    %c0_1 = arith.constant 0 : index
    %3 = vector.load %arg7[%c0, %c0_1] : memref<256x64xf32, #tpu.memory_space<vmem>>, vector<256x64xf32>
    %c0_2 = arith.constant 0 : index
    %c0_3 = arith.constant 0 : index
    %4 = vector.load %arg2[%c0_2, %c0_3] : memref<256x64xbf16, #tpu.memory_space<vmem>>, vector<256x64xbf16>
    %c0_4 = arith.constant 0 : index
    %c0_5 = arith.constant 0 : index
    %5 = vector.load %arg3[%c0_4, %c0_5] : memref<64x64xbf16, #tpu.memory_space<vmem>>, vector<64x64xbf16>
    %cst = arith.constant dense<0.000000e+00> : vector<256x64xf32>
    %6 = tpu.matmul %4, %5, %cst {dimension_numbers = #tpu.dot_dimension_numbers<[1], [0], [0], [1], [0, 0, 1, 1], [], []>} : vector<256x64xbf16>, vector<64x64xbf16>, vector<256x64xf32> -> vector<256x64xf32>
    %7 = arith.addf %3, %6 : vector<256x64xf32>
    %c0_6 = arith.constant 0 : index
    %c0_7 = arith.constant 0 : index
    %8 = vector.load %arg7[%c0_6, %c0_7] : memref<256x64xf32, #tpu.memory_space<vmem>>, vector<256x64xf32>
    tpu.vector_store %arg7[%c0_6, %c0_7], %7 {strides = array<i32>} : memref<256x64xf32, #tpu.memory_space<vmem>>, vector<256x64xf32>,
    %c0_i32_8 = arith.constant 0 : i32
    %9 = arith.cmpi eq, %arg1, %c0_i32_8 : i32
    %10 = arith.extui %9 : i1 to i32
    %c0_i32_9 = arith.constant 0 : i32
    %11 = arith.cmpi ne, %10, %c0_i32_9 : i32
    scf.if %11 {
      %c0_10 = arith.constant 0 : index
      %c0_11 = arith.constant 0 : index
      %12 = vector.load %arg7[%c0_10, %c0_11] : memref<256x64xf32, #tpu.memory_space<vmem>>, vector<256x64xf32>
      %c0_12 = arith.constant 0 : index
      %c0_13 = arith.constant 0 : index
      %13 = vector.load %arg4[%c0_12, %c0_13] : memref<1x64xf32, #tpu.memory_space<vmem>>, vector<1x64xf32>
      %14 = vector.broadcast %13 : vector<1x64xf32> to vector<256x64xf32>
      %15 = arith.mulf %12, %14 : vector<256x64xf32>
      %c0_14 = arith.constant 0 : index
      %c0_15 = arith.constant 0 : index
      %16 = vector.load %arg5[%c0_14, %c0_15] : memref<1x64xf32, #tpu.memory_space<vmem>>, vector<1x64xf32>
      %17 = vector.broadcast %16 : vector<1x64xf32> to vector<256x64xf32>
      %18 = arith.addf %15, %17 : vector<256x64xf32>
      %cst_16 = arith.constant 0.000000e+00 : f32
      %19 = vector.broadcast %cst_16 : f32 to vector<256x64xf32>
      %20 = arith.maximumf %18, %19 : vector<256x64xf32>
      %21 = arith.truncf %20 : vector<256x64xf32> to vector<256x64xbf16>
      %c0_17 = arith.constant 0 : index
      %c0_18 = arith.constant 0 : index
      %22 = vector.load %arg6[%c0_17, %c0_18] : memref<256x64xbf16, #tpu.memory_space<vmem>>, vector<256x64xbf16>
      tpu.vector_store %arg6[%c0_17, %c0_18], %21 {strides = array<i32>} : memref<256x64xbf16, #tpu.memory_space<vmem>>, vector<256x64xbf16>,
    } else {
    }
    return
  }
  func.func @transform_0(%arg0: i32, %arg1: i32) -> (i32, i32) {
    %c0_i32 = arith.constant 0 : i32
    return %arg0, %arg1 : i32, i32
  }
  func.func @transform_1(%arg0: i32, %arg1: i32) -> (i32, i32) {
    %c0_i32 = arith.constant 0 : i32
    %c0_i32_0 = arith.constant 0 : i32
    return %arg1, %c0_i32 : i32, i32
  }
  func.func @transform_2(%arg0: i32, %arg1: i32) -> (i32, i32) {
    %c0_i32 = arith.constant 0 : i32
    %c0_i32_0 = arith.constant 0 : i32
    %c0_i32_1 = arith.constant 0 : i32
    return %c0_i32, %c0_i32_0 : i32, i32
  }
  func.func @transform_3(%arg0: i32, %arg1: i32) -> (i32, i32) {
    %c0_i32 = arith.constant 0 : i32
    %c0_i32_0 = arith.constant 0 : i32
    %c0_i32_1 = arith.constant 0 : i32
    return %c0_i32, %c0_i32_0 : i32, i32
  }
  func.func @transform_4(%arg0: i32, %arg1: i32) -> (i32, i32) {
    %c0_i32 = arith.constant 0 : i32
    %c0_i32_0 = arith.constant 0 : i32
    return %arg0, %c0_i32 : i32, i32
  }
}

module attributes {stable_mosaic.version = 11 : i64} {
  func.func @_conv3x3_kernel(%arg0: i32, %arg1: memref<1x326x64xbf16, #tpu.memory_space<vmem>>, %arg2: memref<3x3x64x64xbf16, #tpu.memory_space<vmem>>, %arg3: memref<1x64xf32, #tpu.memory_space<vmem>>, %arg4: memref<1x64xf32, #tpu.memory_space<vmem>>, %arg5: memref<1x288x64xbf16, #tpu.memory_space<vmem>>) attributes {dimension_semantics = [#tpu.dimension_semantics<parallel>], iteration_bounds = array<i64: 2>, scalar_prefetch = 0 : i64, scratch_operands = 0 : i64, tpu.core_type = #tpu.core_type<tc>, window_params = [{transform_indices = @transform_0, window_bounds = array<i64: 1, 326, 64>}, {pipeline_mode = #tpu.pipeline_mode<synchronous>, transform_indices = @transform_1, window_bounds = array<i64: 3, 3, 64, 64>}, {pipeline_mode = #tpu.pipeline_mode<synchronous>, transform_indices = @transform_2, window_bounds = array<i64: 1, 64>}, {pipeline_mode = #tpu.pipeline_mode<synchronous>, transform_indices = @transform_3, window_bounds = array<i64: 1, 64>}, {transform_indices = @transform_4, window_bounds = array<i64: 1, 288, 64>}]} {
    %cst = arith.constant 0.000000e+00 : f32
    %0 = vector.broadcast %cst : f32 to vector<288x64xf32>
    %c0 = arith.constant 0 : index
    %c0_0 = arith.constant 0 : index
    %c0_1 = arith.constant 0 : index
    %1 = vector.load %arg1[%c0, %c0_0, %c0_1] : memref<1x326x64xbf16, #tpu.memory_space<vmem>>, vector<1x288x64xbf16>
    %2 = vector.shape_cast %1 : vector<1x288x64xbf16> to vector<288x64xbf16>
    %c0_2 = arith.constant 0 : index
    %c0_3 = arith.constant 0 : index
    %c0_4 = arith.constant 0 : index
    %c0_5 = arith.constant 0 : index
    %3 = vector.load %arg2[%c0_2, %c0_3, %c0_4, %c0_5] : memref<3x3x64x64xbf16, #tpu.memory_space<vmem>>, vector<1x1x64x64xbf16>
    %4 = vector.shape_cast %3 : vector<1x1x64x64xbf16> to vector<64x64xbf16>
    %cst_6 = arith.constant dense<0.000000e+00> : vector<288x64xf32>
    %5 = tpu.matmul %2, %4, %cst_6 {dimension_numbers = #tpu.dot_dimension_numbers<[1], [0], [0], [1], [0, 0, 1, 1], [], []>} : vector<288x64xbf16>, vector<64x64xbf16>, vector<288x64xf32> -> vector<288x64xf32>
    %6 = arith.addf %0, %5 : vector<288x64xf32>
    %c0_7 = arith.constant 0 : index
    %c1 = arith.constant 1 : index
    %c0_8 = arith.constant 0 : index
    %7 = vector.load %arg1[%c0_7, %c1, %c0_8] : memref<1x326x64xbf16, #tpu.memory_space<vmem>>, vector<1x288x64xbf16>
    %8 = vector.shape_cast %7 : vector<1x288x64xbf16> to vector<288x64xbf16>
    %c0_9 = arith.constant 0 : index
    %c1_10 = arith.constant 1 : index
    %c0_11 = arith.constant 0 : index
    %c0_12 = arith.constant 0 : index
    %9 = vector.load %arg2[%c0_9, %c1_10, %c0_11, %c0_12] : memref<3x3x64x64xbf16, #tpu.memory_space<vmem>>, vector<1x1x64x64xbf16>
    %10 = vector.shape_cast %9 : vector<1x1x64x64xbf16> to vector<64x64xbf16>
    %cst_13 = arith.constant dense<0.000000e+00> : vector<288x64xf32>
    %11 = tpu.matmul %8, %10, %cst_13 {dimension_numbers = #tpu.dot_dimension_numbers<[1], [0], [0], [1], [0, 0, 1, 1], [], []>} : vector<288x64xbf16>, vector<64x64xbf16>, vector<288x64xf32> -> vector<288x64xf32>
    %12 = arith.addf %6, %11 : vector<288x64xf32>
    %c0_14 = arith.constant 0 : index
    %c2 = arith.constant 2 : index
    %c0_15 = arith.constant 0 : index
    %13 = vector.load %arg1[%c0_14, %c2, %c0_15] : memref<1x326x64xbf16, #tpu.memory_space<vmem>>, vector<1x288x64xbf16>
    %14 = vector.shape_cast %13 : vector<1x288x64xbf16> to vector<288x64xbf16>
    %c0_16 = arith.constant 0 : index
    %c2_17 = arith.constant 2 : index
    %c0_18 = arith.constant 0 : index
    %c0_19 = arith.constant 0 : index
    %15 = vector.load %arg2[%c0_16, %c2_17, %c0_18, %c0_19] : memref<3x3x64x64xbf16, #tpu.memory_space<vmem>>, vector<1x1x64x64xbf16>
    %16 = vector.shape_cast %15 : vector<1x1x64x64xbf16> to vector<64x64xbf16>
    %cst_20 = arith.constant dense<0.000000e+00> : vector<288x64xf32>
    %17 = tpu.matmul %14, %16, %cst_20 {dimension_numbers = #tpu.dot_dimension_numbers<[1], [0], [0], [1], [0, 0, 1, 1], [], []>} : vector<288x64xbf16>, vector<64x64xbf16>, vector<288x64xf32> -> vector<288x64xf32>
    %18 = arith.addf %12, %17 : vector<288x64xf32>
    %c0_21 = arith.constant 0 : index
    %c18 = arith.constant 18 : index
    %c0_22 = arith.constant 0 : index
    %19 = vector.load %arg1[%c0_21, %c18, %c0_22] : memref<1x326x64xbf16, #tpu.memory_space<vmem>>, vector<1x288x64xbf16>
    %20 = vector.shape_cast %19 : vector<1x288x64xbf16> to vector<288x64xbf16>
    %c1_23 = arith.constant 1 : index
    %c0_24 = arith.constant 0 : index
    %c0_25 = arith.constant 0 : index
    %c0_26 = arith.constant 0 : index
    %21 = vector.load %arg2[%c1_23, %c0_24, %c0_25, %c0_26] : memref<3x3x64x64xbf16, #tpu.memory_space<vmem>>, vector<1x1x64x64xbf16>
    %22 = vector.shape_cast %21 : vector<1x1x64x64xbf16> to vector<64x64xbf16>
    %cst_27 = arith.constant dense<0.000000e+00> : vector<288x64xf32>
    %23 = tpu.matmul %20, %22, %cst_27 {dimension_numbers = #tpu.dot_dimension_numbers<[1], [0], [0], [1], [0, 0, 1, 1], [], []>} : vector<288x64xbf16>, vector<64x64xbf16>, vector<288x64xf32> -> vector<288x64xf32>
    %24 = arith.addf %18, %23 : vector<288x64xf32>
    %c0_28 = arith.constant 0 : index
    %c19 = arith.constant 19 : index
    %c0_29 = arith.constant 0 : index
    %25 = vector.load %arg1[%c0_28, %c19, %c0_29] : memref<1x326x64xbf16, #tpu.memory_space<vmem>>, vector<1x288x64xbf16>
    %26 = vector.shape_cast %25 : vector<1x288x64xbf16> to vector<288x64xbf16>
    %c1_30 = arith.constant 1 : index
    %c1_31 = arith.constant 1 : index
    %c0_32 = arith.constant 0 : index
    %c0_33 = arith.constant 0 : index
    %27 = vector.load %arg2[%c1_30, %c1_31, %c0_32, %c0_33] : memref<3x3x64x64xbf16, #tpu.memory_space<vmem>>, vector<1x1x64x64xbf16>
    %28 = vector.shape_cast %27 : vector<1x1x64x64xbf16> to vector<64x64xbf16>
    %cst_34 = arith.constant dense<0.000000e+00> : vector<288x64xf32>
    %29 = tpu.matmul %26, %28, %cst_34 {dimension_numbers = #tpu.dot_dimension_numbers<[1], [0], [0], [1], [0, 0, 1, 1], [], []>} : vector<288x64xbf16>, vector<64x64xbf16>, vector<288x64xf32> -> vector<288x64xf32>
    %30 = arith.addf %24, %29 : vector<288x64xf32>
    %c0_35 = arith.constant 0 : index
    %c20 = arith.constant 20 : index
    %c0_36 = arith.constant 0 : index
    %31 = vector.load %arg1[%c0_35, %c20, %c0_36] : memref<1x326x64xbf16, #tpu.memory_space<vmem>>, vector<1x288x64xbf16>
    %32 = vector.shape_cast %31 : vector<1x288x64xbf16> to vector<288x64xbf16>
    %c1_37 = arith.constant 1 : index
    %c2_38 = arith.constant 2 : index
    %c0_39 = arith.constant 0 : index
    %c0_40 = arith.constant 0 : index
    %33 = vector.load %arg2[%c1_37, %c2_38, %c0_39, %c0_40] : memref<3x3x64x64xbf16, #tpu.memory_space<vmem>>, vector<1x1x64x64xbf16>
    %34 = vector.shape_cast %33 : vector<1x1x64x64xbf16> to vector<64x64xbf16>
    %cst_41 = arith.constant dense<0.000000e+00> : vector<288x64xf32>
    %35 = tpu.matmul %32, %34, %cst_41 {dimension_numbers = #tpu.dot_dimension_numbers<[1], [0], [0], [1], [0, 0, 1, 1], [], []>} : vector<288x64xbf16>, vector<64x64xbf16>, vector<288x64xf32> -> vector<288x64xf32>
    %36 = arith.addf %30, %35 : vector<288x64xf32>
    %c0_42 = arith.constant 0 : index
    %c36 = arith.constant 36 : index
    %c0_43 = arith.constant 0 : index
    %37 = vector.load %arg1[%c0_42, %c36, %c0_43] : memref<1x326x64xbf16, #tpu.memory_space<vmem>>, vector<1x288x64xbf16>
    %38 = vector.shape_cast %37 : vector<1x288x64xbf16> to vector<288x64xbf16>
    %c2_44 = arith.constant 2 : index
    %c0_45 = arith.constant 0 : index
    %c0_46 = arith.constant 0 : index
    %c0_47 = arith.constant 0 : index
    %39 = vector.load %arg2[%c2_44, %c0_45, %c0_46, %c0_47] : memref<3x3x64x64xbf16, #tpu.memory_space<vmem>>, vector<1x1x64x64xbf16>
    %40 = vector.shape_cast %39 : vector<1x1x64x64xbf16> to vector<64x64xbf16>
    %cst_48 = arith.constant dense<0.000000e+00> : vector<288x64xf32>
    %41 = tpu.matmul %38, %40, %cst_48 {dimension_numbers = #tpu.dot_dimension_numbers<[1], [0], [0], [1], [0, 0, 1, 1], [], []>} : vector<288x64xbf16>, vector<64x64xbf16>, vector<288x64xf32> -> vector<288x64xf32>
    %42 = arith.addf %36, %41 : vector<288x64xf32>
    %c0_49 = arith.constant 0 : index
    %c37 = arith.constant 37 : index
    %c0_50 = arith.constant 0 : index
    %43 = vector.load %arg1[%c0_49, %c37, %c0_50] : memref<1x326x64xbf16, #tpu.memory_space<vmem>>, vector<1x288x64xbf16>
    %44 = vector.shape_cast %43 : vector<1x288x64xbf16> to vector<288x64xbf16>
    %c2_51 = arith.constant 2 : index
    %c1_52 = arith.constant 1 : index
    %c0_53 = arith.constant 0 : index
    %c0_54 = arith.constant 0 : index
    %45 = vector.load %arg2[%c2_51, %c1_52, %c0_53, %c0_54] : memref<3x3x64x64xbf16, #tpu.memory_space<vmem>>, vector<1x1x64x64xbf16>
    %46 = vector.shape_cast %45 : vector<1x1x64x64xbf16> to vector<64x64xbf16>
    %cst_55 = arith.constant dense<0.000000e+00> : vector<288x64xf32>
    %47 = tpu.matmul %44, %46, %cst_55 {dimension_numbers = #tpu.dot_dimension_numbers<[1], [0], [0], [1], [0, 0, 1, 1], [], []>} : vector<288x64xbf16>, vector<64x64xbf16>, vector<288x64xf32> -> vector<288x64xf32>
    %48 = arith.addf %42, %47 : vector<288x64xf32>
    %c0_56 = arith.constant 0 : index
    %c38 = arith.constant 38 : index
    %c0_57 = arith.constant 0 : index
    %49 = vector.load %arg1[%c0_56, %c38, %c0_57] : memref<1x326x64xbf16, #tpu.memory_space<vmem>>, vector<1x288x64xbf16>
    %50 = vector.shape_cast %49 : vector<1x288x64xbf16> to vector<288x64xbf16>
    %c2_58 = arith.constant 2 : index
    %c2_59 = arith.constant 2 : index
    %c0_60 = arith.constant 0 : index
    %c0_61 = arith.constant 0 : index
    %51 = vector.load %arg2[%c2_58, %c2_59, %c0_60, %c0_61] : memref<3x3x64x64xbf16, #tpu.memory_space<vmem>>, vector<1x1x64x64xbf16>
    %52 = vector.shape_cast %51 : vector<1x1x64x64xbf16> to vector<64x64xbf16>
    %cst_62 = arith.constant dense<0.000000e+00> : vector<288x64xf32>
    %53 = tpu.matmul %50, %52, %cst_62 {dimension_numbers = #tpu.dot_dimension_numbers<[1], [0], [0], [1], [0, 0, 1, 1], [], []>} : vector<288x64xbf16>, vector<64x64xbf16>, vector<288x64xf32> -> vector<288x64xf32>
    %54 = arith.addf %48, %53 : vector<288x64xf32>
    %c0_63 = arith.constant 0 : index
    %c0_64 = arith.constant 0 : index
    %55 = vector.load %arg3[%c0_63, %c0_64] : memref<1x64xf32, #tpu.memory_space<vmem>>, vector<1x64xf32>
    %56 = vector.broadcast %55 : vector<1x64xf32> to vector<288x64xf32>
    %57 = arith.mulf %54, %56 : vector<288x64xf32>
    %c0_65 = arith.constant 0 : index
    %c0_66 = arith.constant 0 : index
    %58 = vector.load %arg4[%c0_65, %c0_66] : memref<1x64xf32, #tpu.memory_space<vmem>>, vector<1x64xf32>
    %59 = vector.broadcast %58 : vector<1x64xf32> to vector<288x64xf32>
    %60 = arith.addf %57, %59 : vector<288x64xf32>
    %cst_67 = arith.constant 0.000000e+00 : f32
    %61 = vector.broadcast %cst_67 : f32 to vector<288x64xf32>
    %62 = arith.maximumf %60, %61 : vector<288x64xf32>
    %63 = arith.truncf %62 : vector<288x64xf32> to vector<288x64xbf16>
    %c0_68 = arith.constant 0 : index
    %c0_69 = arith.constant 0 : index
    %c0_70 = arith.constant 0 : index
    %64 = vector.load %arg5[%c0_68, %c0_69, %c0_70] : memref<1x288x64xbf16, #tpu.memory_space<vmem>>, vector<1x288x64xbf16>
    %65 = vector.shape_cast %64 : vector<1x288x64xbf16> to vector<288x64xbf16>
    %66 = vector.shape_cast %63 : vector<288x64xbf16> to vector<1x288x64xbf16>
    tpu.vector_store %arg5[%c0_68, %c0_69, %c0_70], %66 {strides = array<i32>} : memref<1x288x64xbf16, #tpu.memory_space<vmem>>, vector<1x288x64xbf16>,
    return
  }
  func.func @transform_0(%arg0: i32) -> (i32, i32, i32) {
    %c0_i32 = arith.constant 0 : i32
    %c0_i32_0 = arith.constant 0 : i32
    %c0_i32_1 = arith.constant 0 : i32
    return %arg0, %c0_i32, %c0_i32_0 : i32, i32, i32
  }
  func.func @transform_1(%arg0: i32) -> (i32, i32, i32, i32) {
    %c0_i32 = arith.constant 0 : i32
    %c0_i32_0 = arith.constant 0 : i32
    %c0_i32_1 = arith.constant 0 : i32
    %c0_i32_2 = arith.constant 0 : i32
    %c0_i32_3 = arith.constant 0 : i32
    return %c0_i32, %c0_i32_0, %c0_i32_1, %c0_i32_2 : i32, i32, i32, i32
  }
  func.func @transform_2(%arg0: i32) -> (i32, i32) {
    %c0_i32 = arith.constant 0 : i32
    %c0_i32_0 = arith.constant 0 : i32
    %c0_i32_1 = arith.constant 0 : i32
    return %c0_i32, %c0_i32_0 : i32, i32
  }
  func.func @transform_3(%arg0: i32) -> (i32, i32) {
    %c0_i32 = arith.constant 0 : i32
    %c0_i32_0 = arith.constant 0 : i32
    %c0_i32_1 = arith.constant 0 : i32
    return %c0_i32, %c0_i32_0 : i32, i32
  }
  func.func @transform_4(%arg0: i32) -> (i32, i32, i32) {
    %c0_i32 = arith.constant 0 : i32
    %c0_i32_0 = arith.constant 0 : i32
    %c0_i32_1 = arith.constant 0 : i32
    return %arg0, %c0_i32, %c0_i32_0 : i32, i32, i32
  }
}

module attributes {stable_mosaic.version = 11 : i64} {
  func.func @_mm_bn_kernel(%arg0: i32, %arg1: i32, %arg2: memref<256x64xbf16, #tpu.memory_space<vmem>>, %arg3: memref<64x256xbf16, #tpu.memory_space<vmem>>, %arg4: memref<1x256xf32, #tpu.memory_space<vmem>>, %arg5: memref<1x256xf32, #tpu.memory_space<vmem>>, %arg6: memref<256x256xbf16, #tpu.memory_space<vmem>>, %arg7: memref<256x256xf32, #tpu.memory_space<vmem>>) attributes {dimension_semantics = [#tpu.dimension_semantics<parallel>, #tpu.dimension_semantics<arbitrary>], iteration_bounds = array<i64: 2, 1>, scalar_prefetch = 0 : i64, scratch_operands = 1 : i64, tpu.core_type = #tpu.core_type<tc>, window_params = [{transform_indices = @transform_0, window_bounds = array<i64: 256, 64>}, {transform_indices = @transform_1, window_bounds = array<i64: 64, 256>}, {pipeline_mode = #tpu.pipeline_mode<synchronous>, transform_indices = @transform_2, window_bounds = array<i64: 1, 256>}, {pipeline_mode = #tpu.pipeline_mode<synchronous>, transform_indices = @transform_3, window_bounds = array<i64: 1, 256>}, {transform_indices = @transform_4, window_bounds = array<i64: 256, 256>}]} {
    %c0_i32 = arith.constant 0 : i32
    %0 = arith.cmpi eq, %arg1, %c0_i32 : i32
    %1 = arith.extui %0 : i1 to i32
    %c0_i32_0 = arith.constant 0 : i32
    %2 = arith.cmpi ne, %1, %c0_i32_0 : i32
    scf.if %2 {
      %cst_10 = arith.constant 0.000000e+00 : f32
      %12 = vector.broadcast %cst_10 : f32 to vector<256x256xf32>
      %c0_11 = arith.constant 0 : index
      %c0_12 = arith.constant 0 : index
      %13 = vector.load %arg7[%c0_11, %c0_12] : memref<256x256xf32, #tpu.memory_space<vmem>>, vector<256x256xf32>
      tpu.vector_store %arg7[%c0_11, %c0_12], %12 {strides = array<i32>} : memref<256x256xf32, #tpu.memory_space<vmem>>, vector<256x256xf32>,
    } else {
    }
    %c0 = arith.constant 0 : index
    %c0_1 = arith.constant 0 : index
    %3 = vector.load %arg7[%c0, %c0_1] : memref<256x256xf32, #tpu.memory_space<vmem>>, vector<256x256xf32>
    %c0_2 = arith.constant 0 : index
    %c0_3 = arith.constant 0 : index
    %4 = vector.load %arg2[%c0_2, %c0_3] : memref<256x64xbf16, #tpu.memory_space<vmem>>, vector<256x64xbf16>
    %c0_4 = arith.constant 0 : index
    %c0_5 = arith.constant 0 : index
    %5 = vector.load %arg3[%c0_4, %c0_5] : memref<64x256xbf16, #tpu.memory_space<vmem>>, vector<64x256xbf16>
    %cst = arith.constant dense<0.000000e+00> : vector<256x256xf32>
    %6 = tpu.matmul %4, %5, %cst {dimension_numbers = #tpu.dot_dimension_numbers<[1], [0], [0], [1], [0, 0, 1, 1], [], []>} : vector<256x64xbf16>, vector<64x256xbf16>, vector<256x256xf32> -> vector<256x256xf32>
    %7 = arith.addf %3, %6 : vector<256x256xf32>
    %c0_6 = arith.constant 0 : index
    %c0_7 = arith.constant 0 : index
    %8 = vector.load %arg7[%c0_6, %c0_7] : memref<256x256xf32, #tpu.memory_space<vmem>>, vector<256x256xf32>
    tpu.vector_store %arg7[%c0_6, %c0_7], %7 {strides = array<i32>} : memref<256x256xf32, #tpu.memory_space<vmem>>, vector<256x256xf32>,
    %c0_i32_8 = arith.constant 0 : i32
    %9 = arith.cmpi eq, %arg1, %c0_i32_8 : i32
    %10 = arith.extui %9 : i1 to i32
    %c0_i32_9 = arith.constant 0 : i32
    %11 = arith.cmpi ne, %10, %c0_i32_9 : i32
    scf.if %11 {
      %c0_10 = arith.constant 0 : index
      %c0_11 = arith.constant 0 : index
      %12 = vector.load %arg7[%c0_10, %c0_11] : memref<256x256xf32, #tpu.memory_space<vmem>>, vector<256x256xf32>
      %c0_12 = arith.constant 0 : index
      %c0_13 = arith.constant 0 : index
      %13 = vector.load %arg4[%c0_12, %c0_13] : memref<1x256xf32, #tpu.memory_space<vmem>>, vector<1x256xf32>
      %14 = vector.broadcast %13 : vector<1x256xf32> to vector<256x256xf32>
      %15 = arith.mulf %12, %14 : vector<256x256xf32>
      %c0_14 = arith.constant 0 : index
      %c0_15 = arith.constant 0 : index
      %16 = vector.load %arg5[%c0_14, %c0_15] : memref<1x256xf32, #tpu.memory_space<vmem>>, vector<1x256xf32>
      %17 = vector.broadcast %16 : vector<1x256xf32> to vector<256x256xf32>
      %18 = arith.addf %15, %17 : vector<256x256xf32>
      %19 = arith.truncf %18 : vector<256x256xf32> to vector<256x256xbf16>
      %c0_16 = arith.constant 0 : index
      %c0_17 = arith.constant 0 : index
      %20 = vector.load %arg6[%c0_16, %c0_17] : memref<256x256xbf16, #tpu.memory_space<vmem>>, vector<256x256xbf16>
      tpu.vector_store %arg6[%c0_16, %c0_17], %19 {strides = array<i32>} : memref<256x256xbf16, #tpu.memory_space<vmem>>, vector<256x256xbf16>,
    } else {
    }
    return
  }
  func.func @transform_0(%arg0: i32, %arg1: i32) -> (i32, i32) {
    %c0_i32 = arith.constant 0 : i32
    return %arg0, %arg1 : i32, i32
  }
  func.func @transform_1(%arg0: i32, %arg1: i32) -> (i32, i32) {
    %c0_i32 = arith.constant 0 : i32
    %c0_i32_0 = arith.constant 0 : i32
    return %arg1, %c0_i32 : i32, i32
  }
  func.func @transform_2(%arg0: i32, %arg1: i32) -> (i32, i32) {
    %c0_i32 = arith.constant 0 : i32
    %c0_i32_0 = arith.constant 0 : i32
    %c0_i32_1 = arith.constant 0 : i32
    return %c0_i32, %c0_i32_0 : i32, i32
  }
  func.func @transform_3(%arg0: i32, %arg1: i32) -> (i32, i32) {
    %c0_i32 = arith.constant 0 : i32
    %c0_i32_0 = arith.constant 0 : i32
    %c0_i32_1 = arith.constant 0 : i32
    return %c0_i32, %c0_i32_0 : i32, i32
  }
  func.func @transform_4(%arg0: i32, %arg1: i32) -> (i32, i32) {
    %c0_i32 = arith.constant 0 : i32
    %c0_i32_0 = arith.constant 0 : i32
    return %arg0, %c0_i32 : i32, i32
  }
}

module attributes {stable_mosaic.version = 11 : i64} {
  func.func @_mm_bn_res_kernel(%arg0: i32, %arg1: i32, %arg2: memref<256x64xbf16, #tpu.memory_space<vmem>>, %arg3: memref<64x256xbf16, #tpu.memory_space<vmem>>, %arg4: memref<1x256xf32, #tpu.memory_space<vmem>>, %arg5: memref<1x256xf32, #tpu.memory_space<vmem>>, %arg6: memref<256x256xbf16, #tpu.memory_space<vmem>>, %arg7: memref<256x256xf32, #tpu.memory_space<vmem>>, %arg8: memref<256x256xf32, #tpu.memory_space<vmem>>) attributes {dimension_semantics = [#tpu.dimension_semantics<parallel>, #tpu.dimension_semantics<arbitrary>], iteration_bounds = array<i64: 2, 1>, scalar_prefetch = 0 : i64, scratch_operands = 1 : i64, tpu.core_type = #tpu.core_type<tc>, window_params = [{transform_indices = @transform_0, window_bounds = array<i64: 256, 64>}, {transform_indices = @transform_1, window_bounds = array<i64: 64, 256>}, {pipeline_mode = #tpu.pipeline_mode<synchronous>, transform_indices = @transform_2, window_bounds = array<i64: 1, 256>}, {pipeline_mode = #tpu.pipeline_mode<synchronous>, transform_indices = @transform_3, window_bounds = array<i64: 1, 256>}, {transform_indices = @transform_4, window_bounds = array<i64: 256, 256>}, {transform_indices = @transform_5, window_bounds = array<i64: 256, 256>}]} {
    %c0_i32 = arith.constant 0 : i32
    %0 = arith.cmpi eq, %arg1, %c0_i32 : i32
    %1 = arith.extui %0 : i1 to i32
    %c0_i32_0 = arith.constant 0 : i32
    %2 = arith.cmpi ne, %1, %c0_i32_0 : i32
    scf.if %2 {
      %cst_10 = arith.constant 0.000000e+00 : f32
      %12 = vector.broadcast %cst_10 : f32 to vector<256x256xf32>
      %c0_11 = arith.constant 0 : index
      %c0_12 = arith.constant 0 : index
      %13 = vector.load %arg8[%c0_11, %c0_12] : memref<256x256xf32, #tpu.memory_space<vmem>>, vector<256x256xf32>
      tpu.vector_store %arg8[%c0_11, %c0_12], %12 {strides = array<i32>} : memref<256x256xf32, #tpu.memory_space<vmem>>, vector<256x256xf32>,
    } else {
    }
    %c0 = arith.constant 0 : index
    %c0_1 = arith.constant 0 : index
    %3 = vector.load %arg8[%c0, %c0_1] : memref<256x256xf32, #tpu.memory_space<vmem>>, vector<256x256xf32>
    %c0_2 = arith.constant 0 : index
    %c0_3 = arith.constant 0 : index
    %4 = vector.load %arg2[%c0_2, %c0_3] : memref<256x64xbf16, #tpu.memory_space<vmem>>, vector<256x64xbf16>
    %c0_4 = arith.constant 0 : index
    %c0_5 = arith.constant 0 : index
    %5 = vector.load %arg3[%c0_4, %c0_5] : memref<64x256xbf16, #tpu.memory_space<vmem>>, vector<64x256xbf16>
    %cst = arith.constant dense<0.000000e+00> : vector<256x256xf32>
    %6 = tpu.matmul %4, %5, %cst {dimension_numbers = #tpu.dot_dimension_numbers<[1], [0], [0], [1], [0, 0, 1, 1], [], []>} : vector<256x64xbf16>, vector<64x256xbf16>, vector<256x256xf32> -> vector<256x256xf32>
    %7 = arith.addf %3, %6 : vector<256x256xf32>
    %c0_6 = arith.constant 0 : index
    %c0_7 = arith.constant 0 : index
    %8 = vector.load %arg8[%c0_6, %c0_7] : memref<256x256xf32, #tpu.memory_space<vmem>>, vector<256x256xf32>
    tpu.vector_store %arg8[%c0_6, %c0_7], %7 {strides = array<i32>} : memref<256x256xf32, #tpu.memory_space<vmem>>, vector<256x256xf32>,
    %c0_i32_8 = arith.constant 0 : i32
    %9 = arith.cmpi eq, %arg1, %c0_i32_8 : i32
    %10 = arith.extui %9 : i1 to i32
    %c0_i32_9 = arith.constant 0 : i32
    %11 = arith.cmpi ne, %10, %c0_i32_9 : i32
    scf.if %11 {
      %c0_10 = arith.constant 0 : index
      %c0_11 = arith.constant 0 : index
      %12 = vector.load %arg8[%c0_10, %c0_11] : memref<256x256xf32, #tpu.memory_space<vmem>>, vector<256x256xf32>
      %c0_12 = arith.constant 0 : index
      %c0_13 = arith.constant 0 : index
      %13 = vector.load %arg4[%c0_12, %c0_13] : memref<1x256xf32, #tpu.memory_space<vmem>>, vector<1x256xf32>
      %14 = vector.broadcast %13 : vector<1x256xf32> to vector<256x256xf32>
      %15 = arith.mulf %12, %14 : vector<256x256xf32>
      %c0_14 = arith.constant 0 : index
      %c0_15 = arith.constant 0 : index
      %16 = vector.load %arg5[%c0_14, %c0_15] : memref<1x256xf32, #tpu.memory_space<vmem>>, vector<1x256xf32>
      %17 = vector.broadcast %16 : vector<1x256xf32> to vector<256x256xf32>
      %18 = arith.addf %15, %17 : vector<256x256xf32>
      %c0_16 = arith.constant 0 : index
      %c0_17 = arith.constant 0 : index
      %19 = vector.load %arg6[%c0_16, %c0_17] : memref<256x256xbf16, #tpu.memory_space<vmem>>, vector<256x256xbf16>
      %20 = arith.extf %19 : vector<256x256xbf16> to vector<256x256xf32>
      %21 = arith.addf %18, %20 : vector<256x256xf32>
      %cst_18 = arith.constant 0.000000e+00 : f32
      %22 = vector.broadcast %cst_18 : f32 to vector<256x256xf32>
      %23 = arith.maximumf %21, %22 : vector<256x256xf32>
      %c0_19 = arith.constant 0 : index
      %c0_20 = arith.constant 0 : index
      %24 = vector.load %arg7[%c0_19, %c0_20] : memref<256x256xf32, #tpu.memory_space<vmem>>, vector<256x256xf32>
      tpu.vector_store %arg7[%c0_19, %c0_20], %23 {strides = array<i32>} : memref<256x256xf32, #tpu.memory_space<vmem>>, vector<256x256xf32>,
    } else {
    }
    return
  }
  func.func @transform_0(%arg0: i32, %arg1: i32) -> (i32, i32) {
    %c0_i32 = arith.constant 0 : i32
    return %arg0, %arg1 : i32, i32
  }
  func.func @transform_1(%arg0: i32, %arg1: i32) -> (i32, i32) {
    %c0_i32 = arith.constant 0 : i32
    %c0_i32_0 = arith.constant 0 : i32
    return %arg1, %c0_i32 : i32, i32
  }
  func.func @transform_2(%arg0: i32, %arg1: i32) -> (i32, i32) {
    %c0_i32 = arith.constant 0 : i32
    %c0_i32_0 = arith.constant 0 : i32
    %c0_i32_1 = arith.constant 0 : i32
    return %c0_i32, %c0_i32_0 : i32, i32
  }
  func.func @transform_3(%arg0: i32, %arg1: i32) -> (i32, i32) {
    %c0_i32 = arith.constant 0 : i32
    %c0_i32_0 = arith.constant 0 : i32
    %c0_i32_1 = arith.constant 0 : i32
    return %c0_i32, %c0_i32_0 : i32, i32
  }
  func.func @transform_4(%arg0: i32, %arg1: i32) -> (i32, i32) {
    %c0_i32 = arith.constant 0 : i32
    %c0_i32_0 = arith.constant 0 : i32
    return %arg0, %c0_i32 : i32, i32
  }
  func.func @transform_5(%arg0: i32, %arg1: i32) -> (i32, i32) {
    %c0_i32 = arith.constant 0 : i32
    %c0_i32_0 = arith.constant 0 : i32
    return %arg0, %c0_i32 : i32, i32
  }
}

</mosaic_0001>

<llo_original>
// kernel: _lambda_.4
$region0: #{_lambda_.4}
  #allocation0 [shape = 'u32[]', space=smem, size = 0x4, offset = 0x4, fixed_abs, tag = 'smem constant byte address 0x4 - core index']
  #allocation1 [shape = 'u32[72,128]{1,0:T(1,128)}', space=vmem, size = 0x9000, scoped, tag = 'internal scratch']
  #allocation2 [shape = 'f32[256,64]{1,0:T(8,128)}', space=vmem, size = 0x20000, scoped, tag = 'scratch operand']
  %s0 = inlined_call_operand.vmem [shape: bf16[512,64], index: 0, kind: input, shape index: {}]
  %s1 = inlined_call_operand.vmem [shape: bf16[64,64], index: 1, kind: input, shape index: {}]
  %s2 = inlined_call_operand.vmem [shape: f32[1,64], index: 2, kind: input, shape index: {}]
  %s3 = inlined_call_operand.vmem [shape: f32[1,64], index: 3, kind: input, shape index: {}]
  %s4 = inlined_call_operand.vmem [shape: bf16[512,64], index: 4, kind: output, shape index: {}]
  %s5 = sld [smem:[#allocation0]]
  $region57: #{_lambda_.4} parent=0
    _
  %s7 = ssub.s32 1, %s5
  %s8 = scalar_select 0, %s7, %s5
  loop: start=0, step=1, limit=4
  $region2: #{_lambda_.4} parent=0 // loop_pre_header
    _
  $region3: #{_lambda_.4} parent=0 // loop_header
    %s10 = sphi 0, %s14
    %p11 = scmp.ge.s32.totalorder %s10, 4
    %s17 = sphi 0, %s29
    %s18 = sphi 0, %s25
    %s19 = sphi 0, %s17
    %s20 = sphi 0, %s18
    %s21 = sphi 0, %s19
    %s22 = sphi 0, %s20
    %s34 = sphi 0, %s36
    %s37 = sphi 0, %s34
    %s38 = sphi 0, %s37
    %s54 = sphi 0, %s38
    %s60 = sphi 0, %s62
    %s63 = sphi 0, %s60
    %s64 = sphi 0, %s63
    %s80 = sphi 0, %s64
    %s84 = sphi 0, %s84
    %s86 = sphi 0, %s84
    %s87 = sphi 0, %s86
    %s101 = sphi 0, %s87
    %s105 = sphi 0, %s105
    %s107 = sphi 0, %s105
    %s108 = sphi 0, %s107
    %s122 = sphi 0, %s108
    %s128 = sphi 0, %s130
    %s131 = sphi 0, %s128
    %s132 = sphi 0, %s131
    %s148 = sphi 0, %s132
  $region4: #{_lambda_.4} parent=0 // loop_header_branch
    %13 = sbr.rel (%p11) target = $region8
  $region5: #{_lambda_.4} parent=0 // loop_body
    %s15 = ssub.s32 %s10, 1
    %s16 = ssub.s32 %s10, 2
    %s23 = sadd.s32 1, %s18
    %p24 = scmp.ge.s32.totalorder %s23, 1
    %s25 = scalar_select %p24, 0, %s23
    %s26 = sadd.s32 1, %s17
    %s27 = scalar_select %p24, %s26, %s17
    %p28 = scmp.ge.s32.totalorder %s27, 2
    %s29 = scalar_select %p28, 0, %s27
    %s30 = ssub.s32 %s17, %s29
    %s31 = ssub.s32 %s18, %s25
    %s32 = sor.u32 %s30, %s31
    %p33 = scmp.eq.s32.totalorder %s32, 0
    %s35 = sadd.s32 %s34, 1
    %s36 = scalar_select %p33, %s34, %s35
    %p39 = pneg %p33
    %p40 = scmp.eq.s32.totalorder %s10, 1
    %p41 = por %p39, %p40
    %p42 = scmp.ne.s32.totalorder %s34, %s37
    %p43 = scmp.eq.s32.totalorder %s10, 0
    %p44 = por %p42, %p43
    %p45 = scmp.ne.s32.totalorder %s34, %s37
    %p46 = scmp.eq.s32.totalorder %s15, 1
    %p47 = por %p45, %p46
    %p48 = scmp.ne.s32.totalorder %s37, %s38
    %p49 = scmp.eq.s32.totalorder %s15, 0
    %p50 = por %p48, %p49
    %p51 = scmp.ne.s32.totalorder %s37, %s38
    %p52 = scmp.eq.s32.totalorder %s16, 1
    %p53 = por %p51, %p52
    %p55 = scmp.ne.s32.totalorder %s38, %s54
    %p56 = scmp.eq.s32.totalorder %s16, 0
    %p57 = por %p55, %p56
    %s58 = ssub.s32 %s18, %s25
    %p59 = scmp.eq.s32.totalorder %s58, 0
    %s61 = sadd.s32 %s60, 1
    %s62 = scalar_select %p59, %s60, %s61
    %p65 = pneg %p59
    %p66 = scmp.eq.s32.totalorder %s10, 1
    %p67 = por %p65, %p66
    %p68 = scmp.ne.s32.totalorder %s60, %s63
    %p69 = scmp.eq.s32.totalorder %s10, 0
    %p70 = por %p68, %p69
    %p71 = scmp.ne.s32.totalorder %s60, %s63
    %p72 = scmp.eq.s32.totalorder %s15, 1
    %p73 = por %p71, %p72
    %p74 = scmp.ne.s32.totalorder %s63, %s64
    %p75 = scmp.eq.s32.totalorder %s15, 0
    %p76 = por %p74, %p75
    %p77 = scmp.ne.s32.totalorder %s63, %s64
    %p78 = scmp.eq.s32.totalorder %s16, 1
    %p79 = por %p77, %p78
    %p81 = scmp.ne.s32.totalorder %s64, %s80
    %p82 = scmp.eq.s32.totalorder %s16, 0
    %p83 = por %p81, %p82
    %s85 = sadd.s32 %s84, 1
    %p88 = scmp.eq.s32.totalorder %s10, 1
    %p89 = scmp.ne.s32.totalorder %s84, %s86
    %p90 = scmp.eq.s32.totalorder %s10, 0
    %p91 = por %p89, %p90
    %p92 = scmp.ne.s32.totalorder %s84, %s86
    %p93 = scmp.eq.s32.totalorder %s15, 1
    %p94 = por %p92, %p93
    %p95 = scmp.ne.s32.totalorder %s86, %s87
    %p96 = scmp.eq.s32.totalorder %s15, 0
    %p97 = por %p95, %p96
    %p98 = scmp.ne.s32.totalorder %s86, %s87
    %p99 = scmp.eq.s32.totalorder %s16, 1
    %p100 = por %p98, %p99
    %p102 = scmp.ne.s32.totalorder %s87, %s101
    %p103 = scmp.eq.s32.totalorder %s16, 0
    %p104 = por %p102, %p103
    %s106 = sadd.s32 %s105, 1
    %p109 = scmp.eq.s32.totalorder %s10, 1
    %p110 = scmp.ne.s32.totalorder %s105, %s107
    %p111 = scmp.eq.s32.totalorder %s10, 0
    %p112 = por %p110, %p111
    %p113 = scmp.ne.s32.totalorder %s105, %s107
    %p114 = scmp.eq.s32.totalorder %s15, 1
    %p115 = por %p113, %p114
    %p116 = scmp.ne.s32.totalorder %s107, %s108
    %p117 = scmp.eq.s32.totalorder %s15, 0
    %p118 = por %p116, %p117
    %p119 = scmp.ne.s32.totalorder %s107, %s108
    %p120 = scmp.eq.s32.totalorder %s16, 1
    %p121 = por %p119, %p120
    %p123 = scmp.ne.s32.totalorder %s108, %s122
    %p124 = scmp.eq.s32.totalorder %s16, 0
    %p125 = por %p123, %p124
    %s126 = ssub.s32 %s17, %s29
    %p127 = scmp.eq.s32.totalorder %s126, 0
    %s129 = sadd.s32 %s128, 1
    %s130 = scalar_select %p127, %s128, %s129
    %p133 = pneg %p127
    %p134 = scmp.eq.s32.totalorder %s10, 1
    %p135 = por %p133, %p134
    %p136 = scmp.ne.s32.totalorder %s128, %s131
    %p137 = scmp.eq.s32.totalorder %s10, 0
    %p138 = por %p136, %p137
    %p139 = scmp.ne.s32.totalorder %s128, %s131
    %p140 = scmp.eq.s32.totalorder %s15, 1
    %p141 = por %p139, %p140
    %p142 = scmp.ne.s32.totalorder %s131, %s132
    %p143 = scmp.eq.s32.totalorder %s15, 0
    %p144 = por %p142, %p143
    %p145 = scmp.ne.s32.totalorder %s131, %s132
    %p146 = scmp.eq.s32.totalorder %s16, 1
    %p147 = por %p145, %p146
    %p149 = scmp.ne.s32.totalorder %s132, %s148
    %p150 = scmp.eq.s32.totalorder %s16, 0
    %p151 = por %p149, %p150
    %p152 = scmp.le.s32.totalorder 1, %s10
    %p153 = scmp.lt.s32.totalorder %s10, 3
    %p154 = pnand %p152, %p153
    %p155 = pneg %p154
    // Predicated region
    $region9: #{_lambda_.4} parent=5 // pred_check
      _
    $region10: #{_lambda_.4} parent=5 // pred_check_branch
      %157 = sbr.rel (%p154) target = $region12
    $region11: #{_lambda_.4} parent=5 // pred_region
      %s158 = ssub.s32 %s10, 1
      // Predicated region
      $region13: #{_lambda_.4} parent=11 // pred_check
        %p159 = pneg %p76
      $region14: #{_lambda_.4} parent=11 // pred_check_branch
        %161 = sbr.rel (%p159) target = $region16
      $region15: #{_lambda_.4} parent=11 // pred_region
        %s162 = smul.u32 8, %s20
        %p163 = scmp.lt.s32.totalorder %s162, 7
        %s164 = scalar_select %p163, %s162, 7
        %s165 = smul.addr %s164, 4
        %s166 = scalar_lea.vmem %s1, %s165
        %s167 = smul.u32 8, %s20
      $region16: #{_lambda_.4} parent=11 // pred_fallthru
        _
      // Predicated region
      $region17: #{_lambda_.4} parent=11 // pred_check
        %p168 = pneg %p97
      $region18: #{_lambda_.4} parent=11 // pred_check_branch
        %170 = sbr.rel (%p168) target = $region20
      $region19: #{_lambda_.4} parent=11 // pred_region
        _
      $region20: #{_lambda_.4} parent=11 // pred_fallthru
        _
      // Predicated region
      $region21: #{_lambda_.4} parent=11 // pred_check
        %p171 = pneg %p118
      $region22: #{_lambda_.4} parent=11 // pred_check_branch
        %173 = sbr.rel (%p171) target = $region24
      $region23: #{_lambda_.4} parent=11 // pred_region
        _
      $region24: #{_lambda_.4} parent=11 // pred_fallthru
        _
    $region12: #{_lambda_.4} parent=5 // pred_fallthru
      _
    %p174 = scmp.lt.s32.totalorder %s10, 2
    // Predicated region
    $region25: #{_lambda_.4} parent=5 // pred_check
      %p175 = pneg %p174
    $region26: #{_lambda_.4} parent=5 // pred_check_branch
      %177 = sbr.rel (%p175) target = $region28
    $region27: #{_lambda_.4} parent=5 // pred_region
      // Predicated region
      $region29: #{_lambda_.4} parent=27 // pred_check
        %p178 = pneg %p44
      $region30: #{_lambda_.4} parent=27 // pred_check_branch
        %180 = sbr.rel (%p178) target = $region32
      $region31: #{_lambda_.4} parent=27 // pred_region
        %s181 = smul.u32 32, %s17
        %p182 = scmp.lt.s32.totalorder %s181, 63
        %s183 = scalar_select %p182, %s181, 63
        %p184 = scmp.lt.s32.totalorder %s18, 0
        %s185 = scalar_select %p184, %s18, 0
        %s186 = sadd.s32 %s185, %s183
        %s187 = smul.addr %s186, 4
        %s188 = scalar_lea.vmem %s0, %s187
        %s189 = smul.u32 32, %s17
      $region32: #{_lambda_.4} parent=27 // pred_fallthru
        _
    $region28: #{_lambda_.4} parent=5 // pred_fallthru
      _
    %p190 = scmp.le.s32.totalorder 1, %s10
    %p191 = scmp.lt.s32.totalorder %s10, 3
    %p192 = pnand %p190, %p191
    %p193 = pneg %p192
    // Predicated region
    $region33: #{_lambda_.4} parent=5 // pred_check
      _
    $region34: #{_lambda_.4} parent=5 // pred_check_branch
      %195 = sbr.rel (%p192) target = $region36
    $region35: #{_lambda_.4} parent=5 // pred_region
      %s196 = ssub.s32 %s10, 1
      %s197 = smul.u32 32, %s19
      %p198 = scmp.lt.s32.totalorder %s197, 63
      %s199 = scalar_select %p198, %s197, 63
      %p200 = scmp.lt.s32.totalorder %s20, 0
      %s201 = scalar_select %p200, %s20, 0
      %s202 = sadd.s32 %s201, %s199
      %s203 = smul.addr %s202, 4
      %s204 = scalar_lea.vmem %s0, %s203
      %p205 = pneg %p50
      %p206 = pneg %p47
      %s207 = smul.u32 8, %s20
      %p208 = scmp.lt.s32.totalorder %s207, 7
      %s209 = scalar_select %p208, %s207, 7
      %s210 = smul.addr %s209, 4
      %s211 = scalar_lea.vmem %s1, %s210
      %p212 = pneg %p76
      %p213 = pneg %p73
      %p214 = pneg %p97
      %p215 = pneg %p94
      %p216 = pneg %p118
      %p217 = pneg %p115
      %p218 = pneg %p144
      %p219 = pneg %p141
      %s220 = smul.u32 32, %s19
      %p221 = scmp.lt.s32.totalorder %s220, 63
      %s222 = scalar_select %p221, %s220, 63
      %s223 = smul.addr %s222, 4
      %s224 = scalar_lea.vmem %s4, %s223
      %s225 = smul.u32 32, %s19
      %p226 = scmp.lt.s32.totalorder %s225, 63
      %s227 = scalar_select %p226, %s225, 63
      %p228 = scmp.lt.s32.totalorder %s20, 0
      %s229 = scalar_select %p228, %s20, 0
      %s230 = sadd.s32 %s229, %s227
      %s231 = smul.addr %s230, 4
      %s232 = scalar_lea.vmem %s0, %s231
      %s233 = smul.u32 32, %s19
      %s234 = smul.u32 8, %s20
      %p235 = scmp.lt.s32.totalorder %s234, 7
      %s236 = scalar_select %p235, %s234, 7
      %s237 = smul.addr %s236, 4
      %s238 = scalar_lea.vmem %s1, %s237
      %s239 = smul.u32 8, %s20
      %s240 = smul.u32 32, %s19
      %p241 = scmp.lt.s32.totalorder %s240, 63
      %s242 = scalar_select %p241, %s240, 63
      %s243 = smul.addr %s242, 4
      %s244 = scalar_lea.vmem %s4, %s243
      %s245 = smul.u32 32, %s19
      %p247 = scmp.eq.s32.totalorder %s20, 0
      // Predicated region
      $region37: #{_lambda_.4} parent=35 // pred_check
        %p248 = pneg %p247
      $region38: #{_lambda_.4} parent=35 // pred_check_branch
        %250 = sbr.rel (%p248) target = $region40
      $region39: #{_lambda_.4} parent=35 // pred_region
        %vm251 = vcmask 523264
        %252 = vst.msk [vmem:[#allocation2] sm:$0xff] %vm251, 0.0
        %253 = vst.msk [vmem:[#allocation2 + $0x8] sm:$0xff] %vm251, 0.0
        %254 = vst.msk [vmem:[#allocation2 + $0x10] sm:$0xff] %vm251, 0.0
        %255 = vst.msk [vmem:[#allocation2 + $0x18] sm:$0xff] %vm251, 0.0
        %256 = vst.msk [vmem:[#allocation2 + $0x20] sm:$0xff] %vm251, 0.0
        %257 = vst.msk [vmem:[#allocation2 + $0x28] sm:$0xff] %vm251, 0.0
        %258 = vst.msk [vmem:[#allocation2 + $0x30] sm:$0xff] %vm251, 0.0
        %259 = vst.msk [vmem:[#allocation2 + $0x38] sm:$0xff] %vm251, 0.0
        %260 = vst.msk [vmem:[#allocation2 + $0x40] sm:$0xff] %vm251, 0.0
        %261 = vst.msk [vmem:[#allocation2 + $0x48] sm:$0xff] %vm251, 0.0
        %262 = vst.msk [vmem:[#allocation2 + $0x50] sm:$0xff] %vm251, 0.0
        %263 = vst.msk [vmem:[#allocation2 + $0x58] sm:$0xff] %vm251, 0.0
        %264 = vst.msk [vmem:[#allocation2 + $0x60] sm:$0xff] %vm251, 0.0
        %265 = vst.msk [vmem:[#allocation2 + $0x68] sm:$0xff] %vm251, 0.0
        %266 = vst.msk [vmem:[#allocation2 + $0x70] sm:$0xff] %vm251, 0.0
        %267 = vst.msk [vmem:[#allocation2 + $0x78] sm:$0xff] %vm251, 0.0
        %268 = vst.msk [vmem:[#allocation2 + $0x80] sm:$0xff] %vm251, 0.0
        %269 = vst.msk [vmem:[#allocation2 + $0x88] sm:$0xff] %vm251, 0.0
        %270 = vst.msk [vmem:[#allocation2 + $0x90] sm:$0xff] %vm251, 0.0
        %271 = vst.msk [vmem:[#allocation2 + $0x98] sm:$0xff] %vm251, 0.0
        %272 = vst.msk [vmem:[#allocation2 + $0xa0] sm:$0xff] %vm251, 0.0
        %273 = vst.msk [vmem:[#allocation2 + $0xa8] sm:$0xff] %vm251, 0.0
        %274 = vst.msk [vmem:[#allocation2 + $0xb0] sm:$0xff] %vm251, 0.0
        %275 = vst.msk [vmem:[#allocation2 + $0xb8] sm:$0xff] %vm251, 0.0
        %276 = vst.msk [vmem:[#allocation2 + $0xc0] sm:$0xff] %vm251, 0.0
        %277 = vst.msk [vmem:[#allocation2 + $0xc8] sm:$0xff] %vm251, 0.0
        %278 = vst.msk [vmem:[#allocation2 + $0xd0] sm:$0xff] %vm251, 0.0
        %279 = vst.msk [vmem:[#allocation2 + $0xd8] sm:$0xff] %vm251, 0.0
        %280 = vst.msk [vmem:[#allocation2 + $0xe0] sm:$0xff] %vm251, 0.0
        %281 = vst.msk [vmem:[#allocation2 + $0xe8] sm:$0xff] %vm251, 0.0
        %282 = vst.msk [vmem:[#allocation2 + $0xf0] sm:$0xff] %vm251, 0.0
        %283 = vst.msk [vmem:[#allocation2 + $0xf8] sm:$0xff] %vm251, 0.0
      $region40: #{_lambda_.4} parent=35 // pred_fallthru
        _
      %v284 = vld [vmem:[#allocation2] sm:$0xff]
      %v285 = vld [vmem:[#allocation2 + $0x8] sm:$0xff]
      %v286 = vld [vmem:[#allocation2 + $0x10] sm:$0xff]
      %v287 = vld [vmem:[#allocation2 + $0x18] sm:$0xff]
      %v288 = vld [vmem:[#allocation2 + $0x20] sm:$0xff]
      %v289 = vld [vmem:[#allocation2 + $0x28] sm:$0xff]
      %v290 = vld [vmem:[#allocation2 + $0x30] sm:$0xff]
      %v291 = vld [vmem:[#allocation2 + $0x38] sm:$0xff]
      %v292 = vld [vmem:[#allocation2 + $0x40] sm:$0xff]
      %v293 = vld [vmem:[#allocation2 + $0x48] sm:$0xff]
      %v294 = vld [vmem:[#allocation2 + $0x50] sm:$0xff]
      %v295 = vld [vmem:[#allocation2 + $0x58] sm:$0xff]
      %v296 = vld [vmem:[#allocation2 + $0x60] sm:$0xff]
      %v297 = vld [vmem:[#allocation2 + $0x68] sm:$0xff]
      %v298 = vld [vmem:[#allocation2 + $0x70] sm:$0xff]
      %v299 = vld [vmem:[#allocation2 + $0x78] sm:$0xff]
      %v300 = vld [vmem:[#allocation2 + $0x80] sm:$0xff]
      %v301 = vld [vmem:[#allocation2 + $0x88] sm:$0xff]
      %v302 = vld [vmem:[#allocation2 + $0x90] sm:$0xff]
      %v303 = vld [vmem:[#allocation2 + $0x98] sm:$0xff]
      %v304 = vld [vmem:[#allocation2 + $0xa0] sm:$0xff]
      %v305 = vld [vmem:[#allocation2 + $0xa8] sm:$0xff]
      %v306 = vld [vmem:[#allocation2 + $0xb0] sm:$0xff]
      %v307 = vld [vmem:[#allocation2 + $0xb8] sm:$0xff]
      %v308 = vld [vmem:[#allocation2 + $0xc0] sm:$0xff]
      %v309 = vld [vmem:[#allocation2 + $0xc8] sm:$0xff]
      %v310 = vld [vmem:[#allocation2 + $0xd0] sm:$0xff]
      %v311 = vld [vmem:[#allocation2 + $0xd8] sm:$0xff]
      %v312 = vld [vmem:[#allocation2 + $0xe0] sm:$0xff]
      %v313 = vld [vmem:[#allocation2 + $0xe8] sm:$0xff]
      %v314 = vld [vmem:[#allocation2 + $0xf0] sm:$0xff]
      %v315 = vld [vmem:[#allocation2 + $0xf8] sm:$0xff]
      %v316 = vld [vmem:[%s232] sm:$0xf]
      %v317 = vld [vmem:[%s232 + $0x4] sm:$0xf]
      %v318 = vld [vmem:[%s232 + $0x8] sm:$0xf]
      %v319 = vld [vmem:[%s232 + $0xc] sm:$0xf]
      %v320 = vld [vmem:[%s232 + $0x10] sm:$0xf]
      %v321 = vld [vmem:[%s232 + $0x14] sm:$0xf]
      %v322 = vld [vmem:[%s232 + $0x18] sm:$0xf]
      %v323 = vld [vmem:[%s232 + $0x1c] sm:$0xf]
      %v324 = vld [vmem:[%s232 + $0x20] sm:$0xf]
      %v325 = vld [vmem:[%s232 + $0x24] sm:$0xf]
      %v326 = vld [vmem:[%s232 + $0x28] sm:$0xf]
      %v327 = vld [vmem:[%s232 + $0x2c] sm:$0xf]
      %v328 = vld [vmem:[%s232 + $0x30] sm:$0xf]
      %v329 = vld [vmem:[%s232 + $0x34] sm:$0xf]
      %v330 = vld [vmem:[%s232 + $0x38] sm:$0xf]
      %v331 = vld [vmem:[%s232 + $0x3c] sm:$0xf]
      %v332 = vld [vmem:[%s232 + $0x40] sm:$0xf]
      %v333 = vld [vmem:[%s232 + $0x44] sm:$0xf]
      %v334 = vld [vmem:[%s232 + $0x48] sm:$0xf]
      %v335 = vld [vmem:[%s232 + $0x4c] sm:$0xf]
      %v336 = vld [vmem:[%s232 + $0x50] sm:$0xf]
      %v337 = vld [vmem:[%s232 + $0x54] sm:$0xf]
      %v338 = vld [vmem:[%s232 + $0x58] sm:$0xf]
      %v339 = vld [vmem:[%s232 + $0x5c] sm:$0xf]
      %v340 = vld [vmem:[%s232 + $0x60] sm:$0xf]
      %v341 = vld [vmem:[%s232 + $0x64] sm:$0xf]
      %v342 = vld [vmem:[%s232 + $0x68] sm:$0xf]
      %v343 = vld [vmem:[%s232 + $0x6c] sm:$0xf]
      %v344 = vld [vmem:[%s232 + $0x70] sm:$0xf]
      %v345 = vld [vmem:[%s232 + $0x74] sm:$0xf]
      %v346 = vld [vmem:[%s232 + $0x78] sm:$0xf]
      %v347 = vld [vmem:[%s232 + $0x7c] sm:$0xf]
      %v348 = vld [vmem:[%s238] sm:$0xf]
      %v349 = vld [vmem:[%s238 + $0x4] sm:$0xf]
      %v350 = vld [vmem:[%s238 + $0x8] sm:$0xf]
      %v351 = vld [vmem:[%s238 + $0xc] sm:$0xf]
      %v352 = vld [vmem:[%s238 + $0x10] sm:$0xf]
      %v353 = vld [vmem:[%s238 + $0x14] sm:$0xf]
      %v354 = vld [vmem:[%s238 + $0x18] sm:$0xf]
      %v355 = vld [vmem:[%s238 + $0x1c] sm:$0xf]
      %v388 = vunpack.c.l.b16 %v316
      %v389 = vunpack.c.l.b16 %v317
      %v390 = vunpack.c.l.b16 %v318
      %v391 = vunpack.c.l.b16 %v319
      %v392 = vunpack.c.l.b16 %v320
      %v393 = vunpack.c.l.b16 %v321
      %v394 = vunpack.c.l.b16 %v322
      %v395 = vunpack.c.l.b16 %v323
      %v396 = vunpack.c.l.b16 %v324
      %v397 = vunpack.c.l.b16 %v325
      %v398 = vunpack.c.l.b16 %v326
      %v399 = vunpack.c.l.b16 %v327
      %v400 = vunpack.c.l.b16 %v328
      %v401 = vunpack.c.l.b16 %v329
      %v402 = vunpack.c.l.b16 %v330
      %v403 = vunpack.c.l.b16 %v331
      %v404 = vunpack.c.l.b16 %v332
      %v405 = vunpack.c.l.b16 %v333
      %v406 = vunpack.c.l.b16 %v334
      %v407 = vunpack.c.l.b16 %v335
      %v408 = vunpack.c.l.b16 %v336
      %v409 = vunpack.c.l.b16 %v337
      %v410 = vunpack.c.l.b16 %v338
      %v411 = vunpack.c.l.b16 %v339
      %v412 = vunpack.c.l.b16 %v340
      %v413 = vunpack.c.l.b16 %v341
      %v414 = vunpack.c.l.b16 %v342
      %v415 = vunpack.c.l.b16 %v343
      %v416 = vunpack.c.l.b16 %v344
      %v417 = vunpack.c.l.b16 %v345
      %v418 = vunpack.c.l.b16 %v346
      %v419 = vunpack.c.l.b16 %v347
      %v420 = vpack.c.b16 %v389, %v388
      %v421 = vpack.c.b16 %v391, %v390
      %v422 = vpack.c.b16 %v393, %v392
      %v423 = vpack.c.b16 %v395, %v394
      %v424 = vpack.c.b16 %v397, %v396
      %v425 = vpack.c.b16 %v399, %v398
      %v426 = vpack.c.b16 %v401, %v400
      %v427 = vpack.c.b16 %v403, %v402
      %v428 = vpack.c.b16 %v405, %v404
      %v429 = vpack.c.b16 %v407, %v406
      %v430 = vpack.c.b16 %v409, %v408
      %v431 = vpack.c.b16 %v411, %v410
      %v432 = vpack.c.b16 %v413, %v412
      %v433 = vpack.c.b16 %v415, %v414
      %v434 = vpack.c.b16 %v417, %v416
      %v435 = vpack.c.b16 %v419, %v418
      %v444 = vunpack.c.l.b16 %v348
      %v445 = vunpack.c.l.b16 %v349
      %v446 = vunpack.c.l.b16 %v350
      %v447 = vunpack.c.l.b16 %v351
      %v448 = vunpack.c.l.b16 %v352
      %v449 = vunpack.c.l.b16 %v353
      %v450 = vunpack.c.l.b16 %v354
      %v451 = vunpack.c.l.b16 %v355
      %v452 = vpack.c.b16 %v445, %v444
      %v453 = vpack.c.b16 %v447, %v446
      %v454 = vpack.c.b16 %v449, %v448
      %v455 = vpack.c.b16 %v451, %v450
      %vm460 = vcmask 523264
      %v462 = vsel %vm460, %v420, 0
      %v465 = vsel %vm460, %v421, 0
      %v468 = vsel %vm460, %v422, 0
      %v471 = vsel %vm460, %v423, 0
      %v474 = vsel %vm460, %v424, 0
      %v477 = vsel %vm460, %v425, 0
      %v480 = vsel %vm460, %v426, 0
      %v483 = vsel %vm460, %v427, 0
      %v486 = vsel %vm460, %v428, 0
      %v489 = vsel %vm460, %v429, 0
      %v492 = vsel %vm460, %v430, 0
      %v495 = vsel %vm460, %v431, 0
      %v498 = vsel %vm460, %v432, 0
      %v501 = vsel %vm460, %v433, 0
      %v504 = vsel %vm460, %v434, 0
      %v507 = vsel %vm460, %v435, 0
      %509 = vmatpush.bf16.msra.mxu0 0
      %510 = vmatpush.bf16.msra.mxu0 0
      %511 = vmatpush.bf16.msra.mxu0 0
      %512 = vmatpush.bf16.msra.mxu0 0
      %513 = vmatpush.bf16.msra.mxu0 %v455
      %514 = vmatpush.bf16.msra.mxu0 %v454
      %515 = vmatpush.bf16.msra.mxu0 %v453
      %516 = vmatpush.bf16.msra.mxu0 %v452
      %517 = vmatmul.bf16.gmra.mxu0 %v462
      %v518 = vpop.f32.mrf.mxu0
      %v519 = vadd.f32 0.0, %v518
      %v520 = vpop.f32.mrf.mxu0
      %v521 = vadd.f32 0.0, %v520
      %522 = vmatmul.bf16.gmra.mxu0 %v465
      %v523 = vpop.f32.mrf.mxu0
      %v524 = vadd.f32 0.0, %v523
      %v525 = vpop.f32.mrf.mxu0
      %v526 = vadd.f32 0.0, %v525
      %527 = vmatmul.bf16.gmra.mxu0 %v468
      %v528 = vpop.f32.mrf.mxu0
      %v529 = vadd.f32 0.0, %v528
      %v530 = vpop.f32.mrf.mxu0
      %v531 = vadd.f32 0.0, %v530
      %532 = vmatmul.bf16.gmra.mxu0 %v471
      %v533 = vpop.f32.mrf.mxu0
      %v534 = vadd.f32 0.0, %v533
      %v535 = vpop.f32.mrf.mxu0
      %v536 = vadd.f32 0.0, %v535
      %537 = vmatmul.bf16.gmra.mxu0 %v474
      %v538 = vpop.f32.mrf.mxu0
      %v539 = vadd.f32 0.0, %v538
      %v540 = vpop.f32.mrf.mxu0
      %v541 = vadd.f32 0.0, %v540
      %542 = vmatmul.bf16.gmra.mxu0 %v477
      %v543 = vpop.f32.mrf.mxu0
      %v544 = vadd.f32 0.0, %v543
      %v545 = vpop.f32.mrf.mxu0
      %v546 = vadd.f32 0.0, %v545
      %547 = vmatmul.bf16.gmra.mxu0 %v480
      %v548 = vpop.f32.mrf.mxu0
      %v549 = vadd.f32 0.0, %v548
      %v550 = vpop.f32.mrf.mxu0
      %v551 = vadd.f32 0.0, %v550
      %552 = vmatmul.bf16.gmra.mxu0 %v483
      %v553 = vpop.f32.mrf.mxu0
      %v554 = vadd.f32 0.0, %v553
      %v555 = vpop.f32.mrf.mxu0
      %v556 = vadd.f32 0.0, %v555
      %557 = vmatmul.bf16.gmra.mxu0 %v486
      %v558 = vpop.f32.mrf.mxu0
      %v559 = vadd.f32 0.0, %v558
      %v560 = vpop.f32.mrf.mxu0
      %v561 = vadd.f32 0.0, %v560
      %562 = vmatmul.bf16.gmra.mxu0 %v489
      %v563 = vpop.f32.mrf.mxu0
      %v564 = vadd.f32 0.0, %v563
      %v565 = vpop.f32.mrf.mxu0
      %v566 = vadd.f32 0.0, %v565
      %567 = vmatmul.bf16.gmra.mxu0 %v492
      %v568 = vpop.f32.mrf.mxu0
      %v569 = vadd.f32 0.0, %v568
      %v570 = vpop.f32.mrf.mxu0
      %v571 = vadd.f32 0.0, %v570
      %572 = vmatmul.bf16.gmra.mxu0 %v495
      %v573 = vpop.f32.mrf.mxu0
      %v574 = vadd.f32 0.0, %v573
      %v575 = vpop.f32.mrf.mxu0
      %v576 = vadd.f32 0.0, %v575
      %577 = vmatmul.bf16.gmra.mxu0 %v498
      %v578 = vpop.f32.mrf.mxu0
      %v579 = vadd.f32 0.0, %v578
      %v580 = vpop.f32.mrf.mxu0
      %v581 = vadd.f32 0.0, %v580
      %582 = vmatmul.bf16.gmra.mxu0 %v501
      %v583 = vpop.f32.mrf.mxu0
      %v584 = vadd.f32 0.0, %v583
      %v585 = vpop.f32.mrf.mxu0
      %v586 = vadd.f32 0.0, %v585
      %587 = vmatmul.bf16.gmra.mxu0 %v504
      %v588 = vpop.f32.mrf.mxu0
      %v589 = vadd.f32 0.0, %v588
      %v590 = vpop.f32.mrf.mxu0
      %v591 = vadd.f32 0.0, %v590
      %592 = vmatmul.bf16.gmra.mxu0 %v507
      %v593 = vpop.f32.mrf.mxu0
      %v594 = vadd.f32 0.0, %v593
      %v595 = vpop.f32.mrf.mxu0
      %v596 = vadd.f32 0.0, %v595
      %597 = vdwg.mxu0
      %v598 = vadd.f32 %v284, %v519
      %v599 = vadd.f32 %v285, %v521
      %v600 = vadd.f32 %v286, %v524
      %v601 = vadd.f32 %v287, %v526
      %v602 = vadd.f32 %v288, %v529
      %v603 = vadd.f32 %v289, %v531
      %v604 = vadd.f32 %v290, %v534
      %v605 = vadd.f32 %v291, %v536
      %v606 = vadd.f32 %v292, %v539
      %v607 = vadd.f32 %v293, %v541
      %v608 = vadd.f32 %v294, %v544
      %v609 = vadd.f32 %v295, %v546
      %v610 = vadd.f32 %v296, %v549
      %v611 = vadd.f32 %v297, %v551
      %v612 = vadd.f32 %v298, %v554
      %v613 = vadd.f32 %v299, %v556
      %v614 = vadd.f32 %v300, %v559
      %v615 = vadd.f32 %v301, %v561
      %v616 = vadd.f32 %v302, %v564
      %v617 = vadd.f32 %v303, %v566
      %v618 = vadd.f32 %v304, %v569
      %v619 = vadd.f32 %v305, %v571
      %v620 = vadd.f32 %v306, %v574
      %v621 = vadd.f32 %v307, %v576
      %v622 = vadd.f32 %v308, %v579
      %v623 = vadd.f32 %v309, %v581
      %v624 = vadd.f32 %v310, %v584
      %v625 = vadd.f32 %v311, %v586
      %v626 = vadd.f32 %v312, %v589
      %v627 = vadd.f32 %v313, %v591
      %v628 = vadd.f32 %v314, %v594
      %v629 = vadd.f32 %v315, %v596
      %630 = vst.msk [vmem:[#allocation2] sm:$0xff] %vm460, %v598
      %631 = vst.msk [vmem:[#allocation2 + $0x8] sm:$0xff] %vm460, %v599
      %632 = vst.msk [vmem:[#allocation2 + $0x10] sm:$0xff] %vm460, %v600
      %633 = vst.msk [vmem:[#allocation2 + $0x18] sm:$0xff] %vm460, %v601
      %634 = vst.msk [vmem:[#allocation2 + $0x20] sm:$0xff] %vm460, %v602
      %635 = vst.msk [vmem:[#allocation2 + $0x28] sm:$0xff] %vm460, %v603
      %636 = vst.msk [vmem:[#allocation2 + $0x30] sm:$0xff] %vm460, %v604
      %637 = vst.msk [vmem:[#allocation2 + $0x38] sm:$0xff] %vm460, %v605
      %638 = vst.msk [vmem:[#allocation2 + $0x40] sm:$0xff] %vm460, %v606
      %639 = vst.msk [vmem:[#allocation2 + $0x48] sm:$0xff] %vm460, %v607
      %640 = vst.msk [vmem:[#allocation2 + $0x50] sm:$0xff] %vm460, %v608
      %641 = vst.msk [vmem:[#allocation2 + $0x58] sm:$0xff] %vm460, %v609
      %642 = vst.msk [vmem:[#allocation2 + $0x60] sm:$0xff] %vm460, %v610
      %643 = vst.msk [vmem:[#allocation2 + $0x68] sm:$0xff] %vm460, %v611
      %644 = vst.msk [vmem:[#allocation2 + $0x70] sm:$0xff] %vm460, %v612
      %645 = vst.msk [vmem:[#allocation2 + $0x78] sm:$0xff] %vm460, %v613
      %646 = vst.msk [vmem:[#allocation2 + $0x80] sm:$0xff] %vm460, %v614
      %647 = vst.msk [vmem:[#allocation2 + $0x88] sm:$0xff] %vm460, %v615
      %648 = vst.msk [vmem:[#allocation2 + $0x90] sm:$0xff] %vm460, %v616
      %649 = vst.msk [vmem:[#allocation2 + $0x98] sm:$0xff] %vm460, %v617
      %650 = vst.msk [vmem:[#allocation2 + $0xa0] sm:$0xff] %vm460, %v618
      %651 = vst.msk [vmem:[#allocation2 + $0xa8] sm:$0xff] %vm460, %v619
      %652 = vst.msk [vmem:[#allocation2 + $0xb0] sm:$0xff] %vm460, %v620
      %653 = vst.msk [vmem:[#allocation2 + $0xb8] sm:$0xff] %vm460, %v621
      %654 = vst.msk [vmem:[#allocation2 + $0xc0] sm:$0xff] %vm460, %v622
      %655 = vst.msk [vmem:[#allocation2 + $0xc8] sm:$0xff] %vm460, %v623
      %656 = vst.msk [vmem:[#allocation2 + $0xd0] sm:$0xff] %vm460, %v624
      %657 = vst.msk [vmem:[#allocation2 + $0xd8] sm:$0xff] %vm460, %v625
      %658 = vst.msk [vmem:[#allocation2 + $0xe0] sm:$0xff] %vm460, %v626
      %659 = vst.msk [vmem:[#allocation2 + $0xe8] sm:$0xff] %vm460, %v627
      %660 = vst.msk [vmem:[#allocation2 + $0xf0] sm:$0xff] %vm460, %v628
      %661 = vst.msk [vmem:[#allocation2 + $0xf8] sm:$0xff] %vm460, %v629
      // Predicated region
      $region41: #{_lambda_.4} parent=35 // pred_check
        %p662 = pneg %p247
      $region42: #{_lambda_.4} parent=35 // pred_check_branch
        %664 = sbr.rel (%p662) target = $region44
      $region43: #{_lambda_.4} parent=35 // pred_region
        %v665 = vld [vmem:[#allocation2] sm:$0xff]
        %v666 = vld [vmem:[#allocation2 + $0x8] sm:$0xff]
        %v667 = vld [vmem:[#allocation2 + $0x10] sm:$0xff]
        %v668 = vld [vmem:[#allocation2 + $0x18] sm:$0xff]
        %v669 = vld [vmem:[#allocation2 + $0x20] sm:$0xff]
        %v670 = vld [vmem:[#allocation2 + $0x28] sm:$0xff]
        %v671 = vld [vmem:[#allocation2 + $0x30] sm:$0xff]
        %v672 = vld [vmem:[#allocation2 + $0x38] sm:$0xff]
        %v673 = vld [vmem:[#allocation2 + $0x40] sm:$0xff]
        %v674 = vld [vmem:[#allocation2 + $0x48] sm:$0xff]
        %v675 = vld [vmem:[#allocation2 + $0x50] sm:$0xff]
        %v676 = vld [vmem:[#allocation2 + $0x58] sm:$0xff]
        %v677 = vld [vmem:[#allocation2 + $0x60] sm:$0xff]
        %v678 = vld [vmem:[#allocation2 + $0x68] sm:$0xff]
        %v679 = vld [vmem:[#allocation2 + $0x70] sm:$0xff]
        %v680 = vld [vmem:[#allocation2 + $0x78] sm:$0xff]
        %v681 = vld [vmem:[#allocation2 + $0x80] sm:$0xff]
        %v682 = vld [vmem:[#allocation2 + $0x88] sm:$0xff]
        %v683 = vld [vmem:[#allocation2 + $0x90] sm:$0xff]
        %v684 = vld [vmem:[#allocation2 + $0x98] sm:$0xff]
        %v685 = vld [vmem:[#allocation2 + $0xa0] sm:$0xff]
        %v686 = vld [vmem:[#allocation2 + $0xa8] sm:$0xff]
        %v687 = vld [vmem:[#allocation2 + $0xb0] sm:$0xff]
        %v688 = vld [vmem:[#allocation2 + $0xb8] sm:$0xff]
        %v689 = vld [vmem:[#allocation2 + $0xc0] sm:$0xff]
        %v690 = vld [vmem:[#allocation2 + $0xc8] sm:$0xff]
        %v691 = vld [vmem:[#allocation2 + $0xd0] sm:$0xff]
        %v692 = vld [vmem:[#allocation2 + $0xd8] sm:$0xff]
        %v693 = vld [vmem:[#allocation2 + $0xe0] sm:$0xff]
        %v694 = vld [vmem:[#allocation2 + $0xe8] sm:$0xff]
        %v695 = vld [vmem:[#allocation2 + $0xf0] sm:$0xff]
        %v696 = vld [vmem:[#allocation2 + $0xf8] sm:$0xff]
        %v697 = vld [vmem:[%s2] sm:$0x1]
        %v699 = vperm.slane %v697, 0
        %v701 = vmul.f32 %v665, %v699
        %v702 = vmul.f32 %v666, %v699
        %v703 = vmul.f32 %v667, %v699
        %v704 = vmul.f32 %v668, %v699
        %v705 = vmul.f32 %v669, %v699
        %v706 = vmul.f32 %v670, %v699
        %v707 = vmul.f32 %v671, %v699
        %v708 = vmul.f32 %v672, %v699
        %v709 = vmul.f32 %v673, %v699
        %v710 = vmul.f32 %v674, %v699
        %v711 = vmul.f32 %v675, %v699
        %v712 = vmul.f32 %v676, %v699
        %v713 = vmul.f32 %v677, %v699
        %v714 = vmul.f32 %v678, %v699
        %v715 = vmul.f32 %v679, %v699
        %v716 = vmul.f32 %v680, %v699
        %v717 = vmul.f32 %v681, %v699
        %v718 = vmul.f32 %v682, %v699
        %v719 = vmul.f32 %v683, %v699
        %v720 = vmul.f32 %v684, %v699
        %v721 = vmul.f32 %v685, %v699
        %v722 = vmul.f32 %v686, %v699
        %v723 = vmul.f32 %v687, %v699
        %v724 = vmul.f32 %v688, %v699
        %v725 = vmul.f32 %v689, %v699
        %v726 = vmul.f32 %v690, %v699
        %v727 = vmul.f32 %v691, %v699
        %v728 = vmul.f32 %v692, %v699
        %v729 = vmul.f32 %v693, %v699
        %v730 = vmul.f32 %v694, %v699
        %v731 = vmul.f32 %v695, %v699
        %v732 = vmul.f32 %v696, %v699
        %v733 = vld [vmem:[%s3] sm:$0x1]
        %v735 = vperm.slane %v733, 0
        %v737 = vadd.f32 %v701, %v735
        %v738 = vadd.f32 %v702, %v735
        %v739 = vadd.f32 %v703, %v735
        %v740 = vadd.f32 %v704, %v735
        %v741 = vadd.f32 %v705, %v735
        %v742 = vadd.f32 %v706, %v735
        %v743 = vadd.f32 %v707, %v735
        %v744 = vadd.f32 %v708, %v735
        %v745 = vadd.f32 %v709, %v735
        %v746 = vadd.f32 %v710, %v735
        %v747 = vadd.f32 %v711, %v735
        %v748 = vadd.f32 %v712, %v735
        %v749 = vadd.f32 %v713, %v735
        %v750 = vadd.f32 %v714, %v735
        %v751 = vadd.f32 %v715, %v735
        %v752 = vadd.f32 %v716, %v735
        %v753 = vadd.f32 %v717, %v735
        %v754 = vadd.f32 %v718, %v735
        %v755 = vadd.f32 %v719, %v735
        %v756 = vadd.f32 %v720, %v735
        %v757 = vadd.f32 %v721, %v735
        %v758 = vadd.f32 %v722, %v735
        %v759 = vadd.f32 %v723, %v735
        %v760 = vadd.f32 %v724, %v735
        %v761 = vadd.f32 %v725, %v735
        %v762 = vadd.f32 %v726, %v735
        %v763 = vadd.f32 %v727, %v735
        %v764 = vadd.f32 %v728, %v735
        %v765 = vadd.f32 %v729, %v735
        %v766 = vadd.f32 %v730, %v735
        %v767 = vadd.f32 %v731, %v735
        %v768 = vadd.f32 %v732, %v735
        %v769 = vmax.f32 %v737, 0.0
        %v770 = vmax.f32 %v738, 0.0
        %v771 = vmax.f32 %v739, 0.0
        %v772 = vmax.f32 %v740, 0.0
        %v773 = vmax.f32 %v741, 0.0
        %v774 = vmax.f32 %v742, 0.0
        %v775 = vmax.f32 %v743, 0.0
        %v776 = vmax.f32 %v744, 0.0
        %v777 = vmax.f32 %v745, 0.0
        %v778 = vmax.f32 %v746, 0.0
        %v779 = vmax.f32 %v747, 0.0
        %v780 = vmax.f32 %v748, 0.0
        %v781 = vmax.f32 %v749, 0.0
        %v782 = vmax.f32 %v750, 0.0
        %v783 = vmax.f32 %v751, 0.0
        %v784 = vmax.f32 %v752, 0.0
        %v785 = vmax.f32 %v753, 0.0
        %v786 = vmax.f32 %v754, 0.0
        %v787 = vmax.f32 %v755, 0.0
        %v788 = vmax.f32 %v756, 0.0
        %v789 = vmax.f32 %v757, 0.0
        %v790 = vmax.f32 %v758, 0.0
        %v791 = vmax.f32 %v759, 0.0
        %v792 = vmax.f32 %v760, 0.0
        %v793 = vmax.f32 %v761, 0.0
        %v794 = vmax.f32 %v762, 0.0
        %v795 = vmax.f32 %v763, 0.0
        %v796 = vmax.f32 %v764, 0.0
        %v797 = vmax.f32 %v765, 0.0
        %v798 = vmax.f32 %v766, 0.0
        %v799 = vmax.f32 %v767, 0.0
        %v800 = vmax.f32 %v768, 0.0
        %v801 = vpack.c.bf16 %v769, %v769
        %v802 = vpack.c.bf16 %v770, %v770
        %v803 = vpack.c.bf16 %v771, %v771
        %v804 = vpack.c.bf16 %v772, %v772
        %v805 = vpack.c.bf16 %v773, %v773
        %v806 = vpack.c.bf16 %v774, %v774
        %v807 = vpack.c.bf16 %v775, %v775
        %v808 = vpack.c.bf16 %v776, %v776
        %v809 = vpack.c.bf16 %v777, %v777
        %v810 = vpack.c.bf16 %v778, %v778
        %v811 = vpack.c.bf16 %v779, %v779
        %v812 = vpack.c.bf16 %v780, %v780
        %v813 = vpack.c.bf16 %v781, %v781
        %v814 = vpack.c.bf16 %v782, %v782
        %v815 = vpack.c.bf16 %v783, %v783
        %v816 = vpack.c.bf16 %v784, %v784
        %v817 = vpack.c.bf16 %v785, %v785
        %v818 = vpack.c.bf16 %v786, %v786
        %v819 = vpack.c.bf16 %v787, %v787
        %v820 = vpack.c.bf16 %v788, %v788
        %v821 = vpack.c.bf16 %v789, %v789
        %v822 = vpack.c.bf16 %v790, %v790
        %v823 = vpack.c.bf16 %v791, %v791
        %v824 = vpack.c.bf16 %v792, %v792
        %v825 = vpack.c.bf16 %v793, %v793
        %v826 = vpack.c.bf16 %v794, %v794
        %v827 = vpack.c.bf16 %v795, %v795
        %v828 = vpack.c.bf16 %v796, %v796
        %v829 = vpack.c.bf16 %v797, %v797
        %v830 = vpack.c.bf16 %v798, %v798
        %v831 = vpack.c.bf16 %v799, %v799
        %v832 = vpack.c.bf16 %v800, %v800
        %vm833 = vcmask 519168
        %834 = vst.msk [vmem:[%s244] sm:$0xf] %vm833, %v801
        %835 = vst.msk [vmem:[%s244 + $0x4] sm:$0xf] %vm833, %v802
        %836 = vst.msk [vmem:[%s244 + $0x8] sm:$0xf] %vm833, %v803
        %837 = vst.msk [vmem:[%s244 + $0xc] sm:$0xf] %vm833, %v804
        %838 = vst.msk [vmem:[%s244 + $0x10] sm:$0xf] %vm833, %v805
        %839 = vst.msk [vmem:[%s244 + $0x14] sm:$0xf] %vm833, %v806
        %840 = vst.msk [vmem:[%s244 + $0x18] sm:$0xf] %vm833, %v807
        %841 = vst.msk [vmem:[%s244 + $0x1c] sm:$0xf] %vm833, %v808
        %842 = vst.msk [vmem:[%s244 + $0x20] sm:$0xf] %vm833, %v809
        %843 = vst.msk [vmem:[%s244 + $0x24] sm:$0xf] %vm833, %v810
        %844 = vst.msk [vmem:[%s244 + $0x28] sm:$0xf] %vm833, %v811
        %845 = vst.msk [vmem:[%s244 + $0x2c] sm:$0xf] %vm833, %v812
        %846 = vst.msk [vmem:[%s244 + $0x30] sm:$0xf] %vm833, %v813
        %847 = vst.msk [vmem:[%s244 + $0x34] sm:$0xf] %vm833, %v814
        %848 = vst.msk [vmem:[%s244 + $0x38] sm:$0xf] %vm833, %v815
        %849 = vst.msk [vmem:[%s244 + $0x3c] sm:$0xf] %vm833, %v816
        %850 = vst.msk [vmem:[%s244 + $0x40] sm:$0xf] %vm833, %v817
        %851 = vst.msk [vmem:[%s244 + $0x44] sm:$0xf] %vm833, %v818
        %852 = vst.msk [vmem:[%s244 + $0x48] sm:$0xf] %vm833, %v819
        %853 = vst.msk [vmem:[%s244 + $0x4c] sm:$0xf] %vm833, %v820
        %854 = vst.msk [vmem:[%s244 + $0x50] sm:$0xf] %vm833, %v821
        %855 = vst.msk [vmem:[%s244 + $0x54] sm:$0xf] %vm833, %v822
        %856 = vst.msk [vmem:[%s244 + $0x58] sm:$0xf] %vm833, %v823
        %857 = vst.msk [vmem:[%s244 + $0x5c] sm:$0xf] %vm833, %v824
        %858 = vst.msk [vmem:[%s244 + $0x60] sm:$0xf] %vm833, %v825
        %859 = vst.msk [vmem:[%s244 + $0x64] sm:$0xf] %vm833, %v826
        %860 = vst.msk [vmem:[%s244 + $0x68] sm:$0xf] %vm833, %v827
        %861 = vst.msk [vmem:[%s244 + $0x6c] sm:$0xf] %vm833, %v828
        %862 = vst.msk [vmem:[%s244 + $0x70] sm:$0xf] %vm833, %v829
        %863 = vst.msk [vmem:[%s244 + $0x74] sm:$0xf] %vm833, %v830
        %864 = vst.msk [vmem:[%s244 + $0x78] sm:$0xf] %vm833, %v831
        %865 = vst.msk [vmem:[%s244 + $0x7c] sm:$0xf] %vm833, %v832
      $region44: #{_lambda_.4} parent=35 // pred_fallthru
        _
      %s866 = smul.u32 32, %s19
      %p867 = scmp.lt.s32.totalorder %s866, 63
      %s868 = scalar_select %p867, %s866, 63
      %s869 = smul.addr %s868, 4
      %s870 = scalar_lea.vmem %s4, %s869
      // Predicated region
      $region45: #{_lambda_.4} parent=35 // pred_check
        %p871 = pneg %p141
      $region46: #{_lambda_.4} parent=35 // pred_check_branch
        %873 = sbr.rel (%p871) target = $region48
      $region47: #{_lambda_.4} parent=35 // pred_region
        %s874 = smul.u32 32, %s19
      $region48: #{_lambda_.4} parent=35 // pred_fallthru
        _
    $region36: #{_lambda_.4} parent=5 // pred_fallthru
      _
    %p875 = scmp.le.s32.totalorder 2, %s10
    // Predicated region
    $region49: #{_lambda_.4} parent=5 // pred_check
      %p876 = pneg %p875
    $region50: #{_lambda_.4} parent=5 // pred_check_branch
      %878 = sbr.rel (%p876) target = $region52
    $region51: #{_lambda_.4} parent=5 // pred_region
      %s879 = ssub.s32 %s10, 2
      // Predicated region
      $region53: #{_lambda_.4} parent=51 // pred_check
        %p880 = pneg %p147
      $region54: #{_lambda_.4} parent=51 // pred_check_branch
        %882 = sbr.rel (%p880) target = $region56
      $region55: #{_lambda_.4} parent=51 // pred_region
        %s883 = smul.u32 32, %s21
        %p884 = scmp.lt.s32.totalorder %s883, 63
        %s885 = scalar_select %p884, %s883, 63
        %s886 = smul.addr %s885, 4
        %s887 = scalar_lea.vmem %s4, %s886
      $region56: #{_lambda_.4} parent=51 // pred_fallthru
        _
    $region52: #{_lambda_.4} parent=5 // pred_fallthru
      _
  $region6: #{_lambda_.4} parent=0 // loop_footer
    %s14 = sadd.s32 1, %s10
  $region7: #{_lambda_.4} parent=0 // loop_footer_branch
    %9 = sbr.rel target = $region3
  $region8: #{_lambda_.4} parent=0 // loop_exit
    _

// kernel: _lambda_.6
$region0: #{_lambda_.6}
  #allocation0 [shape = 'u32[]', space=smem, size = 0x4, offset = 0x4, fixed_abs, tag = 'smem constant byte address 0x4 - core index']
  #allocation1 [shape = 'u32[72,128]{1,0:T(1,128)}', space=vmem, size = 0x9000, scoped, tag = 'internal scratch']
  #allocation2 [shape = 'f32[256,256]{1,0:T(8,128)}', space=vmem, size = 0x40000, scoped, tag = 'scratch operand']
  %s0 = inlined_call_operand.vmem [shape: bf16[512,64], index: 0, kind: input, shape index: {}]
  %s1 = inlined_call_operand.vmem [shape: bf16[64,256], index: 1, kind: input, shape index: {}]
  %s2 = inlined_call_operand.vmem [shape: f32[1,256], index: 2, kind: input, shape index: {}]
  %s3 = inlined_call_operand.vmem [shape: f32[1,256], index: 3, kind: input, shape index: {}]
  %s4 = inlined_call_operand.vmem [shape: bf16[512,256], index: 4, kind: output, shape index: {}]
  %s5 = sld [smem:[#allocation0]]
  $region57: #{_lambda_.6} parent=0
    _
  %s7 = ssub.s32 1, %s5
  %s8 = scalar_select 0, %s7, %s5
  loop: start=0, step=1, limit=4
  $region2: #{_lambda_.6} parent=0 // loop_pre_header
    _
  $region3: #{_lambda_.6} parent=0 // loop_header
    %s10 = sphi 0, %s14
    %p11 = scmp.ge.s32.totalorder %s10, 4
    %s17 = sphi 0, %s29
    %s18 = sphi 0, %s25
    %s19 = sphi 0, %s17
    %s20 = sphi 0, %s18
    %s21 = sphi 0, %s19
    %s22 = sphi 0, %s20
    %s34 = sphi 0, %s36
    %s37 = sphi 0, %s34
    %s38 = sphi 0, %s37
    %s54 = sphi 0, %s38
    %s60 = sphi 0, %s62
    %s63 = sphi 0, %s60
    %s64 = sphi 0, %s63
    %s80 = sphi 0, %s64
    %s84 = sphi 0, %s84
    %s86 = sphi 0, %s84
    %s87 = sphi 0, %s86
    %s101 = sphi 0, %s87
    %s105 = sphi 0, %s105
    %s107 = sphi 0, %s105
    %s108 = sphi 0, %s107
    %s122 = sphi 0, %s108
    %s128 = sphi 0, %s130
    %s131 = sphi 0, %s128
    %s132 = sphi 0, %s131
    %s148 = sphi 0, %s132
  $region4: #{_lambda_.6} parent=0 // loop_header_branch
    %13 = sbr.rel (%p11) target = $region8
  $region5: #{_lambda_.6} parent=0 // loop_body
    %s15 = ssub.s32 %s10, 1
    %s16 = ssub.s32 %s10, 2
    %s23 = sadd.s32 1, %s18
    %p24 = scmp.ge.s32.totalorder %s23, 1
    %s25 = scalar_select %p24, 0, %s23
    %s26 = sadd.s32 1, %s17
    %s27 = scalar_select %p24, %s26, %s17
    %p28 = scmp.ge.s32.totalorder %s27, 2
    %s29 = scalar_select %p28, 0, %s27
    %s30 = ssub.s32 %s17, %s29
    %s31 = ssub.s32 %s18, %s25
    %s32 = sor.u32 %s30, %s31
    %p33 = scmp.eq.s32.totalorder %s32, 0
    %s35 = sadd.s32 %s34, 1
    %s36 = scalar_select %p33, %s34, %s35
    %p39 = pneg %p33
    %p40 = scmp.eq.s32.totalorder %s10, 1
    %p41 = por %p39, %p40
    %p42 = scmp.ne.s32.totalorder %s34, %s37
    %p43 = scmp.eq.s32.totalorder %s10, 0
    %p44 = por %p42, %p43
    %p45 = scmp.ne.s32.totalorder %s34, %s37
    %p46 = scmp.eq.s32.totalorder %s15, 1
    %p47 = por %p45, %p46
    %p48 = scmp.ne.s32.totalorder %s37, %s38
    %p49 = scmp.eq.s32.totalorder %s15, 0
    %p50 = por %p48, %p49
    %p51 = scmp.ne.s32.totalorder %s37, %s38
    %p52 = scmp.eq.s32.totalorder %s16, 1
    %p53 = por %p51, %p52
    %p55 = scmp.ne.s32.totalorder %s38, %s54
    %p56 = scmp.eq.s32.totalorder %s16, 0
    %p57 = por %p55, %p56
    %s58 = ssub.s32 %s18, %s25
    %p59 = scmp.eq.s32.totalorder %s58, 0
    %s61 = sadd.s32 %s60, 1
    %s62 = scalar_select %p59, %s60, %s61
    %p65 = pneg %p59
    %p66 = scmp.eq.s32.totalorder %s10, 1
    %p67 = por %p65, %p66
    %p68 = scmp.ne.s32.totalorder %s60, %s63
    %p69 = scmp.eq.s32.totalorder %s10, 0
    %p70 = por %p68, %p69
    %p71 = scmp.ne.s32.totalorder %s60, %s63
    %p72 = scmp.eq.s32.totalorder %s15, 1
    %p73 = por %p71, %p72
    %p74 = scmp.ne.s32.totalorder %s63, %s64
    %p75 = scmp.eq.s32.totalorder %s15, 0
    %p76 = por %p74, %p75
    %p77 = scmp.ne.s32.totalorder %s63, %s64
    %p78 = scmp.eq.s32.totalorder %s16, 1
    %p79 = por %p77, %p78
    %p81 = scmp.ne.s32.totalorder %s64, %s80
    %p82 = scmp.eq.s32.totalorder %s16, 0
    %p83 = por %p81, %p82
    %s85 = sadd.s32 %s84, 1
    %p88 = scmp.eq.s32.totalorder %s10, 1
    %p89 = scmp.ne.s32.totalorder %s84, %s86
    %p90 = scmp.eq.s32.totalorder %s10, 0
    %p91 = por %p89, %p90
    %p92 = scmp.ne.s32.totalorder %s84, %s86
    %p93 = scmp.eq.s32.totalorder %s15, 1
    %p94 = por %p92, %p93
    %p95 = scmp.ne.s32.totalorder %s86, %s87
    %p96 = scmp.eq.s32.totalorder %s15, 0
    %p97 = por %p95, %p96
    %p98 = scmp.ne.s32.totalorder %s86, %s87
    %p99 = scmp.eq.s32.totalorder %s16, 1
    %p100 = por %p98, %p99
    %p102 = scmp.ne.s32.totalorder %s87, %s101
    %p103 = scmp.eq.s32.totalorder %s16, 0
    %p104 = por %p102, %p103
    %s106 = sadd.s32 %s105, 1
    %p109 = scmp.eq.s32.totalorder %s10, 1
    %p110 = scmp.ne.s32.totalorder %s105, %s107
    %p111 = scmp.eq.s32.totalorder %s10, 0
    %p112 = por %p110, %p111
    %p113 = scmp.ne.s32.totalorder %s105, %s107
    %p114 = scmp.eq.s32.totalorder %s15, 1
    %p115 = por %p113, %p114
    %p116 = scmp.ne.s32.totalorder %s107, %s108
    %p117 = scmp.eq.s32.totalorder %s15, 0
    %p118 = por %p116, %p117
    %p119 = scmp.ne.s32.totalorder %s107, %s108
    %p120 = scmp.eq.s32.totalorder %s16, 1
    %p121 = por %p119, %p120
    %p123 = scmp.ne.s32.totalorder %s108, %s122
    %p124 = scmp.eq.s32.totalorder %s16, 0
    %p125 = por %p123, %p124
    %s126 = ssub.s32 %s17, %s29
    %p127 = scmp.eq.s32.totalorder %s126, 0
    %s129 = sadd.s32 %s128, 1
    %s130 = scalar_select %p127, %s128, %s129
    %p133 = pneg %p127
    %p134 = scmp.eq.s32.totalorder %s10, 1
    %p135 = por %p133, %p134
    %p136 = scmp.ne.s32.totalorder %s128, %s131
    %p137 = scmp.eq.s32.totalorder %s10, 0
    %p138 = por %p136, %p137
    %p139 = scmp.ne.s32.totalorder %s128, %s131
    %p140 = scmp.eq.s32.totalorder %s15, 1
    %p141 = por %p139, %p140
    %p142 = scmp.ne.s32.totalorder %s131, %s132
    %p143 = scmp.eq.s32.totalorder %s15, 0
    %p144 = por %p142, %p143
    %p145 = scmp.ne.s32.totalorder %s131, %s132
    %p146 = scmp.eq.s32.totalorder %s16, 1
    %p147 = por %p145, %p146
    %p149 = scmp.ne.s32.totalorder %s132, %s148
    %p150 = scmp.eq.s32.totalorder %s16, 0
    %p151 = por %p149, %p150
    %p152 = scmp.le.s32.totalorder 1, %s10
    %p153 = scmp.lt.s32.totalorder %s10, 3
    %p154 = pnand %p152, %p153
    %p155 = pneg %p154
    // Predicated region
    $region9: #{_lambda_.6} parent=5 // pred_check
      _
    $region10: #{_lambda_.6} parent=5 // pred_check_branch
      %157 = sbr.rel (%p154) target = $region12
    $region11: #{_lambda_.6} parent=5 // pred_region
      %s158 = ssub.s32 %s10, 1
      // Predicated region
      $region13: #{_lambda_.6} parent=11 // pred_check
        %p159 = pneg %p76
      $region14: #{_lambda_.6} parent=11 // pred_check_branch
        %161 = sbr.rel (%p159) target = $region16
      $region15: #{_lambda_.6} parent=11 // pred_region
        %s162 = smul.u32 8, %s20
        %p163 = scmp.lt.s32.totalorder %s162, 7
        %s164 = scalar_select %p163, %s162, 7
        %s165 = smul.addr %s164, 2
        %s166 = smul.addr %s165, 4
        %s167 = scalar_lea.vmem %s1, %s166
        %s168 = smul.u32 8, %s20
      $region16: #{_lambda_.6} parent=11 // pred_fallthru
        _
      // Predicated region
      $region17: #{_lambda_.6} parent=11 // pred_check
        %p169 = pneg %p97
      $region18: #{_lambda_.6} parent=11 // pred_check_branch
        %171 = sbr.rel (%p169) target = $region20
      $region19: #{_lambda_.6} parent=11 // pred_region
        _
      $region20: #{_lambda_.6} parent=11 // pred_fallthru
        _
      // Predicated region
      $region21: #{_lambda_.6} parent=11 // pred_check
        %p172 = pneg %p118
      $region22: #{_lambda_.6} parent=11 // pred_check_branch
        %174 = sbr.rel (%p172) target = $region24
      $region23: #{_lambda_.6} parent=11 // pred_region
        _
      $region24: #{_lambda_.6} parent=11 // pred_fallthru
        _
    $region12: #{_lambda_.6} parent=5 // pred_fallthru
      _
    %p175 = scmp.lt.s32.totalorder %s10, 2
    // Predicated region
    $region25: #{_lambda_.6} parent=5 // pred_check
      %p176 = pneg %p175
    $region26: #{_lambda_.6} parent=5 // pred_check_branch
      %178 = sbr.rel (%p176) target = $region28
    $region27: #{_lambda_.6} parent=5 // pred_region
      // Predicated region
      $region29: #{_lambda_.6} parent=27 // pred_check
        %p179 = pneg %p44
      $region30: #{_lambda_.6} parent=27 // pred_check_branch
        %181 = sbr.rel (%p179) target = $region32
      $region31: #{_lambda_.6} parent=27 // pred_region
        %s182 = smul.u32 32, %s17
        %p183 = scmp.lt.s32.totalorder %s182, 63
        %s184 = scalar_select %p183, %s182, 63
        %p185 = scmp.lt.s32.totalorder %s18, 0
        %s186 = scalar_select %p185, %s18, 0
        %s187 = sadd.s32 %s186, %s184
        %s188 = smul.addr %s187, 4
        %s189 = scalar_lea.vmem %s0, %s188
        %s190 = smul.u32 32, %s17
      $region32: #{_lambda_.6} parent=27 // pred_fallthru
        _
    $region28: #{_lambda_.6} parent=5 // pred_fallthru
      _
    %p191 = scmp.le.s32.totalorder 1, %s10
    %p192 = scmp.lt.s32.totalorder %s10, 3
    %p193 = pnand %p191, %p192
    %p194 = pneg %p193
    // Predicated region
    $region33: #{_lambda_.6} parent=5 // pred_check
      _
    $region34: #{_lambda_.6} parent=5 // pred_check_branch
      %196 = sbr.rel (%p193) target = $region36
    $region35: #{_lambda_.6} parent=5 // pred_region
      %s197 = ssub.s32 %s10, 1
      %s198 = smul.u32 32, %s19
      %p199 = scmp.lt.s32.totalorder %s198, 63
      %s200 = scalar_select %p199, %s198, 63
      %p201 = scmp.lt.s32.totalorder %s20, 0
      %s202 = scalar_select %p201, %s20, 0
      %s203 = sadd.s32 %s202, %s200
      %s204 = smul.addr %s203, 4
      %s205 = scalar_lea.vmem %s0, %s204
      %p206 = pneg %p50
      %p207 = pneg %p47
      %s208 = smul.u32 8, %s20
      %p209 = scmp.lt.s32.totalorder %s208, 7
      %s210 = scalar_select %p209, %s208, 7
      %s211 = smul.addr %s210, 2
      %s212 = smul.addr %s211, 4
      %s213 = scalar_lea.vmem %s1, %s212
      %p214 = pneg %p76
      %p215 = pneg %p73
      %p216 = pneg %p97
      %p217 = pneg %p94
      %p218 = pneg %p118
      %p219 = pneg %p115
      %p220 = pneg %p144
      %p221 = pneg %p141
      %s222 = smul.u32 32, %s19
      %p223 = scmp.lt.s32.totalorder %s222, 63
      %s224 = scalar_select %p223, %s222, 63
      %s225 = smul.addr %s224, 2
      %s226 = smul.addr %s225, 4
      %s227 = scalar_lea.vmem %s4, %s226
      %s228 = smul.u32 32, %s19
      %p229 = scmp.lt.s32.totalorder %s228, 63
      %s230 = scalar_select %p229, %s228, 63
      %p231 = scmp.lt.s32.totalorder %s20, 0
      %s232 = scalar_select %p231, %s20, 0
      %s233 = sadd.s32 %s232, %s230
      %s234 = smul.addr %s233, 4
      %s235 = scalar_lea.vmem %s0, %s234
      %s236 = smul.u32 32, %s19
      %s237 = smul.u32 8, %s20
      %p238 = scmp.lt.s32.totalorder %s237, 7
      %s239 = scalar_select %p238, %s237, 7
      %s240 = smul.addr %s239, 2
      %s241 = smul.addr %s240, 4
      %s242 = scalar_lea.vmem %s1, %s241
      %s243 = smul.u32 8, %s20
      %s244 = smul.u32 32, %s19
      %p245 = scmp.lt.s32.totalorder %s244, 63
      %s246 = scalar_select %p245, %s244, 63
      %s247 = smul.addr %s246, 2
      %s248 = smul.addr %s247, 4
      %s249 = scalar_lea.vmem %s4, %s248
      %s250 = smul.u32 32, %s19
      %p252 = scmp.eq.s32.totalorder %s20, 0
      // Predicated region
      $region37: #{_lambda_.6} parent=35 // pred_check
        %p253 = pneg %p252
      $region38: #{_lambda_.6} parent=35 // pred_check_branch
        %255 = sbr.rel (%p253) target = $region40
      $region39: #{_lambda_.6} parent=35 // pred_region
        %256 = vst [vmem:[#allocation2] sm:$0xff] 0.0
        %257 = vst [vmem:[#allocation2 + $0x8] sm:$0xff] 0.0
        %258 = vst [vmem:[#allocation2 + $0x10] sm:$0xff] 0.0
        %259 = vst [vmem:[#allocation2 + $0x18] sm:$0xff] 0.0
        %260 = vst [vmem:[#allocation2 + $0x20] sm:$0xff] 0.0
        %261 = vst [vmem:[#allocation2 + $0x28] sm:$0xff] 0.0
        %262 = vst [vmem:[#allocation2 + $0x30] sm:$0xff] 0.0
        %263 = vst [vmem:[#allocation2 + $0x38] sm:$0xff] 0.0
        %264 = vst [vmem:[#allocation2 + $0x40] sm:$0xff] 0.0
        %265 = vst [vmem:[#allocation2 + $0x48] sm:$0xff] 0.0
        %266 = vst [vmem:[#allocation2 + $0x50] sm:$0xff] 0.0
        %267 = vst [vmem:[#allocation2 + $0x58] sm:$0xff] 0.0
        %268 = vst [vmem:[#allocation2 + $0x60] sm:$0xff] 0.0
        %269 = vst [vmem:[#allocation2 + $0x68] sm:$0xff] 0.0
        %270 = vst [vmem:[#allocation2 + $0x70] sm:$0xff] 0.0
        %271 = vst [vmem:[#allocation2 + $0x78] sm:$0xff] 0.0
        %272 = vst [vmem:[#allocation2 + $0x80] sm:$0xff] 0.0
        %273 = vst [vmem:[#allocation2 + $0x88] sm:$0xff] 0.0
        %274 = vst [vmem:[#allocation2 + $0x90] sm:$0xff] 0.0
        %275 = vst [vmem:[#allocation2 + $0x98] sm:$0xff] 0.0
        %276 = vst [vmem:[#allocation2 + $0xa0] sm:$0xff] 0.0
        %277 = vst [vmem:[#allocation2 + $0xa8] sm:$0xff] 0.0
        %278 = vst [vmem:[#allocation2 + $0xb0] sm:$0xff] 0.0
        %279 = vst [vmem:[#allocation2 + $0xb8] sm:$0xff] 0.0
        %280 = vst [vmem:[#allocation2 + $0xc0] sm:$0xff] 0.0
        %281 = vst [vmem:[#allocation2 + $0xc8] sm:$0xff] 0.0
        %282 = vst [vmem:[#allocation2 + $0xd0] sm:$0xff] 0.0
        %283 = vst [vmem:[#allocation2 + $0xd8] sm:$0xff] 0.0
        %284 = vst [vmem:[#allocation2 + $0xe0] sm:$0xff] 0.0
        %285 = vst [vmem:[#allocation2 + $0xe8] sm:$0xff] 0.0
        %286 = vst [vmem:[#allocation2 + $0xf0] sm:$0xff] 0.0
        %287 = vst [vmem:[#allocation2 + $0xf8] sm:$0xff] 0.0
        %288 = vst [vmem:[#allocation2 + $0x100] sm:$0xff] 0.0
        %289 = vst [vmem:[#allocation2 + $0x108] sm:$0xff] 0.0
        %290 = vst [vmem:[#allocation2 + $0x110] sm:$0xff] 0.0
        %291 = vst [vmem:[#allocation2 + $0x118] sm:$0xff] 0.0
        %292 = vst [vmem:[#allocation2 + $0x120] sm:$0xff] 0.0
        %293 = vst [vmem:[#allocation2 + $0x128] sm:$0xff] 0.0
        %294 = vst [vmem:[#allocation2 + $0x130] sm:$0xff] 0.0
        %295 = vst [vmem:[#allocation2 + $0x138] sm:$0xff] 0.0
        %296 = vst [vmem:[#allocation2 + $0x140] sm:$0xff] 0.0
        %297 = vst [vmem:[#allocation2 + $0x148] sm:$0xff] 0.0
        %298 = vst [vmem:[#allocation2 + $0x150] sm:$0xff] 0.0
        %299 = vst [vmem:[#allocation2 + $0x158] sm:$0xff] 0.0
        %300 = vst [vmem:[#allocation2 + $0x160] sm:$0xff] 0.0
        %301 = vst [vmem:[#allocation2 + $0x168] sm:$0xff] 0.0
        %302 = vst [vmem:[#allocation2 + $0x170] sm:$0xff] 0.0
        %303 = vst [vmem:[#allocation2 + $0x178] sm:$0xff] 0.0
        %304 = vst [vmem:[#allocation2 + $0x180] sm:$0xff] 0.0
        %305 = vst [vmem:[#allocation2 + $0x188] sm:$0xff] 0.0
        %306 = vst [vmem:[#allocation2 + $0x190] sm:$0xff] 0.0
        %307 = vst [vmem:[#allocation2 + $0x198] sm:$0xff] 0.0
        %308 = vst [vmem:[#allocation2 + $0x1a0] sm:$0xff] 0.0
        %309 = vst [vmem:[#allocation2 + $0x1a8] sm:$0xff] 0.0
        %310 = vst [vmem:[#allocation2 + $0x1b0] sm:$0xff] 0.0
        %311 = vst [vmem:[#allocation2 + $0x1b8] sm:$0xff] 0.0
        %312 = vst [vmem:[#allocation2 + $0x1c0] sm:$0xff] 0.0
        %313 = vst [vmem:[#allocation2 + $0x1c8] sm:$0xff] 0.0
        %314 = vst [vmem:[#allocation2 + $0x1d0] sm:$0xff] 0.0
        %315 = vst [vmem:[#allocation2 + $0x1d8] sm:$0xff] 0.0
        %316 = vst [vmem:[#allocation2 + $0x1e0] sm:$0xff] 0.0
        %317 = vst [vmem:[#allocation2 + $0x1e8] sm:$0xff] 0.0
        %318 = vst [vmem:[#allocation2 + $0x1f0] sm:$0xff] 0.0
        %319 = vst [vmem:[#allocation2 + $0x1f8] sm:$0xff] 0.0
      $region40: #{_lambda_.6} parent=35 // pred_fallthru
        _
      %v320 = vld [vmem:[#allocation2] sm:$0xff]
      %v321 = vld [vmem:[#allocation2 + $0x8] sm:$0xff]
      %v322 = vld [vmem:[#allocation2 + $0x10] sm:$0xff]
      %v323 = vld [vmem:[#allocation2 + $0x18] sm:$0xff]
      %v324 = vld [vmem:[#allocation2 + $0x20] sm:$0xff]
      %v325 = vld [vmem:[#allocation2 + $0x28] sm:$0xff]
      %v326 = vld [vmem:[#allocation2 + $0x30] sm:$0xff]
      %v327 = vld [vmem:[#allocation2 + $0x38] sm:$0xff]
      %v328 = vld [vmem:[#allocation2 + $0x40] sm:$0xff]
      %v329 = vld [vmem:[#allocation2 + $0x48] sm:$0xff]
      %v330 = vld [vmem:[#allocation2 + $0x50] sm:$0xff]
      %v331 = vld [vmem:[#allocation2 + $0x58] sm:$0xff]
      %v332 = vld [vmem:[#allocation2 + $0x60] sm:$0xff]
      %v333 = vld [vmem:[#allocation2 + $0x68] sm:$0xff]
      %v334 = vld [vmem:[#allocation2 + $0x70] sm:$0xff]
      %v335 = vld [vmem:[#allocation2 + $0x78] sm:$0xff]
      %v336 = vld [vmem:[#allocation2 + $0x80] sm:$0xff]
      %v337 = vld [vmem:[#allocation2 + $0x88] sm:$0xff]
      %v338 = vld [vmem:[#allocation2 + $0x90] sm:$0xff]
      %v339 = vld [vmem:[#allocation2 + $0x98] sm:$0xff]
      %v340 = vld [vmem:[#allocation2 + $0xa0] sm:$0xff]
      %v341 = vld [vmem:[#allocation2 + $0xa8] sm:$0xff]
      %v342 = vld [vmem:[#allocation2 + $0xb0] sm:$0xff]
      %v343 = vld [vmem:[#allocation2 + $0xb8] sm:$0xff]
      %v344 = vld [vmem:[#allocation2 + $0xc0] sm:$0xff]
      %v345 = vld [vmem:[#allocation2 + $0xc8] sm:$0xff]
      %v346 = vld [vmem:[#allocation2 + $0xd0] sm:$0xff]
      %v347 = vld [vmem:[#allocation2 + $0xd8] sm:$0xff]
      %v348 = vld [vmem:[#allocation2 + $0xe0] sm:$0xff]
      %v349 = vld [vmem:[#allocation2 + $0xe8] sm:$0xff]
      %v350 = vld [vmem:[#allocation2 + $0xf0] sm:$0xff]
      %v351 = vld [vmem:[#allocation2 + $0xf8] sm:$0xff]
      %v352 = vld [vmem:[#allocation2 + $0x100] sm:$0xff]
      %v353 = vld [vmem:[#allocation2 + $0x108] sm:$0xff]
      %v354 = vld [vmem:[#allocation2 + $0x110] sm:$0xff]
      %v355 = vld [vmem:[#allocation2 + $0x118] sm:$0xff]
      %v356 = vld [vmem:[#allocation2 + $0x120] sm:$0xff]
      %v357 = vld [vmem:[#allocation2 + $0x128] sm:$0xff]
      %v358 = vld [vmem:[#allocation2 + $0x130] sm:$0xff]
      %v359 = vld [vmem:[#allocation2 + $0x138] sm:$0xff]
      %v360 = vld [vmem:[#allocation2 + $0x140] sm:$0xff]
      %v361 = vld [vmem:[#allocation2 + $0x148] sm:$0xff]
      %v362 = vld [vmem:[#allocation2 + $0x150] sm:$0xff]
      %v363 = vld [vmem:[#allocation2 + $0x158] sm:$0xff]
      %v364 = vld [vmem:[#allocation2 + $0x160] sm:$0xff]
      %v365 = vld [vmem:[#allocation2 + $0x168] sm:$0xff]
      %v366 = vld [vmem:[#allocation2 + $0x170] sm:$0xff]
      %v367 = vld [vmem:[#allocation2 + $0x178] sm:$0xff]
      %v368 = vld [vmem:[#allocation2 + $0x180] sm:$0xff]
      %v369 = vld [vmem:[#allocation2 + $0x188] sm:$0xff]
      %v370 = vld [vmem:[#allocation2 + $0x190] sm:$0xff]
      %v371 = vld [vmem:[#allocation2 + $0x198] sm:$0xff]
      %v372 = vld [vmem:[#allocation2 + $0x1a0] sm:$0xff]
      %v373 = vld [vmem:[#allocation2 + $0x1a8] sm:$0xff]
      %v374 = vld [vmem:[#allocation2 + $0x1b0] sm:$0xff]
      %v375 = vld [vmem:[#allocation2 + $0x1b8] sm:$0xff]
      %v376 = vld [vmem:[#allocation2 + $0x1c0] sm:$0xff]
      %v377 = vld [vmem:[#allocation2 + $0x1c8] sm:$0xff]
      %v378 = vld [vmem:[#allocation2 + $0x1d0] sm:$0xff]
      %v379 = vld [vmem:[#allocation2 + $0x1d8] sm:$0xff]
      %v380 = vld [vmem:[#allocation2 + $0x1e0] sm:$0xff]
      %v381 = vld [vmem:[#allocation2 + $0x1e8] sm:$0xff]
      %v382 = vld [vmem:[#allocation2 + $0x1f0] sm:$0xff]
      %v383 = vld [vmem:[#allocation2 + $0x1f8] sm:$0xff]
      %v384 = vld [vmem:[%s235] sm:$0xf]
      %v385 = vld [vmem:[%s235 + $0x4] sm:$0xf]
      %v386 = vld [vmem:[%s235 + $0x8] sm:$0xf]
      %v387 = vld [vmem:[%s235 + $0xc] sm:$0xf]
      %v388 = vld [vmem:[%s235 + $0x10] sm:$0xf]
      %v389 = vld [vmem:[%s235 + $0x14] sm:$0xf]
      %v390 = vld [vmem:[%s235 + $0x18] sm:$0xf]
      %v391 = vld [vmem:[%s235 + $0x1c] sm:$0xf]
      %v392 = vld [vmem:[%s235 + $0x20] sm:$0xf]
      %v393 = vld [vmem:[%s235 + $0x24] sm:$0xf]
      %v394 = vld [vmem:[%s235 + $0x28] sm:$0xf]
      %v395 = vld [vmem:[%s235 + $0x2c] sm:$0xf]
      %v396 = vld [vmem:[%s235 + $0x30] sm:$0xf]
      %v397 = vld [vmem:[%s235 + $0x34] sm:$0xf]
      %v398 = vld [vmem:[%s235 + $0x38] sm:$0xf]
      %v399 = vld [vmem:[%s235 + $0x3c] sm:$0xf]
      %v400 = vld [vmem:[%s235 + $0x40] sm:$0xf]
      %v401 = vld [vmem:[%s235 + $0x44] sm:$0xf]
      %v402 = vld [vmem:[%s235 + $0x48] sm:$0xf]
      %v403 = vld [vmem:[%s235 + $0x4c] sm:$0xf]
      %v404 = vld [vmem:[%s235 + $0x50] sm:$0xf]
      %v405 = vld [vmem:[%s235 + $0x54] sm:$0xf]
      %v406 = vld [vmem:[%s235 + $0x58] sm:$0xf]
      %v407 = vld [vmem:[%s235 + $0x5c] sm:$0xf]
      %v408 = vld [vmem:[%s235 + $0x60] sm:$0xf]
      %v409 = vld [vmem:[%s235 + $0x64] sm:$0xf]
      %v410 = vld [vmem:[%s235 + $0x68] sm:$0xf]
      %v411 = vld [vmem:[%s235 + $0x6c] sm:$0xf]
      %v412 = vld [vmem:[%s235 + $0x70] sm:$0xf]
      %v413 = vld [vmem:[%s235 + $0x74] sm:$0xf]
      %v414 = vld [vmem:[%s235 + $0x78] sm:$0xf]
      %v415 = vld [vmem:[%s235 + $0x7c] sm:$0xf]
      %v416 = vld [vmem:[%s242] sm:$0xff]
      %v417 = vld [vmem:[%s242 + $0x8] sm:$0xff]
      %v418 = vld [vmem:[%s242 + $0x10] sm:$0xff]
      %v419 = vld [vmem:[%s242 + $0x18] sm:$0xff]
      %v420 = vld [vmem:[%s242 + $0x20] sm:$0xff]
      %v421 = vld [vmem:[%s242 + $0x28] sm:$0xff]
      %v422 = vld [vmem:[%s242 + $0x30] sm:$0xff]
      %v423 = vld [vmem:[%s242 + $0x38] sm:$0xff]
      %v456 = vunpack.c.l.b16 %v384
      %v457 = vunpack.c.l.b16 %v385
      %v458 = vunpack.c.l.b16 %v386
      %v459 = vunpack.c.l.b16 %v387
      %v460 = vunpack.c.l.b16 %v388
      %v461 = vunpack.c.l.b16 %v389
      %v462 = vunpack.c.l.b16 %v390
      %v463 = vunpack.c.l.b16 %v391
      %v464 = vunpack.c.l.b16 %v392
      %v465 = vunpack.c.l.b16 %v393
      %v466 = vunpack.c.l.b16 %v394
      %v467 = vunpack.c.l.b16 %v395
      %v468 = vunpack.c.l.b16 %v396
      %v469 = vunpack.c.l.b16 %v397
      %v470 = vunpack.c.l.b16 %v398
      %v471 = vunpack.c.l.b16 %v399
      %v472 = vunpack.c.l.b16 %v400
      %v473 = vunpack.c.l.b16 %v401
      %v474 = vunpack.c.l.b16 %v402
      %v475 = vunpack.c.l.b16 %v403
      %v476 = vunpack.c.l.b16 %v404
      %v477 = vunpack.c.l.b16 %v405
      %v478 = vunpack.c.l.b16 %v406
      %v479 = vunpack.c.l.b16 %v407
      %v480 = vunpack.c.l.b16 %v408
      %v481 = vunpack.c.l.b16 %v409
      %v482 = vunpack.c.l.b16 %v410
      %v483 = vunpack.c.l.b16 %v411
      %v484 = vunpack.c.l.b16 %v412
      %v485 = vunpack.c.l.b16 %v413
      %v486 = vunpack.c.l.b16 %v414
      %v487 = vunpack.c.l.b16 %v415
      %v488 = vpack.c.b16 %v457, %v456
      %v489 = vpack.c.b16 %v459, %v458
      %v490 = vpack.c.b16 %v461, %v460
      %v491 = vpack.c.b16 %v463, %v462
      %v492 = vpack.c.b16 %v465, %v464
      %v493 = vpack.c.b16 %v467, %v466
      %v494 = vpack.c.b16 %v469, %v468
      %v495 = vpack.c.b16 %v471, %v470
      %v496 = vpack.c.b16 %v473, %v472
      %v497 = vpack.c.b16 %v475, %v474
      %v498 = vpack.c.b16 %v477, %v476
      %v499 = vpack.c.b16 %v479, %v478
      %v500 = vpack.c.b16 %v481, %v480
      %v501 = vpack.c.b16 %v483, %v482
      %v502 = vpack.c.b16 %v485, %v484
      %v503 = vpack.c.b16 %v487, %v486
      %v512 = vunpack.c.l.b16 %v416
      %v513 = vunpack.c.h.b16 %v416
      %v514 = vunpack.c.l.b16 %v417
      %v515 = vunpack.c.h.b16 %v417
      %v516 = vunpack.c.l.b16 %v418
      %v517 = vunpack.c.h.b16 %v418
      %v518 = vunpack.c.l.b16 %v419
      %v519 = vunpack.c.h.b16 %v419
      %v520 = vunpack.c.l.b16 %v420
      %v521 = vunpack.c.h.b16 %v420
      %v522 = vunpack.c.l.b16 %v421
      %v523 = vunpack.c.h.b16 %v421
      %v524 = vunpack.c.l.b16 %v422
      %v525 = vunpack.c.h.b16 %v422
      %v526 = vunpack.c.l.b16 %v423
      %v527 = vunpack.c.h.b16 %v423
      %v528 = vpack.c.b16 %v514, %v512
      %v529 = vpack.c.b16 %v515, %v513
      %v530 = vpack.c.b16 %v518, %v516
      %v531 = vpack.c.b16 %v519, %v517
      %v532 = vpack.c.b16 %v522, %v520
      %v533 = vpack.c.b16 %v523, %v521
      %v534 = vpack.c.b16 %v526, %v524
      %v535 = vpack.c.b16 %v527, %v525
      %vm544 = vcmask 523264
      %v546 = vsel %vm544, %v488, 0
      %v549 = vsel %vm544, %v489, 0
      %v552 = vsel %vm544, %v490, 0
      %v555 = vsel %vm544, %v491, 0
      %v558 = vsel %vm544, %v492, 0
      %v561 = vsel %vm544, %v493, 0
      %v564 = vsel %vm544, %v494, 0
      %v567 = vsel %vm544, %v495, 0
      %v570 = vsel %vm544, %v496, 0
      %v573 = vsel %vm544, %v497, 0
      %v576 = vsel %vm544, %v498, 0
      %v579 = vsel %vm544, %v499, 0
      %v582 = vsel %vm544, %v500, 0
      %v585 = vsel %vm544, %v501, 0
      %v588 = vsel %vm544, %v502, 0
      %v591 = vsel %vm544, %v503, 0
      %593 = vmatpush.bf16.msra.mxu0 0
      %594 = vmatpush.bf16.msra.mxu0 0
      %595 = vmatpush.bf16.msra.mxu0 0
      %596 = vmatpush.bf16.msra.mxu0 0
      %597 = vmatpush.bf16.msra.mxu0 %v534
      %598 = vmatpush.bf16.msra.mxu0 %v532
      %599 = vmatpush.bf16.msra.mxu0 %v530
      %600 = vmatpush.bf16.msra.mxu0 %v528
      %601 = vmatmul.bf16.gmra.mxu0 %v546
      %v602 = vpop.f32.mrf.mxu0
      %v603 = vadd.f32 0.0, %v602
      %v604 = vpop.f32.mrf.mxu0
      %v605 = vadd.f32 0.0, %v604
      %606 = vmatmul.bf16.gmra.mxu0 %v549
      %v607 = vpop.f32.mrf.mxu0
      %v608 = vadd.f32 0.0, %v607
      %v609 = vpop.f32.mrf.mxu0
      %v610 = vadd.f32 0.0, %v609
      %611 = vmatmul.bf16.gmra.mxu0 %v552
      %v612 = vpop.f32.mrf.mxu0
      %v613 = vadd.f32 0.0, %v612
      %v614 = vpop.f32.mrf.mxu0
      %v615 = vadd.f32 0.0, %v614
      %616 = vmatmul.bf16.gmra.mxu0 %v555
      %v617 = vpop.f32.mrf.mxu0
      %v618 = vadd.f32 0.0, %v617
      %v619 = vpop.f32.mrf.mxu0
      %v620 = vadd.f32 0.0, %v619
      %621 = vmatmul.bf16.gmra.mxu0 %v558
      %v622 = vpop.f32.mrf.mxu0
      %v623 = vadd.f32 0.0, %v622
      %v624 = vpop.f32.mrf.mxu0
      %v625 = vadd.f32 0.0, %v624
      %626 = vmatmul.bf16.gmra.mxu0 %v561
      %v627 = vpop.f32.mrf.mxu0
      %v628 = vadd.f32 0.0, %v627
      %v629 = vpop.f32.mrf.mxu0
      %v630 = vadd.f32 0.0, %v629
      %631 = vmatmul.bf16.gmra.mxu0 %v564
      %v632 = vpop.f32.mrf.mxu0
      %v633 = vadd.f32 0.0, %v632
      %v634 = vpop.f32.mrf.mxu0
      %v635 = vadd.f32 0.0, %v634
      %636 = vmatmul.bf16.gmra.mxu0 %v567
      %v637 = vpop.f32.mrf.mxu0
      %v638 = vadd.f32 0.0, %v637
      %v639 = vpop.f32.mrf.mxu0
      %v640 = vadd.f32 0.0, %v639
      %641 = vmatmul.bf16.gmra.mxu0 %v570
      %v642 = vpop.f32.mrf.mxu0
      %v643 = vadd.f32 0.0, %v642
      %v644 = vpop.f32.mrf.mxu0
      %v645 = vadd.f32 0.0, %v644
      %646 = vmatmul.bf16.gmra.mxu0 %v573
      %v647 = vpop.f32.mrf.mxu0
      %v648 = vadd.f32 0.0, %v647
      %v649 = vpop.f32.mrf.mxu0
      %v650 = vadd.f32 0.0, %v649
      %651 = vmatmul.bf16.gmra.mxu0 %v576
      %v652 = vpop.f32.mrf.mxu0
      %v653 = vadd.f32 0.0, %v652
      %v654 = vpop.f32.mrf.mxu0
      %v655 = vadd.f32 0.0, %v654
      %656 = vmatmul.bf16.gmra.mxu0 %v579
      %v657 = vpop.f32.mrf.mxu0
      %v658 = vadd.f32 0.0, %v657
      %v659 = vpop.f32.mrf.mxu0
      %v660 = vadd.f32 0.0, %v659
      %661 = vmatmul.bf16.gmra.mxu0 %v582
      %v662 = vpop.f32.mrf.mxu0
      %v663 = vadd.f32 0.0, %v662
      %v664 = vpop.f32.mrf.mxu0
      %v665 = vadd.f32 0.0, %v664
      %666 = vmatmul.bf16.gmra.mxu0 %v585
      %v667 = vpop.f32.mrf.mxu0
      %v668 = vadd.f32 0.0, %v667
      %v669 = vpop.f32.mrf.mxu0
      %v670 = vadd.f32 0.0, %v669
      %671 = vmatmul.bf16.gmra.mxu0 %v588
      %v672 = vpop.f32.mrf.mxu0
      %v673 = vadd.f32 0.0, %v672
      %v674 = vpop.f32.mrf.mxu0
      %v675 = vadd.f32 0.0, %v674
      %676 = vmatmul.bf16.gmra.mxu0 %v591
      %v677 = vpop.f32.mrf.mxu0
      %v678 = vadd.f32 0.0, %v677
      %v679 = vpop.f32.mrf.mxu0
      %v680 = vadd.f32 0.0, %v679
      %681 = vdwg.mxu0
      %682 = vmatpush.bf16.msra.mxu0 0
      %683 = vmatpush.bf16.msra.mxu0 0
      %684 = vmatpush.bf16.msra.mxu0 0
      %685 = vmatpush.bf16.msra.mxu0 0
      %686 = vmatpush.bf16.msra.mxu0 %v535
      %687 = vmatpush.bf16.msra.mxu0 %v533
      %688 = vmatpush.bf16.msra.mxu0 %v531
      %689 = vmatpush.bf16.msra.mxu0 %v529
      %690 = vmatmul.bf16.gmra.mxu0 %v546
      %v691 = vpop.f32.mrf.mxu0
      %v692 = vadd.f32 0.0, %v691
      %v693 = vpop.f32.mrf.mxu0
      %v694 = vadd.f32 0.0, %v693
      %695 = vmatmul.bf16.gmra.mxu0 %v549
      %v696 = vpop.f32.mrf.mxu0
      %v697 = vadd.f32 0.0, %v696
      %v698 = vpop.f32.mrf.mxu0
      %v699 = vadd.f32 0.0, %v698
      %700 = vmatmul.bf16.gmra.mxu0 %v552
      %v701 = vpop.f32.mrf.mxu0
      %v702 = vadd.f32 0.0, %v701
      %v703 = vpop.f32.mrf.mxu0
      %v704 = vadd.f32 0.0, %v703
      %705 = vmatmul.bf16.gmra.mxu0 %v555
      %v706 = vpop.f32.mrf.mxu0
      %v707 = vadd.f32 0.0, %v706
      %v708 = vpop.f32.mrf.mxu0
      %v709 = vadd.f32 0.0, %v708
      %710 = vmatmul.bf16.gmra.mxu0 %v558
      %v711 = vpop.f32.mrf.mxu0
      %v712 = vadd.f32 0.0, %v711
      %v713 = vpop.f32.mrf.mxu0
      %v714 = vadd.f32 0.0, %v713
      %715 = vmatmul.bf16.gmra.mxu0 %v561
      %v716 = vpop.f32.mrf.mxu0
      %v717 = vadd.f32 0.0, %v716
      %v718 = vpop.f32.mrf.mxu0
      %v719 = vadd.f32 0.0, %v718
      %720 = vmatmul.bf16.gmra.mxu0 %v564
      %v721 = vpop.f32.mrf.mxu0
      %v722 = vadd.f32 0.0, %v721
      %v723 = vpop.f32.mrf.mxu0
      %v724 = vadd.f32 0.0, %v723
      %725 = vmatmul.bf16.gmra.mxu0 %v567
      %v726 = vpop.f32.mrf.mxu0
      %v727 = vadd.f32 0.0, %v726
      %v728 = vpop.f32.mrf.mxu0
      %v729 = vadd.f32 0.0, %v728
      %730 = vmatmul.bf16.gmra.mxu0 %v570
      %v731 = vpop.f32.mrf.mxu0
      %v732 = vadd.f32 0.0, %v731
      %v733 = vpop.f32.mrf.mxu0
      %v734 = vadd.f32 0.0, %v733
      %735 = vmatmul.bf16.gmra.mxu0 %v573
      %v736 = vpop.f32.mrf.mxu0
      %v737 = vadd.f32 0.0, %v736
      %v738 = vpop.f32.mrf.mxu0
      %v739 = vadd.f32 0.0, %v738
      %740 = vmatmul.bf16.gmra.mxu0 %v576
      %v741 = vpop.f32.mrf.mxu0
      %v742 = vadd.f32 0.0, %v741
      %v743 = vpop.f32.mrf.mxu0
      %v744 = vadd.f32 0.0, %v743
      %745 = vmatmul.bf16.gmra.mxu0 %v579
      %v746 = vpop.f32.mrf.mxu0
      %v747 = vadd.f32 0.0, %v746
      %v748 = vpop.f32.mrf.mxu0
      %v749 = vadd.f32 0.0, %v748
      %750 = vmatmul.bf16.gmra.mxu0 %v582
      %v751 = vpop.f32.mrf.mxu0
      %v752 = vadd.f32 0.0, %v751
      %v753 = vpop.f32.mrf.mxu0
      %v754 = vadd.f32 0.0, %v753
      %755 = vmatmul.bf16.gmra.mxu0 %v585
      %v756 = vpop.f32.mrf.mxu0
      %v757 = vadd.f32 0.0, %v756
      %v758 = vpop.f32.mrf.mxu0
      %v759 = vadd.f32 0.0, %v758
      %760 = vmatmul.bf16.gmra.mxu0 %v588
      %v761 = vpop.f32.mrf.mxu0
      %v762 = vadd.f32 0.0, %v761
      %v763 = vpop.f32.mrf.mxu0
      %v764 = vadd.f32 0.0, %v763
      %765 = vmatmul.bf16.gmra.mxu0 %v591
      %v766 = vpop.f32.mrf.mxu0
      %v767 = vadd.f32 0.0, %v766
      %v768 = vpop.f32.mrf.mxu0
      %v769 = vadd.f32 0.0, %v768
      %770 = vdwg.mxu0
      %v771 = vadd.f32 %v320, %v603
      %v772 = vadd.f32 %v321, %v692
      %v773 = vadd.f32 %v322, %v605
      %v774 = vadd.f32 %v323, %v694
      %v775 = vadd.f32 %v324, %v608
      %v776 = vadd.f32 %v325, %v697
      %v777 = vadd.f32 %v326, %v610
      %v778 = vadd.f32 %v327, %v699
      %v779 = vadd.f32 %v328, %v613
      %v780 = vadd.f32 %v329, %v702
      %v781 = vadd.f32 %v330, %v615
      %v782 = vadd.f32 %v331, %v704
      %v783 = vadd.f32 %v332, %v618
      %v784 = vadd.f32 %v333, %v707
      %v785 = vadd.f32 %v334, %v620
      %v786 = vadd.f32 %v335, %v709
      %v787 = vadd.f32 %v336, %v623
      %v788 = vadd.f32 %v337, %v712
      %v789 = vadd.f32 %v338, %v625
      %v790 = vadd.f32 %v339, %v714
      %v791 = vadd.f32 %v340, %v628
      %v792 = vadd.f32 %v341, %v717
      %v793 = vadd.f32 %v342, %v630
      %v794 = vadd.f32 %v343, %v719
      %v795 = vadd.f32 %v344, %v633
      %v796 = vadd.f32 %v345, %v722
      %v797 = vadd.f32 %v346, %v635
      %v798 = vadd.f32 %v347, %v724
      %v799 = vadd.f32 %v348, %v638
      %v800 = vadd.f32 %v349, %v727
      %v801 = vadd.f32 %v350, %v640
      %v802 = vadd.f32 %v351, %v729
      %v803 = vadd.f32 %v352, %v643
      %v804 = vadd.f32 %v353, %v732
      %v805 = vadd.f32 %v354, %v645
      %v806 = vadd.f32 %v355, %v734
      %v807 = vadd.f32 %v356, %v648
      %v808 = vadd.f32 %v357, %v737
      %v809 = vadd.f32 %v358, %v650
      %v810 = vadd.f32 %v359, %v739
      %v811 = vadd.f32 %v360, %v653
      %v812 = vadd.f32 %v361, %v742
      %v813 = vadd.f32 %v362, %v655
      %v814 = vadd.f32 %v363, %v744
      %v815 = vadd.f32 %v364, %v658
      %v816 = vadd.f32 %v365, %v747
      %v817 = vadd.f32 %v366, %v660
      %v818 = vadd.f32 %v367, %v749
      %v819 = vadd.f32 %v368, %v663
      %v820 = vadd.f32 %v369, %v752
      %v821 = vadd.f32 %v370, %v665
      %v822 = vadd.f32 %v371, %v754
      %v823 = vadd.f32 %v372, %v668
      %v824 = vadd.f32 %v373, %v757
      %v825 = vadd.f32 %v374, %v670
      %v826 = vadd.f32 %v375, %v759
      %v827 = vadd.f32 %v376, %v673
      %v828 = vadd.f32 %v377, %v762
      %v829 = vadd.f32 %v378, %v675
      %v830 = vadd.f32 %v379, %v764
      %v831 = vadd.f32 %v380, %v678
      %v832 = vadd.f32 %v381, %v767
      %v833 = vadd.f32 %v382, %v680
      %v834 = vadd.f32 %v383, %v769
      %835 = vst [vmem:[#allocation2] sm:$0xff] %v771
      %836 = vst [vmem:[#allocation2 + $0x8] sm:$0xff] %v772
      %837 = vst [vmem:[#allocation2 + $0x10] sm:$0xff] %v773
      %838 = vst [vmem:[#allocation2 + $0x18] sm:$0xff] %v774
      %839 = vst [vmem:[#allocation2 + $0x20] sm:$0xff] %v775
      %840 = vst [vmem:[#allocation2 + $0x28] sm:$0xff] %v776
      %841 = vst [vmem:[#allocation2 + $0x30] sm:$0xff] %v777
      %842 = vst [vmem:[#allocation2 + $0x38] sm:$0xff] %v778
      %843 = vst [vmem:[#allocation2 + $0x40] sm:$0xff] %v779
      %844 = vst [vmem:[#allocation2 + $0x48] sm:$0xff] %v780
      %845 = vst [vmem:[#allocation2 + $0x50] sm:$0xff] %v781
      %846 = vst [vmem:[#allocation2 + $0x58] sm:$0xff] %v782
      %847 = vst [vmem:[#allocation2 + $0x60] sm:$0xff] %v783
      %848 = vst [vmem:[#allocation2 + $0x68] sm:$0xff] %v784
      %849 = vst [vmem:[#allocation2 + $0x70] sm:$0xff] %v785
      %850 = vst [vmem:[#allocation2 + $0x78] sm:$0xff] %v786
      %851 = vst [vmem:[#allocation2 + $0x80] sm:$0xff] %v787
      %852 = vst [vmem:[#allocation2 + $0x88] sm:$0xff] %v788
      %853 = vst [vmem:[#allocation2 + $0x90] sm:$0xff] %v789
      %854 = vst [vmem:[#allocation2 + $0x98] sm:$0xff] %v790
      %855 = vst [vmem:[#allocation2 + $0xa0] sm:$0xff] %v791
      %856 = vst [vmem:[#allocation2 + $0xa8] sm:$0xff] %v792
      %857 = vst [vmem:[#allocation2 + $0xb0] sm:$0xff] %v793
      %858 = vst [vmem:[#allocation2 + $0xb8] sm:$0xff] %v794
      %859 = vst [vmem:[#allocation2 + $0xc0] sm:$0xff] %v795
      %860 = vst [vmem:[#allocation2 + $0xc8] sm:$0xff] %v796
      %861 = vst [vmem:[#allocation2 + $0xd0] sm:$0xff] %v797
      %862 = vst [vmem:[#allocation2 + $0xd8] sm:$0xff] %v798
      %863 = vst [vmem:[#allocation2 + $0xe0] sm:$0xff] %v799
      %864 = vst [vmem:[#allocation2 + $0xe8] sm:$0xff] %v800
      %865 = vst [vmem:[#allocation2 + $0xf0] sm:$0xff] %v801
      %866 = vst [vmem:[#allocation2 + $0xf8] sm:$0xff] %v802
      %867 = vst [vmem:[#allocation2 + $0x100] sm:$0xff] %v803
      %868 = vst [vmem:[#allocation2 + $0x108] sm:$0xff] %v804
      %869 = vst [vmem:[#allocation2 + $0x110] sm:$0xff] %v805
      %870 = vst [vmem:[#allocation2 + $0x118] sm:$0xff] %v806
      %871 = vst [vmem:[#allocation2 + $0x120] sm:$0xff] %v807
      %872 = vst [vmem:[#allocation2 + $0x128] sm:$0xff] %v808
      %873 = vst [vmem:[#allocation2 + $0x130] sm:$0xff] %v809
      %874 = vst [vmem:[#allocation2 + $0x138] sm:$0xff] %v810
      %875 = vst [vmem:[#allocation2 + $0x140] sm:$0xff] %v811
      %876 = vst [vmem:[#allocation2 + $0x148] sm:$0xff] %v812
      %877 = vst [vmem:[#allocation2 + $0x150] sm:$0xff] %v813
      %878 = vst [vmem:[#allocation2 + $0x158] sm:$0xff] %v814
      %879 = vst [vmem:[#allocation2 + $0x160] sm:$0xff] %v815
      %880 = vst [vmem:[#allocation2 + $0x168] sm:$0xff] %v816
      %881 = vst [vmem:[#allocation2 + $0x170] sm:$0xff] %v817
      %882 = vst [vmem:[#allocation2 + $0x178] sm:$0xff] %v818
      %883 = vst [vmem:[#allocation2 + $0x180] sm:$0xff] %v819
      %884 = vst [vmem:[#allocation2 + $0x188] sm:$0xff] %v820
      %885 = vst [vmem:[#allocation2 + $0x190] sm:$0xff] %v821
      %886 = vst [vmem:[#allocation2 + $0x198] sm:$0xff] %v822
      %887 = vst [vmem:[#allocation2 + $0x1a0] sm:$0xff] %v823
      %888 = vst [vmem:[#allocation2 + $0x1a8] sm:$0xff] %v824
      %889 = vst [vmem:[#allocation2 + $0x1b0] sm:$0xff] %v825
      %890 = vst [vmem:[#allocation2 + $0x1b8] sm:$0xff] %v826
      %891 = vst [vmem:[#allocation2 + $0x1c0] sm:$0xff] %v827
      %892 = vst [vmem:[#allocation2 + $0x1c8] sm:$0xff] %v828
      %893 = vst [vmem:[#allocation2 + $0x1d0] sm:$0xff] %v829
      %894 = vst [vmem:[#allocation2 + $0x1d8] sm:$0xff] %v830
      %895 = vst [vmem:[#allocation2 + $0x1e0] sm:$0xff] %v831
      %896 = vst [vmem:[#allocation2 + $0x1e8] sm:$0xff] %v832
      %897 = vst [vmem:[#allocation2 + $0x1f0] sm:$0xff] %v833
      %898 = vst [vmem:[#allocation2 + $0x1f8] sm:$0xff] %v834
      // Predicated region
      $region41: #{_lambda_.6} parent=35 // pred_check
        %p899 = pneg %p252
      $region42: #{_lambda_.6} parent=35 // pred_check_branch
        %901 = sbr.rel (%p899) target = $region44
      $region43: #{_lambda_.6} parent=35 // pred_region
        %v902 = vld [vmem:[#allocation2] sm:$0xff]
        %v903 = vld [vmem:[#allocation2 + $0x8] sm:$0xff]
        %v904 = vld [vmem:[#allocation2 + $0x10] sm:$0xff]
        %v905 = vld [vmem:[#allocation2 + $0x18] sm:$0xff]
        %v906 = vld [vmem:[#allocation2 + $0x20] sm:$0xff]
        %v907 = vld [vmem:[#allocation2 + $0x28] sm:$0xff]
        %v908 = vld [vmem:[#allocation2 + $0x30] sm:$0xff]
        %v909 = vld [vmem:[#allocation2 + $0x38] sm:$0xff]
        %v910 = vld [vmem:[#allocation2 + $0x40] sm:$0xff]
        %v911 = vld [vmem:[#allocation2 + $0x48] sm:$0xff]
        %v912 = vld [vmem:[#allocation2 + $0x50] sm:$0xff]
        %v913 = vld [vmem:[#allocation2 + $0x58] sm:$0xff]
        %v914 = vld [vmem:[#allocation2 + $0x60] sm:$0xff]
        %v915 = vld [vmem:[#allocation2 + $0x68] sm:$0xff]
        %v916 = vld [vmem:[#allocation2 + $0x70] sm:$0xff]
        %v917 = vld [vmem:[#allocation2 + $0x78] sm:$0xff]
        %v918 = vld [vmem:[#allocation2 + $0x80] sm:$0xff]
        %v919 = vld [vmem:[#allocation2 + $0x88] sm:$0xff]
        %v920 = vld [vmem:[#allocation2 + $0x90] sm:$0xff]
        %v921 = vld [vmem:[#allocation2 + $0x98] sm:$0xff]
        %v922 = vld [vmem:[#allocation2 + $0xa0] sm:$0xff]
        %v923 = vld [vmem:[#allocation2 + $0xa8] sm:$0xff]
        %v924 = vld [vmem:[#allocation2 + $0xb0] sm:$0xff]
        %v925 = vld [vmem:[#allocation2 + $0xb8] sm:$0xff]
        %v926 = vld [vmem:[#allocation2 + $0xc0] sm:$0xff]
        %v927 = vld [vmem:[#allocation2 + $0xc8] sm:$0xff]
        %v928 = vld [vmem:[#allocation2 + $0xd0] sm:$0xff]
        %v929 = vld [vmem:[#allocation2 + $0xd8] sm:$0xff]
        %v930 = vld [vmem:[#allocation2 + $0xe0] sm:$0xff]
        %v931 = vld [vmem:[#allocation2 + $0xe8] sm:$0xff]
        %v932 = vld [vmem:[#allocation2 + $0xf0] sm:$0xff]
        %v933 = vld [vmem:[#allocation2 + $0xf8] sm:$0xff]
        %v934 = vld [vmem:[#allocation2 + $0x100] sm:$0xff]
        %v935 = vld [vmem:[#allocation2 + $0x108] sm:$0xff]
        %v936 = vld [vmem:[#allocation2 + $0x110] sm:$0xff]
        %v937 = vld [vmem:[#allocation2 + $0x118] sm:$0xff]
        %v938 = vld [vmem:[#allocation2 + $0x120] sm:$0xff]
        %v939 = vld [vmem:[#allocation2 + $0x128] sm:$0xff]
        %v940 = vld [vmem:[#allocation2 + $0x130] sm:$0xff]
        %v941 = vld [vmem:[#allocation2 + $0x138] sm:$0xff]
        %v942 = vld [vmem:[#allocation2 + $0x140] sm:$0xff]
        %v943 = vld [vmem:[#allocation2 + $0x148] sm:$0xff]
        %v944 = vld [vmem:[#allocation2 + $0x150] sm:$0xff]
        %v945 = vld [vmem:[#allocation2 + $0x158] sm:$0xff]
        %v946 = vld [vmem:[#allocation2 + $0x160] sm:$0xff]
        %v947 = vld [vmem:[#allocation2 + $0x168] sm:$0xff]
        %v948 = vld [vmem:[#allocation2 + $0x170] sm:$0xff]
        %v949 = vld [vmem:[#allocation2 + $0x178] sm:$0xff]
        %v950 = vld [vmem:[#allocation2 + $0x180] sm:$0xff]
        %v951 = vld [vmem:[#allocation2 + $0x188] sm:$0xff]
        %v952 = vld [vmem:[#allocation2 + $0x190] sm:$0xff]
        %v953 = vld [vmem:[#allocation2 + $0x198] sm:$0xff]
        %v954 = vld [vmem:[#allocation2 + $0x1a0] sm:$0xff]
        %v955 = vld [vmem:[#allocation2 + $0x1a8] sm:$0xff]
        %v956 = vld [vmem:[#allocation2 + $0x1b0] sm:$0xff]
        %v957 = vld [vmem:[#allocation2 + $0x1b8] sm:$0xff]
        %v958 = vld [vmem:[#allocation2 + $0x1c0] sm:$0xff]
        %v959 = vld [vmem:[#allocation2 + $0x1c8] sm:$0xff]
        %v960 = vld [vmem:[#allocation2 + $0x1d0] sm:$0xff]
        %v961 = vld [vmem:[#allocation2 + $0x1d8] sm:$0xff]
        %v962 = vld [vmem:[#allocation2 + $0x1e0] sm:$0xff]
        %v963 = vld [vmem:[#allocation2 + $0x1e8] sm:$0xff]
        %v964 = vld [vmem:[#allocation2 + $0x1f0] sm:$0xff]
        %v965 = vld [vmem:[#allocation2 + $0x1f8] sm:$0xff]
        %v966 = vld [vmem:[%s2] sm:$0x3]
        %v968 = vperm.slane %v966, 0
        %v969 = vperm.slane %v966, 1
        %v972 = vmul.f32 %v902, %v968
        %v973 = vmul.f32 %v903, %v969
        %v974 = vmul.f32 %v904, %v968
        %v975 = vmul.f32 %v905, %v969
        %v976 = vmul.f32 %v906, %v968
        %v977 = vmul.f32 %v907, %v969
        %v978 = vmul.f32 %v908, %v968
        %v979 = vmul.f32 %v909, %v969
        %v980 = vmul.f32 %v910, %v968
        %v981 = vmul.f32 %v911, %v969
        %v982 = vmul.f32 %v912, %v968
        %v983 = vmul.f32 %v913, %v969
        %v984 = vmul.f32 %v914, %v968
        %v985 = vmul.f32 %v915, %v969
        %v986 = vmul.f32 %v916, %v968
        %v987 = vmul.f32 %v917, %v969
        %v988 = vmul.f32 %v918, %v968
        %v989 = vmul.f32 %v919, %v969
        %v990 = vmul.f32 %v920, %v968
        %v991 = vmul.f32 %v921, %v969
        %v992 = vmul.f32 %v922, %v968
        %v993 = vmul.f32 %v923, %v969
        %v994 = vmul.f32 %v924, %v968
        %v995 = vmul.f32 %v925, %v969
        %v996 = vmul.f32 %v926, %v968
        %v997 = vmul.f32 %v927, %v969
        %v998 = vmul.f32 %v928, %v968
        %v999 = vmul.f32 %v929, %v969
        %v1000 = vmul.f32 %v930, %v968
        %v1001 = vmul.f32 %v931, %v969
        %v1002 = vmul.f32 %v932, %v968
        %v1003 = vmul.f32 %v933, %v969
        %v1004 = vmul.f32 %v934, %v968
        %v1005 = vmul.f32 %v935, %v969
        %v1006 = vmul.f32 %v936, %v968
        %v1007 = vmul.f32 %v937, %v969
        %v1008 = vmul.f32 %v938, %v968
        %v1009 = vmul.f32 %v939, %v969
        %v1010 = vmul.f32 %v940, %v968
        %v1011 = vmul.f32 %v941, %v969
        %v1012 = vmul.f32 %v942, %v968
        %v1013 = vmul.f32 %v943, %v969
        %v1014 = vmul.f32 %v944, %v968
        %v1015 = vmul.f32 %v945, %v969
        %v1016 = vmul.f32 %v946, %v968
        %v1017 = vmul.f32 %v947, %v969
        %v1018 = vmul.f32 %v948, %v968
        %v1019 = vmul.f32 %v949, %v969
        %v1020 = vmul.f32 %v950, %v968
        %v1021 = vmul.f32 %v951, %v969
        %v1022 = vmul.f32 %v952, %v968
        %v1023 = vmul.f32 %v953, %v969
        %v1024 = vmul.f32 %v954, %v968
        %v1025 = vmul.f32 %v955, %v969
        %v1026 = vmul.f32 %v956, %v968
        %v1027 = vmul.f32 %v957, %v969
        %v1028 = vmul.f32 %v958, %v968
        %v1029 = vmul.f32 %v959, %v969
        %v1030 = vmul.f32 %v960, %v968
        %v1031 = vmul.f32 %v961, %v969
        %v1032 = vmul.f32 %v962, %v968
        %v1033 = vmul.f32 %v963, %v969
        %v1034 = vmul.f32 %v964, %v968
        %v1035 = vmul.f32 %v965, %v969
        %v1036 = vld [vmem:[%s3] sm:$0x3]
        %v1038 = vperm.slane %v1036, 0
        %v1039 = vperm.slane %v1036, 1
        %v1042 = vadd.f32 %v972, %v1038
        %v1043 = vadd.f32 %v973, %v1039
        %v1044 = vadd.f32 %v974, %v1038
        %v1045 = vadd.f32 %v975, %v1039
        %v1046 = vadd.f32 %v976, %v1038
        %v1047 = vadd.f32 %v977, %v1039
        %v1048 = vadd.f32 %v978, %v1038
        %v1049 = vadd.f32 %v979, %v1039
        %v1050 = vadd.f32 %v980, %v1038
        %v1051 = vadd.f32 %v981, %v1039
        %v1052 = vadd.f32 %v982, %v1038
        %v1053 = vadd.f32 %v983, %v1039
        %v1054 = vadd.f32 %v984, %v1038
        %v1055 = vadd.f32 %v985, %v1039
        %v1056 = vadd.f32 %v986, %v1038
        %v1057 = vadd.f32 %v987, %v1039
        %v1058 = vadd.f32 %v988, %v1038
        %v1059 = vadd.f32 %v989, %v1039
        %v1060 = vadd.f32 %v990, %v1038
        %v1061 = vadd.f32 %v991, %v1039
        %v1062 = vadd.f32 %v992, %v1038
        %v1063 = vadd.f32 %v993, %v1039
        %v1064 = vadd.f32 %v994, %v1038
        %v1065 = vadd.f32 %v995, %v1039
        %v1066 = vadd.f32 %v996, %v1038
        %v1067 = vadd.f32 %v997, %v1039
        %v1068 = vadd.f32 %v998, %v1038
        %v1069 = vadd.f32 %v999, %v1039
        %v1070 = vadd.f32 %v1000, %v1038
        %v1071 = vadd.f32 %v1001, %v1039
        %v1072 = vadd.f32 %v1002, %v1038
        %v1073 = vadd.f32 %v1003, %v1039
        %v1074 = vadd.f32 %v1004, %v1038
        %v1075 = vadd.f32 %v1005, %v1039
        %v1076 = vadd.f32 %v1006, %v1038
        %v1077 = vadd.f32 %v1007, %v1039
        %v1078 = vadd.f32 %v1008, %v1038
        %v1079 = vadd.f32 %v1009, %v1039
        %v1080 = vadd.f32 %v1010, %v1038
        %v1081 = vadd.f32 %v1011, %v1039
        %v1082 = vadd.f32 %v1012, %v1038
        %v1083 = vadd.f32 %v1013, %v1039
        %v1084 = vadd.f32 %v1014, %v1038
        %v1085 = vadd.f32 %v1015, %v1039
        %v1086 = vadd.f32 %v1016, %v1038
        %v1087 = vadd.f32 %v1017, %v1039
        %v1088 = vadd.f32 %v1018, %v1038
        %v1089 = vadd.f32 %v1019, %v1039
        %v1090 = vadd.f32 %v1020, %v1038
        %v1091 = vadd.f32 %v1021, %v1039
        %v1092 = vadd.f32 %v1022, %v1038
        %v1093 = vadd.f32 %v1023, %v1039
        %v1094 = vadd.f32 %v1024, %v1038
        %v1095 = vadd.f32 %v1025, %v1039
        %v1096 = vadd.f32 %v1026, %v1038
        %v1097 = vadd.f32 %v1027, %v1039
        %v1098 = vadd.f32 %v1028, %v1038
        %v1099 = vadd.f32 %v1029, %v1039
        %v1100 = vadd.f32 %v1030, %v1038
        %v1101 = vadd.f32 %v1031, %v1039
        %v1102 = vadd.f32 %v1032, %v1038
        %v1103 = vadd.f32 %v1033, %v1039
        %v1104 = vadd.f32 %v1034, %v1038
        %v1105 = vadd.f32 %v1035, %v1039
        %v1106 = vpack.c.bf16 %v1043, %v1042
        %v1107 = vpack.c.bf16 %v1045, %v1044
        %v1108 = vpack.c.bf16 %v1047, %v1046
        %v1109 = vpack.c.bf16 %v1049, %v1048
        %v1110 = vpack.c.bf16 %v1051, %v1050
        %v1111 = vpack.c.bf16 %v1053, %v1052
        %v1112 = vpack.c.bf16 %v1055, %v1054
        %v1113 = vpack.c.bf16 %v1057, %v1056
        %v1114 = vpack.c.bf16 %v1059, %v1058
        %v1115 = vpack.c.bf16 %v1061, %v1060
        %v1116 = vpack.c.bf16 %v1063, %v1062
        %v1117 = vpack.c.bf16 %v1065, %v1064
        %v1118 = vpack.c.bf16 %v1067, %v1066
        %v1119 = vpack.c.bf16 %v1069, %v1068
        %v1120 = vpack.c.bf16 %v1071, %v1070
        %v1121 = vpack.c.bf16 %v1073, %v1072
        %v1122 = vpack.c.bf16 %v1075, %v1074
        %v1123 = vpack.c.bf16 %v1077, %v1076
        %v1124 = vpack.c.bf16 %v1079, %v1078
        %v1125 = vpack.c.bf16 %v1081, %v1080
        %v1126 = vpack.c.bf16 %v1083, %v1082
        %v1127 = vpack.c.bf16 %v1085, %v1084
        %v1128 = vpack.c.bf16 %v1087, %v1086
        %v1129 = vpack.c.bf16 %v1089, %v1088
        %v1130 = vpack.c.bf16 %v1091, %v1090
        %v1131 = vpack.c.bf16 %v1093, %v1092
        %v1132 = vpack.c.bf16 %v1095, %v1094
        %v1133 = vpack.c.bf16 %v1097, %v1096
        %v1134 = vpack.c.bf16 %v1099, %v1098
        %v1135 = vpack.c.bf16 %v1101, %v1100
        %v1136 = vpack.c.bf16 %v1103, %v1102
        %v1137 = vpack.c.bf16 %v1105, %v1104
        %1138 = vst [vmem:[%s249] sm:$0xff] %v1106
        %1139 = vst [vmem:[%s249 + $0x8] sm:$0xff] %v1107
        %1140 = vst [vmem:[%s249 + $0x10] sm:$0xff] %v1108
        %1141 = vst [vmem:[%s249 + $0x18] sm:$0xff] %v1109
        %1142 = vst [vmem:[%s249 + $0x20] sm:$0xff] %v1110
        %1143 = vst [vmem:[%s249 + $0x28] sm:$0xff] %v1111
        %1144 = vst [vmem:[%s249 + $0x30] sm:$0xff] %v1112
        %1145 = vst [vmem:[%s249 + $0x38] sm:$0xff] %v1113
        %1146 = vst [vmem:[%s249 + $0x40] sm:$0xff] %v1114
        %1147 = vst [vmem:[%s249 + $0x48] sm:$0xff] %v1115
        %1148 = vst [vmem:[%s249 + $0x50] sm:$0xff] %v1116
        %1149 = vst [vmem:[%s249 + $0x58] sm:$0xff] %v1117
        %1150 = vst [vmem:[%s249 + $0x60] sm:$0xff] %v1118
        %1151 = vst [vmem:[%s249 + $0x68] sm:$0xff] %v1119
        %1152 = vst [vmem:[%s249 + $0x70] sm:$0xff] %v1120
        %1153 = vst [vmem:[%s249 + $0x78] sm:$0xff] %v1121
        %1154 = vst [vmem:[%s249 + $0x80] sm:$0xff] %v1122
        %1155 = vst [vmem:[%s249 + $0x88] sm:$0xff] %v1123
        %1156 = vst [vmem:[%s249 + $0x90] sm:$0xff] %v1124
        %1157 = vst [vmem:[%s249 + $0x98] sm:$0xff] %v1125
        %1158 = vst [vmem:[%s249 + $0xa0] sm:$0xff] %v1126
        %1159 = vst [vmem:[%s249 + $0xa8] sm:$0xff] %v1127
        %1160 = vst [vmem:[%s249 + $0xb0] sm:$0xff] %v1128
        %1161 = vst [vmem:[%s249 + $0xb8] sm:$0xff] %v1129
        %1162 = vst [vmem:[%s249 + $0xc0] sm:$0xff] %v1130
        %1163 = vst [vmem:[%s249 + $0xc8] sm:$0xff] %v1131
        %1164 = vst [vmem:[%s249 + $0xd0] sm:$0xff] %v1132
        %1165 = vst [vmem:[%s249 + $0xd8] sm:$0xff] %v1133
        %1166 = vst [vmem:[%s249 + $0xe0] sm:$0xff] %v1134
        %1167 = vst [vmem:[%s249 + $0xe8] sm:$0xff] %v1135
        %1168 = vst [vmem:[%s249 + $0xf0] sm:$0xff] %v1136
        %1169 = vst [vmem:[%s249 + $0xf8] sm:$0xff] %v1137
      $region44: #{_lambda_.6} parent=35 // pred_fallthru
        _
      %s1170 = smul.u32 32, %s19
      %p1171 = scmp.lt.s32.totalorder %s1170, 63
      %s1172 = scalar_select %p1171, %s1170, 63
      %s1173 = smul.addr %s1172, 2
      %s1174 = smul.addr %s1173, 4
      %s1175 = scalar_lea.vmem %s4, %s1174
      // Predicated region
      $region45: #{_lambda_.6} parent=35 // pred_check
        %p1176 = pneg %p141
      $region46: #{_lambda_.6} parent=35 // pred_check_branch
        %1178 = sbr.rel (%p1176) target = $region48
      $region47: #{_lambda_.6} parent=35 // pred_region
        %s1179 = smul.u32 32, %s19
      $region48: #{_lambda_.6} parent=35 // pred_fallthru
        _
    $region36: #{_lambda_.6} parent=5 // pred_fallthru
      _
    %p1180 = scmp.le.s32.totalorder 2, %s10
    // Predicated region
    $region49: #{_lambda_.6} parent=5 // pred_check
      %p1181 = pneg %p1180
    $region50: #{_lambda_.6} parent=5 // pred_check_branch
      %1183 = sbr.rel (%p1181) target = $region52
    $region51: #{_lambda_.6} parent=5 // pred_region
      %s1184 = ssub.s32 %s10, 2
      // Predicated region
      $region53: #{_lambda_.6} parent=51 // pred_check
        %p1185 = pneg %p147
      $region54: #{_lambda_.6} parent=51 // pred_check_branch
        %1187 = sbr.rel (%p1185) target = $region56
      $region55: #{_lambda_.6} parent=51 // pred_region
        %s1188 = smul.u32 32, %s21
        %p1189 = scmp.lt.s32.totalorder %s1188, 63
        %s1190 = scalar_select %p1189, %s1188, 63
        %s1191 = smul.addr %s1190, 2
        %s1192 = smul.addr %s1191, 4
        %s1193 = scalar_lea.vmem %s4, %s1192
      $region56: #{_lambda_.6} parent=51 // pred_fallthru
        _
    $region52: #{_lambda_.6} parent=5 // pred_fallthru
      _
  $region6: #{_lambda_.6} parent=0 // loop_footer
    %s14 = sadd.s32 1, %s10
  $region7: #{_lambda_.6} parent=0 // loop_footer_branch
    %9 = sbr.rel target = $region3
  $region8: #{_lambda_.6} parent=0 // loop_exit
    _

// kernel: _lambda_.5
$region0: #{_lambda_.5}
  #allocation0 [shape = 'u32[]', space=smem, size = 0x4, offset = 0x4, fixed_abs, tag = 'smem constant byte address 0x4 - core index']
  #allocation1 [shape = 'u32[72,128]{1,0:T(1,128)}', space=vmem, size = 0x9000, scoped, tag = 'internal scratch']
  %s0 = inlined_call_operand.vmem [shape: bf16[2,326,64], index: 0, kind: input, shape index: {}]
  %s1 = inlined_call_operand.vmem [shape: bf16[3,3,64,64], index: 1, kind: input, shape index: {}]
  %s2 = inlined_call_operand.vmem [shape: f32[1,64], index: 2, kind: input, shape index: {}]
  %s3 = inlined_call_operand.vmem [shape: f32[1,64], index: 3, kind: input, shape index: {}]
  %s4 = inlined_call_operand.vmem [shape: bf16[2,288,64], index: 4, kind: output, shape index: {}]
  %s5 = sld [smem:[#allocation0]]
  $region49: #{_lambda_.5} parent=0
    _
  %s7 = ssub.s32 1, %s5
  %s8 = scalar_select 0, %s7, %s5
  loop: start=0, step=1, limit=4
  $region2: #{_lambda_.5} parent=0 // loop_pre_header
    _
  $region3: #{_lambda_.5} parent=0 // loop_header
    %s10 = sphi 0, %s14
    %p11 = scmp.ge.s32.totalorder %s10, 4
    %s20 = sphi 0, %s22
    %s23 = sphi 0, %s20
    %s24 = sphi 0, %s23
    %s40 = sphi 0, %s24
    %s44 = sphi 0, %s44
    %s46 = sphi 0, %s44
    %s47 = sphi 0, %s46
    %s61 = sphi 0, %s47
    %s65 = sphi 0, %s65
    %s67 = sphi 0, %s65
    %s68 = sphi 0, %s67
    %s82 = sphi 0, %s68
    %s86 = sphi 0, %s86
    %s88 = sphi 0, %s86
    %s89 = sphi 0, %s88
    %s103 = sphi 0, %s89
    %s109 = sphi 0, %s111
    %s112 = sphi 0, %s109
    %s113 = sphi 0, %s112
    %s129 = sphi 0, %s113
  $region4: #{_lambda_.5} parent=0 // loop_header_branch
    %13 = sbr.rel (%p11) target = $region8
  $region5: #{_lambda_.5} parent=0 // loop_body
    %s15 = ssub.s32 %s10, 1
    %s16 = ssub.s32 %s10, 2
    %s17 = sadd.s32 %s10, 1
    %s18 = ssub.s32 %s10, %s17
    %p19 = scmp.eq.s32.totalorder %s18, 0
    %s21 = sadd.s32 %s20, 1
    %s22 = scalar_select %p19, %s20, %s21
    %p25 = pneg %p19
    %p26 = scmp.eq.s32.totalorder %s10, 1
    %p27 = por %p25, %p26
    %p28 = scmp.ne.s32.totalorder %s20, %s23
    %p29 = scmp.eq.s32.totalorder %s10, 0
    %p30 = por %p28, %p29
    %p31 = scmp.ne.s32.totalorder %s20, %s23
    %p32 = scmp.eq.s32.totalorder %s15, 1
    %p33 = por %p31, %p32
    %p34 = scmp.ne.s32.totalorder %s23, %s24
    %p35 = scmp.eq.s32.totalorder %s15, 0
    %p36 = por %p34, %p35
    %p37 = scmp.ne.s32.totalorder %s23, %s24
    %p38 = scmp.eq.s32.totalorder %s16, 1
    %p39 = por %p37, %p38
    %p41 = scmp.ne.s32.totalorder %s24, %s40
    %p42 = scmp.eq.s32.totalorder %s16, 0
    %p43 = por %p41, %p42
    %s45 = sadd.s32 %s44, 1
    %p48 = scmp.eq.s32.totalorder %s10, 1
    %p49 = scmp.ne.s32.totalorder %s44, %s46
    %p50 = scmp.eq.s32.totalorder %s10, 0
    %p51 = por %p49, %p50
    %p52 = scmp.ne.s32.totalorder %s44, %s46
    %p53 = scmp.eq.s32.totalorder %s15, 1
    %p54 = por %p52, %p53
    %p55 = scmp.ne.s32.totalorder %s46, %s47
    %p56 = scmp.eq.s32.totalorder %s15, 0
    %p57 = por %p55, %p56
    %p58 = scmp.ne.s32.totalorder %s46, %s47
    %p59 = scmp.eq.s32.totalorder %s16, 1
    %p60 = por %p58, %p59
    %p62 = scmp.ne.s32.totalorder %s47, %s61
    %p63 = scmp.eq.s32.totalorder %s16, 0
    %p64 = por %p62, %p63
    %s66 = sadd.s32 %s65, 1
    %p69 = scmp.eq.s32.totalorder %s10, 1
    %p70 = scmp.ne.s32.totalorder %s65, %s67
    %p71 = scmp.eq.s32.totalorder %s10, 0
    %p72 = por %p70, %p71
    %p73 = scmp.ne.s32.totalorder %s65, %s67
    %p74 = scmp.eq.s32.totalorder %s15, 1
    %p75 = por %p73, %p74
    %p76 = scmp.ne.s32.totalorder %s67, %s68
    %p77 = scmp.eq.s32.totalorder %s15, 0
    %p78 = por %p76, %p77
    %p79 = scmp.ne.s32.totalorder %s67, %s68
    %p80 = scmp.eq.s32.totalorder %s16, 1
    %p81 = por %p79, %p80
    %p83 = scmp.ne.s32.totalorder %s68, %s82
    %p84 = scmp.eq.s32.totalorder %s16, 0
    %p85 = por %p83, %p84
    %s87 = sadd.s32 %s86, 1
    %p90 = scmp.eq.s32.totalorder %s10, 1
    %p91 = scmp.ne.s32.totalorder %s86, %s88
    %p92 = scmp.eq.s32.totalorder %s10, 0
    %p93 = por %p91, %p92
    %p94 = scmp.ne.s32.totalorder %s86, %s88
    %p95 = scmp.eq.s32.totalorder %s15, 1
    %p96 = por %p94, %p95
    %p97 = scmp.ne.s32.totalorder %s88, %s89
    %p98 = scmp.eq.s32.totalorder %s15, 0
    %p99 = por %p97, %p98
    %p100 = scmp.ne.s32.totalorder %s88, %s89
    %p101 = scmp.eq.s32.totalorder %s16, 1
    %p102 = por %p100, %p101
    %p104 = scmp.ne.s32.totalorder %s89, %s103
    %p105 = scmp.eq.s32.totalorder %s16, 0
    %p106 = por %p104, %p105
    %s107 = ssub.s32 %s10, %s17
    %p108 = scmp.eq.s32.totalorder %s107, 0
    %s110 = sadd.s32 %s109, 1
    %s111 = scalar_select %p108, %s109, %s110
    %p114 = pneg %p108
    %p115 = scmp.eq.s32.totalorder %s10, 1
    %p116 = por %p114, %p115
    %p117 = scmp.ne.s32.totalorder %s109, %s112
    %p118 = scmp.eq.s32.totalorder %s10, 0
    %p119 = por %p117, %p118
    %p120 = scmp.ne.s32.totalorder %s109, %s112
    %p121 = scmp.eq.s32.totalorder %s15, 1
    %p122 = por %p120, %p121
    %p123 = scmp.ne.s32.totalorder %s112, %s113
    %p124 = scmp.eq.s32.totalorder %s15, 0
    %p125 = por %p123, %p124
    %p126 = scmp.ne.s32.totalorder %s112, %s113
    %p127 = scmp.eq.s32.totalorder %s16, 1
    %p128 = por %p126, %p127
    %p130 = scmp.ne.s32.totalorder %s113, %s129
    %p131 = scmp.eq.s32.totalorder %s16, 0
    %p132 = por %p130, %p131
    %p133 = scmp.le.s32.totalorder 1, %s10
    %p134 = scmp.lt.s32.totalorder %s10, 3
    %p135 = pnand %p133, %p134
    %p136 = pneg %p135
    // Predicated region
    $region9: #{_lambda_.5} parent=5 // pred_check
      _
    $region10: #{_lambda_.5} parent=5 // pred_check_branch
      %138 = sbr.rel (%p135) target = $region12
    $region11: #{_lambda_.5} parent=5 // pred_region
      %s139 = ssub.s32 %s10, 1
      // Predicated region
      $region13: #{_lambda_.5} parent=11 // pred_check
        %p140 = pneg %p57
      $region14: #{_lambda_.5} parent=11 // pred_check_branch
        %142 = sbr.rel (%p140) target = $region16
      $region15: #{_lambda_.5} parent=11 // pred_region
        _
      $region16: #{_lambda_.5} parent=11 // pred_fallthru
        _
      // Predicated region
      $region17: #{_lambda_.5} parent=11 // pred_check
        %p143 = pneg %p78
      $region18: #{_lambda_.5} parent=11 // pred_check_branch
        %145 = sbr.rel (%p143) target = $region20
      $region19: #{_lambda_.5} parent=11 // pred_region
        _
      $region20: #{_lambda_.5} parent=11 // pred_fallthru
        _
      // Predicated region
      $region21: #{_lambda_.5} parent=11 // pred_check
        %p146 = pneg %p99
      $region22: #{_lambda_.5} parent=11 // pred_check_branch
        %148 = sbr.rel (%p146) target = $region24
      $region23: #{_lambda_.5} parent=11 // pred_region
        _
      $region24: #{_lambda_.5} parent=11 // pred_fallthru
        _
    $region12: #{_lambda_.5} parent=5 // pred_fallthru
      _
    %p149 = scmp.lt.s32.totalorder %s10, 2
    // Predicated region
    $region25: #{_lambda_.5} parent=5 // pred_check
      %p150 = pneg %p149
    $region26: #{_lambda_.5} parent=5 // pred_check_branch
      %152 = sbr.rel (%p150) target = $region28
    $region27: #{_lambda_.5} parent=5 // pred_region
      // Predicated region
      $region29: #{_lambda_.5} parent=27 // pred_check
        %p153 = pneg %p30
      $region30: #{_lambda_.5} parent=27 // pred_check_branch
        %155 = sbr.rel (%p153) target = $region32
      $region31: #{_lambda_.5} parent=27 // pred_region
        %p156 = scmp.lt.s32.totalorder %s10, 1
        %s157 = scalar_select %p156, %s10, 1
        %s158 = smul.addr %s157, 41
        %s159 = smul.addr %s158, 4
        %s160 = scalar_lea.vmem %s0, %s159
      $region32: #{_lambda_.5} parent=27 // pred_fallthru
        _
    $region28: #{_lambda_.5} parent=5 // pred_fallthru
      _
    %p161 = scmp.le.s32.totalorder 1, %s10
    %p162 = scmp.lt.s32.totalorder %s10, 3
    %p163 = pnand %p161, %p162
    %p164 = pneg %p163
    // Predicated region
    $region33: #{_lambda_.5} parent=5 // pred_check
      _
    $region34: #{_lambda_.5} parent=5 // pred_check_branch
      %166 = sbr.rel (%p163) target = $region36
    $region35: #{_lambda_.5} parent=5 // pred_region
      %s167 = ssub.s32 %s10, 1
      %p168 = scmp.lt.s32.totalorder %s15, 1
      %s169 = scalar_select %p168, %s15, 1
      %s170 = smul.addr %s169, 41
      %s171 = smul.addr %s170, 4
      %s172 = scalar_lea.vmem %s0, %s171
      %p173 = pneg %p36
      %p174 = pneg %p33
      %p175 = pneg %p57
      %p176 = pneg %p54
      %p177 = pneg %p78
      %p178 = pneg %p75
      %p179 = pneg %p99
      %p180 = pneg %p96
      %p181 = pneg %p125
      %p182 = pneg %p122
      %p183 = scmp.lt.s32.totalorder %s15, 1
      %s184 = scalar_select %p183, %s15, 1
      %s185 = smul.addr %s184, 36
      %s186 = smul.addr %s185, 4
      %s187 = scalar_lea.vmem %s4, %s186
      %p188 = scmp.lt.s32.totalorder %s15, 1
      %s189 = scalar_select %p188, %s15, 1
      %s190 = smul.addr %s189, 41
      %s191 = smul.addr %s190, 4
      %s192 = scalar_lea.vmem %s0, %s191
      %p193 = scmp.lt.s32.totalorder %s15, 1
      %s194 = scalar_select %p193, %s15, 1
      %s195 = smul.addr %s194, 36
      %s196 = smul.addr %s195, 4
      %s197 = scalar_lea.vmem %s4, %s196
      %v199 = vld [vmem:[%s192] sm:$0xf]
      %v200 = vld [vmem:[%s192 + $0x4] sm:$0xf]
      %v201 = vld [vmem:[%s192 + $0x8] sm:$0xf]
      %v202 = vld [vmem:[%s192 + $0xc] sm:$0xf]
      %v203 = vld [vmem:[%s192 + $0x10] sm:$0xf]
      %v204 = vld [vmem:[%s192 + $0x14] sm:$0xf]
      %v205 = vld [vmem:[%s192 + $0x18] sm:$0xf]
      %v206 = vld [vmem:[%s192 + $0x1c] sm:$0xf]
      %v207 = vld [vmem:[%s192 + $0x20] sm:$0xf]
      %v208 = vld [vmem:[%s192 + $0x24] sm:$0xf]
      %v209 = vld [vmem:[%s192 + $0x28] sm:$0xf]
      %v210 = vld [vmem:[%s192 + $0x2c] sm:$0xf]
      %v211 = vld [vmem:[%s192 + $0x30] sm:$0xf]
      %v212 = vld [vmem:[%s192 + $0x34] sm:$0xf]
      %v213 = vld [vmem:[%s192 + $0x38] sm:$0xf]
      %v214 = vld [vmem:[%s192 + $0x3c] sm:$0xf]
      %v215 = vld [vmem:[%s192 + $0x40] sm:$0xf]
      %v216 = vld [vmem:[%s192 + $0x44] sm:$0xf]
      %v217 = vld [vmem:[%s192 + $0x48] sm:$0xf]
      %v218 = vld [vmem:[%s192 + $0x4c] sm:$0xf]
      %v219 = vld [vmem:[%s192 + $0x50] sm:$0xf]
      %v220 = vld [vmem:[%s192 + $0x54] sm:$0xf]
      %v221 = vld [vmem:[%s192 + $0x58] sm:$0xf]
      %v222 = vld [vmem:[%s192 + $0x5c] sm:$0xf]
      %v223 = vld [vmem:[%s192 + $0x60] sm:$0xf]
      %v224 = vld [vmem:[%s192 + $0x64] sm:$0xf]
      %v225 = vld [vmem:[%s192 + $0x68] sm:$0xf]
      %v226 = vld [vmem:[%s192 + $0x6c] sm:$0xf]
      %v227 = vld [vmem:[%s192 + $0x70] sm:$0xf]
      %v228 = vld [vmem:[%s192 + $0x74] sm:$0xf]
      %v229 = vld [vmem:[%s192 + $0x78] sm:$0xf]
      %v230 = vld [vmem:[%s192 + $0x7c] sm:$0xf]
      %v231 = vld [vmem:[%s192 + $0x80] sm:$0xf]
      %v232 = vld [vmem:[%s192 + $0x84] sm:$0xf]
      %v233 = vld [vmem:[%s192 + $0x88] sm:$0xf]
      %v234 = vld [vmem:[%s192 + $0x8c] sm:$0xf]
      %v235 = vld [vmem:[%s1] sm:$0xf]
      %v236 = vld [vmem:[%s1 + $0x4] sm:$0xf]
      %v237 = vld [vmem:[%s1 + $0x8] sm:$0xf]
      %v238 = vld [vmem:[%s1 + $0xc] sm:$0xf]
      %v239 = vld [vmem:[%s1 + $0x10] sm:$0xf]
      %v240 = vld [vmem:[%s1 + $0x14] sm:$0xf]
      %v241 = vld [vmem:[%s1 + $0x18] sm:$0xf]
      %v242 = vld [vmem:[%s1 + $0x1c] sm:$0xf]
      %v243 = vld [vmem:[%s192 + $0x90] sm:$0x1]
      %s244 = scalar_lea.vmem %s1, 32
      %v245 = vld [vmem:[%s244] sm:$0xf]
      %v246 = vld [vmem:[%s244 + $0x4] sm:$0xf]
      %v247 = vld [vmem:[%s244 + $0x8] sm:$0xf]
      %v248 = vld [vmem:[%s244 + $0xc] sm:$0xf]
      %v249 = vld [vmem:[%s244 + $0x10] sm:$0xf]
      %v250 = vld [vmem:[%s244 + $0x14] sm:$0xf]
      %v251 = vld [vmem:[%s244 + $0x18] sm:$0xf]
      %v252 = vld [vmem:[%s244 + $0x1c] sm:$0xf]
      %v290 = vunpack.c.l.b16 %v199
      %v291 = vunpack.c.l.b16 %v200
      %v292 = vunpack.c.l.b16 %v201
      %v293 = vunpack.c.l.b16 %v202
      %v294 = vunpack.c.l.b16 %v203
      %v295 = vunpack.c.l.b16 %v204
      %v296 = vunpack.c.l.b16 %v205
      %v297 = vunpack.c.l.b16 %v206
      %v298 = vunpack.c.l.b16 %v207
      %v299 = vunpack.c.l.b16 %v208
      %v300 = vunpack.c.l.b16 %v209
      %v301 = vunpack.c.l.b16 %v210
      %v302 = vunpack.c.l.b16 %v211
      %v303 = vunpack.c.l.b16 %v212
      %v304 = vunpack.c.l.b16 %v213
      %v305 = vunpack.c.l.b16 %v214
      %v306 = vunpack.c.l.b16 %v215
      %v307 = vunpack.c.l.b16 %v216
      %v308 = vunpack.c.l.b16 %v217
      %v309 = vunpack.c.l.b16 %v218
      %v310 = vunpack.c.l.b16 %v219
      %v311 = vunpack.c.l.b16 %v220
      %v312 = vunpack.c.l.b16 %v221
      %v313 = vunpack.c.l.b16 %v222
      %v314 = vunpack.c.l.b16 %v223
      %v315 = vunpack.c.l.b16 %v224
      %v316 = vunpack.c.l.b16 %v225
      %v317 = vunpack.c.l.b16 %v226
      %v318 = vunpack.c.l.b16 %v227
      %v319 = vunpack.c.l.b16 %v228
      %v320 = vunpack.c.l.b16 %v229
      %v321 = vunpack.c.l.b16 %v230
      %v322 = vunpack.c.l.b16 %v231
      %v323 = vunpack.c.l.b16 %v232
      %v324 = vunpack.c.l.b16 %v233
      %v325 = vunpack.c.l.b16 %v234
      %v326 = vunpack.c.l.b16 %v243
      %v327 = vpack.c.b16 %v291, %v290
      %v328 = vpack.c.b16 %v293, %v292
      %v329 = vpack.c.b16 %v295, %v294
      %v330 = vpack.c.b16 %v297, %v296
      %v331 = vpack.c.b16 %v299, %v298
      %v332 = vpack.c.b16 %v301, %v300
      %v333 = vpack.c.b16 %v303, %v302
      %v334 = vpack.c.b16 %v305, %v304
      %v335 = vpack.c.b16 %v307, %v306
      %v336 = vpack.c.b16 %v309, %v308
      %v337 = vpack.c.b16 %v311, %v310
      %v338 = vpack.c.b16 %v313, %v312
      %v339 = vpack.c.b16 %v315, %v314
      %v340 = vpack.c.b16 %v317, %v316
      %v341 = vpack.c.b16 %v319, %v318
      %v342 = vpack.c.b16 %v321, %v320
      %v343 = vpack.c.b16 %v323, %v322
      %v344 = vpack.c.b16 %v325, %v324
      %v345 = vpack.c.b16 %v326, %v326
      %vm346 = vsmask.f32 7424
      %v348 = vshrl.u32 %v327, 16
      %v350 = vshll.u32 %v327, 16
      %v352 = vrot.slane %v350, 1
      %v353 = vor.u32 %v348, %v352
      %v355 = vshll.u32 %v328, 16
      %v357 = vrot.slane %v355, 1
      %v358 = vsel %vm346, %v353, %v357
      %v359 = vshrl.u32 %v328, 16
      %v361 = vor.u32 %v359, %v357
      %v363 = vshll.u32 %v329, 16
      %v365 = vrot.slane %v363, 1
      %v366 = vsel %vm346, %v361, %v365
      %v367 = vshrl.u32 %v329, 16
      %v369 = vor.u32 %v367, %v365
      %v371 = vshll.u32 %v330, 16
      %v373 = vrot.slane %v371, 1
      %v374 = vsel %vm346, %v369, %v373
      %v375 = vshrl.u32 %v330, 16
      %v377 = vor.u32 %v375, %v373
      %v379 = vshll.u32 %v331, 16
      %v381 = vrot.slane %v379, 1
      %v382 = vsel %vm346, %v377, %v381
      %v383 = vshrl.u32 %v331, 16
      %v385 = vor.u32 %v383, %v381
      %v387 = vshll.u32 %v332, 16
      %v389 = vrot.slane %v387, 1
      %v390 = vsel %vm346, %v385, %v389
      %v391 = vshrl.u32 %v332, 16
      %v393 = vor.u32 %v391, %v389
      %v395 = vshll.u32 %v333, 16
      %v397 = vrot.slane %v395, 1
      %v398 = vsel %vm346, %v393, %v397
      %v399 = vshrl.u32 %v333, 16
      %v401 = vor.u32 %v399, %v397
      %v403 = vshll.u32 %v334, 16
      %v405 = vrot.slane %v403, 1
      %v406 = vsel %vm346, %v401, %v405
      %v407 = vshrl.u32 %v334, 16
      %v409 = vor.u32 %v407, %v405
      %v411 = vshll.u32 %v335, 16
      %v413 = vrot.slane %v411, 1
      %v414 = vsel %vm346, %v409, %v413
      %v415 = vshrl.u32 %v335, 16
      %v417 = vor.u32 %v415, %v413
      %v419 = vshll.u32 %v336, 16
      %v421 = vrot.slane %v419, 1
      %v422 = vsel %vm346, %v417, %v421
      %v423 = vshrl.u32 %v336, 16
      %v425 = vor.u32 %v423, %v421
      %v427 = vshll.u32 %v337, 16
      %v429 = vrot.slane %v427, 1
      %v430 = vsel %vm346, %v425, %v429
      %v431 = vshrl.u32 %v337, 16
      %v433 = vor.u32 %v431, %v429
      %v435 = vshll.u32 %v338, 16
      %v437 = vrot.slane %v435, 1
      %v438 = vsel %vm346, %v433, %v437
      %v439 = vshrl.u32 %v338, 16
      %v441 = vor.u32 %v439, %v437
      %v443 = vshll.u32 %v339, 16
      %v445 = vrot.slane %v443, 1
      %v446 = vsel %vm346, %v441, %v445
      %v447 = vshrl.u32 %v339, 16
      %v449 = vor.u32 %v447, %v445
      %v451 = vshll.u32 %v340, 16
      %v453 = vrot.slane %v451, 1
      %v454 = vsel %vm346, %v449, %v453
      %v455 = vshrl.u32 %v340, 16
      %v457 = vor.u32 %v455, %v453
      %v459 = vshll.u32 %v341, 16
      %v461 = vrot.slane %v459, 1
      %v462 = vsel %vm346, %v457, %v461
      %v463 = vshrl.u32 %v341, 16
      %v465 = vor.u32 %v463, %v461
      %v467 = vshll.u32 %v342, 16
      %v469 = vrot.slane %v467, 1
      %v470 = vsel %vm346, %v465, %v469
      %v471 = vshrl.u32 %v342, 16
      %v473 = vor.u32 %v471, %v469
      %v475 = vshll.u32 %v343, 16
      %v477 = vrot.slane %v475, 1
      %v478 = vsel %vm346, %v473, %v477
      %v479 = vshrl.u32 %v343, 16
      %v481 = vor.u32 %v479, %v477
      %v483 = vshll.u32 %v344, 16
      %v485 = vrot.slane %v483, 1
      %v486 = vsel %vm346, %v481, %v485
      %v487 = vshrl.u32 %v344, 16
      %v489 = vor.u32 %v487, %v485
      %v491 = vshll.u32 %v345, 16
      %v493 = vrot.slane %v491, 1
      %v494 = vsel %vm346, %v489, %v493
      %v503 = vunpack.c.l.b16 %v245
      %v504 = vunpack.c.l.b16 %v246
      %v505 = vunpack.c.l.b16 %v247
      %v506 = vunpack.c.l.b16 %v248
      %v507 = vunpack.c.l.b16 %v249
      %v508 = vunpack.c.l.b16 %v250
      %v509 = vunpack.c.l.b16 %v251
      %v510 = vunpack.c.l.b16 %v252
      %v511 = vpack.c.b16 %v504, %v503
      %v512 = vpack.c.b16 %v506, %v505
      %v513 = vpack.c.b16 %v508, %v507
      %v514 = vpack.c.b16 %v510, %v509
      %vm519 = vcmask 523264
      %v521 = vsel %vm519, %v358, 0
      %v524 = vsel %vm519, %v366, 0
      %v527 = vsel %vm519, %v374, 0
      %v530 = vsel %vm519, %v382, 0
      %v533 = vsel %vm519, %v390, 0
      %v536 = vsel %vm519, %v398, 0
      %v539 = vsel %vm519, %v406, 0
      %v542 = vsel %vm519, %v414, 0
      %v545 = vsel %vm519, %v422, 0
      %v548 = vsel %vm519, %v430, 0
      %v551 = vsel %vm519, %v438, 0
      %v554 = vsel %vm519, %v446, 0
      %v557 = vsel %vm519, %v454, 0
      %v560 = vsel %vm519, %v462, 0
      %v563 = vsel %vm519, %v470, 0
      %v566 = vsel %vm519, %v478, 0
      %v569 = vsel %vm519, %v486, 0
      %v572 = vsel %vm519, %v494, 0
      %574 = vmatpush.bf16.msra.mxu0 0
      %575 = vmatpush.bf16.msra.mxu0 0
      %576 = vmatpush.bf16.msra.mxu0 0
      %577 = vmatpush.bf16.msra.mxu0 0
      %578 = vmatpush.bf16.msra.mxu0 %v514
      %579 = vmatpush.bf16.msra.mxu0 %v513
      %580 = vmatpush.bf16.msra.mxu0 %v512
      %581 = vmatpush.bf16.msra.mxu0 %v511
      %582 = vmatmul.bf16.gmra.mxu0 %v521
      %v583 = vpop.f32.mrf.mxu0
      %v584 = vadd.f32 0.0, %v583
      %v585 = vpop.f32.mrf.mxu0
      %v586 = vadd.f32 0.0, %v585
      %587 = vmatmul.bf16.gmra.mxu0 %v524
      %v588 = vpop.f32.mrf.mxu0
      %v589 = vadd.f32 0.0, %v588
      %v590 = vpop.f32.mrf.mxu0
      %v591 = vadd.f32 0.0, %v590
      %592 = vmatmul.bf16.gmra.mxu0 %v527
      %v593 = vpop.f32.mrf.mxu0
      %v594 = vadd.f32 0.0, %v593
      %v595 = vpop.f32.mrf.mxu0
      %v596 = vadd.f32 0.0, %v595
      %597 = vmatmul.bf16.gmra.mxu0 %v530
      %v598 = vpop.f32.mrf.mxu0
      %v599 = vadd.f32 0.0, %v598
      %v600 = vpop.f32.mrf.mxu0
      %v601 = vadd.f32 0.0, %v600
      %602 = vmatmul.bf16.gmra.mxu0 %v533
      %v603 = vpop.f32.mrf.mxu0
      %v604 = vadd.f32 0.0, %v603
      %v605 = vpop.f32.mrf.mxu0
      %v606 = vadd.f32 0.0, %v605
      %607 = vmatmul.bf16.gmra.mxu0 %v536
      %v608 = vpop.f32.mrf.mxu0
      %v609 = vadd.f32 0.0, %v608
      %v610 = vpop.f32.mrf.mxu0
      %v611 = vadd.f32 0.0, %v610
      %612 = vmatmul.bf16.gmra.mxu0 %v539
      %v613 = vpop.f32.mrf.mxu0
      %v614 = vadd.f32 0.0, %v613
      %v615 = vpop.f32.mrf.mxu0
      %v616 = vadd.f32 0.0, %v615
      %617 = vmatmul.bf16.gmra.mxu0 %v542
      %v618 = vpop.f32.mrf.mxu0
      %v619 = vadd.f32 0.0, %v618
      %v620 = vpop.f32.mrf.mxu0
      %v621 = vadd.f32 0.0, %v620
      %622 = vmatmul.bf16.gmra.mxu0 %v545
      %v623 = vpop.f32.mrf.mxu0
      %v624 = vadd.f32 0.0, %v623
      %v625 = vpop.f32.mrf.mxu0
      %v626 = vadd.f32 0.0, %v625
      %627 = vmatmul.bf16.gmra.mxu0 %v548
      %v628 = vpop.f32.mrf.mxu0
      %v629 = vadd.f32 0.0, %v628
      %v630 = vpop.f32.mrf.mxu0
      %v631 = vadd.f32 0.0, %v630
      %632 = vmatmul.bf16.gmra.mxu0 %v551
      %v633 = vpop.f32.mrf.mxu0
      %v634 = vadd.f32 0.0, %v633
      %v635 = vpop.f32.mrf.mxu0
      %v636 = vadd.f32 0.0, %v635
      %637 = vmatmul.bf16.gmra.mxu0 %v554
      %v638 = vpop.f32.mrf.mxu0
      %v639 = vadd.f32 0.0, %v638
      %v640 = vpop.f32.mrf.mxu0
      %v641 = vadd.f32 0.0, %v640
      %642 = vmatmul.bf16.gmra.mxu0 %v557
      %v643 = vpop.f32.mrf.mxu0
      %v644 = vadd.f32 0.0, %v643
      %v645 = vpop.f32.mrf.mxu0
      %v646 = vadd.f32 0.0, %v645
      %647 = vmatmul.bf16.gmra.mxu0 %v560
      %v648 = vpop.f32.mrf.mxu0
      %v649 = vadd.f32 0.0, %v648
      %v650 = vpop.f32.mrf.mxu0
      %v651 = vadd.f32 0.0, %v650
      %652 = vmatmul.bf16.gmra.mxu0 %v563
      %v653 = vpop.f32.mrf.mxu0
      %v654 = vadd.f32 0.0, %v653
      %v655 = vpop.f32.mrf.mxu0
      %v656 = vadd.f32 0.0, %v655
      %657 = vmatmul.bf16.gmra.mxu0 %v566
      %v658 = vpop.f32.mrf.mxu0
      %v659 = vadd.f32 0.0, %v658
      %v660 = vpop.f32.mrf.mxu0
      %v661 = vadd.f32 0.0, %v660
      %662 = vmatmul.bf16.gmra.mxu0 %v569
      %v663 = vpop.f32.mrf.mxu0
      %v664 = vadd.f32 0.0, %v663
      %v665 = vpop.f32.mrf.mxu0
      %v666 = vadd.f32 0.0, %v665
      %667 = vmatmul.bf16.gmra.mxu0 %v572
      %v668 = vpop.f32.mrf.mxu0
      %v669 = vadd.f32 0.0, %v668
      %v670 = vpop.f32.mrf.mxu0
      %v671 = vadd.f32 0.0, %v670
      %672 = vdwg.mxu0
      %v681 = vunpack.c.l.b16 %v235
      %v682 = vunpack.c.l.b16 %v236
      %v683 = vunpack.c.l.b16 %v237
      %v684 = vunpack.c.l.b16 %v238
      %v685 = vunpack.c.l.b16 %v239
      %v686 = vunpack.c.l.b16 %v240
      %v687 = vunpack.c.l.b16 %v241
      %v688 = vunpack.c.l.b16 %v242
      %v689 = vpack.c.b16 %v682, %v681
      %v690 = vpack.c.b16 %v684, %v683
      %v691 = vpack.c.b16 %v686, %v685
      %v692 = vpack.c.b16 %v688, %v687
      %v697 = vsel %vm519, %v327, 0
      %v699 = vsel %vm519, %v328, 0
      %v701 = vsel %vm519, %v329, 0
      %v703 = vsel %vm519, %v330, 0
      %v705 = vsel %vm519, %v331, 0
      %v707 = vsel %vm519, %v332, 0
      %v709 = vsel %vm519, %v333, 0
      %v711 = vsel %vm519, %v334, 0
      %v713 = vsel %vm519, %v335, 0
      %v715 = vsel %vm519, %v336, 0
      %v717 = vsel %vm519, %v337, 0
      %v719 = vsel %vm519, %v338, 0
      %v721 = vsel %vm519, %v339, 0
      %v723 = vsel %vm519, %v340, 0
      %v725 = vsel %vm519, %v341, 0
      %v727 = vsel %vm519, %v342, 0
      %v729 = vsel %vm519, %v343, 0
      %v731 = vsel %vm519, %v344, 0
      %733 = vmatpush.bf16.msra.mxu0 0
      %734 = vmatpush.bf16.msra.mxu0 0
      %735 = vmatpush.bf16.msra.mxu0 0
      %736 = vmatpush.bf16.msra.mxu0 0
      %737 = vmatpush.bf16.msra.mxu0 %v692
      %738 = vmatpush.bf16.msra.mxu0 %v691
      %739 = vmatpush.bf16.msra.mxu0 %v690
      %740 = vmatpush.bf16.msra.mxu0 %v689
      %741 = vmatmul.bf16.gmra.mxu0 %v697
      %v742 = vpop.f32.mrf.mxu0
      %v743 = vadd.f32 %v584, %v742
      %v744 = vpop.f32.mrf.mxu0
      %v745 = vadd.f32 %v586, %v744
      %746 = vmatmul.bf16.gmra.mxu0 %v699
      %v747 = vpop.f32.mrf.mxu0
      %v748 = vadd.f32 %v589, %v747
      %v749 = vpop.f32.mrf.mxu0
      %v750 = vadd.f32 %v591, %v749
      %751 = vmatmul.bf16.gmra.mxu0 %v701
      %v752 = vpop.f32.mrf.mxu0
      %v753 = vadd.f32 %v594, %v752
      %v754 = vpop.f32.mrf.mxu0
      %v755 = vadd.f32 %v596, %v754
      %756 = vmatmul.bf16.gmra.mxu0 %v703
      %v757 = vpop.f32.mrf.mxu0
      %v758 = vadd.f32 %v599, %v757
      %v759 = vpop.f32.mrf.mxu0
      %v760 = vadd.f32 %v601, %v759
      %761 = vmatmul.bf16.gmra.mxu0 %v705
      %v762 = vpop.f32.mrf.mxu0
      %v763 = vadd.f32 %v604, %v762
      %v764 = vpop.f32.mrf.mxu0
      %v765 = vadd.f32 %v606, %v764
      %766 = vmatmul.bf16.gmra.mxu0 %v707
      %v767 = vpop.f32.mrf.mxu0
      %v768 = vadd.f32 %v609, %v767
      %v769 = vpop.f32.mrf.mxu0
      %v770 = vadd.f32 %v611, %v769
      %771 = vmatmul.bf16.gmra.mxu0 %v709
      %v772 = vpop.f32.mrf.mxu0
      %v773 = vadd.f32 %v614, %v772
      %v774 = vpop.f32.mrf.mxu0
      %v775 = vadd.f32 %v616, %v774
      %776 = vmatmul.bf16.gmra.mxu0 %v711
      %v777 = vpop.f32.mrf.mxu0
      %v778 = vadd.f32 %v619, %v777
      %v779 = vpop.f32.mrf.mxu0
      %v780 = vadd.f32 %v621, %v779
      %781 = vmatmul.bf16.gmra.mxu0 %v713
      %v782 = vpop.f32.mrf.mxu0
      %v783 = vadd.f32 %v624, %v782
      %v784 = vpop.f32.mrf.mxu0
      %v785 = vadd.f32 %v626, %v784
      %786 = vmatmul.bf16.gmra.mxu0 %v715
      %v787 = vpop.f32.mrf.mxu0
      %v788 = vadd.f32 %v629, %v787
      %v789 = vpop.f32.mrf.mxu0
      %v790 = vadd.f32 %v631, %v789
      %791 = vmatmul.bf16.gmra.mxu0 %v717
      %v792 = vpop.f32.mrf.mxu0
      %v793 = vadd.f32 %v634, %v792
      %v794 = vpop.f32.mrf.mxu0
      %v795 = vadd.f32 %v636, %v794
      %796 = vmatmul.bf16.gmra.mxu0 %v719
      %v797 = vpop.f32.mrf.mxu0
      %v798 = vadd.f32 %v639, %v797
      %v799 = vpop.f32.mrf.mxu0
      %v800 = vadd.f32 %v641, %v799
      %801 = vmatmul.bf16.gmra.mxu0 %v721
      %v802 = vpop.f32.mrf.mxu0
      %v803 = vadd.f32 %v644, %v802
      %v804 = vpop.f32.mrf.mxu0
      %v805 = vadd.f32 %v646, %v804
      %806 = vmatmul.bf16.gmra.mxu0 %v723
      %v807 = vpop.f32.mrf.mxu0
      %v808 = vadd.f32 %v649, %v807
      %v809 = vpop.f32.mrf.mxu0
      %v810 = vadd.f32 %v651, %v809
      %811 = vmatmul.bf16.gmra.mxu0 %v725
      %v812 = vpop.f32.mrf.mxu0
      %v813 = vadd.f32 %v654, %v812
      %v814 = vpop.f32.mrf.mxu0
      %v815 = vadd.f32 %v656, %v814
      %816 = vmatmul.bf16.gmra.mxu0 %v727
      %v817 = vpop.f32.mrf.mxu0
      %v818 = vadd.f32 %v659, %v817
      %v819 = vpop.f32.mrf.mxu0
      %v820 = vadd.f32 %v661, %v819
      %821 = vmatmul.bf16.gmra.mxu0 %v729
      %v822 = vpop.f32.mrf.mxu0
      %v823 = vadd.f32 %v664, %v822
      %v824 = vpop.f32.mrf.mxu0
      %v825 = vadd.f32 %v666, %v824
      %826 = vmatmul.bf16.gmra.mxu0 %v731
      %v827 = vpop.f32.mrf.mxu0
      %v828 = vadd.f32 %v669, %v827
      %v829 = vpop.f32.mrf.mxu0
      %v830 = vadd.f32 %v671, %v829
      %831 = vdwg.mxu0
      %v832 = vld [vmem:[%s192] sm:$0xe]
      %s833 = scalar_lea.vmem %s1, 64
      %v834 = vld [vmem:[%s833] sm:$0xf]
      %v835 = vld [vmem:[%s833 + $0x4] sm:$0xf]
      %v836 = vld [vmem:[%s833 + $0x8] sm:$0xf]
      %v837 = vld [vmem:[%s833 + $0xc] sm:$0xf]
      %v838 = vld [vmem:[%s833 + $0x10] sm:$0xf]
      %v839 = vld [vmem:[%s833 + $0x14] sm:$0xf]
      %v840 = vld [vmem:[%s833 + $0x18] sm:$0xf]
      %v841 = vld [vmem:[%s833 + $0x1c] sm:$0xf]
      %v843 = vunpack.c.l.b16 %v832
      %v844 = vpack.c.b16 %v291, %v843
      %vm845 = vcmask 1046528
      %v846 = vrot.slane %v844, 1
      %v847 = vrot.slane %v328, 1
      %v848 = vsel %vm845, %v846, %v847
      %v849 = vrot.slane %v329, 1
      %v850 = vsel %vm845, %v847, %v849
      %v851 = vrot.slane %v330, 1
      %v852 = vsel %vm845, %v849, %v851
      %v853 = vrot.slane %v331, 1
      %v854 = vsel %vm845, %v851, %v853
      %v855 = vrot.slane %v332, 1
      %v856 = vsel %vm845, %v853, %v855
      %v857 = vrot.slane %v333, 1
      %v858 = vsel %vm845, %v855, %v857
      %v859 = vrot.slane %v334, 1
      %v860 = vsel %vm845, %v857, %v859
      %v861 = vrot.slane %v335, 1
      %v862 = vsel %vm845, %v859, %v861
      %v863 = vrot.slane %v336, 1
      %v864 = vsel %vm845, %v861, %v863
      %v865 = vrot.slane %v337, 1
      %v866 = vsel %vm845, %v863, %v865
      %v867 = vrot.slane %v338, 1
      %v868 = vsel %vm845, %v865, %v867
      %v869 = vrot.slane %v339, 1
      %v870 = vsel %vm845, %v867, %v869
      %v871 = vrot.slane %v340, 1
      %v872 = vsel %vm845, %v869, %v871
      %v873 = vrot.slane %v341, 1
      %v874 = vsel %vm845, %v871, %v873
      %v875 = vrot.slane %v342, 1
      %v876 = vsel %vm845, %v873, %v875
      %v877 = vrot.slane %v343, 1
      %v878 = vsel %vm845, %v875, %v877
      %v879 = vrot.slane %v344, 1
      %v880 = vsel %vm845, %v877, %v879
      %v881 = vrot.slane %v345, 1
      %v882 = vsel %vm845, %v879, %v881
      %v891 = vunpack.c.l.b16 %v834
      %v892 = vunpack.c.l.b16 %v835
      %v893 = vunpack.c.l.b16 %v836
      %v894 = vunpack.c.l.b16 %v837
      %v895 = vunpack.c.l.b16 %v838
      %v896 = vunpack.c.l.b16 %v839
      %v897 = vunpack.c.l.b16 %v840
      %v898 = vunpack.c.l.b16 %v841
      %v899 = vpack.c.b16 %v892, %v891
      %v900 = vpack.c.b16 %v894, %v893
      %v901 = vpack.c.b16 %v896, %v895
      %v902 = vpack.c.b16 %v898, %v897
      %v908 = vsel %vm519, %v848, 0
      %v911 = vsel %vm519, %v850, 0
      %v914 = vsel %vm519, %v852, 0
      %v917 = vsel %vm519, %v854, 0
      %v920 = vsel %vm519, %v856, 0
      %v923 = vsel %vm519, %v858, 0
      %v926 = vsel %vm519, %v860, 0
      %v929 = vsel %vm519, %v862, 0
      %v932 = vsel %vm519, %v864, 0
      %v935 = vsel %vm519, %v866, 0
      %v938 = vsel %vm519, %v868, 0
      %v941 = vsel %vm519, %v870, 0
      %v944 = vsel %vm519, %v872, 0
      %v947 = vsel %vm519, %v874, 0
      %v950 = vsel %vm519, %v876, 0
      %v953 = vsel %vm519, %v878, 0
      %v956 = vsel %vm519, %v880, 0
      %v959 = vsel %vm519, %v882, 0
      %961 = vmatpush.bf16.msra.mxu0 0
      %962 = vmatpush.bf16.msra.mxu0 0
      %963 = vmatpush.bf16.msra.mxu0 0
      %964 = vmatpush.bf16.msra.mxu0 0
      %965 = vmatpush.bf16.msra.mxu0 %v902
      %966 = vmatpush.bf16.msra.mxu0 %v901
      %967 = vmatpush.bf16.msra.mxu0 %v900
      %968 = vmatpush.bf16.msra.mxu0 %v899
      %969 = vmatmul.bf16.gmra.mxu0 %v908
      %v970 = vpop.f32.mrf.mxu0
      %v971 = vadd.f32 0.0, %v970
      %v972 = vpop.f32.mrf.mxu0
      %v973 = vadd.f32 0.0, %v972
      %974 = vmatmul.bf16.gmra.mxu0 %v911
      %v975 = vpop.f32.mrf.mxu0
      %v976 = vadd.f32 0.0, %v975
      %v977 = vpop.f32.mrf.mxu0
      %v978 = vadd.f32 0.0, %v977
      %979 = vmatmul.bf16.gmra.mxu0 %v914
      %v980 = vpop.f32.mrf.mxu0
      %v981 = vadd.f32 0.0, %v980
      %v982 = vpop.f32.mrf.mxu0
      %v983 = vadd.f32 0.0, %v982
      %984 = vmatmul.bf16.gmra.mxu0 %v917
      %v985 = vpop.f32.mrf.mxu0
      %v986 = vadd.f32 0.0, %v985
      %v987 = vpop.f32.mrf.mxu0
      %v988 = vadd.f32 0.0, %v987
      %989 = vmatmul.bf16.gmra.mxu0 %v920
      %v990 = vpop.f32.mrf.mxu0
      %v991 = vadd.f32 0.0, %v990
      %v992 = vpop.f32.mrf.mxu0
      %v993 = vadd.f32 0.0, %v992
      %994 = vmatmul.bf16.gmra.mxu0 %v923
      %v995 = vpop.f32.mrf.mxu0
      %v996 = vadd.f32 0.0, %v995
      %v997 = vpop.f32.mrf.mxu0
      %v998 = vadd.f32 0.0, %v997
      %999 = vmatmul.bf16.gmra.mxu0 %v926
      %v1000 = vpop.f32.mrf.mxu0
      %v1001 = vadd.f32 0.0, %v1000
      %v1002 = vpop.f32.mrf.mxu0
      %v1003 = vadd.f32 0.0, %v1002
      %1004 = vmatmul.bf16.gmra.mxu0 %v929
      %v1005 = vpop.f32.mrf.mxu0
      %v1006 = vadd.f32 0.0, %v1005
      %v1007 = vpop.f32.mrf.mxu0
      %v1008 = vadd.f32 0.0, %v1007
      %1009 = vmatmul.bf16.gmra.mxu0 %v932
      %v1010 = vpop.f32.mrf.mxu0
      %v1011 = vadd.f32 0.0, %v1010
      %v1012 = vpop.f32.mrf.mxu0
      %v1013 = vadd.f32 0.0, %v1012
      %1014 = vmatmul.bf16.gmra.mxu0 %v935
      %v1015 = vpop.f32.mrf.mxu0
      %v1016 = vadd.f32 0.0, %v1015
      %v1017 = vpop.f32.mrf.mxu0
      %v1018 = vadd.f32 0.0, %v1017
      %1019 = vmatmul.bf16.gmra.mxu0 %v938
      %v1020 = vpop.f32.mrf.mxu0
      %v1021 = vadd.f32 0.0, %v1020
      %v1022 = vpop.f32.mrf.mxu0
      %v1023 = vadd.f32 0.0, %v1022
      %1024 = vmatmul.bf16.gmra.mxu0 %v941
      %v1025 = vpop.f32.mrf.mxu0
      %v1026 = vadd.f32 0.0, %v1025
      %v1027 = vpop.f32.mrf.mxu0
      %v1028 = vadd.f32 0.0, %v1027
      %1029 = vmatmul.bf16.gmra.mxu0 %v944
      %v1030 = vpop.f32.mrf.mxu0
      %v1031 = vadd.f32 0.0, %v1030
      %v1032 = vpop.f32.mrf.mxu0
      %v1033 = vadd.f32 0.0, %v1032
      %1034 = vmatmul.bf16.gmra.mxu0 %v947
      %v1035 = vpop.f32.mrf.mxu0
      %v1036 = vadd.f32 0.0, %v1035
      %v1037 = vpop.f32.mrf.mxu0
      %v1038 = vadd.f32 0.0, %v1037
      %1039 = vmatmul.bf16.gmra.mxu0 %v950
      %v1040 = vpop.f32.mrf.mxu0
      %v1041 = vadd.f32 0.0, %v1040
      %v1042 = vpop.f32.mrf.mxu0
      %v1043 = vadd.f32 0.0, %v1042
      %1044 = vmatmul.bf16.gmra.mxu0 %v953
      %v1045 = vpop.f32.mrf.mxu0
      %v1046 = vadd.f32 0.0, %v1045
      %v1047 = vpop.f32.mrf.mxu0
      %v1048 = vadd.f32 0.0, %v1047
      %1049 = vmatmul.bf16.gmra.mxu0 %v956
      %v1050 = vpop.f32.mrf.mxu0
      %v1051 = vadd.f32 0.0, %v1050
      %v1052 = vpop.f32.mrf.mxu0
      %v1053 = vadd.f32 0.0, %v1052
      %1054 = vmatmul.bf16.gmra.mxu0 %v959
      %v1055 = vpop.f32.mrf.mxu0
      %v1056 = vadd.f32 0.0, %v1055
      %v1057 = vpop.f32.mrf.mxu0
      %v1058 = vadd.f32 0.0, %v1057
      %1059 = vdwg.mxu0
      %v1060 = vadd.f32 %v743, %v971
      %v1061 = vadd.f32 %v745, %v973
      %v1062 = vadd.f32 %v748, %v976
      %v1063 = vadd.f32 %v750, %v978
      %v1064 = vadd.f32 %v753, %v981
      %v1065 = vadd.f32 %v755, %v983
      %v1066 = vadd.f32 %v758, %v986
      %v1067 = vadd.f32 %v760, %v988
      %v1068 = vadd.f32 %v763, %v991
      %v1069 = vadd.f32 %v765, %v993
      %v1070 = vadd.f32 %v768, %v996
      %v1071 = vadd.f32 %v770, %v998
      %v1072 = vadd.f32 %v773, %v1001
      %v1073 = vadd.f32 %v775, %v1003
      %v1074 = vadd.f32 %v778, %v1006
      %v1075 = vadd.f32 %v780, %v1008
      %v1076 = vadd.f32 %v783, %v1011
      %v1077 = vadd.f32 %v785, %v1013
      %v1078 = vadd.f32 %v788, %v1016
      %v1079 = vadd.f32 %v790, %v1018
      %v1080 = vadd.f32 %v793, %v1021
      %v1081 = vadd.f32 %v795, %v1023
      %v1082 = vadd.f32 %v798, %v1026
      %v1083 = vadd.f32 %v800, %v1028
      %v1084 = vadd.f32 %v803, %v1031
      %v1085 = vadd.f32 %v805, %v1033
      %v1086 = vadd.f32 %v808, %v1036
      %v1087 = vadd.f32 %v810, %v1038
      %v1088 = vadd.f32 %v813, %v1041
      %v1089 = vadd.f32 %v815, %v1043
      %v1090 = vadd.f32 %v818, %v1046
      %v1091 = vadd.f32 %v820, %v1048
      %v1092 = vadd.f32 %v823, %v1051
      %v1093 = vadd.f32 %v825, %v1053
      %v1094 = vadd.f32 %v828, %v1056
      %v1095 = vadd.f32 %v830, %v1058
      %v1096 = vld [vmem:[%s192 + $0x8] sm:$0xe]
      %v1097 = vld [vmem:[%s192 + $0xc] sm:$0xf]
      %v1098 = vld [vmem:[%s192 + $0x10] sm:$0xf]
      %v1099 = vld [vmem:[%s192 + $0x14] sm:$0xf]
      %v1100 = vld [vmem:[%s192 + $0x18] sm:$0xf]
      %v1101 = vld [vmem:[%s192 + $0x1c] sm:$0xf]
      %v1102 = vld [vmem:[%s192 + $0x20] sm:$0xf]
      %v1103 = vld [vmem:[%s192 + $0x24] sm:$0xf]
      %v1104 = vld [vmem:[%s192 + $0x28] sm:$0xf]
      %v1105 = vld [vmem:[%s192 + $0x2c] sm:$0xf]
      %v1106 = vld [vmem:[%s192 + $0x30] sm:$0xf]
      %v1107 = vld [vmem:[%s192 + $0x34] sm:$0xf]
      %v1108 = vld [vmem:[%s192 + $0x38] sm:$0xf]
      %v1109 = vld [vmem:[%s192 + $0x3c] sm:$0xf]
      %v1110 = vld [vmem:[%s192 + $0x40] sm:$0xf]
      %v1111 = vld [vmem:[%s192 + $0x44] sm:$0xf]
      %v1112 = vld [vmem:[%s192 + $0x48] sm:$0xf]
      %v1113 = vld [vmem:[%s192 + $0x4c] sm:$0xf]
      %v1114 = vld [vmem:[%s192 + $0x50] sm:$0xf]
      %v1115 = vld [vmem:[%s192 + $0x54] sm:$0xf]
      %v1116 = vld [vmem:[%s192 + $0x58] sm:$0xf]
      %v1117 = vld [vmem:[%s192 + $0x5c] sm:$0xf]
      %v1118 = vld [vmem:[%s192 + $0x60] sm:$0xf]
      %v1119 = vld [vmem:[%s192 + $0x64] sm:$0xf]
      %v1120 = vld [vmem:[%s192 + $0x68] sm:$0xf]
      %v1121 = vld [vmem:[%s192 + $0x6c] sm:$0xf]
      %v1122 = vld [vmem:[%s192 + $0x70] sm:$0xf]
      %v1123 = vld [vmem:[%s192 + $0x74] sm:$0xf]
      %v1124 = vld [vmem:[%s192 + $0x78] sm:$0xf]
      %v1125 = vld [vmem:[%s192 + $0x7c] sm:$0xf]
      %v1126 = vld [vmem:[%s192 + $0x80] sm:$0xf]
      %v1127 = vld [vmem:[%s192 + $0x84] sm:$0xf]
      %v1128 = vld [vmem:[%s192 + $0x88] sm:$0xf]
      %v1129 = vld [vmem:[%s192 + $0x8c] sm:$0xf]
      %v1130 = vld [vmem:[%s192 + $0x90] sm:$0xf]
      %v1131 = vld [vmem:[%s192 + $0x94] sm:$0xf]
      %v1132 = vld [vmem:[%s192 + $0x98] sm:$0x1]
      %s1133 = scalar_lea.vmem %s1, 96
      %v1134 = vld [vmem:[%s1133] sm:$0xf]
      %v1135 = vld [vmem:[%s1133 + $0x4] sm:$0xf]
      %v1136 = vld [vmem:[%s1133 + $0x8] sm:$0xf]
      %v1137 = vld [vmem:[%s1133 + $0xc] sm:$0xf]
      %v1138 = vld [vmem:[%s1133 + $0x10] sm:$0xf]
      %v1139 = vld [vmem:[%s1133 + $0x14] sm:$0xf]
      %v1140 = vld [vmem:[%s1133 + $0x18] sm:$0xf]
      %v1141 = vld [vmem:[%s1133 + $0x1c] sm:$0xf]
      %v1179 = vunpack.c.l.b16 %v1096
      %v1180 = vunpack.c.l.b16 %v1097
      %v1181 = vunpack.c.l.b16 %v1098
      %v1182 = vunpack.c.l.b16 %v1099
      %v1183 = vunpack.c.l.b16 %v1100
      %v1184 = vunpack.c.l.b16 %v1101
      %v1185 = vunpack.c.l.b16 %v1102
      %v1186 = vunpack.c.l.b16 %v1103
      %v1187 = vunpack.c.l.b16 %v1104
      %v1188 = vunpack.c.l.b16 %v1105
      %v1189 = vunpack.c.l.b16 %v1106
      %v1190 = vunpack.c.l.b16 %v1107
      %v1191 = vunpack.c.l.b16 %v1108
      %v1192 = vunpack.c.l.b16 %v1109
      %v1193 = vunpack.c.l.b16 %v1110
      %v1194 = vunpack.c.l.b16 %v1111
      %v1195 = vunpack.c.l.b16 %v1112
      %v1196 = vunpack.c.l.b16 %v1113
      %v1197 = vunpack.c.l.b16 %v1114
      %v1198 = vunpack.c.l.b16 %v1115
      %v1199 = vunpack.c.l.b16 %v1116
      %v1200 = vunpack.c.l.b16 %v1117
      %v1201 = vunpack.c.l.b16 %v1118
      %v1202 = vunpack.c.l.b16 %v1119
      %v1203 = vunpack.c.l.b16 %v1120
      %v1204 = vunpack.c.l.b16 %v1121
      %v1205 = vunpack.c.l.b16 %v1122
      %v1206 = vunpack.c.l.b16 %v1123
      %v1207 = vunpack.c.l.b16 %v1124
      %v1208 = vunpack.c.l.b16 %v1125
      %v1209 = vunpack.c.l.b16 %v1126
      %v1210 = vunpack.c.l.b16 %v1127
      %v1211 = vunpack.c.l.b16 %v1128
      %v1212 = vunpack.c.l.b16 %v1129
      %v1213 = vunpack.c.l.b16 %v1130
      %v1214 = vunpack.c.l.b16 %v1131
      %v1215 = vunpack.c.l.b16 %v1132
      %v1216 = vpack.c.b16 %v1180, %v1179
      %v1217 = vpack.c.b16 %v1182, %v1181
      %v1218 = vpack.c.b16 %v1184, %v1183
      %v1219 = vpack.c.b16 %v1186, %v1185
      %v1220 = vpack.c.b16 %v1188, %v1187
      %v1221 = vpack.c.b16 %v1190, %v1189
      %v1222 = vpack.c.b16 %v1192, %v1191
      %v1223 = vpack.c.b16 %v1194, %v1193
      %v1224 = vpack.c.b16 %v1196, %v1195
      %v1225 = vpack.c.b16 %v1198, %v1197
      %v1226 = vpack.c.b16 %v1200, %v1199
      %v1227 = vpack.c.b16 %v1202, %v1201
      %v1228 = vpack.c.b16 %v1204, %v1203
      %v1229 = vpack.c.b16 %v1206, %v1205
      %v1230 = vpack.c.b16 %v1208, %v1207
      %v1231 = vpack.c.b16 %v1210, %v1209
      %v1232 = vpack.c.b16 %v1212, %v1211
      %v1233 = vpack.c.b16 %v1214, %v1213
      %v1234 = vpack.c.b16 %v1215, %v1215
      %v1235 = vrot.slane %v1216, 1
      %v1236 = vrot.slane %v1217, 1
      %v1237 = vsel %vm845, %v1235, %v1236
      %v1238 = vrot.slane %v1218, 1
      %v1239 = vsel %vm845, %v1236, %v1238
      %v1240 = vrot.slane %v1219, 1
      %v1241 = vsel %vm845, %v1238, %v1240
      %v1242 = vrot.slane %v1220, 1
      %v1243 = vsel %vm845, %v1240, %v1242
      %v1244 = vrot.slane %v1221, 1
      %v1245 = vsel %vm845, %v1242, %v1244
      %v1246 = vrot.slane %v1222, 1
      %v1247 = vsel %vm845, %v1244, %v1246
      %v1248 = vrot.slane %v1223, 1
      %v1249 = vsel %vm845, %v1246, %v1248
      %v1250 = vrot.slane %v1224, 1
      %v1251 = vsel %vm845, %v1248, %v1250
      %v1252 = vrot.slane %v1225, 1
      %v1253 = vsel %vm845, %v1250, %v1252
      %v1254 = vrot.slane %v1226, 1
      %v1255 = vsel %vm845, %v1252, %v1254
      %v1256 = vrot.slane %v1227, 1
      %v1257 = vsel %vm845, %v1254, %v1256
      %v1258 = vrot.slane %v1228, 1
      %v1259 = vsel %vm845, %v1256, %v1258
      %v1260 = vrot.slane %v1229, 1
      %v1261 = vsel %vm845, %v1258, %v1260
      %v1262 = vrot.slane %v1230, 1
      %v1263 = vsel %vm845, %v1260, %v1262
      %v1264 = vrot.slane %v1231, 1
      %v1265 = vsel %vm845, %v1262, %v1264
      %v1266 = vrot.slane %v1232, 1
      %v1267 = vsel %vm845, %v1264, %v1266
      %v1268 = vrot.slane %v1233, 1
      %v1269 = vsel %vm845, %v1266, %v1268
      %v1270 = vrot.slane %v1234, 1
      %v1271 = vsel %vm845, %v1268, %v1270
      %v1280 = vunpack.c.l.b16 %v1134
      %v1281 = vunpack.c.l.b16 %v1135
      %v1282 = vunpack.c.l.b16 %v1136
      %v1283 = vunpack.c.l.b16 %v1137
      %v1284 = vunpack.c.l.b16 %v1138
      %v1285 = vunpack.c.l.b16 %v1139
      %v1286 = vunpack.c.l.b16 %v1140
      %v1287 = vunpack.c.l.b16 %v1141
      %v1288 = vpack.c.b16 %v1281, %v1280
      %v1289 = vpack.c.b16 %v1283, %v1282
      %v1290 = vpack.c.b16 %v1285, %v1284
      %v1291 = vpack.c.b16 %v1287, %v1286
      %v1297 = vsel %vm519, %v1237, 0
      %v1300 = vsel %vm519, %v1239, 0
      %v1303 = vsel %vm519, %v1241, 0
      %v1306 = vsel %vm519, %v1243, 0
      %v1309 = vsel %vm519, %v1245, 0
      %v1312 = vsel %vm519, %v1247, 0
      %v1315 = vsel %vm519, %v1249, 0
      %v1318 = vsel %vm519, %v1251, 0
      %v1321 = vsel %vm519, %v1253, 0
      %v1324 = vsel %vm519, %v1255, 0
      %v1327 = vsel %vm519, %v1257, 0
      %v1330 = vsel %vm519, %v1259, 0
      %v1333 = vsel %vm519, %v1261, 0
      %v1336 = vsel %vm519, %v1263, 0
      %v1339 = vsel %vm519, %v1265, 0
      %v1342 = vsel %vm519, %v1267, 0
      %v1345 = vsel %vm519, %v1269, 0
      %v1348 = vsel %vm519, %v1271, 0
      %1350 = vmatpush.bf16.msra.mxu0 0
      %1351 = vmatpush.bf16.msra.mxu0 0
      %1352 = vmatpush.bf16.msra.mxu0 0
      %1353 = vmatpush.bf16.msra.mxu0 0
      %1354 = vmatpush.bf16.msra.mxu0 %v1291
      %1355 = vmatpush.bf16.msra.mxu0 %v1290
      %1356 = vmatpush.bf16.msra.mxu0 %v1289
      %1357 = vmatpush.bf16.msra.mxu0 %v1288
      %1358 = vmatmul.bf16.gmra.mxu0 %v1297
      %v1359 = vpop.f32.mrf.mxu0
      %v1360 = vadd.f32 0.0, %v1359
      %v1361 = vpop.f32.mrf.mxu0
      %v1362 = vadd.f32 0.0, %v1361
      %1363 = vmatmul.bf16.gmra.mxu0 %v1300
      %v1364 = vpop.f32.mrf.mxu0
      %v1365 = vadd.f32 0.0, %v1364
      %v1366 = vpop.f32.mrf.mxu0
      %v1367 = vadd.f32 0.0, %v1366
      %1368 = vmatmul.bf16.gmra.mxu0 %v1303
      %v1369 = vpop.f32.mrf.mxu0
      %v1370 = vadd.f32 0.0, %v1369
      %v1371 = vpop.f32.mrf.mxu0
      %v1372 = vadd.f32 0.0, %v1371
      %1373 = vmatmul.bf16.gmra.mxu0 %v1306
      %v1374 = vpop.f32.mrf.mxu0
      %v1375 = vadd.f32 0.0, %v1374
      %v1376 = vpop.f32.mrf.mxu0
      %v1377 = vadd.f32 0.0, %v1376
      %1378 = vmatmul.bf16.gmra.mxu0 %v1309
      %v1379 = vpop.f32.mrf.mxu0
      %v1380 = vadd.f32 0.0, %v1379
      %v1381 = vpop.f32.mrf.mxu0
      %v1382 = vadd.f32 0.0, %v1381
      %1383 = vmatmul.bf16.gmra.mxu0 %v1312
      %v1384 = vpop.f32.mrf.mxu0
      %v1385 = vadd.f32 0.0, %v1384
      %v1386 = vpop.f32.mrf.mxu0
      %v1387 = vadd.f32 0.0, %v1386
      %1388 = vmatmul.bf16.gmra.mxu0 %v1315
      %v1389 = vpop.f32.mrf.mxu0
      %v1390 = vadd.f32 0.0, %v1389
      %v1391 = vpop.f32.mrf.mxu0
      %v1392 = vadd.f32 0.0, %v1391
      %1393 = vmatmul.bf16.gmra.mxu0 %v1318
      %v1394 = vpop.f32.mrf.mxu0
      %v1395 = vadd.f32 0.0, %v1394
      %v1396 = vpop.f32.mrf.mxu0
      %v1397 = vadd.f32 0.0, %v1396
      %1398 = vmatmul.bf16.gmra.mxu0 %v1321
      %v1399 = vpop.f32.mrf.mxu0
      %v1400 = vadd.f32 0.0, %v1399
      %v1401 = vpop.f32.mrf.mxu0
      %v1402 = vadd.f32 0.0, %v1401
      %1403 = vmatmul.bf16.gmra.mxu0 %v1324
      %v1404 = vpop.f32.mrf.mxu0
      %v1405 = vadd.f32 0.0, %v1404
      %v1406 = vpop.f32.mrf.mxu0
      %v1407 = vadd.f32 0.0, %v1406
      %1408 = vmatmul.bf16.gmra.mxu0 %v1327
      %v1409 = vpop.f32.mrf.mxu0
      %v1410 = vadd.f32 0.0, %v1409
      %v1411 = vpop.f32.mrf.mxu0
      %v1412 = vadd.f32 0.0, %v1411
      %1413 = vmatmul.bf16.gmra.mxu0 %v1330
      %v1414 = vpop.f32.mrf.mxu0
      %v1415 = vadd.f32 0.0, %v1414
      %v1416 = vpop.f32.mrf.mxu0
      %v1417 = vadd.f32 0.0, %v1416
      %1418 = vmatmul.bf16.gmra.mxu0 %v1333
      %v1419 = vpop.f32.mrf.mxu0
      %v1420 = vadd.f32 0.0, %v1419
      %v1421 = vpop.f32.mrf.mxu0
      %v1422 = vadd.f32 0.0, %v1421
      %1423 = vmatmul.bf16.gmra.mxu0 %v1336
      %v1424 = vpop.f32.mrf.mxu0
      %v1425 = vadd.f32 0.0, %v1424
      %v1426 = vpop.f32.mrf.mxu0
      %v1427 = vadd.f32 0.0, %v1426
      %1428 = vmatmul.bf16.gmra.mxu0 %v1339
      %v1429 = vpop.f32.mrf.mxu0
      %v1430 = vadd.f32 0.0, %v1429
      %v1431 = vpop.f32.mrf.mxu0
      %v1432 = vadd.f32 0.0, %v1431
      %1433 = vmatmul.bf16.gmra.mxu0 %v1342
      %v1434 = vpop.f32.mrf.mxu0
      %v1435 = vadd.f32 0.0, %v1434
      %v1436 = vpop.f32.mrf.mxu0
      %v1437 = vadd.f32 0.0, %v1436
      %1438 = vmatmul.bf16.gmra.mxu0 %v1345
      %v1439 = vpop.f32.mrf.mxu0
      %v1440 = vadd.f32 0.0, %v1439
      %v1441 = vpop.f32.mrf.mxu0
      %v1442 = vadd.f32 0.0, %v1441
      %1443 = vmatmul.bf16.gmra.mxu0 %v1348
      %v1444 = vpop.f32.mrf.mxu0
      %v1445 = vadd.f32 0.0, %v1444
      %v1446 = vpop.f32.mrf.mxu0
      %v1447 = vadd.f32 0.0, %v1446
      %1448 = vdwg.mxu0
      %v1449 = vadd.f32 %v1060, %v1360
      %v1450 = vadd.f32 %v1061, %v1362
      %v1451 = vadd.f32 %v1062, %v1365
      %v1452 = vadd.f32 %v1063, %v1367
      %v1453 = vadd.f32 %v1064, %v1370
      %v1454 = vadd.f32 %v1065, %v1372
      %v1455 = vadd.f32 %v1066, %v1375
      %v1456 = vadd.f32 %v1067, %v1377
      %v1457 = vadd.f32 %v1068, %v1380
      %v1458 = vadd.f32 %v1069, %v1382
      %v1459 = vadd.f32 %v1070, %v1385
      %v1460 = vadd.f32 %v1071, %v1387
      %v1461 = vadd.f32 %v1072, %v1390
      %v1462 = vadd.f32 %v1073, %v1392
      %v1463 = vadd.f32 %v1074, %v1395
      %v1464 = vadd.f32 %v1075, %v1397
      %v1465 = vadd.f32 %v1076, %v1400
      %v1466 = vadd.f32 %v1077, %v1402
      %v1467 = vadd.f32 %v1078, %v1405
      %v1468 = vadd.f32 %v1079, %v1407
      %v1469 = vadd.f32 %v1080, %v1410
      %v1470 = vadd.f32 %v1081, %v1412
      %v1471 = vadd.f32 %v1082, %v1415
      %v1472 = vadd.f32 %v1083, %v1417
      %v1473 = vadd.f32 %v1084, %v1420
      %v1474 = vadd.f32 %v1085, %v1422
      %v1475 = vadd.f32 %v1086, %v1425
      %v1476 = vadd.f32 %v1087, %v1427
      %v1477 = vadd.f32 %v1088, %v1430
      %v1478 = vadd.f32 %v1089, %v1432
      %v1479 = vadd.f32 %v1090, %v1435
      %v1480 = vadd.f32 %v1091, %v1437
      %v1481 = vadd.f32 %v1092, %v1440
      %v1482 = vadd.f32 %v1093, %v1442
      %v1483 = vadd.f32 %v1094, %v1445
      %v1484 = vadd.f32 %v1095, %v1447
      %v1485 = vld [vmem:[%s192 + $0x98] sm:$0x3]
      %s1486 = scalar_lea.vmem %s1, 128
      %v1487 = vld [vmem:[%s1486] sm:$0xf]
      %v1488 = vld [vmem:[%s1486 + $0x4] sm:$0xf]
      %v1489 = vld [vmem:[%s1486 + $0x8] sm:$0xf]
      %v1490 = vld [vmem:[%s1486 + $0xc] sm:$0xf]
      %v1491 = vld [vmem:[%s1486 + $0x10] sm:$0xf]
      %v1492 = vld [vmem:[%s1486 + $0x14] sm:$0xf]
      %v1493 = vld [vmem:[%s1486 + $0x18] sm:$0xf]
      %v1494 = vld [vmem:[%s1486 + $0x1c] sm:$0xf]
      %v1496 = vunpack.c.l.b16 %v1485
      %v1497 = vpack.c.b16 %v1496, %v1496
      %vm1498 = vsmask.f32 6400
      %v1500 = vshrl.u32 %v1216, 16
      %v1502 = vrot.slane %v1500, 1
      %v1503 = vshll.u32 %v1216, 16
      %v1505 = vrot.slane %v1503, 2
      %v1506 = vor.u32 %v1502, %v1505
      %v1508 = vshrl.u32 %v1217, 16
      %v1510 = vrot.slane %v1508, 1
      %v1511 = vshll.u32 %v1217, 16
      %v1513 = vrot.slane %v1511, 2
      %v1514 = vor.u32 %v1510, %v1513
      %v1515 = vsel %vm1498, %v1506, %v1514
      %v1517 = vshrl.u32 %v1218, 16
      %v1519 = vrot.slane %v1517, 1
      %v1520 = vshll.u32 %v1218, 16
      %v1522 = vrot.slane %v1520, 2
      %v1523 = vor.u32 %v1519, %v1522
      %v1524 = vsel %vm1498, %v1514, %v1523
      %v1526 = vshrl.u32 %v1219, 16
      %v1528 = vrot.slane %v1526, 1
      %v1529 = vshll.u32 %v1219, 16
      %v1531 = vrot.slane %v1529, 2
      %v1532 = vor.u32 %v1528, %v1531
      %v1533 = vsel %vm1498, %v1523, %v1532
      %v1535 = vshrl.u32 %v1220, 16
      %v1537 = vrot.slane %v1535, 1
      %v1538 = vshll.u32 %v1220, 16
      %v1540 = vrot.slane %v1538, 2
      %v1541 = vor.u32 %v1537, %v1540
      %v1542 = vsel %vm1498, %v1532, %v1541
      %v1544 = vshrl.u32 %v1221, 16
      %v1546 = vrot.slane %v1544, 1
      %v1547 = vshll.u32 %v1221, 16
      %v1549 = vrot.slane %v1547, 2
      %v1550 = vor.u32 %v1546, %v1549
      %v1551 = vsel %vm1498, %v1541, %v1550
      %v1553 = vshrl.u32 %v1222, 16
      %v1555 = vrot.slane %v1553, 1
      %v1556 = vshll.u32 %v1222, 16
      %v1558 = vrot.slane %v1556, 2
      %v1559 = vor.u32 %v1555, %v1558
      %v1560 = vsel %vm1498, %v1550, %v1559
      %v1562 = vshrl.u32 %v1223, 16
      %v1564 = vrot.slane %v1562, 1
      %v1565 = vshll.u32 %v1223, 16
      %v1567 = vrot.slane %v1565, 2
      %v1568 = vor.u32 %v1564, %v1567
      %v1569 = vsel %vm1498, %v1559, %v1568
      %v1571 = vshrl.u32 %v1224, 16
      %v1573 = vrot.slane %v1571, 1
      %v1574 = vshll.u32 %v1224, 16
      %v1576 = vrot.slane %v1574, 2
      %v1577 = vor.u32 %v1573, %v1576
      %v1578 = vsel %vm1498, %v1568, %v1577
      %v1580 = vshrl.u32 %v1225, 16
      %v1582 = vrot.slane %v1580, 1
      %v1583 = vshll.u32 %v1225, 16
      %v1585 = vrot.slane %v1583, 2
      %v1586 = vor.u32 %v1582, %v1585
      %v1587 = vsel %vm1498, %v1577, %v1586
      %v1589 = vshrl.u32 %v1226, 16
      %v1591 = vrot.slane %v1589, 1
      %v1592 = vshll.u32 %v1226, 16
      %v1594 = vrot.slane %v1592, 2
      %v1595 = vor.u32 %v1591, %v1594
      %v1596 = vsel %vm1498, %v1586, %v1595
      %v1598 = vshrl.u32 %v1227, 16
      %v1600 = vrot.slane %v1598, 1
      %v1601 = vshll.u32 %v1227, 16
      %v1603 = vrot.slane %v1601, 2
      %v1604 = vor.u32 %v1600, %v1603
      %v1605 = vsel %vm1498, %v1595, %v1604
      %v1607 = vshrl.u32 %v1228, 16
      %v1609 = vrot.slane %v1607, 1
      %v1610 = vshll.u32 %v1228, 16
      %v1612 = vrot.slane %v1610, 2
      %v1613 = vor.u32 %v1609, %v1612
      %v1614 = vsel %vm1498, %v1604, %v1613
      %v1616 = vshrl.u32 %v1229, 16
      %v1618 = vrot.slane %v1616, 1
      %v1619 = vshll.u32 %v1229, 16
      %v1621 = vrot.slane %v1619, 2
      %v1622 = vor.u32 %v1618, %v1621
      %v1623 = vsel %vm1498, %v1613, %v1622
      %v1625 = vshrl.u32 %v1230, 16
      %v1627 = vrot.slane %v1625, 1
      %v1628 = vshll.u32 %v1230, 16
      %v1630 = vrot.slane %v1628, 2
      %v1631 = vor.u32 %v1627, %v1630
      %v1632 = vsel %vm1498, %v1622, %v1631
      %v1634 = vshrl.u32 %v1231, 16
      %v1636 = vrot.slane %v1634, 1
      %v1637 = vshll.u32 %v1231, 16
      %v1639 = vrot.slane %v1637, 2
      %v1640 = vor.u32 %v1636, %v1639
      %v1641 = vsel %vm1498, %v1631, %v1640
      %v1643 = vshrl.u32 %v1232, 16
      %v1645 = vrot.slane %v1643, 1
      %v1646 = vshll.u32 %v1232, 16
      %v1648 = vrot.slane %v1646, 2
      %v1649 = vor.u32 %v1645, %v1648
      %v1650 = vsel %vm1498, %v1640, %v1649
      %v1652 = vshrl.u32 %v1233, 16
      %v1654 = vrot.slane %v1652, 1
      %v1655 = vshll.u32 %v1233, 16
      %v1657 = vrot.slane %v1655, 2
      %v1658 = vor.u32 %v1654, %v1657
      %v1659 = vsel %vm1498, %v1649, %v1658
      %v1661 = vshrl.u32 %v1497, 16
      %v1663 = vrot.slane %v1661, 1
      %v1664 = vshll.u32 %v1497, 16
      %v1666 = vrot.slane %v1664, 2
      %v1667 = vor.u32 %v1663, %v1666
      %v1668 = vsel %vm1498, %v1658, %v1667
      %v1677 = vunpack.c.l.b16 %v1487
      %v1678 = vunpack.c.l.b16 %v1488
      %v1679 = vunpack.c.l.b16 %v1489
      %v1680 = vunpack.c.l.b16 %v1490
      %v1681 = vunpack.c.l.b16 %v1491
      %v1682 = vunpack.c.l.b16 %v1492
      %v1683 = vunpack.c.l.b16 %v1493
      %v1684 = vunpack.c.l.b16 %v1494
      %v1685 = vpack.c.b16 %v1678, %v1677
      %v1686 = vpack.c.b16 %v1680, %v1679
      %v1687 = vpack.c.b16 %v1682, %v1681
      %v1688 = vpack.c.b16 %v1684, %v1683
      %v1694 = vsel %vm519, %v1515, 0
      %v1697 = vsel %vm519, %v1524, 0
      %v1700 = vsel %vm519, %v1533, 0
      %v1703 = vsel %vm519, %v1542, 0
      %v1706 = vsel %vm519, %v1551, 0
      %v1709 = vsel %vm519, %v1560, 0
      %v1712 = vsel %vm519, %v1569, 0
      %v1715 = vsel %vm519, %v1578, 0
      %v1718 = vsel %vm519, %v1587, 0
      %v1721 = vsel %vm519, %v1596, 0
      %v1724 = vsel %vm519, %v1605, 0
      %v1727 = vsel %vm519, %v1614, 0
      %v1730 = vsel %vm519, %v1623, 0
      %v1733 = vsel %vm519, %v1632, 0
      %v1736 = vsel %vm519, %v1641, 0
      %v1739 = vsel %vm519, %v1650, 0
      %v1742 = vsel %vm519, %v1659, 0
      %v1745 = vsel %vm519, %v1668, 0
      %1747 = vmatpush.bf16.msra.mxu0 0
      %1748 = vmatpush.bf16.msra.mxu0 0
      %1749 = vmatpush.bf16.msra.mxu0 0
      %1750 = vmatpush.bf16.msra.mxu0 0
      %1751 = vmatpush.bf16.msra.mxu0 %v1688
      %1752 = vmatpush.bf16.msra.mxu0 %v1687
      %1753 = vmatpush.bf16.msra.mxu0 %v1686
      %1754 = vmatpush.bf16.msra.mxu0 %v1685
      %1755 = vmatmul.bf16.gmra.mxu0 %v1694
      %v1756 = vpop.f32.mrf.mxu0
      %v1757 = vadd.f32 0.0, %v1756
      %v1758 = vpop.f32.mrf.mxu0
      %v1759 = vadd.f32 0.0, %v1758
      %1760 = vmatmul.bf16.gmra.mxu0 %v1697
      %v1761 = vpop.f32.mrf.mxu0
      %v1762 = vadd.f32 0.0, %v1761
      %v1763 = vpop.f32.mrf.mxu0
      %v1764 = vadd.f32 0.0, %v1763
      %1765 = vmatmul.bf16.gmra.mxu0 %v1700
      %v1766 = vpop.f32.mrf.mxu0
      %v1767 = vadd.f32 0.0, %v1766
      %v1768 = vpop.f32.mrf.mxu0
      %v1769 = vadd.f32 0.0, %v1768
      %1770 = vmatmul.bf16.gmra.mxu0 %v1703
      %v1771 = vpop.f32.mrf.mxu0
      %v1772 = vadd.f32 0.0, %v1771
      %v1773 = vpop.f32.mrf.mxu0
      %v1774 = vadd.f32 0.0, %v1773
      %1775 = vmatmul.bf16.gmra.mxu0 %v1706
      %v1776 = vpop.f32.mrf.mxu0
      %v1777 = vadd.f32 0.0, %v1776
      %v1778 = vpop.f32.mrf.mxu0
      %v1779 = vadd.f32 0.0, %v1778
      %1780 = vmatmul.bf16.gmra.mxu0 %v1709
      %v1781 = vpop.f32.mrf.mxu0
      %v1782 = vadd.f32 0.0, %v1781
      %v1783 = vpop.f32.mrf.mxu0
      %v1784 = vadd.f32 0.0, %v1783
      %1785 = vmatmul.bf16.gmra.mxu0 %v1712
      %v1786 = vpop.f32.mrf.mxu0
      %v1787 = vadd.f32 0.0, %v1786
      %v1788 = vpop.f32.mrf.mxu0
      %v1789 = vadd.f32 0.0, %v1788
      %1790 = vmatmul.bf16.gmra.mxu0 %v1715
      %v1791 = vpop.f32.mrf.mxu0
      %v1792 = vadd.f32 0.0, %v1791
      %v1793 = vpop.f32.mrf.mxu0
      %v1794 = vadd.f32 0.0, %v1793
      %1795 = vmatmul.bf16.gmra.mxu0 %v1718
      %v1796 = vpop.f32.mrf.mxu0
      %v1797 = vadd.f32 0.0, %v1796
      %v1798 = vpop.f32.mrf.mxu0
      %v1799 = vadd.f32 0.0, %v1798
      %1800 = vmatmul.bf16.gmra.mxu0 %v1721
      %v1801 = vpop.f32.mrf.mxu0
      %v1802 = vadd.f32 0.0, %v1801
      %v1803 = vpop.f32.mrf.mxu0
      %v1804 = vadd.f32 0.0, %v1803
      %1805 = vmatmul.bf16.gmra.mxu0 %v1724
      %v1806 = vpop.f32.mrf.mxu0
      %v1807 = vadd.f32 0.0, %v1806
      %v1808 = vpop.f32.mrf.mxu0
      %v1809 = vadd.f32 0.0, %v1808
      %1810 = vmatmul.bf16.gmra.mxu0 %v1727
      %v1811 = vpop.f32.mrf.mxu0
      %v1812 = vadd.f32 0.0, %v1811
      %v1813 = vpop.f32.mrf.mxu0
      %v1814 = vadd.f32 0.0, %v1813
      %1815 = vmatmul.bf16.gmra.mxu0 %v1730
      %v1816 = vpop.f32.mrf.mxu0
      %v1817 = vadd.f32 0.0, %v1816
      %v1818 = vpop.f32.mrf.mxu0
      %v1819 = vadd.f32 0.0, %v1818
      %1820 = vmatmul.bf16.gmra.mxu0 %v1733
      %v1821 = vpop.f32.mrf.mxu0
      %v1822 = vadd.f32 0.0, %v1821
      %v1823 = vpop.f32.mrf.mxu0
      %v1824 = vadd.f32 0.0, %v1823
      %1825 = vmatmul.bf16.gmra.mxu0 %v1736
      %v1826 = vpop.f32.mrf.mxu0
      %v1827 = vadd.f32 0.0, %v1826
      %v1828 = vpop.f32.mrf.mxu0
      %v1829 = vadd.f32 0.0, %v1828
      %1830 = vmatmul.bf16.gmra.mxu0 %v1739
      %v1831 = vpop.f32.mrf.mxu0
      %v1832 = vadd.f32 0.0, %v1831
      %v1833 = vpop.f32.mrf.mxu0
      %v1834 = vadd.f32 0.0, %v1833
      %1835 = vmatmul.bf16.gmra.mxu0 %v1742
      %v1836 = vpop.f32.mrf.mxu0
      %v1837 = vadd.f32 0.0, %v1836
      %v1838 = vpop.f32.mrf.mxu0
      %v1839 = vadd.f32 0.0, %v1838
      %1840 = vmatmul.bf16.gmra.mxu0 %v1745
      %v1841 = vpop.f32.mrf.mxu0
      %v1842 = vadd.f32 0.0, %v1841
      %v1843 = vpop.f32.mrf.mxu0
      %v1844 = vadd.f32 0.0, %v1843
      %1845 = vdwg.mxu0
      %v1846 = vadd.f32 %v1449, %v1757
      %v1847 = vadd.f32 %v1450, %v1759
      %v1848 = vadd.f32 %v1451, %v1762
      %v1849 = vadd.f32 %v1452, %v1764
      %v1850 = vadd.f32 %v1453, %v1767
      %v1851 = vadd.f32 %v1454, %v1769
      %v1852 = vadd.f32 %v1455, %v1772
      %v1853 = vadd.f32 %v1456, %v1774
      %v1854 = vadd.f32 %v1457, %v1777
      %v1855 = vadd.f32 %v1458, %v1779
      %v1856 = vadd.f32 %v1459, %v1782
      %v1857 = vadd.f32 %v1460, %v1784
      %v1858 = vadd.f32 %v1461, %v1787
      %v1859 = vadd.f32 %v1462, %v1789
      %v1860 = vadd.f32 %v1463, %v1792
      %v1861 = vadd.f32 %v1464, %v1794
      %v1862 = vadd.f32 %v1465, %v1797
      %v1863 = vadd.f32 %v1466, %v1799
      %v1864 = vadd.f32 %v1467, %v1802
      %v1865 = vadd.f32 %v1468, %v1804
      %v1866 = vadd.f32 %v1469, %v1807
      %v1867 = vadd.f32 %v1470, %v1809
      %v1868 = vadd.f32 %v1471, %v1812
      %v1869 = vadd.f32 %v1472, %v1814
      %v1870 = vadd.f32 %v1473, %v1817
      %v1871 = vadd.f32 %v1474, %v1819
      %v1872 = vadd.f32 %v1475, %v1822
      %v1873 = vadd.f32 %v1476, %v1824
      %v1874 = vadd.f32 %v1477, %v1827
      %v1875 = vadd.f32 %v1478, %v1829
      %v1876 = vadd.f32 %v1479, %v1832
      %v1877 = vadd.f32 %v1480, %v1834
      %v1878 = vadd.f32 %v1481, %v1837
      %v1879 = vadd.f32 %v1482, %v1839
      %v1880 = vadd.f32 %v1483, %v1842
      %v1881 = vadd.f32 %v1484, %v1844
      %v1882 = vld [vmem:[%s192 + $0x8] sm:$0xc]
      %s1883 = scalar_lea.vmem %s1, 160
      %v1884 = vld [vmem:[%s1883] sm:$0xf]
      %v1885 = vld [vmem:[%s1883 + $0x4] sm:$0xf]
      %v1886 = vld [vmem:[%s1883 + $0x8] sm:$0xf]
      %v1887 = vld [vmem:[%s1883 + $0xc] sm:$0xf]
      %v1888 = vld [vmem:[%s1883 + $0x10] sm:$0xf]
      %v1889 = vld [vmem:[%s1883 + $0x14] sm:$0xf]
      %v1890 = vld [vmem:[%s1883 + $0x18] sm:$0xf]
      %v1891 = vld [vmem:[%s1883 + $0x1c] sm:$0xf]
      %v1893 = vunpack.c.l.b16 %v1882
      %v1894 = vpack.c.b16 %v1180, %v1893
      %vm1895 = vcmask 1045504
      %v1896 = vrot.slane %v1894, 2
      %v1897 = vrot.slane %v1217, 2
      %v1898 = vsel %vm1895, %v1896, %v1897
      %v1899 = vrot.slane %v1218, 2
      %v1900 = vsel %vm1895, %v1897, %v1899
      %v1901 = vrot.slane %v1219, 2
      %v1902 = vsel %vm1895, %v1899, %v1901
      %v1903 = vrot.slane %v1220, 2
      %v1904 = vsel %vm1895, %v1901, %v1903
      %v1905 = vrot.slane %v1221, 2
      %v1906 = vsel %vm1895, %v1903, %v1905
      %v1907 = vrot.slane %v1222, 2
      %v1908 = vsel %vm1895, %v1905, %v1907
      %v1909 = vrot.slane %v1223, 2
      %v1910 = vsel %vm1895, %v1907, %v1909
      %v1911 = vrot.slane %v1224, 2
      %v1912 = vsel %vm1895, %v1909, %v1911
      %v1913 = vrot.slane %v1225, 2
      %v1914 = vsel %vm1895, %v1911, %v1913
      %v1915 = vrot.slane %v1226, 2
      %v1916 = vsel %vm1895, %v1913, %v1915
      %v1917 = vrot.slane %v1227, 2
      %v1918 = vsel %vm1895, %v1915, %v1917
      %v1919 = vrot.slane %v1228, 2
      %v1920 = vsel %vm1895, %v1917, %v1919
      %v1921 = vrot.slane %v1229, 2
      %v1922 = vsel %vm1895, %v1919, %v1921
      %v1923 = vrot.slane %v1230, 2
      %v1924 = vsel %vm1895, %v1921, %v1923
      %v1925 = vrot.slane %v1231, 2
      %v1926 = vsel %vm1895, %v1923, %v1925
      %v1927 = vrot.slane %v1232, 2
      %v1928 = vsel %vm1895, %v1925, %v1927
      %v1929 = vrot.slane %v1233, 2
      %v1930 = vsel %vm1895, %v1927, %v1929
      %v1931 = vrot.slane %v1497, 2
      %v1932 = vsel %vm1895, %v1929, %v1931
      %v1941 = vunpack.c.l.b16 %v1884
      %v1942 = vunpack.c.l.b16 %v1885
      %v1943 = vunpack.c.l.b16 %v1886
      %v1944 = vunpack.c.l.b16 %v1887
      %v1945 = vunpack.c.l.b16 %v1888
      %v1946 = vunpack.c.l.b16 %v1889
      %v1947 = vunpack.c.l.b16 %v1890
      %v1948 = vunpack.c.l.b16 %v1891
      %v1949 = vpack.c.b16 %v1942, %v1941
      %v1950 = vpack.c.b16 %v1944, %v1943
      %v1951 = vpack.c.b16 %v1946, %v1945
      %v1952 = vpack.c.b16 %v1948, %v1947
      %v1958 = vsel %vm519, %v1898, 0
      %v1961 = vsel %vm519, %v1900, 0
      %v1964 = vsel %vm519, %v1902, 0
      %v1967 = vsel %vm519, %v1904, 0
      %v1970 = vsel %vm519, %v1906, 0
      %v1973 = vsel %vm519, %v1908, 0
      %v1976 = vsel %vm519, %v1910, 0
      %v1979 = vsel %vm519, %v1912, 0
      %v1982 = vsel %vm519, %v1914, 0
      %v1985 = vsel %vm519, %v1916, 0
      %v1988 = vsel %vm519, %v1918, 0
      %v1991 = vsel %vm519, %v1920, 0
      %v1994 = vsel %vm519, %v1922, 0
      %v1997 = vsel %vm519, %v1924, 0
      %v2000 = vsel %vm519, %v1926, 0
      %v2003 = vsel %vm519, %v1928, 0
      %v2006 = vsel %vm519, %v1930, 0
      %v2009 = vsel %vm519, %v1932, 0
      %2011 = vmatpush.bf16.msra.mxu0 0
      %2012 = vmatpush.bf16.msra.mxu0 0
      %2013 = vmatpush.bf16.msra.mxu0 0
      %2014 = vmatpush.bf16.msra.mxu0 0
      %2015 = vmatpush.bf16.msra.mxu0 %v1952
      %2016 = vmatpush.bf16.msra.mxu0 %v1951
      %2017 = vmatpush.bf16.msra.mxu0 %v1950
      %2018 = vmatpush.bf16.msra.mxu0 %v1949
      %2019 = vmatmul.bf16.gmra.mxu0 %v1958
      %v2020 = vpop.f32.mrf.mxu0
      %v2021 = vadd.f32 0.0, %v2020
      %v2022 = vpop.f32.mrf.mxu0
      %v2023 = vadd.f32 0.0, %v2022
      %2024 = vmatmul.bf16.gmra.mxu0 %v1961
      %v2025 = vpop.f32.mrf.mxu0
      %v2026 = vadd.f32 0.0, %v2025
      %v2027 = vpop.f32.mrf.mxu0
      %v2028 = vadd.f32 0.0, %v2027
      %2029 = vmatmul.bf16.gmra.mxu0 %v1964
      %v2030 = vpop.f32.mrf.mxu0
      %v2031 = vadd.f32 0.0, %v2030
      %v2032 = vpop.f32.mrf.mxu0
      %v2033 = vadd.f32 0.0, %v2032
      %2034 = vmatmul.bf16.gmra.mxu0 %v1967
      %v2035 = vpop.f32.mrf.mxu0
      %v2036 = vadd.f32 0.0, %v2035
      %v2037 = vpop.f32.mrf.mxu0
      %v2038 = vadd.f32 0.0, %v2037
      %2039 = vmatmul.bf16.gmra.mxu0 %v1970
      %v2040 = vpop.f32.mrf.mxu0
      %v2041 = vadd.f32 0.0, %v2040
      %v2042 = vpop.f32.mrf.mxu0
      %v2043 = vadd.f32 0.0, %v2042
      %2044 = vmatmul.bf16.gmra.mxu0 %v1973
      %v2045 = vpop.f32.mrf.mxu0
      %v2046 = vadd.f32 0.0, %v2045
      %v2047 = vpop.f32.mrf.mxu0
      %v2048 = vadd.f32 0.0, %v2047
      %2049 = vmatmul.bf16.gmra.mxu0 %v1976
      %v2050 = vpop.f32.mrf.mxu0
      %v2051 = vadd.f32 0.0, %v2050
      %v2052 = vpop.f32.mrf.mxu0
      %v2053 = vadd.f32 0.0, %v2052
      %2054 = vmatmul.bf16.gmra.mxu0 %v1979
      %v2055 = vpop.f32.mrf.mxu0
      %v2056 = vadd.f32 0.0, %v2055
      %v2057 = vpop.f32.mrf.mxu0
      %v2058 = vadd.f32 0.0, %v2057
      %2059 = vmatmul.bf16.gmra.mxu0 %v1982
      %v2060 = vpop.f32.mrf.mxu0
      %v2061 = vadd.f32 0.0, %v2060
      %v2062 = vpop.f32.mrf.mxu0
      %v2063 = vadd.f32 0.0, %v2062
      %2064 = vmatmul.bf16.gmra.mxu0 %v1985
      %v2065 = vpop.f32.mrf.mxu0
      %v2066 = vadd.f32 0.0, %v2065
      %v2067 = vpop.f32.mrf.mxu0
      %v2068 = vadd.f32 0.0, %v2067
      %2069 = vmatmul.bf16.gmra.mxu0 %v1988
      %v2070 = vpop.f32.mrf.mxu0
      %v2071 = vadd.f32 0.0, %v2070
      %v2072 = vpop.f32.mrf.mxu0
      %v2073 = vadd.f32 0.0, %v2072
      %2074 = vmatmul.bf16.gmra.mxu0 %v1991
      %v2075 = vpop.f32.mrf.mxu0
      %v2076 = vadd.f32 0.0, %v2075
      %v2077 = vpop.f32.mrf.mxu0
      %v2078 = vadd.f32 0.0, %v2077
      %2079 = vmatmul.bf16.gmra.mxu0 %v1994
      %v2080 = vpop.f32.mrf.mxu0
      %v2081 = vadd.f32 0.0, %v2080
      %v2082 = vpop.f32.mrf.mxu0
      %v2083 = vadd.f32 0.0, %v2082
      %2084 = vmatmul.bf16.gmra.mxu0 %v1997
      %v2085 = vpop.f32.mrf.mxu0
      %v2086 = vadd.f32 0.0, %v2085
      %v2087 = vpop.f32.mrf.mxu0
      %v2088 = vadd.f32 0.0, %v2087
      %2089 = vmatmul.bf16.gmra.mxu0 %v2000
      %v2090 = vpop.f32.mrf.mxu0
      %v2091 = vadd.f32 0.0, %v2090
      %v2092 = vpop.f32.mrf.mxu0
      %v2093 = vadd.f32 0.0, %v2092
      %2094 = vmatmul.bf16.gmra.mxu0 %v2003
      %v2095 = vpop.f32.mrf.mxu0
      %v2096 = vadd.f32 0.0, %v2095
      %v2097 = vpop.f32.mrf.mxu0
      %v2098 = vadd.f32 0.0, %v2097
      %2099 = vmatmul.bf16.gmra.mxu0 %v2006
      %v2100 = vpop.f32.mrf.mxu0
      %v2101 = vadd.f32 0.0, %v2100
      %v2102 = vpop.f32.mrf.mxu0
      %v2103 = vadd.f32 0.0, %v2102
      %2104 = vmatmul.bf16.gmra.mxu0 %v2009
      %v2105 = vpop.f32.mrf.mxu0
      %v2106 = vadd.f32 0.0, %v2105
      %v2107 = vpop.f32.mrf.mxu0
      %v2108 = vadd.f32 0.0, %v2107
      %2109 = vdwg.mxu0
      %v2110 = vadd.f32 %v1846, %v2021
      %v2111 = vadd.f32 %v1847, %v2023
      %v2112 = vadd.f32 %v1848, %v2026
      %v2113 = vadd.f32 %v1849, %v2028
      %v2114 = vadd.f32 %v1850, %v2031
      %v2115 = vadd.f32 %v1851, %v2033
      %v2116 = vadd.f32 %v1852, %v2036
      %v2117 = vadd.f32 %v1853, %v2038
      %v2118 = vadd.f32 %v1854, %v2041
      %v2119 = vadd.f32 %v1855, %v2043
      %v2120 = vadd.f32 %v1856, %v2046
      %v2121 = vadd.f32 %v1857, %v2048
      %v2122 = vadd.f32 %v1858, %v2051
      %v2123 = vadd.f32 %v1859, %v2053
      %v2124 = vadd.f32 %v1860, %v2056
      %v2125 = vadd.f32 %v1861, %v2058
      %v2126 = vadd.f32 %v1862, %v2061
      %v2127 = vadd.f32 %v1863, %v2063
      %v2128 = vadd.f32 %v1864, %v2066
      %v2129 = vadd.f32 %v1865, %v2068
      %v2130 = vadd.f32 %v1866, %v2071
      %v2131 = vadd.f32 %v1867, %v2073
      %v2132 = vadd.f32 %v1868, %v2076
      %v2133 = vadd.f32 %v1869, %v2078
      %v2134 = vadd.f32 %v1870, %v2081
      %v2135 = vadd.f32 %v1871, %v2083
      %v2136 = vadd.f32 %v1872, %v2086
      %v2137 = vadd.f32 %v1873, %v2088
      %v2138 = vadd.f32 %v1874, %v2091
      %v2139 = vadd.f32 %v1875, %v2093
      %v2140 = vadd.f32 %v1876, %v2096
      %v2141 = vadd.f32 %v1877, %v2098
      %v2142 = vadd.f32 %v1878, %v2101
      %v2143 = vadd.f32 %v1879, %v2103
      %v2144 = vadd.f32 %v1880, %v2106
      %v2145 = vadd.f32 %v1881, %v2108
      %v2146 = vld [vmem:[%s192 + $0x10] sm:$0xc]
      %v2147 = vld [vmem:[%s192 + $0x14] sm:$0xf]
      %v2148 = vld [vmem:[%s192 + $0x18] sm:$0xf]
      %v2149 = vld [vmem:[%s192 + $0x1c] sm:$0xf]
      %v2150 = vld [vmem:[%s192 + $0x20] sm:$0xf]
      %v2151 = vld [vmem:[%s192 + $0x24] sm:$0xf]
      %v2152 = vld [vmem:[%s192 + $0x28] sm:$0xf]
      %v2153 = vld [vmem:[%s192 + $0x2c] sm:$0xf]
      %v2154 = vld [vmem:[%s192 + $0x30] sm:$0xf]
      %v2155 = vld [vmem:[%s192 + $0x34] sm:$0xf]
      %v2156 = vld [vmem:[%s192 + $0x38] sm:$0xf]
      %v2157 = vld [vmem:[%s192 + $0x3c] sm:$0xf]
      %v2158 = vld [vmem:[%s192 + $0x40] sm:$0xf]
      %v2159 = vld [vmem:[%s192 + $0x44] sm:$0xf]
      %v2160 = vld [vmem:[%s192 + $0x48] sm:$0xf]
      %v2161 = vld [vmem:[%s192 + $0x4c] sm:$0xf]
      %v2162 = vld [vmem:[%s192 + $0x50] sm:$0xf]
      %v2163 = vld [vmem:[%s192 + $0x54] sm:$0xf]
      %v2164 = vld [vmem:[%s192 + $0x58] sm:$0xf]
      %v2165 = vld [vmem:[%s192 + $0x5c] sm:$0xf]
      %v2166 = vld [vmem:[%s192 + $0x60] sm:$0xf]
      %v2167 = vld [vmem:[%s192 + $0x64] sm:$0xf]
      %v2168 = vld [vmem:[%s192 + $0x68] sm:$0xf]
      %v2169 = vld [vmem:[%s192 + $0x6c] sm:$0xf]
      %v2170 = vld [vmem:[%s192 + $0x70] sm:$0xf]
      %v2171 = vld [vmem:[%s192 + $0x74] sm:$0xf]
      %v2172 = vld [vmem:[%s192 + $0x78] sm:$0xf]
      %v2173 = vld [vmem:[%s192 + $0x7c] sm:$0xf]
      %v2174 = vld [vmem:[%s192 + $0x80] sm:$0xf]
      %v2175 = vld [vmem:[%s192 + $0x84] sm:$0xf]
      %v2176 = vld [vmem:[%s192 + $0x88] sm:$0xf]
      %v2177 = vld [vmem:[%s192 + $0x8c] sm:$0xf]
      %v2178 = vld [vmem:[%s192 + $0x90] sm:$0xf]
      %v2179 = vld [vmem:[%s192 + $0x94] sm:$0xf]
      %v2180 = vld [vmem:[%s192 + $0x98] sm:$0xf]
      %v2181 = vld [vmem:[%s192 + $0x9c] sm:$0xf]
      %v2182 = vld [vmem:[%s192 + $0xa0] sm:$0x3]
      %s2183 = scalar_lea.vmem %s1, 192
      %v2184 = vld [vmem:[%s2183] sm:$0xf]
      %v2185 = vld [vmem:[%s2183 + $0x4] sm:$0xf]
      %v2186 = vld [vmem:[%s2183 + $0x8] sm:$0xf]
      %v2187 = vld [vmem:[%s2183 + $0xc] sm:$0xf]
      %v2188 = vld [vmem:[%s2183 + $0x10] sm:$0xf]
      %v2189 = vld [vmem:[%s2183 + $0x14] sm:$0xf]
      %v2190 = vld [vmem:[%s2183 + $0x18] sm:$0xf]
      %v2191 = vld [vmem:[%s2183 + $0x1c] sm:$0xf]
      %v2229 = vunpack.c.l.b16 %v2146
      %v2230 = vunpack.c.l.b16 %v2147
      %v2231 = vunpack.c.l.b16 %v2148
      %v2232 = vunpack.c.l.b16 %v2149
      %v2233 = vunpack.c.l.b16 %v2150
      %v2234 = vunpack.c.l.b16 %v2151
      %v2235 = vunpack.c.l.b16 %v2152
      %v2236 = vunpack.c.l.b16 %v2153
      %v2237 = vunpack.c.l.b16 %v2154
      %v2238 = vunpack.c.l.b16 %v2155
      %v2239 = vunpack.c.l.b16 %v2156
      %v2240 = vunpack.c.l.b16 %v2157
      %v2241 = vunpack.c.l.b16 %v2158
      %v2242 = vunpack.c.l.b16 %v2159
      %v2243 = vunpack.c.l.b16 %v2160
      %v2244 = vunpack.c.l.b16 %v2161
      %v2245 = vunpack.c.l.b16 %v2162
      %v2246 = vunpack.c.l.b16 %v2163
      %v2247 = vunpack.c.l.b16 %v2164
      %v2248 = vunpack.c.l.b16 %v2165
      %v2249 = vunpack.c.l.b16 %v2166
      %v2250 = vunpack.c.l.b16 %v2167
      %v2251 = vunpack.c.l.b16 %v2168
      %v2252 = vunpack.c.l.b16 %v2169
      %v2253 = vunpack.c.l.b16 %v2170
      %v2254 = vunpack.c.l.b16 %v2171
      %v2255 = vunpack.c.l.b16 %v2172
      %v2256 = vunpack.c.l.b16 %v2173
      %v2257 = vunpack.c.l.b16 %v2174
      %v2258 = vunpack.c.l.b16 %v2175
      %v2259 = vunpack.c.l.b16 %v2176
      %v2260 = vunpack.c.l.b16 %v2177
      %v2261 = vunpack.c.l.b16 %v2178
      %v2262 = vunpack.c.l.b16 %v2179
      %v2263 = vunpack.c.l.b16 %v2180
      %v2264 = vunpack.c.l.b16 %v2181
      %v2265 = vunpack.c.l.b16 %v2182
      %v2266 = vpack.c.b16 %v2230, %v2229
      %v2267 = vpack.c.b16 %v2232, %v2231
      %v2268 = vpack.c.b16 %v2234, %v2233
      %v2269 = vpack.c.b16 %v2236, %v2235
      %v2270 = vpack.c.b16 %v2238, %v2237
      %v2271 = vpack.c.b16 %v2240, %v2239
      %v2272 = vpack.c.b16 %v2242, %v2241
      %v2273 = vpack.c.b16 %v2244, %v2243
      %v2274 = vpack.c.b16 %v2246, %v2245
      %v2275 = vpack.c.b16 %v2248, %v2247
      %v2276 = vpack.c.b16 %v2250, %v2249
      %v2277 = vpack.c.b16 %v2252, %v2251
      %v2278 = vpack.c.b16 %v2254, %v2253
      %v2279 = vpack.c.b16 %v2256, %v2255
      %v2280 = vpack.c.b16 %v2258, %v2257
      %v2281 = vpack.c.b16 %v2260, %v2259
      %v2282 = vpack.c.b16 %v2262, %v2261
      %v2283 = vpack.c.b16 %v2264, %v2263
      %v2284 = vpack.c.b16 %v2265, %v2265
      %v2285 = vrot.slane %v2266, 2
      %v2286 = vrot.slane %v2267, 2
      %v2287 = vsel %vm1895, %v2285, %v2286
      %v2288 = vrot.slane %v2268, 2
      %v2289 = vsel %vm1895, %v2286, %v2288
      %v2290 = vrot.slane %v2269, 2
      %v2291 = vsel %vm1895, %v2288, %v2290
      %v2292 = vrot.slane %v2270, 2
      %v2293 = vsel %vm1895, %v2290, %v2292
      %v2294 = vrot.slane %v2271, 2
      %v2295 = vsel %vm1895, %v2292, %v2294
      %v2296 = vrot.slane %v2272, 2
      %v2297 = vsel %vm1895, %v2294, %v2296
      %v2298 = vrot.slane %v2273, 2
      %v2299 = vsel %vm1895, %v2296, %v2298
      %v2300 = vrot.slane %v2274, 2
      %v2301 = vsel %vm1895, %v2298, %v2300
      %v2302 = vrot.slane %v2275, 2
      %v2303 = vsel %vm1895, %v2300, %v2302
      %v2304 = vrot.slane %v2276, 2
      %v2305 = vsel %vm1895, %v2302, %v2304
      %v2306 = vrot.slane %v2277, 2
      %v2307 = vsel %vm1895, %v2304, %v2306
      %v2308 = vrot.slane %v2278, 2
      %v2309 = vsel %vm1895, %v2306, %v2308
      %v2310 = vrot.slane %v2279, 2
      %v2311 = vsel %vm1895, %v2308, %v2310
      %v2312 = vrot.slane %v2280, 2
      %v2313 = vsel %vm1895, %v2310, %v2312
      %v2314 = vrot.slane %v2281, 2
      %v2315 = vsel %vm1895, %v2312, %v2314
      %v2316 = vrot.slane %v2282, 2
      %v2317 = vsel %vm1895, %v2314, %v2316
      %v2318 = vrot.slane %v2283, 2
      %v2319 = vsel %vm1895, %v2316, %v2318
      %v2320 = vrot.slane %v2284, 2
      %v2321 = vsel %vm1895, %v2318, %v2320
      %v2330 = vunpack.c.l.b16 %v2184
      %v2331 = vunpack.c.l.b16 %v2185
      %v2332 = vunpack.c.l.b16 %v2186
      %v2333 = vunpack.c.l.b16 %v2187
      %v2334 = vunpack.c.l.b16 %v2188
      %v2335 = vunpack.c.l.b16 %v2189
      %v2336 = vunpack.c.l.b16 %v2190
      %v2337 = vunpack.c.l.b16 %v2191
      %v2338 = vpack.c.b16 %v2331, %v2330
      %v2339 = vpack.c.b16 %v2333, %v2332
      %v2340 = vpack.c.b16 %v2335, %v2334
      %v2341 = vpack.c.b16 %v2337, %v2336
      %v2347 = vsel %vm519, %v2287, 0
      %v2350 = vsel %vm519, %v2289, 0
      %v2353 = vsel %vm519, %v2291, 0
      %v2356 = vsel %vm519, %v2293, 0
      %v2359 = vsel %vm519, %v2295, 0
      %v2362 = vsel %vm519, %v2297, 0
      %v2365 = vsel %vm519, %v2299, 0
      %v2368 = vsel %vm519, %v2301, 0
      %v2371 = vsel %vm519, %v2303, 0
      %v2374 = vsel %vm519, %v2305, 0
      %v2377 = vsel %vm519, %v2307, 0
      %v2380 = vsel %vm519, %v2309, 0
      %v2383 = vsel %vm519, %v2311, 0
      %v2386 = vsel %vm519, %v2313, 0
      %v2389 = vsel %vm519, %v2315, 0
      %v2392 = vsel %vm519, %v2317, 0
      %v2395 = vsel %vm519, %v2319, 0
      %v2398 = vsel %vm519, %v2321, 0
      %2400 = vmatpush.bf16.msra.mxu0 0
      %2401 = vmatpush.bf16.msra.mxu0 0
      %2402 = vmatpush.bf16.msra.mxu0 0
      %2403 = vmatpush.bf16.msra.mxu0 0
      %2404 = vmatpush.bf16.msra.mxu0 %v2341
      %2405 = vmatpush.bf16.msra.mxu0 %v2340
      %2406 = vmatpush.bf16.msra.mxu0 %v2339
      %2407 = vmatpush.bf16.msra.mxu0 %v2338
      %2408 = vmatmul.bf16.gmra.mxu0 %v2347
      %v2409 = vpop.f32.mrf.mxu0
      %v2410 = vadd.f32 0.0, %v2409
      %v2411 = vpop.f32.mrf.mxu0
      %v2412 = vadd.f32 0.0, %v2411
      %2413 = vmatmul.bf16.gmra.mxu0 %v2350
      %v2414 = vpop.f32.mrf.mxu0
      %v2415 = vadd.f32 0.0, %v2414
      %v2416 = vpop.f32.mrf.mxu0
      %v2417 = vadd.f32 0.0, %v2416
      %2418 = vmatmul.bf16.gmra.mxu0 %v2353
      %v2419 = vpop.f32.mrf.mxu0
      %v2420 = vadd.f32 0.0, %v2419
      %v2421 = vpop.f32.mrf.mxu0
      %v2422 = vadd.f32 0.0, %v2421
      %2423 = vmatmul.bf16.gmra.mxu0 %v2356
      %v2424 = vpop.f32.mrf.mxu0
      %v2425 = vadd.f32 0.0, %v2424
      %v2426 = vpop.f32.mrf.mxu0
      %v2427 = vadd.f32 0.0, %v2426
      %2428 = vmatmul.bf16.gmra.mxu0 %v2359
      %v2429 = vpop.f32.mrf.mxu0
      %v2430 = vadd.f32 0.0, %v2429
      %v2431 = vpop.f32.mrf.mxu0
      %v2432 = vadd.f32 0.0, %v2431
      %2433 = vmatmul.bf16.gmra.mxu0 %v2362
      %v2434 = vpop.f32.mrf.mxu0
      %v2435 = vadd.f32 0.0, %v2434
      %v2436 = vpop.f32.mrf.mxu0
      %v2437 = vadd.f32 0.0, %v2436
      %2438 = vmatmul.bf16.gmra.mxu0 %v2365
      %v2439 = vpop.f32.mrf.mxu0
      %v2440 = vadd.f32 0.0, %v2439
      %v2441 = vpop.f32.mrf.mxu0
      %v2442 = vadd.f32 0.0, %v2441
      %2443 = vmatmul.bf16.gmra.mxu0 %v2368
      %v2444 = vpop.f32.mrf.mxu0
      %v2445 = vadd.f32 0.0, %v2444
      %v2446 = vpop.f32.mrf.mxu0
      %v2447 = vadd.f32 0.0, %v2446
      %2448 = vmatmul.bf16.gmra.mxu0 %v2371
      %v2449 = vpop.f32.mrf.mxu0
      %v2450 = vadd.f32 0.0, %v2449
      %v2451 = vpop.f32.mrf.mxu0
      %v2452 = vadd.f32 0.0, %v2451
      %2453 = vmatmul.bf16.gmra.mxu0 %v2374
      %v2454 = vpop.f32.mrf.mxu0
      %v2455 = vadd.f32 0.0, %v2454
      %v2456 = vpop.f32.mrf.mxu0
      %v2457 = vadd.f32 0.0, %v2456
      %2458 = vmatmul.bf16.gmra.mxu0 %v2377
      %v2459 = vpop.f32.mrf.mxu0
      %v2460 = vadd.f32 0.0, %v2459
      %v2461 = vpop.f32.mrf.mxu0
      %v2462 = vadd.f32 0.0, %v2461
      %2463 = vmatmul.bf16.gmra.mxu0 %v2380
      %v2464 = vpop.f32.mrf.mxu0
      %v2465 = vadd.f32 0.0, %v2464
      %v2466 = vpop.f32.mrf.mxu0
      %v2467 = vadd.f32 0.0, %v2466
      %2468 = vmatmul.bf16.gmra.mxu0 %v2383
      %v2469 = vpop.f32.mrf.mxu0
      %v2470 = vadd.f32 0.0, %v2469
      %v2471 = vpop.f32.mrf.mxu0
      %v2472 = vadd.f32 0.0, %v2471
      %2473 = vmatmul.bf16.gmra.mxu0 %v2386
      %v2474 = vpop.f32.mrf.mxu0
      %v2475 = vadd.f32 0.0, %v2474
      %v2476 = vpop.f32.mrf.mxu0
      %v2477 = vadd.f32 0.0, %v2476
      %2478 = vmatmul.bf16.gmra.mxu0 %v2389
      %v2479 = vpop.f32.mrf.mxu0
      %v2480 = vadd.f32 0.0, %v2479
      %v2481 = vpop.f32.mrf.mxu0
      %v2482 = vadd.f32 0.0, %v2481
      %2483 = vmatmul.bf16.gmra.mxu0 %v2392
      %v2484 = vpop.f32.mrf.mxu0
      %v2485 = vadd.f32 0.0, %v2484
      %v2486 = vpop.f32.mrf.mxu0
      %v2487 = vadd.f32 0.0, %v2486
      %2488 = vmatmul.bf16.gmra.mxu0 %v2395
      %v2489 = vpop.f32.mrf.mxu0
      %v2490 = vadd.f32 0.0, %v2489
      %v2491 = vpop.f32.mrf.mxu0
      %v2492 = vadd.f32 0.0, %v2491
      %2493 = vmatmul.bf16.gmra.mxu0 %v2398
      %v2494 = vpop.f32.mrf.mxu0
      %v2495 = vadd.f32 0.0, %v2494
      %v2496 = vpop.f32.mrf.mxu0
      %v2497 = vadd.f32 0.0, %v2496
      %2498 = vdwg.mxu0
      %v2499 = vadd.f32 %v2110, %v2410
      %v2500 = vadd.f32 %v2111, %v2412
      %v2501 = vadd.f32 %v2112, %v2415
      %v2502 = vadd.f32 %v2113, %v2417
      %v2503 = vadd.f32 %v2114, %v2420
      %v2504 = vadd.f32 %v2115, %v2422
      %v2505 = vadd.f32 %v2116, %v2425
      %v2506 = vadd.f32 %v2117, %v2427
      %v2507 = vadd.f32 %v2118, %v2430
      %v2508 = vadd.f32 %v2119, %v2432
      %v2509 = vadd.f32 %v2120, %v2435
      %v2510 = vadd.f32 %v2121, %v2437
      %v2511 = vadd.f32 %v2122, %v2440
      %v2512 = vadd.f32 %v2123, %v2442
      %v2513 = vadd.f32 %v2124, %v2445
      %v2514 = vadd.f32 %v2125, %v2447
      %v2515 = vadd.f32 %v2126, %v2450
      %v2516 = vadd.f32 %v2127, %v2452
      %v2517 = vadd.f32 %v2128, %v2455
      %v2518 = vadd.f32 %v2129, %v2457
      %v2519 = vadd.f32 %v2130, %v2460
      %v2520 = vadd.f32 %v2131, %v2462
      %v2521 = vadd.f32 %v2132, %v2465
      %v2522 = vadd.f32 %v2133, %v2467
      %v2523 = vadd.f32 %v2134, %v2470
      %v2524 = vadd.f32 %v2135, %v2472
      %v2525 = vadd.f32 %v2136, %v2475
      %v2526 = vadd.f32 %v2137, %v2477
      %v2527 = vadd.f32 %v2138, %v2480
      %v2528 = vadd.f32 %v2139, %v2482
      %v2529 = vadd.f32 %v2140, %v2485
      %v2530 = vadd.f32 %v2141, %v2487
      %v2531 = vadd.f32 %v2142, %v2490
      %v2532 = vadd.f32 %v2143, %v2492
      %v2533 = vadd.f32 %v2144, %v2495
      %v2534 = vadd.f32 %v2145, %v2497
      %v2535 = vld [vmem:[%s192 + $0xa0] sm:$0x7]
      %s2536 = scalar_lea.vmem %s1, 224
      %v2537 = vld [vmem:[%s2536] sm:$0xf]
      %v2538 = vld [vmem:[%s2536 + $0x4] sm:$0xf]
      %v2539 = vld [vmem:[%s2536 + $0x8] sm:$0xf]
      %v2540 = vld [vmem:[%s2536 + $0xc] sm:$0xf]
      %v2541 = vld [vmem:[%s2536 + $0x10] sm:$0xf]
      %v2542 = vld [vmem:[%s2536 + $0x14] sm:$0xf]
      %v2543 = vld [vmem:[%s2536 + $0x18] sm:$0xf]
      %v2544 = vld [vmem:[%s2536 + $0x1c] sm:$0xf]
      %v2546 = vunpack.c.l.b16 %v2535
      %v2547 = vpack.c.b16 %v2546, %v2546
      %vm2548 = vsmask.f32 5376
      %v2550 = vshrl.u32 %v2266, 16
      %v2552 = vrot.slane %v2550, 2
      %v2553 = vshll.u32 %v2266, 16
      %v2555 = vrot.slane %v2553, 3
      %v2556 = vor.u32 %v2552, %v2555
      %v2558 = vshrl.u32 %v2267, 16
      %v2560 = vrot.slane %v2558, 2
      %v2561 = vshll.u32 %v2267, 16
      %v2563 = vrot.slane %v2561, 3
      %v2564 = vor.u32 %v2560, %v2563
      %v2565 = vsel %vm2548, %v2556, %v2564
      %v2567 = vshrl.u32 %v2268, 16
      %v2569 = vrot.slane %v2567, 2
      %v2570 = vshll.u32 %v2268, 16
      %v2572 = vrot.slane %v2570, 3
      %v2573 = vor.u32 %v2569, %v2572
      %v2574 = vsel %vm2548, %v2564, %v2573
      %v2576 = vshrl.u32 %v2269, 16
      %v2578 = vrot.slane %v2576, 2
      %v2579 = vshll.u32 %v2269, 16
      %v2581 = vrot.slane %v2579, 3
      %v2582 = vor.u32 %v2578, %v2581
      %v2583 = vsel %vm2548, %v2573, %v2582
      %v2585 = vshrl.u32 %v2270, 16
      %v2587 = vrot.slane %v2585, 2
      %v2588 = vshll.u32 %v2270, 16
      %v2590 = vrot.slane %v2588, 3
      %v2591 = vor.u32 %v2587, %v2590
      %v2592 = vsel %vm2548, %v2582, %v2591
      %v2594 = vshrl.u32 %v2271, 16
      %v2596 = vrot.slane %v2594, 2
      %v2597 = vshll.u32 %v2271, 16
      %v2599 = vrot.slane %v2597, 3
      %v2600 = vor.u32 %v2596, %v2599
      %v2601 = vsel %vm2548, %v2591, %v2600
      %v2603 = vshrl.u32 %v2272, 16
      %v2605 = vrot.slane %v2603, 2
      %v2606 = vshll.u32 %v2272, 16
      %v2608 = vrot.slane %v2606, 3
      %v2609 = vor.u32 %v2605, %v2608
      %v2610 = vsel %vm2548, %v2600, %v2609
      %v2612 = vshrl.u32 %v2273, 16
      %v2614 = vrot.slane %v2612, 2
      %v2615 = vshll.u32 %v2273, 16
      %v2617 = vrot.slane %v2615, 3
      %v2618 = vor.u32 %v2614, %v2617
      %v2619 = vsel %vm2548, %v2609, %v2618
      %v2621 = vshrl.u32 %v2274, 16
      %v2623 = vrot.slane %v2621, 2
      %v2624 = vshll.u32 %v2274, 16
      %v2626 = vrot.slane %v2624, 3
      %v2627 = vor.u32 %v2623, %v2626
      %v2628 = vsel %vm2548, %v2618, %v2627
      %v2630 = vshrl.u32 %v2275, 16
      %v2632 = vrot.slane %v2630, 2
      %v2633 = vshll.u32 %v2275, 16
      %v2635 = vrot.slane %v2633, 3
      %v2636 = vor.u32 %v2632, %v2635
      %v2637 = vsel %vm2548, %v2627, %v2636
      %v2639 = vshrl.u32 %v2276, 16
      %v2641 = vrot.slane %v2639, 2
      %v2642 = vshll.u32 %v2276, 16
      %v2644 = vrot.slane %v2642, 3
      %v2645 = vor.u32 %v2641, %v2644
      %v2646 = vsel %vm2548, %v2636, %v2645
      %v2648 = vshrl.u32 %v2277, 16
      %v2650 = vrot.slane %v2648, 2
      %v2651 = vshll.u32 %v2277, 16
      %v2653 = vrot.slane %v2651, 3
      %v2654 = vor.u32 %v2650, %v2653
      %v2655 = vsel %vm2548, %v2645, %v2654
      %v2657 = vshrl.u32 %v2278, 16
      %v2659 = vrot.slane %v2657, 2
      %v2660 = vshll.u32 %v2278, 16
      %v2662 = vrot.slane %v2660, 3
      %v2663 = vor.u32 %v2659, %v2662
      %v2664 = vsel %vm2548, %v2654, %v2663
      %v2666 = vshrl.u32 %v2279, 16
      %v2668 = vrot.slane %v2666, 2
      %v2669 = vshll.u32 %v2279, 16
      %v2671 = vrot.slane %v2669, 3
      %v2672 = vor.u32 %v2668, %v2671
      %v2673 = vsel %vm2548, %v2663, %v2672
      %v2675 = vshrl.u32 %v2280, 16
      %v2677 = vrot.slane %v2675, 2
      %v2678 = vshll.u32 %v2280, 16
      %v2680 = vrot.slane %v2678, 3
      %v2681 = vor.u32 %v2677, %v2680
      %v2682 = vsel %vm2548, %v2672, %v2681
      %v2684 = vshrl.u32 %v2281, 16
      %v2686 = vrot.slane %v2684, 2
      %v2687 = vshll.u32 %v2281, 16
      %v2689 = vrot.slane %v2687, 3
      %v2690 = vor.u32 %v2686, %v2689
      %v2691 = vsel %vm2548, %v2681, %v2690
      %v2693 = vshrl.u32 %v2282, 16
      %v2695 = vrot.slane %v2693, 2
      %v2696 = vshll.u32 %v2282, 16
      %v2698 = vrot.slane %v2696, 3
      %v2699 = vor.u32 %v2695, %v2698
      %v2700 = vsel %vm2548, %v2690, %v2699
      %v2702 = vshrl.u32 %v2283, 16
      %v2704 = vrot.slane %v2702, 2
      %v2705 = vshll.u32 %v2283, 16
      %v2707 = vrot.slane %v2705, 3
      %v2708 = vor.u32 %v2704, %v2707
      %v2709 = vsel %vm2548, %v2699, %v2708
      %v2711 = vshrl.u32 %v2547, 16
      %v2713 = vrot.slane %v2711, 2
      %v2714 = vshll.u32 %v2547, 16
      %v2716 = vrot.slane %v2714, 3
      %v2717 = vor.u32 %v2713, %v2716
      %v2718 = vsel %vm2548, %v2708, %v2717
      %v2727 = vunpack.c.l.b16 %v2537
      %v2728 = vunpack.c.l.b16 %v2538
      %v2729 = vunpack.c.l.b16 %v2539
      %v2730 = vunpack.c.l.b16 %v2540
      %v2731 = vunpack.c.l.b16 %v2541
      %v2732 = vunpack.c.l.b16 %v2542
      %v2733 = vunpack.c.l.b16 %v2543
      %v2734 = vunpack.c.l.b16 %v2544
      %v2735 = vpack.c.b16 %v2728, %v2727
      %v2736 = vpack.c.b16 %v2730, %v2729
      %v2737 = vpack.c.b16 %v2732, %v2731
      %v2738 = vpack.c.b16 %v2734, %v2733
      %v2744 = vsel %vm519, %v2565, 0
      %v2747 = vsel %vm519, %v2574, 0
      %v2750 = vsel %vm519, %v2583, 0
      %v2753 = vsel %vm519, %v2592, 0
      %v2756 = vsel %vm519, %v2601, 0
      %v2759 = vsel %vm519, %v2610, 0
      %v2762 = vsel %vm519, %v2619, 0
      %v2765 = vsel %vm519, %v2628, 0
      %v2768 = vsel %vm519, %v2637, 0
      %v2771 = vsel %vm519, %v2646, 0
      %v2774 = vsel %vm519, %v2655, 0
      %v2777 = vsel %vm519, %v2664, 0
      %v2780 = vsel %vm519, %v2673, 0
      %v2783 = vsel %vm519, %v2682, 0
      %v2786 = vsel %vm519, %v2691, 0
      %v2789 = vsel %vm519, %v2700, 0
      %v2792 = vsel %vm519, %v2709, 0
      %v2795 = vsel %vm519, %v2718, 0
      %2797 = vmatpush.bf16.msra.mxu0 0
      %2798 = vmatpush.bf16.msra.mxu0 0
      %2799 = vmatpush.bf16.msra.mxu0 0
      %2800 = vmatpush.bf16.msra.mxu0 0
      %2801 = vmatpush.bf16.msra.mxu0 %v2738
      %2802 = vmatpush.bf16.msra.mxu0 %v2737
      %2803 = vmatpush.bf16.msra.mxu0 %v2736
      %2804 = vmatpush.bf16.msra.mxu0 %v2735
      %2805 = vmatmul.bf16.gmra.mxu0 %v2744
      %v2806 = vpop.f32.mrf.mxu0
      %v2807 = vadd.f32 0.0, %v2806
      %v2808 = vpop.f32.mrf.mxu0
      %v2809 = vadd.f32 0.0, %v2808
      %2810 = vmatmul.bf16.gmra.mxu0 %v2747
      %v2811 = vpop.f32.mrf.mxu0
      %v2812 = vadd.f32 0.0, %v2811
      %v2813 = vpop.f32.mrf.mxu0
      %v2814 = vadd.f32 0.0, %v2813
      %2815 = vmatmul.bf16.gmra.mxu0 %v2750
      %v2816 = vpop.f32.mrf.mxu0
      %v2817 = vadd.f32 0.0, %v2816
      %v2818 = vpop.f32.mrf.mxu0
      %v2819 = vadd.f32 0.0, %v2818
      %2820 = vmatmul.bf16.gmra.mxu0 %v2753
      %v2821 = vpop.f32.mrf.mxu0
      %v2822 = vadd.f32 0.0, %v2821
      %v2823 = vpop.f32.mrf.mxu0
      %v2824 = vadd.f32 0.0, %v2823
      %2825 = vmatmul.bf16.gmra.mxu0 %v2756
      %v2826 = vpop.f32.mrf.mxu0
      %v2827 = vadd.f32 0.0, %v2826
      %v2828 = vpop.f32.mrf.mxu0
      %v2829 = vadd.f32 0.0, %v2828
      %2830 = vmatmul.bf16.gmra.mxu0 %v2759
      %v2831 = vpop.f32.mrf.mxu0
      %v2832 = vadd.f32 0.0, %v2831
      %v2833 = vpop.f32.mrf.mxu0
      %v2834 = vadd.f32 0.0, %v2833
      %2835 = vmatmul.bf16.gmra.mxu0 %v2762
      %v2836 = vpop.f32.mrf.mxu0
      %v2837 = vadd.f32 0.0, %v2836
      %v2838 = vpop.f32.mrf.mxu0
      %v2839 = vadd.f32 0.0, %v2838
      %2840 = vmatmul.bf16.gmra.mxu0 %v2765
      %v2841 = vpop.f32.mrf.mxu0
      %v2842 = vadd.f32 0.0, %v2841
      %v2843 = vpop.f32.mrf.mxu0
      %v2844 = vadd.f32 0.0, %v2843
      %2845 = vmatmul.bf16.gmra.mxu0 %v2768
      %v2846 = vpop.f32.mrf.mxu0
      %v2847 = vadd.f32 0.0, %v2846
      %v2848 = vpop.f32.mrf.mxu0
      %v2849 = vadd.f32 0.0, %v2848
      %2850 = vmatmul.bf16.gmra.mxu0 %v2771
      %v2851 = vpop.f32.mrf.mxu0
      %v2852 = vadd.f32 0.0, %v2851
      %v2853 = vpop.f32.mrf.mxu0
      %v2854 = vadd.f32 0.0, %v2853
      %2855 = vmatmul.bf16.gmra.mxu0 %v2774
      %v2856 = vpop.f32.mrf.mxu0
      %v2857 = vadd.f32 0.0, %v2856
      %v2858 = vpop.f32.mrf.mxu0
      %v2859 = vadd.f32 0.0, %v2858
      %2860 = vmatmul.bf16.gmra.mxu0 %v2777
      %v2861 = vpop.f32.mrf.mxu0
      %v2862 = vadd.f32 0.0, %v2861
      %v2863 = vpop.f32.mrf.mxu0
      %v2864 = vadd.f32 0.0, %v2863
      %2865 = vmatmul.bf16.gmra.mxu0 %v2780
      %v2866 = vpop.f32.mrf.mxu0
      %v2867 = vadd.f32 0.0, %v2866
      %v2868 = vpop.f32.mrf.mxu0
      %v2869 = vadd.f32 0.0, %v2868
      %2870 = vmatmul.bf16.gmra.mxu0 %v2783
      %v2871 = vpop.f32.mrf.mxu0
      %v2872 = vadd.f32 0.0, %v2871
      %v2873 = vpop.f32.mrf.mxu0
      %v2874 = vadd.f32 0.0, %v2873
      %2875 = vmatmul.bf16.gmra.mxu0 %v2786
      %v2876 = vpop.f32.mrf.mxu0
      %v2877 = vadd.f32 0.0, %v2876
      %v2878 = vpop.f32.mrf.mxu0
      %v2879 = vadd.f32 0.0, %v2878
      %2880 = vmatmul.bf16.gmra.mxu0 %v2789
      %v2881 = vpop.f32.mrf.mxu0
      %v2882 = vadd.f32 0.0, %v2881
      %v2883 = vpop.f32.mrf.mxu0
      %v2884 = vadd.f32 0.0, %v2883
      %2885 = vmatmul.bf16.gmra.mxu0 %v2792
      %v2886 = vpop.f32.mrf.mxu0
      %v2887 = vadd.f32 0.0, %v2886
      %v2888 = vpop.f32.mrf.mxu0
      %v2889 = vadd.f32 0.0, %v2888
      %2890 = vmatmul.bf16.gmra.mxu0 %v2795
      %v2891 = vpop.f32.mrf.mxu0
      %v2892 = vadd.f32 0.0, %v2891
      %v2893 = vpop.f32.mrf.mxu0
      %v2894 = vadd.f32 0.0, %v2893
      %2895 = vdwg.mxu0
      %v2896 = vadd.f32 %v2499, %v2807
      %v2897 = vadd.f32 %v2500, %v2809
      %v2898 = vadd.f32 %v2501, %v2812
      %v2899 = vadd.f32 %v2502, %v2814
      %v2900 = vadd.f32 %v2503, %v2817
      %v2901 = vadd.f32 %v2504, %v2819
      %v2902 = vadd.f32 %v2505, %v2822
      %v2903 = vadd.f32 %v2506, %v2824
      %v2904 = vadd.f32 %v2507, %v2827
      %v2905 = vadd.f32 %v2508, %v2829
      %v2906 = vadd.f32 %v2509, %v2832
      %v2907 = vadd.f32 %v2510, %v2834
      %v2908 = vadd.f32 %v2511, %v2837
      %v2909 = vadd.f32 %v2512, %v2839
      %v2910 = vadd.f32 %v2513, %v2842
      %v2911 = vadd.f32 %v2514, %v2844
      %v2912 = vadd.f32 %v2515, %v2847
      %v2913 = vadd.f32 %v2516, %v2849
      %v2914 = vadd.f32 %v2517, %v2852
      %v2915 = vadd.f32 %v2518, %v2854
      %v2916 = vadd.f32 %v2519, %v2857
      %v2917 = vadd.f32 %v2520, %v2859
      %v2918 = vadd.f32 %v2521, %v2862
      %v2919 = vadd.f32 %v2522, %v2864
      %v2920 = vadd.f32 %v2523, %v2867
      %v2921 = vadd.f32 %v2524, %v2869
      %v2922 = vadd.f32 %v2525, %v2872
      %v2923 = vadd.f32 %v2526, %v2874
      %v2924 = vadd.f32 %v2527, %v2877
      %v2925 = vadd.f32 %v2528, %v2879
      %v2926 = vadd.f32 %v2529, %v2882
      %v2927 = vadd.f32 %v2530, %v2884
      %v2928 = vadd.f32 %v2531, %v2887
      %v2929 = vadd.f32 %v2532, %v2889
      %v2930 = vadd.f32 %v2533, %v2892
      %v2931 = vadd.f32 %v2534, %v2894
      %v2932 = vld [vmem:[%s192 + $0x10] sm:$0x8]
      %s2933 = scalar_lea.vmem %s1, 256
      %v2934 = vld [vmem:[%s2933] sm:$0xf]
      %v2935 = vld [vmem:[%s2933 + $0x4] sm:$0xf]
      %v2936 = vld [vmem:[%s2933 + $0x8] sm:$0xf]
      %v2937 = vld [vmem:[%s2933 + $0xc] sm:$0xf]
      %v2938 = vld [vmem:[%s2933 + $0x10] sm:$0xf]
      %v2939 = vld [vmem:[%s2933 + $0x14] sm:$0xf]
      %v2940 = vld [vmem:[%s2933 + $0x18] sm:$0xf]
      %v2941 = vld [vmem:[%s2933 + $0x1c] sm:$0xf]
      %v2943 = vunpack.c.l.b16 %v2932
      %v2944 = vpack.c.b16 %v2230, %v2943
      %vm2945 = vcmask 1044480
      %v2946 = vrot.slane %v2944, 3
      %v2947 = vrot.slane %v2267, 3
      %v2948 = vsel %vm2945, %v2946, %v2947
      %v2949 = vrot.slane %v2268, 3
      %v2950 = vsel %vm2945, %v2947, %v2949
      %v2951 = vrot.slane %v2269, 3
      %v2952 = vsel %vm2945, %v2949, %v2951
      %v2953 = vrot.slane %v2270, 3
      %v2954 = vsel %vm2945, %v2951, %v2953
      %v2955 = vrot.slane %v2271, 3
      %v2956 = vsel %vm2945, %v2953, %v2955
      %v2957 = vrot.slane %v2272, 3
      %v2958 = vsel %vm2945, %v2955, %v2957
      %v2959 = vrot.slane %v2273, 3
      %v2960 = vsel %vm2945, %v2957, %v2959
      %v2961 = vrot.slane %v2274, 3
      %v2962 = vsel %vm2945, %v2959, %v2961
      %v2963 = vrot.slane %v2275, 3
      %v2964 = vsel %vm2945, %v2961, %v2963
      %v2965 = vrot.slane %v2276, 3
      %v2966 = vsel %vm2945, %v2963, %v2965
      %v2967 = vrot.slane %v2277, 3
      %v2968 = vsel %vm2945, %v2965, %v2967
      %v2969 = vrot.slane %v2278, 3
      %v2970 = vsel %vm2945, %v2967, %v2969
      %v2971 = vrot.slane %v2279, 3
      %v2972 = vsel %vm2945, %v2969, %v2971
      %v2973 = vrot.slane %v2280, 3
      %v2974 = vsel %vm2945, %v2971, %v2973
      %v2975 = vrot.slane %v2281, 3
      %v2976 = vsel %vm2945, %v2973, %v2975
      %v2977 = vrot.slane %v2282, 3
      %v2978 = vsel %vm2945, %v2975, %v2977
      %v2979 = vrot.slane %v2283, 3
      %v2980 = vsel %vm2945, %v2977, %v2979
      %v2981 = vrot.slane %v2547, 3
      %v2982 = vsel %vm2945, %v2979, %v2981
      %v2991 = vunpack.c.l.b16 %v2934
      %v2992 = vunpack.c.l.b16 %v2935
      %v2993 = vunpack.c.l.b16 %v2936
      %v2994 = vunpack.c.l.b16 %v2937
      %v2995 = vunpack.c.l.b16 %v2938
      %v2996 = vunpack.c.l.b16 %v2939
      %v2997 = vunpack.c.l.b16 %v2940
      %v2998 = vunpack.c.l.b16 %v2941
      %v2999 = vpack.c.b16 %v2992, %v2991
      %v3000 = vpack.c.b16 %v2994, %v2993
      %v3001 = vpack.c.b16 %v2996, %v2995
      %v3002 = vpack.c.b16 %v2998, %v2997
      %v3008 = vsel %vm519, %v2948, 0
      %v3011 = vsel %vm519, %v2950, 0
      %v3014 = vsel %vm519, %v2952, 0
      %v3017 = vsel %vm519, %v2954, 0
      %v3020 = vsel %vm519, %v2956, 0
      %v3023 = vsel %vm519, %v2958, 0
      %v3026 = vsel %vm519, %v2960, 0
      %v3029 = vsel %vm519, %v2962, 0
      %v3032 = vsel %vm519, %v2964, 0
      %v3035 = vsel %vm519, %v2966, 0
      %v3038 = vsel %vm519, %v2968, 0
      %v3041 = vsel %vm519, %v2970, 0
      %v3044 = vsel %vm519, %v2972, 0
      %v3047 = vsel %vm519, %v2974, 0
      %v3050 = vsel %vm519, %v2976, 0
      %v3053 = vsel %vm519, %v2978, 0
      %v3056 = vsel %vm519, %v2980, 0
      %v3059 = vsel %vm519, %v2982, 0
      %3061 = vmatpush.bf16.msra.mxu0 0
      %3062 = vmatpush.bf16.msra.mxu0 0
      %3063 = vmatpush.bf16.msra.mxu0 0
      %3064 = vmatpush.bf16.msra.mxu0 0
      %3065 = vmatpush.bf16.msra.mxu0 %v3002
      %3066 = vmatpush.bf16.msra.mxu0 %v3001
      %3067 = vmatpush.bf16.msra.mxu0 %v3000
      %3068 = vmatpush.bf16.msra.mxu0 %v2999
      %3069 = vmatmul.bf16.gmra.mxu0 %v3008
      %v3070 = vpop.f32.mrf.mxu0
      %v3071 = vadd.f32 0.0, %v3070
      %v3072 = vpop.f32.mrf.mxu0
      %v3073 = vadd.f32 0.0, %v3072
      %3074 = vmatmul.bf16.gmra.mxu0 %v3011
      %v3075 = vpop.f32.mrf.mxu0
      %v3076 = vadd.f32 0.0, %v3075
      %v3077 = vpop.f32.mrf.mxu0
      %v3078 = vadd.f32 0.0, %v3077
      %3079 = vmatmul.bf16.gmra.mxu0 %v3014
      %v3080 = vpop.f32.mrf.mxu0
      %v3081 = vadd.f32 0.0, %v3080
      %v3082 = vpop.f32.mrf.mxu0
      %v3083 = vadd.f32 0.0, %v3082
      %3084 = vmatmul.bf16.gmra.mxu0 %v3017
      %v3085 = vpop.f32.mrf.mxu0
      %v3086 = vadd.f32 0.0, %v3085
      %v3087 = vpop.f32.mrf.mxu0
      %v3088 = vadd.f32 0.0, %v3087
      %3089 = vmatmul.bf16.gmra.mxu0 %v3020
      %v3090 = vpop.f32.mrf.mxu0
      %v3091 = vadd.f32 0.0, %v3090
      %v3092 = vpop.f32.mrf.mxu0
      %v3093 = vadd.f32 0.0, %v3092
      %3094 = vmatmul.bf16.gmra.mxu0 %v3023
      %v3095 = vpop.f32.mrf.mxu0
      %v3096 = vadd.f32 0.0, %v3095
      %v3097 = vpop.f32.mrf.mxu0
      %v3098 = vadd.f32 0.0, %v3097
      %3099 = vmatmul.bf16.gmra.mxu0 %v3026
      %v3100 = vpop.f32.mrf.mxu0
      %v3101 = vadd.f32 0.0, %v3100
      %v3102 = vpop.f32.mrf.mxu0
      %v3103 = vadd.f32 0.0, %v3102
      %3104 = vmatmul.bf16.gmra.mxu0 %v3029
      %v3105 = vpop.f32.mrf.mxu0
      %v3106 = vadd.f32 0.0, %v3105
      %v3107 = vpop.f32.mrf.mxu0
      %v3108 = vadd.f32 0.0, %v3107
      %3109 = vmatmul.bf16.gmra.mxu0 %v3032
      %v3110 = vpop.f32.mrf.mxu0
      %v3111 = vadd.f32 0.0, %v3110
      %v3112 = vpop.f32.mrf.mxu0
      %v3113 = vadd.f32 0.0, %v3112
      %3114 = vmatmul.bf16.gmra.mxu0 %v3035
      %v3115 = vpop.f32.mrf.mxu0
      %v3116 = vadd.f32 0.0, %v3115
      %v3117 = vpop.f32.mrf.mxu0
      %v3118 = vadd.f32 0.0, %v3117
      %3119 = vmatmul.bf16.gmra.mxu0 %v3038
      %v3120 = vpop.f32.mrf.mxu0
      %v3121 = vadd.f32 0.0, %v3120
      %v3122 = vpop.f32.mrf.mxu0
      %v3123 = vadd.f32 0.0, %v3122
      %3124 = vmatmul.bf16.gmra.mxu0 %v3041
      %v3125 = vpop.f32.mrf.mxu0
      %v3126 = vadd.f32 0.0, %v3125
      %v3127 = vpop.f32.mrf.mxu0
      %v3128 = vadd.f32 0.0, %v3127
      %3129 = vmatmul.bf16.gmra.mxu0 %v3044
      %v3130 = vpop.f32.mrf.mxu0
      %v3131 = vadd.f32 0.0, %v3130
      %v3132 = vpop.f32.mrf.mxu0
      %v3133 = vadd.f32 0.0, %v3132
      %3134 = vmatmul.bf16.gmra.mxu0 %v3047
      %v3135 = vpop.f32.mrf.mxu0
      %v3136 = vadd.f32 0.0, %v3135
      %v3137 = vpop.f32.mrf.mxu0
      %v3138 = vadd.f32 0.0, %v3137
      %3139 = vmatmul.bf16.gmra.mxu0 %v3050
      %v3140 = vpop.f32.mrf.mxu0
      %v3141 = vadd.f32 0.0, %v3140
      %v3142 = vpop.f32.mrf.mxu0
      %v3143 = vadd.f32 0.0, %v3142
      %3144 = vmatmul.bf16.gmra.mxu0 %v3053
      %v3145 = vpop.f32.mrf.mxu0
      %v3146 = vadd.f32 0.0, %v3145
      %v3147 = vpop.f32.mrf.mxu0
      %v3148 = vadd.f32 0.0, %v3147
      %3149 = vmatmul.bf16.gmra.mxu0 %v3056
      %v3150 = vpop.f32.mrf.mxu0
      %v3151 = vadd.f32 0.0, %v3150
      %v3152 = vpop.f32.mrf.mxu0
      %v3153 = vadd.f32 0.0, %v3152
      %3154 = vmatmul.bf16.gmra.mxu0 %v3059
      %v3155 = vpop.f32.mrf.mxu0
      %v3156 = vadd.f32 0.0, %v3155
      %v3157 = vpop.f32.mrf.mxu0
      %v3158 = vadd.f32 0.0, %v3157
      %3159 = vdwg.mxu0
      %v3160 = vadd.f32 %v2896, %v3071
      %v3161 = vadd.f32 %v2897, %v3073
      %v3162 = vadd.f32 %v2898, %v3076
      %v3163 = vadd.f32 %v2899, %v3078
      %v3164 = vadd.f32 %v2900, %v3081
      %v3165 = vadd.f32 %v2901, %v3083
      %v3166 = vadd.f32 %v2902, %v3086
      %v3167 = vadd.f32 %v2903, %v3088
      %v3168 = vadd.f32 %v2904, %v3091
      %v3169 = vadd.f32 %v2905, %v3093
      %v3170 = vadd.f32 %v2906, %v3096
      %v3171 = vadd.f32 %v2907, %v3098
      %v3172 = vadd.f32 %v2908, %v3101
      %v3173 = vadd.f32 %v2909, %v3103
      %v3174 = vadd.f32 %v2910, %v3106
      %v3175 = vadd.f32 %v2911, %v3108
      %v3176 = vadd.f32 %v2912, %v3111
      %v3177 = vadd.f32 %v2913, %v3113
      %v3178 = vadd.f32 %v2914, %v3116
      %v3179 = vadd.f32 %v2915, %v3118
      %v3180 = vadd.f32 %v2916, %v3121
      %v3181 = vadd.f32 %v2917, %v3123
      %v3182 = vadd.f32 %v2918, %v3126
      %v3183 = vadd.f32 %v2919, %v3128
      %v3184 = vadd.f32 %v2920, %v3131
      %v3185 = vadd.f32 %v2921, %v3133
      %v3186 = vadd.f32 %v2922, %v3136
      %v3187 = vadd.f32 %v2923, %v3138
      %v3188 = vadd.f32 %v2924, %v3141
      %v3189 = vadd.f32 %v2925, %v3143
      %v3190 = vadd.f32 %v2926, %v3146
      %v3191 = vadd.f32 %v2927, %v3148
      %v3192 = vadd.f32 %v2928, %v3151
      %v3193 = vadd.f32 %v2929, %v3153
      %v3194 = vadd.f32 %v2930, %v3156
      %v3195 = vadd.f32 %v2931, %v3158
      %v3196 = vld [vmem:[%s2] sm:$0x1]
      %v3198 = vperm.slane %v3196, 0
      %v3200 = vmul.f32 %v3160, %v3198
      %v3201 = vmul.f32 %v3161, %v3198
      %v3202 = vmul.f32 %v3162, %v3198
      %v3203 = vmul.f32 %v3163, %v3198
      %v3204 = vmul.f32 %v3164, %v3198
      %v3205 = vmul.f32 %v3165, %v3198
      %v3206 = vmul.f32 %v3166, %v3198
      %v3207 = vmul.f32 %v3167, %v3198
      %v3208 = vmul.f32 %v3168, %v3198
      %v3209 = vmul.f32 %v3169, %v3198
      %v3210 = vmul.f32 %v3170, %v3198
      %v3211 = vmul.f32 %v3171, %v3198
      %v3212 = vmul.f32 %v3172, %v3198
      %v3213 = vmul.f32 %v3173, %v3198
      %v3214 = vmul.f32 %v3174, %v3198
      %v3215 = vmul.f32 %v3175, %v3198
      %v3216 = vmul.f32 %v3176, %v3198
      %v3217 = vmul.f32 %v3177, %v3198
      %v3218 = vmul.f32 %v3178, %v3198
      %v3219 = vmul.f32 %v3179, %v3198
      %v3220 = vmul.f32 %v3180, %v3198
      %v3221 = vmul.f32 %v3181, %v3198
      %v3222 = vmul.f32 %v3182, %v3198
      %v3223 = vmul.f32 %v3183, %v3198
      %v3224 = vmul.f32 %v3184, %v3198
      %v3225 = vmul.f32 %v3185, %v3198
      %v3226 = vmul.f32 %v3186, %v3198
      %v3227 = vmul.f32 %v3187, %v3198
      %v3228 = vmul.f32 %v3188, %v3198
      %v3229 = vmul.f32 %v3189, %v3198
      %v3230 = vmul.f32 %v3190, %v3198
      %v3231 = vmul.f32 %v3191, %v3198
      %v3232 = vmul.f32 %v3192, %v3198
      %v3233 = vmul.f32 %v3193, %v3198
      %v3234 = vmul.f32 %v3194, %v3198
      %v3235 = vmul.f32 %v3195, %v3198
      %v3236 = vld [vmem:[%s3] sm:$0x1]
      %v3238 = vperm.slane %v3236, 0
      %v3240 = vadd.f32 %v3200, %v3238
      %v3241 = vadd.f32 %v3201, %v3238
      %v3242 = vadd.f32 %v3202, %v3238
      %v3243 = vadd.f32 %v3203, %v3238
      %v3244 = vadd.f32 %v3204, %v3238
      %v3245 = vadd.f32 %v3205, %v3238
      %v3246 = vadd.f32 %v3206, %v3238
      %v3247 = vadd.f32 %v3207, %v3238
      %v3248 = vadd.f32 %v3208, %v3238
      %v3249 = vadd.f32 %v3209, %v3238
      %v3250 = vadd.f32 %v3210, %v3238
      %v3251 = vadd.f32 %v3211, %v3238
      %v3252 = vadd.f32 %v3212, %v3238
      %v3253 = vadd.f32 %v3213, %v3238
      %v3254 = vadd.f32 %v3214, %v3238
      %v3255 = vadd.f32 %v3215, %v3238
      %v3256 = vadd.f32 %v3216, %v3238
      %v3257 = vadd.f32 %v3217, %v3238
      %v3258 = vadd.f32 %v3218, %v3238
      %v3259 = vadd.f32 %v3219, %v3238
      %v3260 = vadd.f32 %v3220, %v3238
      %v3261 = vadd.f32 %v3221, %v3238
      %v3262 = vadd.f32 %v3222, %v3238
      %v3263 = vadd.f32 %v3223, %v3238
      %v3264 = vadd.f32 %v3224, %v3238
      %v3265 = vadd.f32 %v3225, %v3238
      %v3266 = vadd.f32 %v3226, %v3238
      %v3267 = vadd.f32 %v3227, %v3238
      %v3268 = vadd.f32 %v3228, %v3238
      %v3269 = vadd.f32 %v3229, %v3238
      %v3270 = vadd.f32 %v3230, %v3238
      %v3271 = vadd.f32 %v3231, %v3238
      %v3272 = vadd.f32 %v3232, %v3238
      %v3273 = vadd.f32 %v3233, %v3238
      %v3274 = vadd.f32 %v3234, %v3238
      %v3275 = vadd.f32 %v3235, %v3238
      %v3276 = vmax.f32 %v3240, 0.0
      %v3277 = vmax.f32 %v3241, 0.0
      %v3278 = vmax.f32 %v3242, 0.0
      %v3279 = vmax.f32 %v3243, 0.0
      %v3280 = vmax.f32 %v3244, 0.0
      %v3281 = vmax.f32 %v3245, 0.0
      %v3282 = vmax.f32 %v3246, 0.0
      %v3283 = vmax.f32 %v3247, 0.0
      %v3284 = vmax.f32 %v3248, 0.0
      %v3285 = vmax.f32 %v3249, 0.0
      %v3286 = vmax.f32 %v3250, 0.0
      %v3287 = vmax.f32 %v3251, 0.0
      %v3288 = vmax.f32 %v3252, 0.0
      %v3289 = vmax.f32 %v3253, 0.0
      %v3290 = vmax.f32 %v3254, 0.0
      %v3291 = vmax.f32 %v3255, 0.0
      %v3292 = vmax.f32 %v3256, 0.0
      %v3293 = vmax.f32 %v3257, 0.0
      %v3294 = vmax.f32 %v3258, 0.0
      %v3295 = vmax.f32 %v3259, 0.0
      %v3296 = vmax.f32 %v3260, 0.0
      %v3297 = vmax.f32 %v3261, 0.0
      %v3298 = vmax.f32 %v3262, 0.0
      %v3299 = vmax.f32 %v3263, 0.0
      %v3300 = vmax.f32 %v3264, 0.0
      %v3301 = vmax.f32 %v3265, 0.0
      %v3302 = vmax.f32 %v3266, 0.0
      %v3303 = vmax.f32 %v3267, 0.0
      %v3304 = vmax.f32 %v3268, 0.0
      %v3305 = vmax.f32 %v3269, 0.0
      %v3306 = vmax.f32 %v3270, 0.0
      %v3307 = vmax.f32 %v3271, 0.0
      %v3308 = vmax.f32 %v3272, 0.0
      %v3309 = vmax.f32 %v3273, 0.0
      %v3310 = vmax.f32 %v3274, 0.0
      %v3311 = vmax.f32 %v3275, 0.0
      %v3312 = vpack.c.bf16 %v3276, %v3276
      %v3313 = vpack.c.bf16 %v3277, %v3277
      %v3314 = vpack.c.bf16 %v3278, %v3278
      %v3315 = vpack.c.bf16 %v3279, %v3279
      %v3316 = vpack.c.bf16 %v3280, %v3280
      %v3317 = vpack.c.bf16 %v3281, %v3281
      %v3318 = vpack.c.bf16 %v3282, %v3282
      %v3319 = vpack.c.bf16 %v3283, %v3283
      %v3320 = vpack.c.bf16 %v3284, %v3284
      %v3321 = vpack.c.bf16 %v3285, %v3285
      %v3322 = vpack.c.bf16 %v3286, %v3286
      %v3323 = vpack.c.bf16 %v3287, %v3287
      %v3324 = vpack.c.bf16 %v3288, %v3288
      %v3325 = vpack.c.bf16 %v3289, %v3289
      %v3326 = vpack.c.bf16 %v3290, %v3290
      %v3327 = vpack.c.bf16 %v3291, %v3291
      %v3328 = vpack.c.bf16 %v3292, %v3292
      %v3329 = vpack.c.bf16 %v3293, %v3293
      %v3330 = vpack.c.bf16 %v3294, %v3294
      %v3331 = vpack.c.bf16 %v3295, %v3295
      %v3332 = vpack.c.bf16 %v3296, %v3296
      %v3333 = vpack.c.bf16 %v3297, %v3297
      %v3334 = vpack.c.bf16 %v3298, %v3298
      %v3335 = vpack.c.bf16 %v3299, %v3299
      %v3336 = vpack.c.bf16 %v3300, %v3300
      %v3337 = vpack.c.bf16 %v3301, %v3301
      %v3338 = vpack.c.bf16 %v3302, %v3302
      %v3339 = vpack.c.bf16 %v3303, %v3303
      %v3340 = vpack.c.bf16 %v3304, %v3304
      %v3341 = vpack.c.bf16 %v3305, %v3305
      %v3342 = vpack.c.bf16 %v3306, %v3306
      %v3343 = vpack.c.bf16 %v3307, %v3307
      %v3344 = vpack.c.bf16 %v3308, %v3308
      %v3345 = vpack.c.bf16 %v3309, %v3309
      %v3346 = vpack.c.bf16 %v3310, %v3310
      %v3347 = vpack.c.bf16 %v3311, %v3311
      %vm3348 = vcmask 519168
      %3349 = vst.msk [vmem:[%s197] sm:$0xf] %vm3348, %v3312
      %3350 = vst.msk [vmem:[%s197 + $0x4] sm:$0xf] %vm3348, %v3313
      %3351 = vst.msk [vmem:[%s197 + $0x8] sm:$0xf] %vm3348, %v3314
      %3352 = vst.msk [vmem:[%s197 + $0xc] sm:$0xf] %vm3348, %v3315
      %3353 = vst.msk [vmem:[%s197 + $0x10] sm:$0xf] %vm3348, %v3316
      %3354 = vst.msk [vmem:[%s197 + $0x14] sm:$0xf] %vm3348, %v3317
      %3355 = vst.msk [vmem:[%s197 + $0x18] sm:$0xf] %vm3348, %v3318
      %3356 = vst.msk [vmem:[%s197 + $0x1c] sm:$0xf] %vm3348, %v3319
      %3357 = vst.msk [vmem:[%s197 + $0x20] sm:$0xf] %vm3348, %v3320
      %3358 = vst.msk [vmem:[%s197 + $0x24] sm:$0xf] %vm3348, %v3321
      %3359 = vst.msk [vmem:[%s197 + $0x28] sm:$0xf] %vm3348, %v3322
      %3360 = vst.msk [vmem:[%s197 + $0x2c] sm:$0xf] %vm3348, %v3323
      %3361 = vst.msk [vmem:[%s197 + $0x30] sm:$0xf] %vm3348, %v3324
      %3362 = vst.msk [vmem:[%s197 + $0x34] sm:$0xf] %vm3348, %v3325
      %3363 = vst.msk [vmem:[%s197 + $0x38] sm:$0xf] %vm3348, %v3326
      %3364 = vst.msk [vmem:[%s197 + $0x3c] sm:$0xf] %vm3348, %v3327
      %3365 = vst.msk [vmem:[%s197 + $0x40] sm:$0xf] %vm3348, %v3328
      %3366 = vst.msk [vmem:[%s197 + $0x44] sm:$0xf] %vm3348, %v3329
      %3367 = vst.msk [vmem:[%s197 + $0x48] sm:$0xf] %vm3348, %v3330
      %3368 = vst.msk [vmem:[%s197 + $0x4c] sm:$0xf] %vm3348, %v3331
      %3369 = vst.msk [vmem:[%s197 + $0x50] sm:$0xf] %vm3348, %v3332
      %3370 = vst.msk [vmem:[%s197 + $0x54] sm:$0xf] %vm3348, %v3333
      %3371 = vst.msk [vmem:[%s197 + $0x58] sm:$0xf] %vm3348, %v3334
      %3372 = vst.msk [vmem:[%s197 + $0x5c] sm:$0xf] %vm3348, %v3335
      %3373 = vst.msk [vmem:[%s197 + $0x60] sm:$0xf] %vm3348, %v3336
      %3374 = vst.msk [vmem:[%s197 + $0x64] sm:$0xf] %vm3348, %v3337
      %3375 = vst.msk [vmem:[%s197 + $0x68] sm:$0xf] %vm3348, %v3338
      %3376 = vst.msk [vmem:[%s197 + $0x6c] sm:$0xf] %vm3348, %v3339
      %3377 = vst.msk [vmem:[%s197 + $0x70] sm:$0xf] %vm3348, %v3340
      %3378 = vst.msk [vmem:[%s197 + $0x74] sm:$0xf] %vm3348, %v3341
      %3379 = vst.msk [vmem:[%s197 + $0x78] sm:$0xf] %vm3348, %v3342
      %3380 = vst.msk [vmem:[%s197 + $0x7c] sm:$0xf] %vm3348, %v3343
      %3381 = vst.msk [vmem:[%s197 + $0x80] sm:$0xf] %vm3348, %v3344
      %3382 = vst.msk [vmem:[%s197 + $0x84] sm:$0xf] %vm3348, %v3345
      %3383 = vst.msk [vmem:[%s197 + $0x88] sm:$0xf] %vm3348, %v3346
      %3384 = vst.msk [vmem:[%s197 + $0x8c] sm:$0xf] %vm3348, %v3347
      %p3385 = scmp.lt.s32.totalorder %s15, 1
      %s3386 = scalar_select %p3385, %s15, 1
      %s3387 = smul.addr %s3386, 36
      %s3388 = smul.addr %s3387, 4
      %s3389 = scalar_lea.vmem %s4, %s3388
      // Predicated region
      $region37: #{_lambda_.5} parent=35 // pred_check
        %p3390 = pneg %p122
      $region38: #{_lambda_.5} parent=35 // pred_check_branch
        %3392 = sbr.rel (%p3390) target = $region40
      $region39: #{_lambda_.5} parent=35 // pred_region
        _
      $region40: #{_lambda_.5} parent=35 // pred_fallthru
        _
    $region36: #{_lambda_.5} parent=5 // pred_fallthru
      _
    %p3393 = scmp.le.s32.totalorder 2, %s10
    // Predicated region
    $region41: #{_lambda_.5} parent=5 // pred_check
      %p3394 = pneg %p3393
    $region42: #{_lambda_.5} parent=5 // pred_check_branch
      %3396 = sbr.rel (%p3394) target = $region44
    $region43: #{_lambda_.5} parent=5 // pred_region
      %s3397 = ssub.s32 %s10, 2
      // Predicated region
      $region45: #{_lambda_.5} parent=43 // pred_check
        %p3398 = pneg %p128
      $region46: #{_lambda_.5} parent=43 // pred_check_branch
        %3400 = sbr.rel (%p3398) target = $region48
      $region47: #{_lambda_.5} parent=43 // pred_region
        %p3401 = scmp.lt.s32.totalorder %s16, 1
        %s3402 = scalar_select %p3401, %s16, 1
        %s3403 = smul.addr %s3402, 36
        %s3404 = smul.addr %s3403, 4
        %s3405 = scalar_lea.vmem %s4, %s3404
      $region48: #{_lambda_.5} parent=43 // pred_fallthru
        _
    $region44: #{_lambda_.5} parent=5 // pred_fallthru
      _
  $region6: #{_lambda_.5} parent=0 // loop_footer
    %s14 = sadd.s32 1, %s10
  $region7: #{_lambda_.5} parent=0 // loop_footer_branch
    %9 = sbr.rel target = $region3
  $region8: #{_lambda_.5} parent=0 // loop_exit
    _

// kernel: _lambda_.7
$region0: #{_lambda_.7}
  #allocation0 [shape = 'u32[]', space=smem, size = 0x4, offset = 0x4, fixed_abs, tag = 'smem constant byte address 0x4 - core index']
  #allocation1 [shape = 'u32[72,128]{1,0:T(1,128)}', space=vmem, size = 0x9000, scoped, tag = 'internal scratch']
  #allocation2 [shape = 'f32[256,256]{1,0:T(8,128)}', space=vmem, size = 0x40000, scoped, tag = 'scratch operand']
  %s0 = inlined_call_operand.vmem [shape: bf16[512,64], index: 0, kind: input, shape index: {}]
  %s1 = inlined_call_operand.vmem [shape: bf16[64,256], index: 1, kind: input, shape index: {}]
  %s2 = inlined_call_operand.vmem [shape: f32[1,256], index: 2, kind: input, shape index: {}]
  %s3 = inlined_call_operand.vmem [shape: f32[1,256], index: 3, kind: input, shape index: {}]
  %s4 = inlined_call_operand.vmem [shape: bf16[512,256], index: 4, kind: input, shape index: {}]
  %s5 = inlined_call_operand.hbm [shape: f32[512,256], index: 5, kind: output, shape index: {}]
  %s6 = sld [smem:[#allocation0]]
  $region61: #{_lambda_.7} parent=0
    _
  %s8 = ssub.s32 1, %s6
  %s9 = scalar_select 0, %s8, %s6
  $region1: #{_lambda_.7} parent=0
    #allocation3 [shape = 'u8[524288]{0}', space=vmem, size = 0x80000, scoped, tag = 'output window, operand 0']
    #allocation4 [shape = 's32[2]{0}', space=sflag, size = 0x8, scoped, tag = 'scoped memory for _lambda_.7']
    %10 = vsyncpa [#allocation4], 0
    %s11 = scalar_lea.sflag [#allocation4], 1
    %12 = vsyncpa %s11, 0
    loop: start=0, step=1, limit=4
    $region2: #{_lambda_.7} parent=1 // loop_pre_header
      _
    $region3: #{_lambda_.7} parent=1 // loop_header
      %s14 = sphi 0, %s18
      %p15 = scmp.ge.s32.totalorder %s14, 4
      %s21 = sphi 0, %s33
      %s22 = sphi 0, %s29
      %s23 = sphi 0, %s21
      %s24 = sphi 0, %s22
      %s25 = sphi 0, %s23
      %s26 = sphi 0, %s24
      %s38 = sphi 0, %s40
      %s41 = sphi 0, %s38
      %s42 = sphi 0, %s41
      %s58 = sphi 0, %s42
      %s64 = sphi 0, %s66
      %s67 = sphi 0, %s64
      %s68 = sphi 0, %s67
      %s84 = sphi 0, %s68
      %s88 = sphi 0, %s88
      %s90 = sphi 0, %s88
      %s91 = sphi 0, %s90
      %s105 = sphi 0, %s91
      %s109 = sphi 0, %s109
      %s111 = sphi 0, %s109
      %s112 = sphi 0, %s111
      %s126 = sphi 0, %s112
      %s132 = sphi 0, %s134
      %s135 = sphi 0, %s132
      %s136 = sphi 0, %s135
      %s152 = sphi 0, %s136
      %s158 = sphi 0, %s160
      %s161 = sphi 0, %s158
      %s162 = sphi 0, %s161
      %s178 = sphi 0, %s162
    $region4: #{_lambda_.7} parent=1 // loop_header_branch
      %17 = sbr.rel (%p15) target = $region8
    $region5: #{_lambda_.7} parent=1 // loop_body
      %s19 = ssub.s32 %s14, 1
      %s20 = ssub.s32 %s14, 2
      %s27 = sadd.s32 1, %s22
      %p28 = scmp.ge.s32.totalorder %s27, 1
      %s29 = scalar_select %p28, 0, %s27
      %s30 = sadd.s32 1, %s21
      %s31 = scalar_select %p28, %s30, %s21
      %p32 = scmp.ge.s32.totalorder %s31, 2
      %s33 = scalar_select %p32, 0, %s31
      %s34 = ssub.s32 %s21, %s33
      %s35 = ssub.s32 %s22, %s29
      %s36 = sor.u32 %s34, %s35
      %p37 = scmp.eq.s32.totalorder %s36, 0
      %s39 = sadd.s32 %s38, 1
      %s40 = scalar_select %p37, %s38, %s39
      %p43 = pneg %p37
      %p44 = scmp.eq.s32.totalorder %s14, 1
      %p45 = por %p43, %p44
      %p46 = scmp.ne.s32.totalorder %s38, %s41
      %p47 = scmp.eq.s32.totalorder %s14, 0
      %p48 = por %p46, %p47
      %p49 = scmp.ne.s32.totalorder %s38, %s41
      %p50 = scmp.eq.s32.totalorder %s19, 1
      %p51 = por %p49, %p50
      %p52 = scmp.ne.s32.totalorder %s41, %s42
      %p53 = scmp.eq.s32.totalorder %s19, 0
      %p54 = por %p52, %p53
      %p55 = scmp.ne.s32.totalorder %s41, %s42
      %p56 = scmp.eq.s32.totalorder %s20, 1
      %p57 = por %p55, %p56
      %p59 = scmp.ne.s32.totalorder %s42, %s58
      %p60 = scmp.eq.s32.totalorder %s20, 0
      %p61 = por %p59, %p60
      %s62 = ssub.s32 %s22, %s29
      %p63 = scmp.eq.s32.totalorder %s62, 0
      %s65 = sadd.s32 %s64, 1
      %s66 = scalar_select %p63, %s64, %s65
      %p69 = pneg %p63
      %p70 = scmp.eq.s32.totalorder %s14, 1
      %p71 = por %p69, %p70
      %p72 = scmp.ne.s32.totalorder %s64, %s67
      %p73 = scmp.eq.s32.totalorder %s14, 0
      %p74 = por %p72, %p73
      %p75 = scmp.ne.s32.totalorder %s64, %s67
      %p76 = scmp.eq.s32.totalorder %s19, 1
      %p77 = por %p75, %p76
      %p78 = scmp.ne.s32.totalorder %s67, %s68
      %p79 = scmp.eq.s32.totalorder %s19, 0
      %p80 = por %p78, %p79
      %p81 = scmp.ne.s32.totalorder %s67, %s68
      %p82 = scmp.eq.s32.totalorder %s20, 1
      %p83 = por %p81, %p82
      %p85 = scmp.ne.s32.totalorder %s68, %s84
      %p86 = scmp.eq.s32.totalorder %s20, 0
      %p87 = por %p85, %p86
      %s89 = sadd.s32 %s88, 1
      %p92 = scmp.eq.s32.totalorder %s14, 1
      %p93 = scmp.ne.s32.totalorder %s88, %s90
      %p94 = scmp.eq.s32.totalorder %s14, 0
      %p95 = por %p93, %p94
      %p96 = scmp.ne.s32.totalorder %s88, %s90
      %p97 = scmp.eq.s32.totalorder %s19, 1
      %p98 = por %p96, %p97
      %p99 = scmp.ne.s32.totalorder %s90, %s91
      %p100 = scmp.eq.s32.totalorder %s19, 0
      %p101 = por %p99, %p100
      %p102 = scmp.ne.s32.totalorder %s90, %s91
      %p103 = scmp.eq.s32.totalorder %s20, 1
      %p104 = por %p102, %p103
      %p106 = scmp.ne.s32.totalorder %s91, %s105
      %p107 = scmp.eq.s32.totalorder %s20, 0
      %p108 = por %p106, %p107
      %s110 = sadd.s32 %s109, 1
      %p113 = scmp.eq.s32.totalorder %s14, 1
      %p114 = scmp.ne.s32.totalorder %s109, %s111
      %p115 = scmp.eq.s32.totalorder %s14, 0
      %p116 = por %p114, %p115
      %p117 = scmp.ne.s32.totalorder %s109, %s111
      %p118 = scmp.eq.s32.totalorder %s19, 1
      %p119 = por %p117, %p118
      %p120 = scmp.ne.s32.totalorder %s111, %s112
      %p121 = scmp.eq.s32.totalorder %s19, 0
      %p122 = por %p120, %p121
      %p123 = scmp.ne.s32.totalorder %s111, %s112
      %p124 = scmp.eq.s32.totalorder %s20, 1
      %p125 = por %p123, %p124
      %p127 = scmp.ne.s32.totalorder %s112, %s126
      %p128 = scmp.eq.s32.totalorder %s20, 0
      %p129 = por %p127, %p128
      %s130 = ssub.s32 %s21, %s33
      %p131 = scmp.eq.s32.totalorder %s130, 0
      %s133 = sadd.s32 %s132, 1
      %s134 = scalar_select %p131, %s132, %s133
      %p137 = pneg %p131
      %p138 = scmp.eq.s32.totalorder %s14, 1
      %p139 = por %p137, %p138
      %p140 = scmp.ne.s32.totalorder %s132, %s135
      %p141 = scmp.eq.s32.totalorder %s14, 0
      %p142 = por %p140, %p141
      %p143 = scmp.ne.s32.totalorder %s132, %s135
      %p144 = scmp.eq.s32.totalorder %s19, 1
      %p145 = por %p143, %p144
      %p146 = scmp.ne.s32.totalorder %s135, %s136
      %p147 = scmp.eq.s32.totalorder %s19, 0
      %p148 = por %p146, %p147
      %p149 = scmp.ne.s32.totalorder %s135, %s136
      %p150 = scmp.eq.s32.totalorder %s20, 1
      %p151 = por %p149, %p150
      %p153 = scmp.ne.s32.totalorder %s136, %s152
      %p154 = scmp.eq.s32.totalorder %s20, 0
      %p155 = por %p153, %p154
      %s156 = ssub.s32 %s21, %s33
      %p157 = scmp.eq.s32.totalorder %s156, 0
      %s159 = sadd.s32 %s158, 1
      %s160 = scalar_select %p157, %s158, %s159
      %p163 = pneg %p157
      %p164 = scmp.eq.s32.totalorder %s14, 1
      %p165 = por %p163, %p164
      %p166 = scmp.ne.s32.totalorder %s158, %s161
      %p167 = scmp.eq.s32.totalorder %s14, 0
      %p168 = por %p166, %p167
      %p169 = scmp.ne.s32.totalorder %s158, %s161
      %p170 = scmp.eq.s32.totalorder %s19, 1
      %p171 = por %p169, %p170
      %p172 = scmp.ne.s32.totalorder %s161, %s162
      %p173 = scmp.eq.s32.totalorder %s19, 0
      %p174 = por %p172, %p173
      %p175 = scmp.ne.s32.totalorder %s161, %s162
      %p176 = scmp.eq.s32.totalorder %s20, 1
      %p177 = por %p175, %p176
      %p179 = scmp.ne.s32.totalorder %s162, %s178
      %p180 = scmp.eq.s32.totalorder %s20, 0
      %p181 = por %p179, %p180
      %p182 = scmp.le.s32.totalorder 1, %s14
      %p183 = scmp.lt.s32.totalorder %s14, 3
      %p184 = pnand %p182, %p183
      %p185 = pneg %p184
      // Predicated region
      $region9: #{_lambda_.7} parent=5 // pred_check
        _
      $region10: #{_lambda_.7} parent=5 // pred_check_branch
        %187 = sbr.rel (%p184) target = $region12
      $region11: #{_lambda_.7} parent=5 // pred_region
        %s188 = ssub.s32 %s14, 1
        // Predicated region
        $region13: #{_lambda_.7} parent=11 // pred_check
          %p189 = pneg %p80
        $region14: #{_lambda_.7} parent=11 // pred_check_branch
          %191 = sbr.rel (%p189) target = $region16
        $region15: #{_lambda_.7} parent=11 // pred_region
          %s192 = smul.u32 8, %s24
          %p193 = scmp.lt.s32.totalorder %s192, 7
          %s194 = scalar_select %p193, %s192, 7
          %s195 = smul.addr %s194, 2
          %s196 = smul.addr %s195, 4
          %s197 = scalar_lea.vmem %s1, %s196
          %s198 = smul.u32 8, %s24
        $region16: #{_lambda_.7} parent=11 // pred_fallthru
          _
        // Predicated region
        $region17: #{_lambda_.7} parent=11 // pred_check
          %p199 = pneg %p101
        $region18: #{_lambda_.7} parent=11 // pred_check_branch
          %201 = sbr.rel (%p199) target = $region20
        $region19: #{_lambda_.7} parent=11 // pred_region
          _
        $region20: #{_lambda_.7} parent=11 // pred_fallthru
          _
        // Predicated region
        $region21: #{_lambda_.7} parent=11 // pred_check
          %p202 = pneg %p122
        $region22: #{_lambda_.7} parent=11 // pred_check_branch
          %204 = sbr.rel (%p202) target = $region24
        $region23: #{_lambda_.7} parent=11 // pred_region
          _
        $region24: #{_lambda_.7} parent=11 // pred_fallthru
          _
      $region12: #{_lambda_.7} parent=5 // pred_fallthru
        _
      %p205 = scmp.lt.s32.totalorder %s14, 2
      // Predicated region
      $region25: #{_lambda_.7} parent=5 // pred_check
        %p206 = pneg %p205
      $region26: #{_lambda_.7} parent=5 // pred_check_branch
        %208 = sbr.rel (%p206) target = $region28
      $region27: #{_lambda_.7} parent=5 // pred_region
        // Predicated region
        $region29: #{_lambda_.7} parent=27 // pred_check
          %p209 = pneg %p48
        $region30: #{_lambda_.7} parent=27 // pred_check_branch
          %211 = sbr.rel (%p209) target = $region32
        $region31: #{_lambda_.7} parent=27 // pred_region
          %s212 = smul.u32 32, %s21
          %p213 = scmp.lt.s32.totalorder %s212, 63
          %s214 = scalar_select %p213, %s212, 63
          %p215 = scmp.lt.s32.totalorder %s22, 0
          %s216 = scalar_select %p215, %s22, 0
          %s217 = sadd.s32 %s216, %s214
          %s218 = smul.addr %s217, 4
          %s219 = scalar_lea.vmem %s0, %s218
          %s220 = smul.u32 32, %s21
        $region32: #{_lambda_.7} parent=27 // pred_fallthru
          _
        // Predicated region
        $region33: #{_lambda_.7} parent=27 // pred_check
          %p221 = pneg %p142
        $region34: #{_lambda_.7} parent=27 // pred_check_branch
          %223 = sbr.rel (%p221) target = $region36
        $region35: #{_lambda_.7} parent=27 // pred_region
          %s224 = smul.u32 32, %s21
          %p225 = scmp.lt.s32.totalorder %s224, 63
          %s226 = scalar_select %p225, %s224, 63
          %s227 = smul.addr %s226, 2
          %s228 = smul.addr %s227, 4
          %s229 = scalar_lea.vmem %s4, %s228
          %s230 = smul.u32 32, %s21
        $region36: #{_lambda_.7} parent=27 // pred_fallthru
          _
      $region28: #{_lambda_.7} parent=5 // pred_fallthru
        _
      %p231 = scmp.le.s32.totalorder 1, %s14
      %p232 = scmp.lt.s32.totalorder %s14, 3
      %p233 = pnand %p231, %p232
      %p234 = pneg %p233
      // Predicated region
      $region37: #{_lambda_.7} parent=5 // pred_check
        _
      $region38: #{_lambda_.7} parent=5 // pred_check_branch
        %236 = sbr.rel (%p233) target = $region40
      $region39: #{_lambda_.7} parent=5 // pred_region
        %s237 = ssub.s32 %s14, 1
        %s238 = smul.u32 32, %s23
        %p239 = scmp.lt.s32.totalorder %s238, 63
        %s240 = scalar_select %p239, %s238, 63
        %p241 = scmp.lt.s32.totalorder %s24, 0
        %s242 = scalar_select %p241, %s24, 0
        %s243 = sadd.s32 %s242, %s240
        %s244 = smul.addr %s243, 4
        %s245 = scalar_lea.vmem %s0, %s244
        %p246 = pneg %p54
        %p247 = pneg %p51
        %s248 = smul.u32 8, %s24
        %p249 = scmp.lt.s32.totalorder %s248, 7
        %s250 = scalar_select %p249, %s248, 7
        %s251 = smul.addr %s250, 2
        %s252 = smul.addr %s251, 4
        %s253 = scalar_lea.vmem %s1, %s252
        %p254 = pneg %p80
        %p255 = pneg %p77
        %p256 = pneg %p101
        %p257 = pneg %p98
        %p258 = pneg %p122
        %p259 = pneg %p119
        %s260 = smul.u32 32, %s23
        %p261 = scmp.lt.s32.totalorder %s260, 63
        %s262 = scalar_select %p261, %s260, 63
        %s263 = smul.addr %s262, 2
        %s264 = smul.addr %s263, 4
        %s265 = scalar_lea.vmem %s4, %s264
        %p266 = pneg %p148
        %p267 = pneg %p145
        %p268 = pneg %p174
        %p269 = pneg %p171
        %s270 = sand.u32 %s161, 1
        %s271 = scalar_lea.sflag [#allocation4], %s270
        %s272 = sand.u32 %s161, 1
        %s273 = smul.addr %s272, 512
        %s274 = scalar_lea.vmem [#allocation3], %s273
        %s275 = smul.u32 32, %s23
        %p276 = scmp.lt.s32.totalorder %s275, 63
        %s277 = scalar_select %p276, %s275, 63
        %p278 = scmp.lt.s32.totalorder %s24, 0
        %s279 = scalar_select %p278, %s24, 0
        %s280 = sadd.s32 %s279, %s277
        %s281 = smul.addr %s280, 4
        %s282 = scalar_lea.vmem %s0, %s281
        %s283 = smul.u32 32, %s23
        %s284 = smul.u32 8, %s24
        %p285 = scmp.lt.s32.totalorder %s284, 7
        %s286 = scalar_select %p285, %s284, 7
        %s287 = smul.addr %s286, 2
        %s288 = smul.addr %s287, 4
        %s289 = scalar_lea.vmem %s1, %s288
        %s290 = smul.u32 8, %s24
        %s291 = smul.u32 32, %s23
        %p292 = scmp.lt.s32.totalorder %s291, 63
        %s293 = scalar_select %p292, %s291, 63
        %s294 = smul.addr %s293, 2
        %s295 = smul.addr %s294, 4
        %s296 = scalar_lea.vmem %s4, %s295
        %s297 = smul.u32 32, %s23
        %s298 = smul.u32 32, %s23
        %p300 = scmp.eq.s32.totalorder %s24, 0
        // Predicated region
        $region41: #{_lambda_.7} parent=39 // pred_check
          %p301 = pneg %p300
        $region42: #{_lambda_.7} parent=39 // pred_check_branch
          %303 = sbr.rel (%p301) target = $region44
        $region43: #{_lambda_.7} parent=39 // pred_region
          %304 = vst [vmem:[#allocation2] sm:$0xff] 0.0
          %305 = vst [vmem:[#allocation2 + $0x8] sm:$0xff] 0.0
          %306 = vst [vmem:[#allocation2 + $0x10] sm:$0xff] 0.0
          %307 = vst [vmem:[#allocation2 + $0x18] sm:$0xff] 0.0
          %308 = vst [vmem:[#allocation2 + $0x20] sm:$0xff] 0.0
          %309 = vst [vmem:[#allocation2 + $0x28] sm:$0xff] 0.0
          %310 = vst [vmem:[#allocation2 + $0x30] sm:$0xff] 0.0
          %311 = vst [vmem:[#allocation2 + $0x38] sm:$0xff] 0.0
          %312 = vst [vmem:[#allocation2 + $0x40] sm:$0xff] 0.0
          %313 = vst [vmem:[#allocation2 + $0x48] sm:$0xff] 0.0
          %314 = vst [vmem:[#allocation2 + $0x50] sm:$0xff] 0.0
          %315 = vst [vmem:[#allocation2 + $0x58] sm:$0xff] 0.0
          %316 = vst [vmem:[#allocation2 + $0x60] sm:$0xff] 0.0
          %317 = vst [vmem:[#allocation2 + $0x68] sm:$0xff] 0.0
          %318 = vst [vmem:[#allocation2 + $0x70] sm:$0xff] 0.0
          %319 = vst [vmem:[#allocation2 + $0x78] sm:$0xff] 0.0
          %320 = vst [vmem:[#allocation2 + $0x80] sm:$0xff] 0.0
          %321 = vst [vmem:[#allocation2 + $0x88] sm:$0xff] 0.0
          %322 = vst [vmem:[#allocation2 + $0x90] sm:$0xff] 0.0
          %323 = vst [vmem:[#allocation2 + $0x98] sm:$0xff] 0.0
          %324 = vst [vmem:[#allocation2 + $0xa0] sm:$0xff] 0.0
          %325 = vst [vmem:[#allocation2 + $0xa8] sm:$0xff] 0.0
          %326 = vst [vmem:[#allocation2 + $0xb0] sm:$0xff] 0.0
          %327 = vst [vmem:[#allocation2 + $0xb8] sm:$0xff] 0.0
          %328 = vst [vmem:[#allocation2 + $0xc0] sm:$0xff] 0.0
          %329 = vst [vmem:[#allocation2 + $0xc8] sm:$0xff] 0.0
          %330 = vst [vmem:[#allocation2 + $0xd0] sm:$0xff] 0.0
          %331 = vst [vmem:[#allocation2 + $0xd8] sm:$0xff] 0.0
          %332 = vst [vmem:[#allocation2 + $0xe0] sm:$0xff] 0.0
          %333 = vst [vmem:[#allocation2 + $0xe8] sm:$0xff] 0.0
          %334 = vst [vmem:[#allocation2 + $0xf0] sm:$0xff] 0.0
          %335 = vst [vmem:[#allocation2 + $0xf8] sm:$0xff] 0.0
          %336 = vst [vmem:[#allocation2 + $0x100] sm:$0xff] 0.0
          %337 = vst [vmem:[#allocation2 + $0x108] sm:$0xff] 0.0
          %338 = vst [vmem:[#allocation2 + $0x110] sm:$0xff] 0.0
          %339 = vst [vmem:[#allocation2 + $0x118] sm:$0xff] 0.0
          %340 = vst [vmem:[#allocation2 + $0x120] sm:$0xff] 0.0
          %341 = vst [vmem:[#allocation2 + $0x128] sm:$0xff] 0.0
          %342 = vst [vmem:[#allocation2 + $0x130] sm:$0xff] 0.0
          %343 = vst [vmem:[#allocation2 + $0x138] sm:$0xff] 0.0
          %344 = vst [vmem:[#allocation2 + $0x140] sm:$0xff] 0.0
          %345 = vst [vmem:[#allocation2 + $0x148] sm:$0xff] 0.0
          %346 = vst [vmem:[#allocation2 + $0x150] sm:$0xff] 0.0
          %347 = vst [vmem:[#allocation2 + $0x158] sm:$0xff] 0.0
          %348 = vst [vmem:[#allocation2 + $0x160] sm:$0xff] 0.0
          %349 = vst [vmem:[#allocation2 + $0x168] sm:$0xff] 0.0
          %350 = vst [vmem:[#allocation2 + $0x170] sm:$0xff] 0.0
          %351 = vst [vmem:[#allocation2 + $0x178] sm:$0xff] 0.0
          %352 = vst [vmem:[#allocation2 + $0x180] sm:$0xff] 0.0
          %353 = vst [vmem:[#allocation2 + $0x188] sm:$0xff] 0.0
          %354 = vst [vmem:[#allocation2 + $0x190] sm:$0xff] 0.0
          %355 = vst [vmem:[#allocation2 + $0x198] sm:$0xff] 0.0
          %356 = vst [vmem:[#allocation2 + $0x1a0] sm:$0xff] 0.0
          %357 = vst [vmem:[#allocation2 + $0x1a8] sm:$0xff] 0.0
          %358 = vst [vmem:[#allocation2 + $0x1b0] sm:$0xff] 0.0
          %359 = vst [vmem:[#allocation2 + $0x1b8] sm:$0xff] 0.0
          %360 = vst [vmem:[#allocation2 + $0x1c0] sm:$0xff] 0.0
          %361 = vst [vmem:[#allocation2 + $0x1c8] sm:$0xff] 0.0
          %362 = vst [vmem:[#allocation2 + $0x1d0] sm:$0xff] 0.0
          %363 = vst [vmem:[#allocation2 + $0x1d8] sm:$0xff] 0.0
          %364 = vst [vmem:[#allocation2 + $0x1e0] sm:$0xff] 0.0
          %365 = vst [vmem:[#allocation2 + $0x1e8] sm:$0xff] 0.0
          %366 = vst [vmem:[#allocation2 + $0x1f0] sm:$0xff] 0.0
          %367 = vst [vmem:[#allocation2 + $0x1f8] sm:$0xff] 0.0
        $region44: #{_lambda_.7} parent=39 // pred_fallthru
          _
        %v368 = vld [vmem:[#allocation2] sm:$0xff]
        %v369 = vld [vmem:[#allocation2 + $0x8] sm:$0xff]
        %v370 = vld [vmem:[#allocation2 + $0x10] sm:$0xff]
        %v371 = vld [vmem:[#allocation2 + $0x18] sm:$0xff]
        %v372 = vld [vmem:[#allocation2 + $0x20] sm:$0xff]
        %v373 = vld [vmem:[#allocation2 + $0x28] sm:$0xff]
        %v374 = vld [vmem:[#allocation2 + $0x30] sm:$0xff]
        %v375 = vld [vmem:[#allocation2 + $0x38] sm:$0xff]
        %v376 = vld [vmem:[#allocation2 + $0x40] sm:$0xff]
        %v377 = vld [vmem:[#allocation2 + $0x48] sm:$0xff]
        %v378 = vld [vmem:[#allocation2 + $0x50] sm:$0xff]
        %v379 = vld [vmem:[#allocation2 + $0x58] sm:$0xff]
        %v380 = vld [vmem:[#allocation2 + $0x60] sm:$0xff]
        %v381 = vld [vmem:[#allocation2 + $0x68] sm:$0xff]
        %v382 = vld [vmem:[#allocation2 + $0x70] sm:$0xff]
        %v383 = vld [vmem:[#allocation2 + $0x78] sm:$0xff]
        %v384 = vld [vmem:[#allocation2 + $0x80] sm:$0xff]
        %v385 = vld [vmem:[#allocation2 + $0x88] sm:$0xff]
        %v386 = vld [vmem:[#allocation2 + $0x90] sm:$0xff]
        %v387 = vld [vmem:[#allocation2 + $0x98] sm:$0xff]
        %v388 = vld [vmem:[#allocation2 + $0xa0] sm:$0xff]
        %v389 = vld [vmem:[#allocation2 + $0xa8] sm:$0xff]
        %v390 = vld [vmem:[#allocation2 + $0xb0] sm:$0xff]
        %v391 = vld [vmem:[#allocation2 + $0xb8] sm:$0xff]
        %v392 = vld [vmem:[#allocation2 + $0xc0] sm:$0xff]
        %v393 = vld [vmem:[#allocation2 + $0xc8] sm:$0xff]
        %v394 = vld [vmem:[#allocation2 + $0xd0] sm:$0xff]
        %v395 = vld [vmem:[#allocation2 + $0xd8] sm:$0xff]
        %v396 = vld [vmem:[#allocation2 + $0xe0] sm:$0xff]
        %v397 = vld [vmem:[#allocation2 + $0xe8] sm:$0xff]
        %v398 = vld [vmem:[#allocation2 + $0xf0] sm:$0xff]
        %v399 = vld [vmem:[#allocation2 + $0xf8] sm:$0xff]
        %v400 = vld [vmem:[#allocation2 + $0x100] sm:$0xff]
        %v401 = vld [vmem:[#allocation2 + $0x108] sm:$0xff]
        %v402 = vld [vmem:[#allocation2 + $0x110] sm:$0xff]
        %v403 = vld [vmem:[#allocation2 + $0x118] sm:$0xff]
        %v404 = vld [vmem:[#allocation2 + $0x120] sm:$0xff]
        %v405 = vld [vmem:[#allocation2 + $0x128] sm:$0xff]
        %v406 = vld [vmem:[#allocation2 + $0x130] sm:$0xff]
        %v407 = vld [vmem:[#allocation2 + $0x138] sm:$0xff]
        %v408 = vld [vmem:[#allocation2 + $0x140] sm:$0xff]
        %v409 = vld [vmem:[#allocation2 + $0x148] sm:$0xff]
        %v410 = vld [vmem:[#allocation2 + $0x150] sm:$0xff]
        %v411 = vld [vmem:[#allocation2 + $0x158] sm:$0xff]
        %v412 = vld [vmem:[#allocation2 + $0x160] sm:$0xff]
        %v413 = vld [vmem:[#allocation2 + $0x168] sm:$0xff]
        %v414 = vld [vmem:[#allocation2 + $0x170] sm:$0xff]
        %v415 = vld [vmem:[#allocation2 + $0x178] sm:$0xff]
        %v416 = vld [vmem:[#allocation2 + $0x180] sm:$0xff]
        %v417 = vld [vmem:[#allocation2 + $0x188] sm:$0xff]
        %v418 = vld [vmem:[#allocation2 + $0x190] sm:$0xff]
        %v419 = vld [vmem:[#allocation2 + $0x198] sm:$0xff]
        %v420 = vld [vmem:[#allocation2 + $0x1a0] sm:$0xff]
        %v421 = vld [vmem:[#allocation2 + $0x1a8] sm:$0xff]
        %v422 = vld [vmem:[#allocation2 + $0x1b0] sm:$0xff]
        %v423 = vld [vmem:[#allocation2 + $0x1b8] sm:$0xff]
        %v424 = vld [vmem:[#allocation2 + $0x1c0] sm:$0xff]
        %v425 = vld [vmem:[#allocation2 + $0x1c8] sm:$0xff]
        %v426 = vld [vmem:[#allocation2 + $0x1d0] sm:$0xff]
        %v427 = vld [vmem:[#allocation2 + $0x1d8] sm:$0xff]
        %v428 = vld [vmem:[#allocation2 + $0x1e0] sm:$0xff]
        %v429 = vld [vmem:[#allocation2 + $0x1e8] sm:$0xff]
        %v430 = vld [vmem:[#allocation2 + $0x1f0] sm:$0xff]
        %v431 = vld [vmem:[#allocation2 + $0x1f8] sm:$0xff]
        %v432 = vld [vmem:[%s282] sm:$0xf]
        %v433 = vld [vmem:[%s282 + $0x4] sm:$0xf]
        %v434 = vld [vmem:[%s282 + $0x8] sm:$0xf]
        %v435 = vld [vmem:[%s282 + $0xc] sm:$0xf]
        %v436 = vld [vmem:[%s282 + $0x10] sm:$0xf]
        %v437 = vld [vmem:[%s282 + $0x14] sm:$0xf]
        %v438 = vld [vmem:[%s282 + $0x18] sm:$0xf]
        %v439 = vld [vmem:[%s282 + $0x1c] sm:$0xf]
        %v440 = vld [vmem:[%s282 + $0x20] sm:$0xf]
        %v441 = vld [vmem:[%s282 + $0x24] sm:$0xf]
        %v442 = vld [vmem:[%s282 + $0x28] sm:$0xf]
        %v443 = vld [vmem:[%s282 + $0x2c] sm:$0xf]
        %v444 = vld [vmem:[%s282 + $0x30] sm:$0xf]
        %v445 = vld [vmem:[%s282 + $0x34] sm:$0xf]
        %v446 = vld [vmem:[%s282 + $0x38] sm:$0xf]
        %v447 = vld [vmem:[%s282 + $0x3c] sm:$0xf]
        %v448 = vld [vmem:[%s282 + $0x40] sm:$0xf]
        %v449 = vld [vmem:[%s282 + $0x44] sm:$0xf]
        %v450 = vld [vmem:[%s282 + $0x48] sm:$0xf]
        %v451 = vld [vmem:[%s282 + $0x4c] sm:$0xf]
        %v452 = vld [vmem:[%s282 + $0x50] sm:$0xf]
        %v453 = vld [vmem:[%s282 + $0x54] sm:$0xf]
        %v454 = vld [vmem:[%s282 + $0x58] sm:$0xf]
        %v455 = vld [vmem:[%s282 + $0x5c] sm:$0xf]
        %v456 = vld [vmem:[%s282 + $0x60] sm:$0xf]
        %v457 = vld [vmem:[%s282 + $0x64] sm:$0xf]
        %v458 = vld [vmem:[%s282 + $0x68] sm:$0xf]
        %v459 = vld [vmem:[%s282 + $0x6c] sm:$0xf]
        %v460 = vld [vmem:[%s282 + $0x70] sm:$0xf]
        %v461 = vld [vmem:[%s282 + $0x74] sm:$0xf]
        %v462 = vld [vmem:[%s282 + $0x78] sm:$0xf]
        %v463 = vld [vmem:[%s282 + $0x7c] sm:$0xf]
        %v464 = vld [vmem:[%s289] sm:$0xff]
        %v465 = vld [vmem:[%s289 + $0x8] sm:$0xff]
        %v466 = vld [vmem:[%s289 + $0x10] sm:$0xff]
        %v467 = vld [vmem:[%s289 + $0x18] sm:$0xff]
        %v468 = vld [vmem:[%s289 + $0x20] sm:$0xff]
        %v469 = vld [vmem:[%s289 + $0x28] sm:$0xff]
        %v470 = vld [vmem:[%s289 + $0x30] sm:$0xff]
        %v471 = vld [vmem:[%s289 + $0x38] sm:$0xff]
        %v504 = vunpack.c.l.b16 %v432
        %v505 = vunpack.c.l.b16 %v433
        %v506 = vunpack.c.l.b16 %v434
        %v507 = vunpack.c.l.b16 %v435
        %v508 = vunpack.c.l.b16 %v436
        %v509 = vunpack.c.l.b16 %v437
        %v510 = vunpack.c.l.b16 %v438
        %v511 = vunpack.c.l.b16 %v439
        %v512 = vunpack.c.l.b16 %v440
        %v513 = vunpack.c.l.b16 %v441
        %v514 = vunpack.c.l.b16 %v442
        %v515 = vunpack.c.l.b16 %v443
        %v516 = vunpack.c.l.b16 %v444
        %v517 = vunpack.c.l.b16 %v445
        %v518 = vunpack.c.l.b16 %v446
        %v519 = vunpack.c.l.b16 %v447
        %v520 = vunpack.c.l.b16 %v448
        %v521 = vunpack.c.l.b16 %v449
        %v522 = vunpack.c.l.b16 %v450
        %v523 = vunpack.c.l.b16 %v451
        %v524 = vunpack.c.l.b16 %v452
        %v525 = vunpack.c.l.b16 %v453
        %v526 = vunpack.c.l.b16 %v454
        %v527 = vunpack.c.l.b16 %v455
        %v528 = vunpack.c.l.b16 %v456
        %v529 = vunpack.c.l.b16 %v457
        %v530 = vunpack.c.l.b16 %v458
        %v531 = vunpack.c.l.b16 %v459
        %v532 = vunpack.c.l.b16 %v460
        %v533 = vunpack.c.l.b16 %v461
        %v534 = vunpack.c.l.b16 %v462
        %v535 = vunpack.c.l.b16 %v463
        %v536 = vpack.c.b16 %v505, %v504
        %v537 = vpack.c.b16 %v507, %v506
        %v538 = vpack.c.b16 %v509, %v508
        %v539 = vpack.c.b16 %v511, %v510
        %v540 = vpack.c.b16 %v513, %v512
        %v541 = vpack.c.b16 %v515, %v514
        %v542 = vpack.c.b16 %v517, %v516
        %v543 = vpack.c.b16 %v519, %v518
        %v544 = vpack.c.b16 %v521, %v520
        %v545 = vpack.c.b16 %v523, %v522
        %v546 = vpack.c.b16 %v525, %v524
        %v547 = vpack.c.b16 %v527, %v526
        %v548 = vpack.c.b16 %v529, %v528
        %v549 = vpack.c.b16 %v531, %v530
        %v550 = vpack.c.b16 %v533, %v532
        %v551 = vpack.c.b16 %v535, %v534
        %v560 = vunpack.c.l.b16 %v464
        %v561 = vunpack.c.h.b16 %v464
        %v562 = vunpack.c.l.b16 %v465
        %v563 = vunpack.c.h.b16 %v465
        %v564 = vunpack.c.l.b16 %v466
        %v565 = vunpack.c.h.b16 %v466
        %v566 = vunpack.c.l.b16 %v467
        %v567 = vunpack.c.h.b16 %v467
        %v568 = vunpack.c.l.b16 %v468
        %v569 = vunpack.c.h.b16 %v468
        %v570 = vunpack.c.l.b16 %v469
        %v571 = vunpack.c.h.b16 %v469
        %v572 = vunpack.c.l.b16 %v470
        %v573 = vunpack.c.h.b16 %v470
        %v574 = vunpack.c.l.b16 %v471
        %v575 = vunpack.c.h.b16 %v471
        %v576 = vpack.c.b16 %v562, %v560
        %v577 = vpack.c.b16 %v563, %v561
        %v578 = vpack.c.b16 %v566, %v564
        %v579 = vpack.c.b16 %v567, %v565
        %v580 = vpack.c.b16 %v570, %v568
        %v581 = vpack.c.b16 %v571, %v569
        %v582 = vpack.c.b16 %v574, %v572
        %v583 = vpack.c.b16 %v575, %v573
        %vm592 = vcmask 523264
        %v594 = vsel %vm592, %v536, 0
        %v597 = vsel %vm592, %v537, 0
        %v600 = vsel %vm592, %v538, 0
        %v603 = vsel %vm592, %v539, 0
        %v606 = vsel %vm592, %v540, 0
        %v609 = vsel %vm592, %v541, 0
        %v612 = vsel %vm592, %v542, 0
        %v615 = vsel %vm592, %v543, 0
        %v618 = vsel %vm592, %v544, 0
        %v621 = vsel %vm592, %v545, 0
        %v624 = vsel %vm592, %v546, 0
        %v627 = vsel %vm592, %v547, 0
        %v630 = vsel %vm592, %v548, 0
        %v633 = vsel %vm592, %v549, 0
        %v636 = vsel %vm592, %v550, 0
        %v639 = vsel %vm592, %v551, 0
        %641 = vmatpush.bf16.msra.mxu0 0
        %642 = vmatpush.bf16.msra.mxu0 0
        %643 = vmatpush.bf16.msra.mxu0 0
        %644 = vmatpush.bf16.msra.mxu0 0
        %645 = vmatpush.bf16.msra.mxu0 %v582
        %646 = vmatpush.bf16.msra.mxu0 %v580
        %647 = vmatpush.bf16.msra.mxu0 %v578
        %648 = vmatpush.bf16.msra.mxu0 %v576
        %649 = vmatmul.bf16.gmra.mxu0 %v594
        %v650 = vpop.f32.mrf.mxu0
        %v651 = vadd.f32 0.0, %v650
        %v652 = vpop.f32.mrf.mxu0
        %v653 = vadd.f32 0.0, %v652
        %654 = vmatmul.bf16.gmra.mxu0 %v597
        %v655 = vpop.f32.mrf.mxu0
        %v656 = vadd.f32 0.0, %v655
        %v657 = vpop.f32.mrf.mxu0
        %v658 = vadd.f32 0.0, %v657
        %659 = vmatmul.bf16.gmra.mxu0 %v600
        %v660 = vpop.f32.mrf.mxu0
        %v661 = vadd.f32 0.0, %v660
        %v662 = vpop.f32.mrf.mxu0
        %v663 = vadd.f32 0.0, %v662
        %664 = vmatmul.bf16.gmra.mxu0 %v603
        %v665 = vpop.f32.mrf.mxu0
        %v666 = vadd.f32 0.0, %v665
        %v667 = vpop.f32.mrf.mxu0
        %v668 = vadd.f32 0.0, %v667
        %669 = vmatmul.bf16.gmra.mxu0 %v606
        %v670 = vpop.f32.mrf.mxu0
        %v671 = vadd.f32 0.0, %v670
        %v672 = vpop.f32.mrf.mxu0
        %v673 = vadd.f32 0.0, %v672
        %674 = vmatmul.bf16.gmra.mxu0 %v609
        %v675 = vpop.f32.mrf.mxu0
        %v676 = vadd.f32 0.0, %v675
        %v677 = vpop.f32.mrf.mxu0
        %v678 = vadd.f32 0.0, %v677
        %679 = vmatmul.bf16.gmra.mxu0 %v612
        %v680 = vpop.f32.mrf.mxu0
        %v681 = vadd.f32 0.0, %v680
        %v682 = vpop.f32.mrf.mxu0
        %v683 = vadd.f32 0.0, %v682
        %684 = vmatmul.bf16.gmra.mxu0 %v615
        %v685 = vpop.f32.mrf.mxu0
        %v686 = vadd.f32 0.0, %v685
        %v687 = vpop.f32.mrf.mxu0
        %v688 = vadd.f32 0.0, %v687
        %689 = vmatmul.bf16.gmra.mxu0 %v618
        %v690 = vpop.f32.mrf.mxu0
        %v691 = vadd.f32 0.0, %v690
        %v692 = vpop.f32.mrf.mxu0
        %v693 = vadd.f32 0.0, %v692
        %694 = vmatmul.bf16.gmra.mxu0 %v621
        %v695 = vpop.f32.mrf.mxu0
        %v696 = vadd.f32 0.0, %v695
        %v697 = vpop.f32.mrf.mxu0
        %v698 = vadd.f32 0.0, %v697
        %699 = vmatmul.bf16.gmra.mxu0 %v624
        %v700 = vpop.f32.mrf.mxu0
        %v701 = vadd.f32 0.0, %v700
        %v702 = vpop.f32.mrf.mxu0
        %v703 = vadd.f32 0.0, %v702
        %704 = vmatmul.bf16.gmra.mxu0 %v627
        %v705 = vpop.f32.mrf.mxu0
        %v706 = vadd.f32 0.0, %v705
        %v707 = vpop.f32.mrf.mxu0
        %v708 = vadd.f32 0.0, %v707
        %709 = vmatmul.bf16.gmra.mxu0 %v630
        %v710 = vpop.f32.mrf.mxu0
        %v711 = vadd.f32 0.0, %v710
        %v712 = vpop.f32.mrf.mxu0
        %v713 = vadd.f32 0.0, %v712
        %714 = vmatmul.bf16.gmra.mxu0 %v633
        %v715 = vpop.f32.mrf.mxu0
        %v716 = vadd.f32 0.0, %v715
        %v717 = vpop.f32.mrf.mxu0
        %v718 = vadd.f32 0.0, %v717
        %719 = vmatmul.bf16.gmra.mxu0 %v636
        %v720 = vpop.f32.mrf.mxu0
        %v721 = vadd.f32 0.0, %v720
        %v722 = vpop.f32.mrf.mxu0
        %v723 = vadd.f32 0.0, %v722
        %724 = vmatmul.bf16.gmra.mxu0 %v639
        %v725 = vpop.f32.mrf.mxu0
        %v726 = vadd.f32 0.0, %v725
        %v727 = vpop.f32.mrf.mxu0
        %v728 = vadd.f32 0.0, %v727
        %729 = vdwg.mxu0
        %730 = vmatpush.bf16.msra.mxu0 0
        %731 = vmatpush.bf16.msra.mxu0 0
        %732 = vmatpush.bf16.msra.mxu0 0
        %733 = vmatpush.bf16.msra.mxu0 0
        %734 = vmatpush.bf16.msra.mxu0 %v583
        %735 = vmatpush.bf16.msra.mxu0 %v581
        %736 = vmatpush.bf16.msra.mxu0 %v579
        %737 = vmatpush.bf16.msra.mxu0 %v577
        %738 = vmatmul.bf16.gmra.mxu0 %v594
        %v739 = vpop.f32.mrf.mxu0
        %v740 = vadd.f32 0.0, %v739
        %v741 = vpop.f32.mrf.mxu0
        %v742 = vadd.f32 0.0, %v741
        %743 = vmatmul.bf16.gmra.mxu0 %v597
        %v744 = vpop.f32.mrf.mxu0
        %v745 = vadd.f32 0.0, %v744
        %v746 = vpop.f32.mrf.mxu0
        %v747 = vadd.f32 0.0, %v746
        %748 = vmatmul.bf16.gmra.mxu0 %v600
        %v749 = vpop.f32.mrf.mxu0
        %v750 = vadd.f32 0.0, %v749
        %v751 = vpop.f32.mrf.mxu0
        %v752 = vadd.f32 0.0, %v751
        %753 = vmatmul.bf16.gmra.mxu0 %v603
        %v754 = vpop.f32.mrf.mxu0
        %v755 = vadd.f32 0.0, %v754
        %v756 = vpop.f32.mrf.mxu0
        %v757 = vadd.f32 0.0, %v756
        %758 = vmatmul.bf16.gmra.mxu0 %v606
        %v759 = vpop.f32.mrf.mxu0
        %v760 = vadd.f32 0.0, %v759
        %v761 = vpop.f32.mrf.mxu0
        %v762 = vadd.f32 0.0, %v761
        %763 = vmatmul.bf16.gmra.mxu0 %v609
        %v764 = vpop.f32.mrf.mxu0
        %v765 = vadd.f32 0.0, %v764
        %v766 = vpop.f32.mrf.mxu0
        %v767 = vadd.f32 0.0, %v766
        %768 = vmatmul.bf16.gmra.mxu0 %v612
        %v769 = vpop.f32.mrf.mxu0
        %v770 = vadd.f32 0.0, %v769
        %v771 = vpop.f32.mrf.mxu0
        %v772 = vadd.f32 0.0, %v771
        %773 = vmatmul.bf16.gmra.mxu0 %v615
        %v774 = vpop.f32.mrf.mxu0
        %v775 = vadd.f32 0.0, %v774
        %v776 = vpop.f32.mrf.mxu0
        %v777 = vadd.f32 0.0, %v776
        %778 = vmatmul.bf16.gmra.mxu0 %v618
        %v779 = vpop.f32.mrf.mxu0
        %v780 = vadd.f32 0.0, %v779
        %v781 = vpop.f32.mrf.mxu0
        %v782 = vadd.f32 0.0, %v781
        %783 = vmatmul.bf16.gmra.mxu0 %v621
        %v784 = vpop.f32.mrf.mxu0
        %v785 = vadd.f32 0.0, %v784
        %v786 = vpop.f32.mrf.mxu0
        %v787 = vadd.f32 0.0, %v786
        %788 = vmatmul.bf16.gmra.mxu0 %v624
        %v789 = vpop.f32.mrf.mxu0
        %v790 = vadd.f32 0.0, %v789
        %v791 = vpop.f32.mrf.mxu0
        %v792 = vadd.f32 0.0, %v791
        %793 = vmatmul.bf16.gmra.mxu0 %v627
        %v794 = vpop.f32.mrf.mxu0
        %v795 = vadd.f32 0.0, %v794
        %v796 = vpop.f32.mrf.mxu0
        %v797 = vadd.f32 0.0, %v796
        %798 = vmatmul.bf16.gmra.mxu0 %v630
        %v799 = vpop.f32.mrf.mxu0
        %v800 = vadd.f32 0.0, %v799
        %v801 = vpop.f32.mrf.mxu0
        %v802 = vadd.f32 0.0, %v801
        %803 = vmatmul.bf16.gmra.mxu0 %v633
        %v804 = vpop.f32.mrf.mxu0
        %v805 = vadd.f32 0.0, %v804
        %v806 = vpop.f32.mrf.mxu0
        %v807 = vadd.f32 0.0, %v806
        %808 = vmatmul.bf16.gmra.mxu0 %v636
        %v809 = vpop.f32.mrf.mxu0
        %v810 = vadd.f32 0.0, %v809
        %v811 = vpop.f32.mrf.mxu0
        %v812 = vadd.f32 0.0, %v811
        %813 = vmatmul.bf16.gmra.mxu0 %v639
        %v814 = vpop.f32.mrf.mxu0
        %v815 = vadd.f32 0.0, %v814
        %v816 = vpop.f32.mrf.mxu0
        %v817 = vadd.f32 0.0, %v816
        %818 = vdwg.mxu0
        %v819 = vadd.f32 %v368, %v651
        %v820 = vadd.f32 %v369, %v740
        %v821 = vadd.f32 %v370, %v653
        %v822 = vadd.f32 %v371, %v742
        %v823 = vadd.f32 %v372, %v656
        %v824 = vadd.f32 %v373, %v745
        %v825 = vadd.f32 %v374, %v658
        %v826 = vadd.f32 %v375, %v747
        %v827 = vadd.f32 %v376, %v661
        %v828 = vadd.f32 %v377, %v750
        %v829 = vadd.f32 %v378, %v663
        %v830 = vadd.f32 %v379, %v752
        %v831 = vadd.f32 %v380, %v666
        %v832 = vadd.f32 %v381, %v755
        %v833 = vadd.f32 %v382, %v668
        %v834 = vadd.f32 %v383, %v757
        %v835 = vadd.f32 %v384, %v671
        %v836 = vadd.f32 %v385, %v760
        %v837 = vadd.f32 %v386, %v673
        %v838 = vadd.f32 %v387, %v762
        %v839 = vadd.f32 %v388, %v676
        %v840 = vadd.f32 %v389, %v765
        %v841 = vadd.f32 %v390, %v678
        %v842 = vadd.f32 %v391, %v767
        %v843 = vadd.f32 %v392, %v681
        %v844 = vadd.f32 %v393, %v770
        %v845 = vadd.f32 %v394, %v683
        %v846 = vadd.f32 %v395, %v772
        %v847 = vadd.f32 %v396, %v686
        %v848 = vadd.f32 %v397, %v775
        %v849 = vadd.f32 %v398, %v688
        %v850 = vadd.f32 %v399, %v777
        %v851 = vadd.f32 %v400, %v691
        %v852 = vadd.f32 %v401, %v780
        %v853 = vadd.f32 %v402, %v693
        %v854 = vadd.f32 %v403, %v782
        %v855 = vadd.f32 %v404, %v696
        %v856 = vadd.f32 %v405, %v785
        %v857 = vadd.f32 %v406, %v698
        %v858 = vadd.f32 %v407, %v787
        %v859 = vadd.f32 %v408, %v701
        %v860 = vadd.f32 %v409, %v790
        %v861 = vadd.f32 %v410, %v703
        %v862 = vadd.f32 %v411, %v792
        %v863 = vadd.f32 %v412, %v706
        %v864 = vadd.f32 %v413, %v795
        %v865 = vadd.f32 %v414, %v708
        %v866 = vadd.f32 %v415, %v797
        %v867 = vadd.f32 %v416, %v711
        %v868 = vadd.f32 %v417, %v800
        %v869 = vadd.f32 %v418, %v713
        %v870 = vadd.f32 %v419, %v802
        %v871 = vadd.f32 %v420, %v716
        %v872 = vadd.f32 %v421, %v805
        %v873 = vadd.f32 %v422, %v718
        %v874 = vadd.f32 %v423, %v807
        %v875 = vadd.f32 %v424, %v721
        %v876 = vadd.f32 %v425, %v810
        %v877 = vadd.f32 %v426, %v723
        %v878 = vadd.f32 %v427, %v812
        %v879 = vadd.f32 %v428, %v726
        %v880 = vadd.f32 %v429, %v815
        %v881 = vadd.f32 %v430, %v728
        %v882 = vadd.f32 %v431, %v817
        %883 = vst [vmem:[#allocation2] sm:$0xff] %v819
        %884 = vst [vmem:[#allocation2 + $0x8] sm:$0xff] %v820
        %885 = vst [vmem:[#allocation2 + $0x10] sm:$0xff] %v821
        %886 = vst [vmem:[#allocation2 + $0x18] sm:$0xff] %v822
        %887 = vst [vmem:[#allocation2 + $0x20] sm:$0xff] %v823
        %888 = vst [vmem:[#allocation2 + $0x28] sm:$0xff] %v824
        %889 = vst [vmem:[#allocation2 + $0x30] sm:$0xff] %v825
        %890 = vst [vmem:[#allocation2 + $0x38] sm:$0xff] %v826
        %891 = vst [vmem:[#allocation2 + $0x40] sm:$0xff] %v827
        %892 = vst [vmem:[#allocation2 + $0x48] sm:$0xff] %v828
        %893 = vst [vmem:[#allocation2 + $0x50] sm:$0xff] %v829
        %894 = vst [vmem:[#allocation2 + $0x58] sm:$0xff] %v830
        %895 = vst [vmem:[#allocation2 + $0x60] sm:$0xff] %v831
        %896 = vst [vmem:[#allocation2 + $0x68] sm:$0xff] %v832
        %897 = vst [vmem:[#allocation2 + $0x70] sm:$0xff] %v833
        %898 = vst [vmem:[#allocation2 + $0x78] sm:$0xff] %v834
        %899 = vst [vmem:[#allocation2 + $0x80] sm:$0xff] %v835
        %900 = vst [vmem:[#allocation2 + $0x88] sm:$0xff] %v836
        %901 = vst [vmem:[#allocation2 + $0x90] sm:$0xff] %v837
        %902 = vst [vmem:[#allocation2 + $0x98] sm:$0xff] %v838
        %903 = vst [vmem:[#allocation2 + $0xa0] sm:$0xff] %v839
        %904 = vst [vmem:[#allocation2 + $0xa8] sm:$0xff] %v840
        %905 = vst [vmem:[#allocation2 + $0xb0] sm:$0xff] %v841
        %906 = vst [vmem:[#allocation2 + $0xb8] sm:$0xff] %v842
        %907 = vst [vmem:[#allocation2 + $0xc0] sm:$0xff] %v843
        %908 = vst [vmem:[#allocation2 + $0xc8] sm:$0xff] %v844
        %909 = vst [vmem:[#allocation2 + $0xd0] sm:$0xff] %v845
        %910 = vst [vmem:[#allocation2 + $0xd8] sm:$0xff] %v846
        %911 = vst [vmem:[#allocation2 + $0xe0] sm:$0xff] %v847
        %912 = vst [vmem:[#allocation2 + $0xe8] sm:$0xff] %v848
        %913 = vst [vmem:[#allocation2 + $0xf0] sm:$0xff] %v849
        %914 = vst [vmem:[#allocation2 + $0xf8] sm:$0xff] %v850
        %915 = vst [vmem:[#allocation2 + $0x100] sm:$0xff] %v851
        %916 = vst [vmem:[#allocation2 + $0x108] sm:$0xff] %v852
        %917 = vst [vmem:[#allocation2 + $0x110] sm:$0xff] %v853
        %918 = vst [vmem:[#allocation2 + $0x118] sm:$0xff] %v854
        %919 = vst [vmem:[#allocation2 + $0x120] sm:$0xff] %v855
        %920 = vst [vmem:[#allocation2 + $0x128] sm:$0xff] %v856
        %921 = vst [vmem:[#allocation2 + $0x130] sm:$0xff] %v857
        %922 = vst [vmem:[#allocation2 + $0x138] sm:$0xff] %v858
        %923 = vst [vmem:[#allocation2 + $0x140] sm:$0xff] %v859
        %924 = vst [vmem:[#allocation2 + $0x148] sm:$0xff] %v860
        %925 = vst [vmem:[#allocation2 + $0x150] sm:$0xff] %v861
        %926 = vst [vmem:[#allocation2 + $0x158] sm:$0xff] %v862
        %927 = vst [vmem:[#allocation2 + $0x160] sm:$0xff] %v863
        %928 = vst [vmem:[#allocation2 + $0x168] sm:$0xff] %v864
        %929 = vst [vmem:[#allocation2 + $0x170] sm:$0xff] %v865
        %930 = vst [vmem:[#allocation2 + $0x178] sm:$0xff] %v866
        %931 = vst [vmem:[#allocation2 + $0x180] sm:$0xff] %v867
        %932 = vst [vmem:[#allocation2 + $0x188] sm:$0xff] %v868
        %933 = vst [vmem:[#allocation2 + $0x190] sm:$0xff] %v869
        %934 = vst [vmem:[#allocation2 + $0x198] sm:$0xff] %v870
        %935 = vst [vmem:[#allocation2 + $0x1a0] sm:$0xff] %v871
        %936 = vst [vmem:[#allocation2 + $0x1a8] sm:$0xff] %v872
        %937 = vst [vmem:[#allocation2 + $0x1b0] sm:$0xff] %v873
        %938 = vst [vmem:[#allocation2 + $0x1b8] sm:$0xff] %v874
        %939 = vst [vmem:[#allocation2 + $0x1c0] sm:$0xff] %v875
        %940 = vst [vmem:[#allocation2 + $0x1c8] sm:$0xff] %v876
        %941 = vst [vmem:[#allocation2 + $0x1d0] sm:$0xff] %v877
        %942 = vst [vmem:[#allocation2 + $0x1d8] sm:$0xff] %v878
        %943 = vst [vmem:[#allocation2 + $0x1e0] sm:$0xff] %v879
        %944 = vst [vmem:[#allocation2 + $0x1e8] sm:$0xff] %v880
        %945 = vst [vmem:[#allocation2 + $0x1f0] sm:$0xff] %v881
        %946 = vst [vmem:[#allocation2 + $0x1f8] sm:$0xff] %v882
        // Predicated region
        $region45: #{_lambda_.7} parent=39 // pred_check
          %p947 = pneg %p300
        $region46: #{_lambda_.7} parent=39 // pred_check_branch
          %949 = sbr.rel (%p947) target = $region48
        $region47: #{_lambda_.7} parent=39 // pred_region
          %v950 = vld [vmem:[#allocation2] sm:$0xff]
          %v951 = vld [vmem:[#allocation2 + $0x8] sm:$0xff]
          %v952 = vld [vmem:[#allocation2 + $0x10] sm:$0xff]
          %v953 = vld [vmem:[#allocation2 + $0x18] sm:$0xff]
          %v954 = vld [vmem:[#allocation2 + $0x20] sm:$0xff]
          %v955 = vld [vmem:[#allocation2 + $0x28] sm:$0xff]
          %v956 = vld [vmem:[#allocation2 + $0x30] sm:$0xff]
          %v957 = vld [vmem:[#allocation2 + $0x38] sm:$0xff]
          %v958 = vld [vmem:[#allocation2 + $0x40] sm:$0xff]
          %v959 = vld [vmem:[#allocation2 + $0x48] sm:$0xff]
          %v960 = vld [vmem:[#allocation2 + $0x50] sm:$0xff]
          %v961 = vld [vmem:[#allocation2 + $0x58] sm:$0xff]
          %v962 = vld [vmem:[#allocation2 + $0x60] sm:$0xff]
          %v963 = vld [vmem:[#allocation2 + $0x68] sm:$0xff]
          %v964 = vld [vmem:[#allocation2 + $0x70] sm:$0xff]
          %v965 = vld [vmem:[#allocation2 + $0x78] sm:$0xff]
          %v966 = vld [vmem:[#allocation2 + $0x80] sm:$0xff]
          %v967 = vld [vmem:[#allocation2 + $0x88] sm:$0xff]
          %v968 = vld [vmem:[#allocation2 + $0x90] sm:$0xff]
          %v969 = vld [vmem:[#allocation2 + $0x98] sm:$0xff]
          %v970 = vld [vmem:[#allocation2 + $0xa0] sm:$0xff]
          %v971 = vld [vmem:[#allocation2 + $0xa8] sm:$0xff]
          %v972 = vld [vmem:[#allocation2 + $0xb0] sm:$0xff]
          %v973 = vld [vmem:[#allocation2 + $0xb8] sm:$0xff]
          %v974 = vld [vmem:[#allocation2 + $0xc0] sm:$0xff]
          %v975 = vld [vmem:[#allocation2 + $0xc8] sm:$0xff]
          %v976 = vld [vmem:[#allocation2 + $0xd0] sm:$0xff]
          %v977 = vld [vmem:[#allocation2 + $0xd8] sm:$0xff]
          %v978 = vld [vmem:[#allocation2 + $0xe0] sm:$0xff]
          %v979 = vld [vmem:[#allocation2 + $0xe8] sm:$0xff]
          %v980 = vld [vmem:[#allocation2 + $0xf0] sm:$0xff]
          %v981 = vld [vmem:[#allocation2 + $0xf8] sm:$0xff]
          %v982 = vld [vmem:[#allocation2 + $0x100] sm:$0xff]
          %v983 = vld [vmem:[#allocation2 + $0x108] sm:$0xff]
          %v984 = vld [vmem:[#allocation2 + $0x110] sm:$0xff]
          %v985 = vld [vmem:[#allocation2 + $0x118] sm:$0xff]
          %v986 = vld [vmem:[#allocation2 + $0x120] sm:$0xff]
          %v987 = vld [vmem:[#allocation2 + $0x128] sm:$0xff]
          %v988 = vld [vmem:[#allocation2 + $0x130] sm:$0xff]
          %v989 = vld [vmem:[#allocation2 + $0x138] sm:$0xff]
          %v990 = vld [vmem:[#allocation2 + $0x140] sm:$0xff]
          %v991 = vld [vmem:[#allocation2 + $0x148] sm:$0xff]
          %v992 = vld [vmem:[#allocation2 + $0x150] sm:$0xff]
          %v993 = vld [vmem:[#allocation2 + $0x158] sm:$0xff]
          %v994 = vld [vmem:[#allocation2 + $0x160] sm:$0xff]
          %v995 = vld [vmem:[#allocation2 + $0x168] sm:$0xff]
          %v996 = vld [vmem:[#allocation2 + $0x170] sm:$0xff]
          %v997 = vld [vmem:[#allocation2 + $0x178] sm:$0xff]
          %v998 = vld [vmem:[#allocation2 + $0x180] sm:$0xff]
          %v999 = vld [vmem:[#allocation2 + $0x188] sm:$0xff]
          %v1000 = vld [vmem:[#allocation2 + $0x190] sm:$0xff]
          %v1001 = vld [vmem:[#allocation2 + $0x198] sm:$0xff]
          %v1002 = vld [vmem:[#allocation2 + $0x1a0] sm:$0xff]
          %v1003 = vld [vmem:[#allocation2 + $0x1a8] sm:$0xff]
          %v1004 = vld [vmem:[#allocation2 + $0x1b0] sm:$0xff]
          %v1005 = vld [vmem:[#allocation2 + $0x1b8] sm:$0xff]
          %v1006 = vld [vmem:[#allocation2 + $0x1c0] sm:$0xff]
          %v1007 = vld [vmem:[#allocation2 + $0x1c8] sm:$0xff]
          %v1008 = vld [vmem:[#allocation2 + $0x1d0] sm:$0xff]
          %v1009 = vld [vmem:[#allocation2 + $0x1d8] sm:$0xff]
          %v1010 = vld [vmem:[#allocation2 + $0x1e0] sm:$0xff]
          %v1011 = vld [vmem:[#allocation2 + $0x1e8] sm:$0xff]
          %v1012 = vld [vmem:[#allocation2 + $0x1f0] sm:$0xff]
          %v1013 = vld [vmem:[#allocation2 + $0x1f8] sm:$0xff]
          %v1014 = vld [vmem:[%s2] sm:$0x3]
          %v1016 = vperm.slane %v1014, 0
          %v1017 = vperm.slane %v1014, 1
          %v1020 = vmul.f32 %v950, %v1016
          %v1021 = vmul.f32 %v951, %v1017
          %v1022 = vmul.f32 %v952, %v1016
          %v1023 = vmul.f32 %v953, %v1017
          %v1024 = vmul.f32 %v954, %v1016
          %v1025 = vmul.f32 %v955, %v1017
          %v1026 = vmul.f32 %v956, %v1016
          %v1027 = vmul.f32 %v957, %v1017
          %v1028 = vmul.f32 %v958, %v1016
          %v1029 = vmul.f32 %v959, %v1017
          %v1030 = vmul.f32 %v960, %v1016
          %v1031 = vmul.f32 %v961, %v1017
          %v1032 = vmul.f32 %v962, %v1016
          %v1033 = vmul.f32 %v963, %v1017
          %v1034 = vmul.f32 %v964, %v1016
          %v1035 = vmul.f32 %v965, %v1017
          %v1036 = vmul.f32 %v966, %v1016
          %v1037 = vmul.f32 %v967, %v1017
          %v1038 = vmul.f32 %v968, %v1016
          %v1039 = vmul.f32 %v969, %v1017
          %v1040 = vmul.f32 %v970, %v1016
          %v1041 = vmul.f32 %v971, %v1017
          %v1042 = vmul.f32 %v972, %v1016
          %v1043 = vmul.f32 %v973, %v1017
          %v1044 = vmul.f32 %v974, %v1016
          %v1045 = vmul.f32 %v975, %v1017
          %v1046 = vmul.f32 %v976, %v1016
          %v1047 = vmul.f32 %v977, %v1017
          %v1048 = vmul.f32 %v978, %v1016
          %v1049 = vmul.f32 %v979, %v1017
          %v1050 = vmul.f32 %v980, %v1016
          %v1051 = vmul.f32 %v981, %v1017
          %v1052 = vmul.f32 %v982, %v1016
          %v1053 = vmul.f32 %v983, %v1017
          %v1054 = vmul.f32 %v984, %v1016
          %v1055 = vmul.f32 %v985, %v1017
          %v1056 = vmul.f32 %v986, %v1016
          %v1057 = vmul.f32 %v987, %v1017
          %v1058 = vmul.f32 %v988, %v1016
          %v1059 = vmul.f32 %v989, %v1017
          %v1060 = vmul.f32 %v990, %v1016
          %v1061 = vmul.f32 %v991, %v1017
          %v1062 = vmul.f32 %v992, %v1016
          %v1063 = vmul.f32 %v993, %v1017
          %v1064 = vmul.f32 %v994, %v1016
          %v1065 = vmul.f32 %v995, %v1017
          %v1066 = vmul.f32 %v996, %v1016
          %v1067 = vmul.f32 %v997, %v1017
          %v1068 = vmul.f32 %v998, %v1016
          %v1069 = vmul.f32 %v999, %v1017
          %v1070 = vmul.f32 %v1000, %v1016
          %v1071 = vmul.f32 %v1001, %v1017
          %v1072 = vmul.f32 %v1002, %v1016
          %v1073 = vmul.f32 %v1003, %v1017
          %v1074 = vmul.f32 %v1004, %v1016
          %v1075 = vmul.f32 %v1005, %v1017
          %v1076 = vmul.f32 %v1006, %v1016
          %v1077 = vmul.f32 %v1007, %v1017
          %v1078 = vmul.f32 %v1008, %v1016
          %v1079 = vmul.f32 %v1009, %v1017
          %v1080 = vmul.f32 %v1010, %v1016
          %v1081 = vmul.f32 %v1011, %v1017
          %v1082 = vmul.f32 %v1012, %v1016
          %v1083 = vmul.f32 %v1013, %v1017
          %v1084 = vld [vmem:[%s3] sm:$0x3]
          %v1086 = vperm.slane %v1084, 0
          %v1087 = vperm.slane %v1084, 1
          %v1090 = vadd.f32 %v1020, %v1086
          %v1091 = vadd.f32 %v1021, %v1087
          %v1092 = vadd.f32 %v1022, %v1086
          %v1093 = vadd.f32 %v1023, %v1087
          %v1094 = vadd.f32 %v1024, %v1086
          %v1095 = vadd.f32 %v1025, %v1087
          %v1096 = vadd.f32 %v1026, %v1086
          %v1097 = vadd.f32 %v1027, %v1087
          %v1098 = vadd.f32 %v1028, %v1086
          %v1099 = vadd.f32 %v1029, %v1087
          %v1100 = vadd.f32 %v1030, %v1086
          %v1101 = vadd.f32 %v1031, %v1087
          %v1102 = vadd.f32 %v1032, %v1086
          %v1103 = vadd.f32 %v1033, %v1087
          %v1104 = vadd.f32 %v1034, %v1086
          %v1105 = vadd.f32 %v1035, %v1087
          %v1106 = vadd.f32 %v1036, %v1086
          %v1107 = vadd.f32 %v1037, %v1087
          %v1108 = vadd.f32 %v1038, %v1086
          %v1109 = vadd.f32 %v1039, %v1087
          %v1110 = vadd.f32 %v1040, %v1086
          %v1111 = vadd.f32 %v1041, %v1087
          %v1112 = vadd.f32 %v1042, %v1086
          %v1113 = vadd.f32 %v1043, %v1087
          %v1114 = vadd.f32 %v1044, %v1086
          %v1115 = vadd.f32 %v1045, %v1087
          %v1116 = vadd.f32 %v1046, %v1086
          %v1117 = vadd.f32 %v1047, %v1087
          %v1118 = vadd.f32 %v1048, %v1086
          %v1119 = vadd.f32 %v1049, %v1087
          %v1120 = vadd.f32 %v1050, %v1086
          %v1121 = vadd.f32 %v1051, %v1087
          %v1122 = vadd.f32 %v1052, %v1086
          %v1123 = vadd.f32 %v1053, %v1087
          %v1124 = vadd.f32 %v1054, %v1086
          %v1125 = vadd.f32 %v1055, %v1087
          %v1126 = vadd.f32 %v1056, %v1086
          %v1127 = vadd.f32 %v1057, %v1087
          %v1128 = vadd.f32 %v1058, %v1086
          %v1129 = vadd.f32 %v1059, %v1087
          %v1130 = vadd.f32 %v1060, %v1086
          %v1131 = vadd.f32 %v1061, %v1087
          %v1132 = vadd.f32 %v1062, %v1086
          %v1133 = vadd.f32 %v1063, %v1087
          %v1134 = vadd.f32 %v1064, %v1086
          %v1135 = vadd.f32 %v1065, %v1087
          %v1136 = vadd.f32 %v1066, %v1086
          %v1137 = vadd.f32 %v1067, %v1087
          %v1138 = vadd.f32 %v1068, %v1086
          %v1139 = vadd.f32 %v1069, %v1087
          %v1140 = vadd.f32 %v1070, %v1086
          %v1141 = vadd.f32 %v1071, %v1087
          %v1142 = vadd.f32 %v1072, %v1086
          %v1143 = vadd.f32 %v1073, %v1087
          %v1144 = vadd.f32 %v1074, %v1086
          %v1145 = vadd.f32 %v1075, %v1087
          %v1146 = vadd.f32 %v1076, %v1086
          %v1147 = vadd.f32 %v1077, %v1087
          %v1148 = vadd.f32 %v1078, %v1086
          %v1149 = vadd.f32 %v1079, %v1087
          %v1150 = vadd.f32 %v1080, %v1086
          %v1151 = vadd.f32 %v1081, %v1087
          %v1152 = vadd.f32 %v1082, %v1086
          %v1153 = vadd.f32 %v1083, %v1087
          %v1154 = vld [vmem:[%s296] sm:$0xff]
          %v1155 = vld [vmem:[%s296 + $0x8] sm:$0xff]
          %v1156 = vld [vmem:[%s296 + $0x10] sm:$0xff]
          %v1157 = vld [vmem:[%s296 + $0x18] sm:$0xff]
          %v1158 = vld [vmem:[%s296 + $0x20] sm:$0xff]
          %v1159 = vld [vmem:[%s296 + $0x28] sm:$0xff]
          %v1160 = vld [vmem:[%s296 + $0x30] sm:$0xff]
          %v1161 = vld [vmem:[%s296 + $0x38] sm:$0xff]
          %v1162 = vld [vmem:[%s296 + $0x40] sm:$0xff]
          %v1163 = vld [vmem:[%s296 + $0x48] sm:$0xff]
          %v1164 = vld [vmem:[%s296 + $0x50] sm:$0xff]
          %v1165 = vld [vmem:[%s296 + $0x58] sm:$0xff]
          %v1166 = vld [vmem:[%s296 + $0x60] sm:$0xff]
          %v1167 = vld [vmem:[%s296 + $0x68] sm:$0xff]
          %v1168 = vld [vmem:[%s296 + $0x70] sm:$0xff]
          %v1169 = vld [vmem:[%s296 + $0x78] sm:$0xff]
          %v1170 = vld [vmem:[%s296 + $0x80] sm:$0xff]
          %v1171 = vld [vmem:[%s296 + $0x88] sm:$0xff]
          %v1172 = vld [vmem:[%s296 + $0x90] sm:$0xff]
          %v1173 = vld [vmem:[%s296 + $0x98] sm:$0xff]
          %v1174 = vld [vmem:[%s296 + $0xa0] sm:$0xff]
          %v1175 = vld [vmem:[%s296 + $0xa8] sm:$0xff]
          %v1176 = vld [vmem:[%s296 + $0xb0] sm:$0xff]
          %v1177 = vld [vmem:[%s296 + $0xb8] sm:$0xff]
          %v1178 = vld [vmem:[%s296 + $0xc0] sm:$0xff]
          %v1179 = vld [vmem:[%s296 + $0xc8] sm:$0xff]
          %v1180 = vld [vmem:[%s296 + $0xd0] sm:$0xff]
          %v1181 = vld [vmem:[%s296 + $0xd8] sm:$0xff]
          %v1182 = vld [vmem:[%s296 + $0xe0] sm:$0xff]
          %v1183 = vld [vmem:[%s296 + $0xe8] sm:$0xff]
          %v1184 = vld [vmem:[%s296 + $0xf0] sm:$0xff]
          %v1185 = vld [vmem:[%s296 + $0xf8] sm:$0xff]
          %v1186 = vunpack.c.l.bf16 %v1154
          %v1187 = vunpack.c.h.bf16 %v1154
          %v1188 = vunpack.c.l.bf16 %v1155
          %v1189 = vunpack.c.h.bf16 %v1155
          %v1190 = vunpack.c.l.bf16 %v1156
          %v1191 = vunpack.c.h.bf16 %v1156
          %v1192 = vunpack.c.l.bf16 %v1157
          %v1193 = vunpack.c.h.bf16 %v1157
          %v1194 = vunpack.c.l.bf16 %v1158
          %v1195 = vunpack.c.h.bf16 %v1158
          %v1196 = vunpack.c.l.bf16 %v1159
          %v1197 = vunpack.c.h.bf16 %v1159
          %v1198 = vunpack.c.l.bf16 %v1160
          %v1199 = vunpack.c.h.bf16 %v1160
          %v1200 = vunpack.c.l.bf16 %v1161
          %v1201 = vunpack.c.h.bf16 %v1161
          %v1202 = vunpack.c.l.bf16 %v1162
          %v1203 = vunpack.c.h.bf16 %v1162
          %v1204 = vunpack.c.l.bf16 %v1163
          %v1205 = vunpack.c.h.bf16 %v1163
          %v1206 = vunpack.c.l.bf16 %v1164
          %v1207 = vunpack.c.h.bf16 %v1164
          %v1208 = vunpack.c.l.bf16 %v1165
          %v1209 = vunpack.c.h.bf16 %v1165
          %v1210 = vunpack.c.l.bf16 %v1166
          %v1211 = vunpack.c.h.bf16 %v1166
          %v1212 = vunpack.c.l.bf16 %v1167
          %v1213 = vunpack.c.h.bf16 %v1167
          %v1214 = vunpack.c.l.bf16 %v1168
          %v1215 = vunpack.c.h.bf16 %v1168
          %v1216 = vunpack.c.l.bf16 %v1169
          %v1217 = vunpack.c.h.bf16 %v1169
          %v1218 = vunpack.c.l.bf16 %v1170
          %v1219 = vunpack.c.h.bf16 %v1170
          %v1220 = vunpack.c.l.bf16 %v1171
          %v1221 = vunpack.c.h.bf16 %v1171
          %v1222 = vunpack.c.l.bf16 %v1172
          %v1223 = vunpack.c.h.bf16 %v1172
          %v1224 = vunpack.c.l.bf16 %v1173
          %v1225 = vunpack.c.h.bf16 %v1173
          %v1226 = vunpack.c.l.bf16 %v1174
          %v1227 = vunpack.c.h.bf16 %v1174
          %v1228 = vunpack.c.l.bf16 %v1175
          %v1229 = vunpack.c.h.bf16 %v1175
          %v1230 = vunpack.c.l.bf16 %v1176
          %v1231 = vunpack.c.h.bf16 %v1176
          %v1232 = vunpack.c.l.bf16 %v1177
          %v1233 = vunpack.c.h.bf16 %v1177
          %v1234 = vunpack.c.l.bf16 %v1178
          %v1235 = vunpack.c.h.bf16 %v1178
          %v1236 = vunpack.c.l.bf16 %v1179
          %v1237 = vunpack.c.h.bf16 %v1179
          %v1238 = vunpack.c.l.bf16 %v1180
          %v1239 = vunpack.c.h.bf16 %v1180
          %v1240 = vunpack.c.l.bf16 %v1181
          %v1241 = vunpack.c.h.bf16 %v1181
          %v1242 = vunpack.c.l.bf16 %v1182
          %v1243 = vunpack.c.h.bf16 %v1182
          %v1244 = vunpack.c.l.bf16 %v1183
          %v1245 = vunpack.c.h.bf16 %v1183
          %v1246 = vunpack.c.l.bf16 %v1184
          %v1247 = vunpack.c.h.bf16 %v1184
          %v1248 = vunpack.c.l.bf16 %v1185
          %v1249 = vunpack.c.h.bf16 %v1185
          %v1250 = vadd.f32 %v1090, %v1186
          %v1251 = vadd.f32 %v1091, %v1187
          %v1252 = vadd.f32 %v1092, %v1188
          %v1253 = vadd.f32 %v1093, %v1189
          %v1254 = vadd.f32 %v1094, %v1190
          %v1255 = vadd.f32 %v1095, %v1191
          %v1256 = vadd.f32 %v1096, %v1192
          %v1257 = vadd.f32 %v1097, %v1193
          %v1258 = vadd.f32 %v1098, %v1194
          %v1259 = vadd.f32 %v1099, %v1195
          %v1260 = vadd.f32 %v1100, %v1196
          %v1261 = vadd.f32 %v1101, %v1197
          %v1262 = vadd.f32 %v1102, %v1198
          %v1263 = vadd.f32 %v1103, %v1199
          %v1264 = vadd.f32 %v1104, %v1200
          %v1265 = vadd.f32 %v1105, %v1201
          %v1266 = vadd.f32 %v1106, %v1202
          %v1267 = vadd.f32 %v1107, %v1203
          %v1268 = vadd.f32 %v1108, %v1204
          %v1269 = vadd.f32 %v1109, %v1205
          %v1270 = vadd.f32 %v1110, %v1206
          %v1271 = vadd.f32 %v1111, %v1207
          %v1272 = vadd.f32 %v1112, %v1208
          %v1273 = vadd.f32 %v1113, %v1209
          %v1274 = vadd.f32 %v1114, %v1210
          %v1275 = vadd.f32 %v1115, %v1211
          %v1276 = vadd.f32 %v1116, %v1212
          %v1277 = vadd.f32 %v1117, %v1213
          %v1278 = vadd.f32 %v1118, %v1214
          %v1279 = vadd.f32 %v1119, %v1215
          %v1280 = vadd.f32 %v1120, %v1216
          %v1281 = vadd.f32 %v1121, %v1217
          %v1282 = vadd.f32 %v1122, %v1218
          %v1283 = vadd.f32 %v1123, %v1219
          %v1284 = vadd.f32 %v1124, %v1220
          %v1285 = vadd.f32 %v1125, %v1221
          %v1286 = vadd.f32 %v1126, %v1222
          %v1287 = vadd.f32 %v1127, %v1223
          %v1288 = vadd.f32 %v1128, %v1224
          %v1289 = vadd.f32 %v1129, %v1225
          %v1290 = vadd.f32 %v1130, %v1226
          %v1291 = vadd.f32 %v1131, %v1227
          %v1292 = vadd.f32 %v1132, %v1228
          %v1293 = vadd.f32 %v1133, %v1229
          %v1294 = vadd.f32 %v1134, %v1230
          %v1295 = vadd.f32 %v1135, %v1231
          %v1296 = vadd.f32 %v1136, %v1232
          %v1297 = vadd.f32 %v1137, %v1233
          %v1298 = vadd.f32 %v1138, %v1234
          %v1299 = vadd.f32 %v1139, %v1235
          %v1300 = vadd.f32 %v1140, %v1236
          %v1301 = vadd.f32 %v1141, %v1237
          %v1302 = vadd.f32 %v1142, %v1238
          %v1303 = vadd.f32 %v1143, %v1239
          %v1304 = vadd.f32 %v1144, %v1240
          %v1305 = vadd.f32 %v1145, %v1241
          %v1306 = vadd.f32 %v1146, %v1242
          %v1307 = vadd.f32 %v1147, %v1243
          %v1308 = vadd.f32 %v1148, %v1244
          %v1309 = vadd.f32 %v1149, %v1245
          %v1310 = vadd.f32 %v1150, %v1246
          %v1311 = vadd.f32 %v1151, %v1247
          %v1312 = vadd.f32 %v1152, %v1248
          %v1313 = vadd.f32 %v1153, %v1249
          %v1314 = vmax.f32 %v1250, 0.0
          %v1315 = vmax.f32 %v1251, 0.0
          %v1316 = vmax.f32 %v1252, 0.0
          %v1317 = vmax.f32 %v1253, 0.0
          %v1318 = vmax.f32 %v1254, 0.0
          %v1319 = vmax.f32 %v1255, 0.0
          %v1320 = vmax.f32 %v1256, 0.0
          %v1321 = vmax.f32 %v1257, 0.0
          %v1322 = vmax.f32 %v1258, 0.0
          %v1323 = vmax.f32 %v1259, 0.0
          %v1324 = vmax.f32 %v1260, 0.0
          %v1325 = vmax.f32 %v1261, 0.0
          %v1326 = vmax.f32 %v1262, 0.0
          %v1327 = vmax.f32 %v1263, 0.0
          %v1328 = vmax.f32 %v1264, 0.0
          %v1329 = vmax.f32 %v1265, 0.0
          %v1330 = vmax.f32 %v1266, 0.0
          %v1331 = vmax.f32 %v1267, 0.0
          %v1332 = vmax.f32 %v1268, 0.0
          %v1333 = vmax.f32 %v1269, 0.0
          %v1334 = vmax.f32 %v1270, 0.0
          %v1335 = vmax.f32 %v1271, 0.0
          %v1336 = vmax.f32 %v1272, 0.0
          %v1337 = vmax.f32 %v1273, 0.0
          %v1338 = vmax.f32 %v1274, 0.0
          %v1339 = vmax.f32 %v1275, 0.0
          %v1340 = vmax.f32 %v1276, 0.0
          %v1341 = vmax.f32 %v1277, 0.0
          %v1342 = vmax.f32 %v1278, 0.0
          %v1343 = vmax.f32 %v1279, 0.0
          %v1344 = vmax.f32 %v1280, 0.0
          %v1345 = vmax.f32 %v1281, 0.0
          %v1346 = vmax.f32 %v1282, 0.0
          %v1347 = vmax.f32 %v1283, 0.0
          %v1348 = vmax.f32 %v1284, 0.0
          %v1349 = vmax.f32 %v1285, 0.0
          %v1350 = vmax.f32 %v1286, 0.0
          %v1351 = vmax.f32 %v1287, 0.0
          %v1352 = vmax.f32 %v1288, 0.0
          %v1353 = vmax.f32 %v1289, 0.0
          %v1354 = vmax.f32 %v1290, 0.0
          %v1355 = vmax.f32 %v1291, 0.0
          %v1356 = vmax.f32 %v1292, 0.0
          %v1357 = vmax.f32 %v1293, 0.0
          %v1358 = vmax.f32 %v1294, 0.0
          %v1359 = vmax.f32 %v1295, 0.0
          %v1360 = vmax.f32 %v1296, 0.0
          %v1361 = vmax.f32 %v1297, 0.0
          %v1362 = vmax.f32 %v1298, 0.0
          %v1363 = vmax.f32 %v1299, 0.0
          %v1364 = vmax.f32 %v1300, 0.0
          %v1365 = vmax.f32 %v1301, 0.0
          %v1366 = vmax.f32 %v1302, 0.0
          %v1367 = vmax.f32 %v1303, 0.0
          %v1368 = vmax.f32 %v1304, 0.0
          %v1369 = vmax.f32 %v1305, 0.0
          %v1370 = vmax.f32 %v1306, 0.0
          %v1371 = vmax.f32 %v1307, 0.0
          %v1372 = vmax.f32 %v1308, 0.0
          %v1373 = vmax.f32 %v1309, 0.0
          %v1374 = vmax.f32 %v1310, 0.0
          %v1375 = vmax.f32 %v1311, 0.0
          %v1376 = vmax.f32 %v1312, 0.0
          %v1377 = vmax.f32 %v1313, 0.0
          %1378 = vst [vmem:[%s274] sm:$0xff] %v1314
          %1379 = vst [vmem:[%s274 + $0x8] sm:$0xff] %v1315
          %1380 = vst [vmem:[%s274 + $0x10] sm:$0xff] %v1316
          %1381 = vst [vmem:[%s274 + $0x18] sm:$0xff] %v1317
          %1382 = vst [vmem:[%s274 + $0x20] sm:$0xff] %v1318
          %1383 = vst [vmem:[%s274 + $0x28] sm:$0xff] %v1319
          %1384 = vst [vmem:[%s274 + $0x30] sm:$0xff] %v1320
          %1385 = vst [vmem:[%s274 + $0x38] sm:$0xff] %v1321
          %1386 = vst [vmem:[%s274 + $0x40] sm:$0xff] %v1322
          %1387 = vst [vmem:[%s274 + $0x48] sm:$0xff] %v1323
          %1388 = vst [vmem:[%s274 + $0x50] sm:$0xff] %v1324
          %1389 = vst [vmem:[%s274 + $0x58] sm:$0xff] %v1325
          %1390 = vst [vmem:[%s274 + $0x60] sm:$0xff] %v1326
          %1391 = vst [vmem:[%s274 + $0x68] sm:$0xff] %v1327
          %1392 = vst [vmem:[%s274 + $0x70] sm:$0xff] %v1328
          %1393 = vst [vmem:[%s274 + $0x78] sm:$0xff] %v1329
          %1394 = vst [vmem:[%s274 + $0x80] sm:$0xff] %v1330
          %1395 = vst [vmem:[%s274 + $0x88] sm:$0xff] %v1331
          %1396 = vst [vmem:[%s274 + $0x90] sm:$0xff] %v1332
          %1397 = vst [vmem:[%s274 + $0x98] sm:$0xff] %v1333
          %1398 = vst [vmem:[%s274 + $0xa0] sm:$0xff] %v1334
          %1399 = vst [vmem:[%s274 + $0xa8] sm:$0xff] %v1335
          %1400 = vst [vmem:[%s274 + $0xb0] sm:$0xff] %v1336
          %1401 = vst [vmem:[%s274 + $0xb8] sm:$0xff] %v1337
          %1402 = vst [vmem:[%s274 + $0xc0] sm:$0xff] %v1338
          %1403 = vst [vmem:[%s274 + $0xc8] sm:$0xff] %v1339
          %1404 = vst [vmem:[%s274 + $0xd0] sm:$0xff] %v1340
          %1405 = vst [vmem:[%s274 + $0xd8] sm:$0xff] %v1341
          %1406 = vst [vmem:[%s274 + $0xe0] sm:$0xff] %v1342
          %1407 = vst [vmem:[%s274 + $0xe8] sm:$0xff] %v1343
          %1408 = vst [vmem:[%s274 + $0xf0] sm:$0xff] %v1344
          %1409 = vst [vmem:[%s274 + $0xf8] sm:$0xff] %v1345
          %1410 = vst [vmem:[%s274 + $0x100] sm:$0xff] %v1346
          %1411 = vst [vmem:[%s274 + $0x108] sm:$0xff] %v1347
          %1412 = vst [vmem:[%s274 + $0x110] sm:$0xff] %v1348
          %1413 = vst [vmem:[%s274 + $0x118] sm:$0xff] %v1349
          %1414 = vst [vmem:[%s274 + $0x120] sm:$0xff] %v1350
          %1415 = vst [vmem:[%s274 + $0x128] sm:$0xff] %v1351
          %1416 = vst [vmem:[%s274 + $0x130] sm:$0xff] %v1352
          %1417 = vst [vmem:[%s274 + $0x138] sm:$0xff] %v1353
          %1418 = vst [vmem:[%s274 + $0x140] sm:$0xff] %v1354
          %1419 = vst [vmem:[%s274 + $0x148] sm:$0xff] %v1355
          %1420 = vst [vmem:[%s274 + $0x150] sm:$0xff] %v1356
          %1421 = vst [vmem:[%s274 + $0x158] sm:$0xff] %v1357
          %1422 = vst [vmem:[%s274 + $0x160] sm:$0xff] %v1358
          %1423 = vst [vmem:[%s274 + $0x168] sm:$0xff] %v1359
          %1424 = vst [vmem:[%s274 + $0x170] sm:$0xff] %v1360
          %1425 = vst [vmem:[%s274 + $0x178] sm:$0xff] %v1361
          %1426 = vst [vmem:[%s274 + $0x180] sm:$0xff] %v1362
          %1427 = vst [vmem:[%s274 + $0x188] sm:$0xff] %v1363
          %1428 = vst [vmem:[%s274 + $0x190] sm:$0xff] %v1364
          %1429 = vst [vmem:[%s274 + $0x198] sm:$0xff] %v1365
          %1430 = vst [vmem:[%s274 + $0x1a0] sm:$0xff] %v1366
          %1431 = vst [vmem:[%s274 + $0x1a8] sm:$0xff] %v1367
          %1432 = vst [vmem:[%s274 + $0x1b0] sm:$0xff] %v1368
          %1433 = vst [vmem:[%s274 + $0x1b8] sm:$0xff] %v1369
          %1434 = vst [vmem:[%s274 + $0x1c0] sm:$0xff] %v1370
          %1435 = vst [vmem:[%s274 + $0x1c8] sm:$0xff] %v1371
          %1436 = vst [vmem:[%s274 + $0x1d0] sm:$0xff] %v1372
          %1437 = vst [vmem:[%s274 + $0x1d8] sm:$0xff] %v1373
          %1438 = vst [vmem:[%s274 + $0x1e0] sm:$0xff] %v1374
          %1439 = vst [vmem:[%s274 + $0x1e8] sm:$0xff] %v1375
          %1440 = vst [vmem:[%s274 + $0x1f0] sm:$0xff] %v1376
          %1441 = vst [vmem:[%s274 + $0x1f8] sm:$0xff] %v1377
        $region48: #{_lambda_.7} parent=39 // pred_fallthru
          _
        %s1442 = sand.u32 %s161, 1
        %s1443 = scalar_lea.sflag [#allocation4], %s1442
        %s1444 = sand.u32 %s161, 1
        %s1445 = smul.addr %s1444, 512
        %s1446 = scalar_lea.vmem [#allocation3], %s1445
        // Predicated region
        $region49: #{_lambda_.7} parent=39 // pred_check
          %p1447 = pneg %p171
        $region50: #{_lambda_.7} parent=39 // pred_check_branch
          %1449 = sbr.rel (%p1447) target = $region52
        $region51: #{_lambda_.7} parent=39 // pred_region
          %s1450 = smul.u32 32, %s23
          %1452 = vsyncadd %s1443, 0
          %s1453 = smul.addr %s1450, 2
          %s1454 = smul.addr %s1453, 8
          %s1455 = scalar_lea.hbm %s5, %s1454
          %s1456 = sshll.u32 %s1446, 4
          %s1457 = int_to_ptr.vmem [resolvable:$true] %s1456
          %s1458 = sshll.u32 %s1455, 4
          %s1459 = int_to_ptr.hbm [resolvable:$true] %s1458
          %1464 = dma.vmem_to_hbm [thread:$0]  %s1457, 8192, %s1459, %s1443, 256, 256, 16
        $region52: #{_lambda_.7} parent=39 // pred_fallthru
          _
      $region40: #{_lambda_.7} parent=5 // pred_fallthru
        _
      %p1465 = scmp.le.s32.totalorder 2, %s14
      // Predicated region
      $region53: #{_lambda_.7} parent=5 // pred_check
        %p1466 = pneg %p1465
      $region54: #{_lambda_.7} parent=5 // pred_check_branch
        %1468 = sbr.rel (%p1466) target = $region56
      $region55: #{_lambda_.7} parent=5 // pred_region
        %s1469 = ssub.s32 %s14, 2
        // Predicated region
        $region57: #{_lambda_.7} parent=55 // pred_check
          %p1470 = pneg %p177
        $region58: #{_lambda_.7} parent=55 // pred_check_branch
          %1472 = sbr.rel (%p1470) target = $region60
        $region59: #{_lambda_.7} parent=55 // pred_region
          %s1473 = sand.u32 %s162, 1
          %s1474 = scalar_lea.sflag [#allocation4], %s1473
          %s1475 = sand.u32 %s162, 1
          %s1476 = smul.addr %s1475, 512
          %s1477 = scalar_lea.vmem [#allocation3], %s1476
          %1479 = dma.done %s1474, 8192
        $region60: #{_lambda_.7} parent=55 // pred_fallthru
          _
      $region56: #{_lambda_.7} parent=5 // pred_fallthru
        _
    $region6: #{_lambda_.7} parent=1 // loop_footer
      %s18 = sadd.s32 1, %s14
    $region7: #{_lambda_.7} parent=1 // loop_footer_branch
      %13 = sbr.rel target = $region3
    $region8: #{_lambda_.7} parent=1 // loop_exit
      _
    %1480 = vsyncpa [#allocation4], 1
    %s1481 = scalar_lea.sflag [#allocation4], 1
    %1482 = vsyncpa %s1481, 1

</llo_original>
